<compile_context>
chip_gen: v5e
topology: v5e:2x2
jax: 0.10.0
libtpu: 0.0.40
codegen_flags: <defaults>
</compile_context>

<pallas_src>
import functools

import numpy as np
import jax
import jax.numpy as jnp
from jax.experimental import pallas as pl
from jax.experimental.pallas import tpu as pltpu


def _round_up(x, m):
    return (x + m - 1) // m * m


# ------------------------- host-side weight preparation ----------------------- #

def _build_row_conv_matrix(w_oihw, wp_in, left_pad, out_xs, k_pad=None):
    """Row-block Toeplitz operator for a 3x3 SAME conv (stride 1).

    Maps the flattened slab of 3 consecutive zero-padded input rows
    (K = 3*wp_in*cin, column layout (ky, xp, cin)) to the conv outputs of one
    output row at the requested x positions (N = len(out_xs)*cout, layout
    (n, cout)).  `left_pad` is the number of zero columns on the left of the
    padded row layout.
    """
    w = np.asarray(w_oihw, dtype=np.float32)          # (cout, cin, 3, 3)
    cout, cin = w.shape[0], w.shape[1]
    K = 3 * wp_in * cin
    N = len(out_xs) * cout
    T = np.zeros((K, N), np.float32)
    for n, x in enumerate(out_xs):
        for ky in range(3):
            for kx in range(3):
                xp = x + kx - 1 + left_pad            # column in the padded row
                if 0 <= xp < wp_in:
                    r0 = (ky * wp_in + xp) * cin
                    T[r0:r0 + cin, n * cout:(n + 1) * cout] = w[:, :, ky, kx].T
    if k_pad is not None and k_pad > K:
        T = np.concatenate([T, np.zeros((k_pad - K, N), np.float32)], axis=0)
    return jnp.asarray(T, dtype=jnp.bfloat16)


def make_config(channels, height, width, output_size, batch_tile=8):
    """Static shape / layout configuration (mirrors Method_CNN's size logic)."""
    H1, W1 = height // 2, width // 2
    pool2 = (H1 >= 4 and W1 >= 4)
    H2, W2 = (H1 // 2, W1 // 2) if pool2 else (H1, W1)
    Wp = width + 2                               # padded input row width
    K1 = 3 * Wp * channels
    K1p = _round_up(K1, 128)                     # zero-pad K1 for aligned MXU shapes
    L1 = 4                                       # left zero columns after layer 1 (4*32 = 128 lanes)
    Wp1 = _round_up(W1 + L1 + 1, 4)              # padded row width after layer 1 (lane mult of 128)
    return dict(C=channels, H=height, W=width, TB=batch_tile,
                H1=H1, W1=W1, H2=H2, W2=W2, pool2=pool2,
                Wp=Wp, K1=K1, K1p=K1p, L1=L1, Wp1=Wp1,
                O1=32, O2=64, FCH=128,
                NC=output_size, NCp=_round_up(output_size, 128))


def init_torch_params(key, channels, height, width, output_size):
    """Random parameters in the PyTorch layouts used by Method_CNN."""
    h1, w1 = height // 2, width // 2
    h_out, w_out = (h1 // 2, w1 // 2) if (h1 >= 4 and w1 >= 4) else (h1, w1)
    fc_in = 64 * h_out * w_out
    ks = jax.random.split(key, 8)
    return {
        "w1": 0.1 * jax.random.normal(ks[0], (32, channels, 3, 3), jnp.float32),
        "b1": 0.01 * jax.random.normal(ks[1], (32,), jnp.float32),
        "w2": 0.05 * jax.random.normal(ks[2], (64, 32, 3, 3), jnp.float32),
        "b2": 0.01 * jax.random.normal(ks[3], (64,), jnp.float32),
        "wfc1": 0.05 * jax.random.normal(ks[4], (128, fc_in), jnp.float32),
        "bfc1": 0.01 * jax.random.normal(ks[5], (128,), jnp.float32),
        "wfc2": 0.05 * jax.random.normal(ks[6], (output_size, 128), jnp.float32),
        "bfc2": 0.01 * jax.random.normal(ks[7], (output_size,), jnp.float32),
    }


def prepare_kernel_params(tp, cfg):
    """One-time weight re-layouts for the fused Pallas kernel."""
    H2, W1, W2 = cfg["H2"], cfg["W1"], cfg["W2"]
    O2, FCH, NC, NCp = cfg["O2"], cfg["FCH"], cfg["NC"], cfg["NCp"]

    # layer 1: pooled output x order = (all even x, then all odd x)
    xs1 = [2 * j for j in range(W1)] + [2 * j + 1 for j in range(W1)]
    t1 = _build_row_conv_matrix(tp["w1"], cfg["Wp"], 1, xs1, k_pad=cfg["K1p"])
    b1t = jnp.asarray(np.tile(np.asarray(tp["b1"], np.float32), W1)).reshape(1, -1)

    # layer 2 (pooled or full resolution, matching Method_CNN's nn.Identity branch)
    if cfg["pool2"]:
        xs2 = [2 * j for j in range(W2)] + [2 * j + 1 for j in range(W2)]
    else:
        xs2 = list(range(W1))
    t2 = _build_row_conv_matrix(tp["w2"], cfg["Wp1"], cfg["L1"], xs2)
    b2t = jnp.asarray(np.tile(np.asarray(tp["b2"], np.float32), W2)).reshape(1, -1)

    # fc1: fold nn.Flatten's NCHW ordering into the (K, 128) weight; the kernel
    # produces features ordered (row, col, channel).
    wfc1 = np.asarray(tp["wfc1"], np.float32).reshape(FCH, O2, H2, W2)
    wfc1 = np.transpose(wfc1, (2, 3, 1, 0)).reshape(H2 * W2 * O2, FCH)
    bfc1 = np.asarray(tp["bfc1"], np.float32).reshape(1, FCH)

    # fc2: transpose and pad the class dim to 128 lanes (sliced after the call)
    wfc2 = np.pad(np.asarray(tp["wfc2"], np.float32).T, ((0, 0), (0, NCp - NC)))
    bfc2 = np.pad(np.asarray(tp["bfc2"], np.float32), (0, NCp - NC)).reshape(1, -1)

    return {
        "t1": t1, "b1t": b1t,
        "t2": t2, "b2t": b2t,
        "wfc1": jnp.asarray(wfc1, jnp.bfloat16), "bfc1": jnp.asarray(bfc1),
        "wfc2": jnp.asarray(wfc2, jnp.bfloat16), "bfc2": jnp.asarray(bfc2),
    }


# ------------------------------ host input packing ---------------------------- #

def _prep_input_slabs(x_nchw, cfg):
    """Repack the raw input into per-output-row conv slabs, grouped by row parity.

    Result shape: (num_tiles, 2, H1*TB, K1p) with rows ordered (pooled_row, image)
    so pooling over rows is an elementwise max of the two parity planes.
    """
    B = x_nchw.shape[0]
    H, W, C = cfg["H"], cfg["W"], cfg["C"]
    H1, TB, Wp, K1, K1p = cfg["H1"], cfg["TB"], cfg["Wp"], cfg["K1"], cfg["K1p"]

    x = jnp.transpose(x_nchw, (0, 2, 3, 1)).astype(jnp.bfloat16)          # NHWC
    xp = jnp.pad(x, ((0, 0), (1, 1), (1, 1), (0, 0)))                     # (B, H+2, W+2, C)
    xp = xp.reshape(B, H + 2, Wp * C)
    # slab for conv output row y = padded rows y..y+2 flattened as (ky, xp, c)
    rows3 = jnp.concatenate([xp[:, 0:H, :], xp[:, 1:H + 1, :], xp[:, 2:H + 2, :]], axis=-1)
    rows3 = rows3[:, :2 * H1, :]                                          # MaxPool2d floor semantics
    rows3 = jnp.pad(rows3, ((0, 0), (0, 0), (0, K1p - K1)))               # align K to 128
    Bp = _round_up(B, TB)
    rows3 = jnp.pad(rows3, ((0, Bp - B), (0, 0), (0, 0)))
    nT = Bp // TB
    r = rows3.reshape(nT, TB, H1, 2, K1p)
    r = jnp.transpose(r, (0, 3, 2, 1, 4))                                 # (tile, parity, i, b, K)
    return r.reshape(nT, 2, H1 * TB, K1p), B, Bp, nT


# ------------------------------ fused network kernel -------------------------- #

def _fused_cnn_kernel(x_ref, t1_ref, b1_ref, t2_ref, b2_ref, w3_ref, b3_ref,
                      w4_ref, b4_ref, o_ref, a1pad_scr, lhs2_scr, fc_scr, *, cfg):
    TB, H1, W1, O1 = cfg["TB"], cfg["H1"], cfg["W1"], cfg["O1"]
    H2, W2, O2 = cfg["H2"], cfg["W2"], cfg["O2"]
    L1, Wp1, pool2 = cfg["L1"], cfg["Wp1"], cfg["pool2"]

    # ---- layer 1: conv3x3(SAME) + bias + ReLU + 2x2/2 maxpool ------------------
    # Two Toeplitz matmuls (even / odd conv rows); pooling = max of row-parity
    # planes and of the two vreg-aligned column-parity halves.
    t1 = t1_ref[...]
    y_even = jnp.dot(x_ref[0, 0], t1, preferred_element_type=jnp.float32)
    y_odd = jnp.dot(x_ref[0, 1], t1, preferred_element_type=jnp.float32)
    m = jnp.maximum(y_even, y_odd)                      # pool over row parity
    half1 = W1 * O1
    m = jnp.maximum(m[:, :half1], m[:, half1:])         # pool over column parity
    a1 = jnp.maximum(m + b1_ref[...], 0.0).astype(jnp.bfloat16)   # (H1*TB, W1*O1)
    # (layer-1 dropout is identity in eval mode)

    # ---- scatter pooled rows into a zero-padded per-row layout for layer 2 -----
    a1pad_scr[...] = jnp.zeros_like(a1pad_scr)
    for i in range(H1):
        a1pad_scr[1 + i, :, L1 * O1:(L1 + W1) * O1] = a1[i * TB:(i + 1) * TB, :]

    # ---- layer 2: conv3x3(SAME) + bias + ReLU (+ optional 2x2/2 maxpool) -------
    row_len = Wp1 * O1
    npar = 2 if pool2 else 1
    for p in range(npar):
        for i2 in range(H2):
            y2 = 2 * i2 + p if pool2 else i2
            for ky in range(3):
                lhs2_scr[p, i2 * TB:(i2 + 1) * TB, ky * row_len:(ky + 1) * row_len] = \
                    a1pad_scr[y2 + ky, :, :]
    t2 = t2_ref[...]
    z = jnp.dot(lhs2_scr[0], t2, preferred_element_type=jnp.float32)
    if pool2:
        z = jnp.maximum(z, jnp.dot(lhs2_scr[1], t2, preferred_element_type=jnp.float32))
        half2 = W2 * O2
        z = jnp.maximum(z[:, :half2], z[:, half2:])
    a2 = jnp.maximum(z + b2_ref[...], 0.0).astype(jnp.bfloat16)     # (H2*TB, W2*O2)

    # ---- flatten per image (feature order (row, col, chan); folded into wfc1) --
    fw = W2 * O2
    for i2 in range(H2):
        fc_scr[:, i2 * fw:(i2 + 1) * fw] = a2[i2 * TB:(i2 + 1) * TB, :]

    # ---- fc1 + ReLU + fc2 (dropouts are identity in eval mode) -----------------
    h = jnp.dot(fc_scr[...], w3_ref[...], preferred_element_type=jnp.float32)
    h = jnp.maximum(h + b3_ref[...], 0.0).astype(jnp.bfloat16)
    o = jnp.dot(h, w4_ref[...], preferred_element_type=jnp.float32)
    o_ref[...] = o + b4_ref[...]


# ------------------------------------ forward --------------------------------- #

def forward(kp, x_nchw, *, cfg):
    """Method_CNN.forward (eval mode) as a single fused Pallas TPU kernel."""
    xslab, B, Bp, nT = _prep_input_slabs(x_nchw, cfg)
    TB, H1, W1, O1 = cfg["TB"], cfg["H1"], cfg["W1"], cfg["O1"]
    H2, W2, O2 = cfg["H2"], cfg["W2"], cfg["O2"]
    K1p, Wp1, NCp, FCH = cfg["K1p"], cfg["Wp1"], cfg["NCp"], cfg["FCH"]
    pool2 = cfg["pool2"]

    M1 = H1 * TB
    n1 = 2 * W1 * O1
    K2 = 3 * Wp1 * O1
    n2 = (2 if pool2 else 1) * W2 * O2
    Kfc = H2 * W2 * O2

    flops = 2 * nT * (2 * M1 * K1p * n1
                      + (2 if pool2 else 1) * H2 * TB * K2 * n2
                      + TB * Kfc * FCH + TB * FCH * NCp)
    bytes_acc = int((xslab.size + kp["t1"].size + kp["t2"].size
                     + kp["wfc1"].size + kp["wfc2"].size) * 2 + Bp * NCp * 4)

    kern = functools.partial(_fused_cnn_kernel, cfg=cfg)
    out = pl.pallas_call(
        kern,
        grid=(nT,),
        in_specs=[
            pl.BlockSpec((1, 2, M1, K1p), lambda m: (m, 0, 0, 0)),   # input slabs
            pl.BlockSpec((K1p, n1), lambda m: (0, 0)),               # conv1 Toeplitz
            pl.BlockSpec((1, W1 * O1), lambda m: (0, 0)),            # conv1 bias (tiled)
            pl.BlockSpec((K2, n2), lambda m: (0, 0)),                # conv2 Toeplitz
            pl.BlockSpec((1, W2 * O2), lambda m: (0, 0)),            # conv2 bias (tiled)
            pl.BlockSpec((Kfc, FCH), lambda m: (0, 0)),              # fc1 weight
            pl.BlockSpec((1, FCH), lambda m: (0, 0)),                # fc1 bias
            pl.BlockSpec((FCH, NCp), lambda m: (0, 0)),              # fc2 weight (padded)
            pl.BlockSpec((1, NCp), lambda m: (0, 0)),                # fc2 bias (padded)
        ],
        out_specs=pl.BlockSpec((TB, NCp), lambda m: (m, 0)),
        out_shape=jax.ShapeDtypeStruct((Bp, NCp), jnp.float32),
        scratch_shapes=[
            pltpu.VMEM((H1 + 2, TB, Wp1 * O1), jnp.bfloat16),              # padded layer-1 act
            pltpu.VMEM((2 if pool2 else 1, H2 * TB, K2), jnp.bfloat16),    # layer-2 LHS slabs
            pltpu.VMEM((TB, Kfc), jnp.bfloat16),                           # per-image features
        ],
        compiler_params=pltpu.CompilerParams(
            dimension_semantics=("parallel",),
            vmem_limit_bytes=32 * 1024 * 1024),
        cost_estimate=pl.CostEstimate(flops=flops, transcendentals=0,
                                      bytes_accessed=bytes_acc),
    )(xslab, kp["t1"], kp["b1t"], kp["t2"], kp["b2t"],
      kp["wfc1"], kp["bfc1"], kp["wfc2"], kp["bfc2"])
    return out[:B, :cfg["NC"]]


# ----------------------------- pure-JAX reference ------------------------------ #

def reference_forward(tp, x_nchw):
    """XLA reference with the same bf16-input / f32-accumulation policy."""
    def conv(x_nhwc, w_oihw, b):
        y = jax.lax.conv_general_dilated(
            x_nhwc.astype(jnp.bfloat16), w_oihw.astype(jnp.bfloat16),
            window_strides=(1, 1), padding="SAME",
            dimension_numbers=("NHWC", "OIHW", "NHWC"),
            preferred_element_type=jnp.float32)
        return jax.nn.relu(y + b[None, None, None, :])

    def pool(x):
        return jax.lax.reduce_window(x, -jnp.inf, jax.lax.max,
                                     (1, 2, 2, 1), (1, 2, 2, 1), "VALID")

    x = jnp.transpose(x_nchw, (0, 2, 3, 1))
    a1 = pool(conv(x, tp["w1"], tp["b1"])).astype(jnp.bfloat16)
    a2 = conv(a1, tp["w2"], tp["b2"])
    if a1.shape[1] >= 4 and a1.shape[2] >= 4:
        a2 = pool(a2)
    a2 = a2.astype(jnp.bfloat16)
    flat = jnp.transpose(a2, (0, 3, 1, 2)).reshape(a2.shape[0], -1)   # NCHW flatten
    h = jnp.dot(flat, tp["wfc1"].T.astype(jnp.bfloat16),
                preferred_element_type=jnp.float32) + tp["bfc1"]
    h = jax.nn.relu(h).astype(jnp.bfloat16)
    return jnp.dot(h, tp["wfc2"].T.astype(jnp.bfloat16),
                   preferred_element_type=jnp.float32) + tp["bfc2"]


# ------------------------------------- main ------------------------------------ #

if __name__ == "__main__":
    # Small CIFAR-like config: batch=16, 3 channels, 16x16 spatial, 10 classes.
    B, C, H, W = 16, 3, 16, 16
    NUM_CLASSES = 10

    key = jax.random.PRNGKey(0)
    k_params, k_x = jax.random.split(key)
    torch_params = init_torch_params(k_params, C, H, W, NUM_CLASSES)
    cfg = make_config(C, H, W, NUM_CLASSES, batch_tile=8)     # grid = (2,): even for v7x megacore
    kparams = prepare_kernel_params(torch_params, cfg)
    x = jax.random.uniform(k_x, (B, C, H, W), jnp.float32)    # already in [0, 1]

    fwd = jax.jit(functools.partial(forward, cfg=cfg))
    logits = fwd(kparams, x)
    jax.block_until_ready(logits)

    ref = reference_forward(torch_params, x)
    np.testing.assert_allclose(np.asarray(logits), np.asarray(ref),
                               rtol=2e-2, atol=2e-2)
    assert logits.shape == (B, NUM_CLASSES)

    print("KERNEL_OK")
</pallas_src>

<mosaic_0001>
module attributes {stable_mosaic.version = 11 : i64} {
  func.func @_fused_cnn_kernel(%arg0: i32, %arg1: memref<1x2x64x256xbf16, #tpu.memory_space<vmem>>, %arg2: memref<256x512xbf16, #tpu.memory_space<vmem>>, %arg3: memref<1x256xf32, #tpu.memory_space<vmem>>, %arg4: memref<1536x512xbf16, #tpu.memory_space<vmem>>, %arg5: memref<1x256xf32, #tpu.memory_space<vmem>>, %arg6: memref<1024x128xbf16, #tpu.memory_space<vmem>>, %arg7: memref<1x128xf32, #tpu.memory_space<vmem>>, %arg8: memref<128x128xbf16, #tpu.memory_space<vmem>>, %arg9: memref<1x128xf32, #tpu.memory_space<vmem>>, %arg10: memref<8x128xf32, #tpu.memory_space<vmem>>, %arg11: memref<10x8x512xbf16, #tpu.memory_space<vmem>>, %arg12: memref<2x32x1536xbf16, #tpu.memory_space<vmem>>, %arg13: memref<8x1024xbf16, #tpu.memory_space<vmem>>) attributes {dimension_semantics = [#tpu.dimension_semantics<parallel>], iteration_bounds = array<i64: 2>, scalar_prefetch = 0 : i64, scratch_operands = 3 : i64, tpu.core_type = #tpu.core_type<tc>, window_params = [{transform_indices = @transform_0, window_bounds = array<i64: 1, 2, 64, 256>}, {pipeline_mode = #tpu.pipeline_mode<synchronous>, transform_indices = @transform_1, window_bounds = array<i64: 256, 512>}, {pipeline_mode = #tpu.pipeline_mode<synchronous>, transform_indices = @transform_2, window_bounds = array<i64: 1, 256>}, {pipeline_mode = #tpu.pipeline_mode<synchronous>, transform_indices = @transform_3, window_bounds = array<i64: 1536, 512>}, {pipeline_mode = #tpu.pipeline_mode<synchronous>, transform_indices = @transform_4, window_bounds = array<i64: 1, 256>}, {pipeline_mode = #tpu.pipeline_mode<synchronous>, transform_indices = @transform_5, window_bounds = array<i64: 1024, 128>}, {pipeline_mode = #tpu.pipeline_mode<synchronous>, transform_indices = @transform_6, window_bounds = array<i64: 1, 128>}, {pipeline_mode = #tpu.pipeline_mode<synchronous>, transform_indices = @transform_7, window_bounds = array<i64: 128, 128>}, {pipeline_mode = #tpu.pipeline_mode<synchronous>, transform_indices = @transform_8, window_bounds = array<i64: 1, 128>}, {transform_indices = @transform_9, window_bounds = array<i64: 8, 128>}]} {
    %c0 = arith.constant 0 : index
    %c0_0 = arith.constant 0 : index
    %0 = vector.load %arg2[%c0, %c0_0] : memref<256x512xbf16, #tpu.memory_space<vmem>>, vector<256x512xbf16>
    %c0_1 = arith.constant 0 : index
    %c0_2 = arith.constant 0 : index
    %c0_3 = arith.constant 0 : index
    %c0_4 = arith.constant 0 : index
    %1 = vector.load %arg1[%c0_1, %c0_2, %c0_3, %c0_4] : memref<1x2x64x256xbf16, #tpu.memory_space<vmem>>, vector<1x1x64x256xbf16>
    %2 = vector.shape_cast %1 : vector<1x1x64x256xbf16> to vector<64x256xbf16>
    %cst = arith.constant dense<0.000000e+00> : vector<64x512xf32>
    %3 = tpu.matmul %2, %0, %cst {dimension_numbers = #tpu.dot_dimension_numbers<[1], [0], [0], [1], [0, 0, 1, 1], [], []>} : vector<64x256xbf16>, vector<256x512xbf16>, vector<64x512xf32> -> vector<64x512xf32>
    %c0_5 = arith.constant 0 : index
    %c1 = arith.constant 1 : index
    %c0_6 = arith.constant 0 : index
    %c0_7 = arith.constant 0 : index
    %4 = vector.load %arg1[%c0_5, %c1, %c0_6, %c0_7] : memref<1x2x64x256xbf16, #tpu.memory_space<vmem>>, vector<1x1x64x256xbf16>
    %5 = vector.shape_cast %4 : vector<1x1x64x256xbf16> to vector<64x256xbf16>
    %cst_8 = arith.constant dense<0.000000e+00> : vector<64x512xf32>
    %6 = tpu.matmul %5, %0, %cst_8 {dimension_numbers = #tpu.dot_dimension_numbers<[1], [0], [0], [1], [0, 0, 1, 1], [], []>} : vector<64x256xbf16>, vector<256x512xbf16>, vector<64x512xf32> -> vector<64x512xf32>
    %7 = arith.maximumf %3, %6 : vector<64x512xf32>
    %8 = vector.extract_strided_slice %7 {offsets = [0, 0], sizes = [64, 256], strides = [1, 1]} : vector<64x512xf32> to vector<64x256xf32>
    %9 = vector.extract_strided_slice %7 {offsets = [0, 256], sizes = [64, 256], strides = [1, 1]} : vector<64x512xf32> to vector<64x256xf32>
    %10 = arith.maximumf %8, %9 : vector<64x256xf32>
    %c0_9 = arith.constant 0 : index
    %c0_10 = arith.constant 0 : index
    %11 = vector.load %arg3[%c0_9, %c0_10] : memref<1x256xf32, #tpu.memory_space<vmem>>, vector<1x256xf32>
    %12 = vector.broadcast %11 : vector<1x256xf32> to vector<64x256xf32>
    %13 = arith.addf %10, %12 : vector<64x256xf32>
    %cst_11 = arith.constant 0.000000e+00 : f32
    %14 = vector.broadcast %cst_11 : f32 to vector<64x256xf32>
    %15 = arith.maximumf %13, %14 : vector<64x256xf32>
    %16 = arith.truncf %15 : vector<64x256xf32> to vector<64x256xbf16>
    %cst_12 = arith.constant 0.000000e+00 : bf16
    %17 = vector.broadcast %cst_12 : bf16 to vector<10x8x512xbf16>
    %c0_13 = arith.constant 0 : index
    %c0_14 = arith.constant 0 : index
    %c0_15 = arith.constant 0 : index
    %18 = vector.load %arg11[%c0_13, %c0_14, %c0_15] : memref<10x8x512xbf16, #tpu.memory_space<vmem>>, vector<10x8x512xbf16>
    tpu.vector_store %arg11[%c0_13, %c0_14, %c0_15], %17 {strides = array<i32>} : memref<10x8x512xbf16, #tpu.memory_space<vmem>>, vector<10x8x512xbf16>,
    %19 = vector.extract_strided_slice %16 {offsets = [0, 0], sizes = [8, 256], strides = [1, 1]} : vector<64x256xbf16> to vector<8x256xbf16>
    %c1_16 = arith.constant 1 : index
    %c0_17 = arith.constant 0 : index
    %c128 = arith.constant 128 : index
    %20 = vector.load %arg11[%c1_16, %c0_17, %c128] : memref<10x8x512xbf16, #tpu.memory_space<vmem>>, vector<1x8x256xbf16>
    %21 = vector.shape_cast %20 : vector<1x8x256xbf16> to vector<8x256xbf16>
    %22 = vector.shape_cast %19 : vector<8x256xbf16> to vector<1x8x256xbf16>
    tpu.vector_store %arg11[%c1_16, %c0_17, %c128], %22 {strides = array<i32>} : memref<10x8x512xbf16, #tpu.memory_space<vmem>>, vector<1x8x256xbf16>,
    %23 = vector.extract_strided_slice %16 {offsets = [8, 0], sizes = [8, 256], strides = [1, 1]} : vector<64x256xbf16> to vector<8x256xbf16>
    %c2 = arith.constant 2 : index
    %c0_18 = arith.constant 0 : index
    %c128_19 = arith.constant 128 : index
    %24 = vector.load %arg11[%c2, %c0_18, %c128_19] : memref<10x8x512xbf16, #tpu.memory_space<vmem>>, vector<1x8x256xbf16>
    %25 = vector.shape_cast %24 : vector<1x8x256xbf16> to vector<8x256xbf16>
    %26 = vector.shape_cast %23 : vector<8x256xbf16> to vector<1x8x256xbf16>
    tpu.vector_store %arg11[%c2, %c0_18, %c128_19], %26 {strides = array<i32>} : memref<10x8x512xbf16, #tpu.memory_space<vmem>>, vector<1x8x256xbf16>,
    %27 = vector.extract_strided_slice %16 {offsets = [16, 0], sizes = [8, 256], strides = [1, 1]} : vector<64x256xbf16> to vector<8x256xbf16>
    %c3 = arith.constant 3 : index
    %c0_20 = arith.constant 0 : index
    %c128_21 = arith.constant 128 : index
    %28 = vector.load %arg11[%c3, %c0_20, %c128_21] : memref<10x8x512xbf16, #tpu.memory_space<vmem>>, vector<1x8x256xbf16>
    %29 = vector.shape_cast %28 : vector<1x8x256xbf16> to vector<8x256xbf16>
    %30 = vector.shape_cast %27 : vector<8x256xbf16> to vector<1x8x256xbf16>
    tpu.vector_store %arg11[%c3, %c0_20, %c128_21], %30 {strides = array<i32>} : memref<10x8x512xbf16, #tpu.memory_space<vmem>>, vector<1x8x256xbf16>,
    %31 = vector.extract_strided_slice %16 {offsets = [24, 0], sizes = [8, 256], strides = [1, 1]} : vector<64x256xbf16> to vector<8x256xbf16>
    %c4 = arith.constant 4 : index
    %c0_22 = arith.constant 0 : index
    %c128_23 = arith.constant 128 : index
    %32 = vector.load %arg11[%c4, %c0_22, %c128_23] : memref<10x8x512xbf16, #tpu.memory_space<vmem>>, vector<1x8x256xbf16>
    %33 = vector.shape_cast %32 : vector<1x8x256xbf16> to vector<8x256xbf16>
    %34 = vector.shape_cast %31 : vector<8x256xbf16> to vector<1x8x256xbf16>
    tpu.vector_store %arg11[%c4, %c0_22, %c128_23], %34 {strides = array<i32>} : memref<10x8x512xbf16, #tpu.memory_space<vmem>>, vector<1x8x256xbf16>,
    %35 = vector.extract_strided_slice %16 {offsets = [32, 0], sizes = [8, 256], strides = [1, 1]} : vector<64x256xbf16> to vector<8x256xbf16>
    %c5 = arith.constant 5 : index
    %c0_24 = arith.constant 0 : index
    %c128_25 = arith.constant 128 : index
    %36 = vector.load %arg11[%c5, %c0_24, %c128_25] : memref<10x8x512xbf16, #tpu.memory_space<vmem>>, vector<1x8x256xbf16>
    %37 = vector.shape_cast %36 : vector<1x8x256xbf16> to vector<8x256xbf16>
    %38 = vector.shape_cast %35 : vector<8x256xbf16> to vector<1x8x256xbf16>
    tpu.vector_store %arg11[%c5, %c0_24, %c128_25], %38 {strides = array<i32>} : memref<10x8x512xbf16, #tpu.memory_space<vmem>>, vector<1x8x256xbf16>,
    %39 = vector.extract_strided_slice %16 {offsets = [40, 0], sizes = [8, 256], strides = [1, 1]} : vector<64x256xbf16> to vector<8x256xbf16>
    %c6 = arith.constant 6 : index
    %c0_26 = arith.constant 0 : index
    %c128_27 = arith.constant 128 : index
    %40 = vector.load %arg11[%c6, %c0_26, %c128_27] : memref<10x8x512xbf16, #tpu.memory_space<vmem>>, vector<1x8x256xbf16>
    %41 = vector.shape_cast %40 : vector<1x8x256xbf16> to vector<8x256xbf16>
    %42 = vector.shape_cast %39 : vector<8x256xbf16> to vector<1x8x256xbf16>
    tpu.vector_store %arg11[%c6, %c0_26, %c128_27], %42 {strides = array<i32>} : memref<10x8x512xbf16, #tpu.memory_space<vmem>>, vector<1x8x256xbf16>,
    %43 = vector.extract_strided_slice %16 {offsets = [48, 0], sizes = [8, 256], strides = [1, 1]} : vector<64x256xbf16> to vector<8x256xbf16>
    %c7 = arith.constant 7 : index
    %c0_28 = arith.constant 0 : index
    %c128_29 = arith.constant 128 : index
    %44 = vector.load %arg11[%c7, %c0_28, %c128_29] : memref<10x8x512xbf16, #tpu.memory_space<vmem>>, vector<1x8x256xbf16>
    %45 = vector.shape_cast %44 : vector<1x8x256xbf16> to vector<8x256xbf16>
    %46 = vector.shape_cast %43 : vector<8x256xbf16> to vector<1x8x256xbf16>
    tpu.vector_store %arg11[%c7, %c0_28, %c128_29], %46 {strides = array<i32>} : memref<10x8x512xbf16, #tpu.memory_space<vmem>>, vector<1x8x256xbf16>,
    %47 = vector.extract_strided_slice %16 {offsets = [56, 0], sizes = [8, 256], strides = [1, 1]} : vector<64x256xbf16> to vector<8x256xbf16>
    %c8 = arith.constant 8 : index
    %c0_30 = arith.constant 0 : index
    %c128_31 = arith.constant 128 : index
    %48 = vector.load %arg11[%c8, %c0_30, %c128_31] : memref<10x8x512xbf16, #tpu.memory_space<vmem>>, vector<1x8x256xbf16>
    %49 = vector.shape_cast %48 : vector<1x8x256xbf16> to vector<8x256xbf16>
    %50 = vector.shape_cast %47 : vector<8x256xbf16> to vector<1x8x256xbf16>
    tpu.vector_store %arg11[%c8, %c0_30, %c128_31], %50 {strides = array<i32>} : memref<10x8x512xbf16, #tpu.memory_space<vmem>>, vector<1x8x256xbf16>,
    %c0_32 = arith.constant 0 : index
    %c0_33 = arith.constant 0 : index
    %c0_34 = arith.constant 0 : index
    %51 = vector.load %arg11[%c0_32, %c0_33, %c0_34] : memref<10x8x512xbf16, #tpu.memory_space<vmem>>, vector<1x8x512xbf16>
    %52 = vector.shape_cast %51 : vector<1x8x512xbf16> to vector<8x512xbf16>
    %c0_35 = arith.constant 0 : index
    %c0_36 = arith.constant 0 : index
    %c0_37 = arith.constant 0 : index
    %53 = vector.load %arg12[%c0_35, %c0_36, %c0_37] : memref<2x32x1536xbf16, #tpu.memory_space<vmem>>, vector<1x8x512xbf16>
    %54 = vector.shape_cast %53 : vector<1x8x512xbf16> to vector<8x512xbf16>
    %55 = vector.shape_cast %52 : vector<8x512xbf16> to vector<1x8x512xbf16>
    tpu.vector_store %arg12[%c0_35, %c0_36, %c0_37], %55 {strides = array<i32>} : memref<2x32x1536xbf16, #tpu.memory_space<vmem>>, vector<1x8x512xbf16>,
    %c1_38 = arith.constant 1 : index
    %c0_39 = arith.constant 0 : index
    %c0_40 = arith.constant 0 : index
    %56 = vector.load %arg11[%c1_38, %c0_39, %c0_40] : memref<10x8x512xbf16, #tpu.memory_space<vmem>>, vector<1x8x512xbf16>
    %57 = vector.shape_cast %56 : vector<1x8x512xbf16> to vector<8x512xbf16>
    %c0_41 = arith.constant 0 : index
    %c0_42 = arith.constant 0 : index
    %c512 = arith.constant 512 : index
    %58 = vector.load %arg12[%c0_41, %c0_42, %c512] : memref<2x32x1536xbf16, #tpu.memory_space<vmem>>, vector<1x8x512xbf16>
    %59 = vector.shape_cast %58 : vector<1x8x512xbf16> to vector<8x512xbf16>
    %60 = vector.shape_cast %57 : vector<8x512xbf16> to vector<1x8x512xbf16>
    tpu.vector_store %arg12[%c0_41, %c0_42, %c512], %60 {strides = array<i32>} : memref<2x32x1536xbf16, #tpu.memory_space<vmem>>, vector<1x8x512xbf16>,
    %c2_43 = arith.constant 2 : index
    %c0_44 = arith.constant 0 : index
    %c0_45 = arith.constant 0 : index
    %61 = vector.load %arg11[%c2_43, %c0_44, %c0_45] : memref<10x8x512xbf16, #tpu.memory_space<vmem>>, vector<1x8x512xbf16>
    %62 = vector.shape_cast %61 : vector<1x8x512xbf16> to vector<8x512xbf16>
    %c0_46 = arith.constant 0 : index
    %c0_47 = arith.constant 0 : index
    %c1024 = arith.constant 1024 : index
    %63 = vector.load %arg12[%c0_46, %c0_47, %c1024] : memref<2x32x1536xbf16, #tpu.memory_space<vmem>>, vector<1x8x512xbf16>
    %64 = vector.shape_cast %63 : vector<1x8x512xbf16> to vector<8x512xbf16>
    %65 = vector.shape_cast %62 : vector<8x512xbf16> to vector<1x8x512xbf16>
    tpu.vector_store %arg12[%c0_46, %c0_47, %c1024], %65 {strides = array<i32>} : memref<2x32x1536xbf16, #tpu.memory_space<vmem>>, vector<1x8x512xbf16>,
    %c2_48 = arith.constant 2 : index
    %c0_49 = arith.constant 0 : index
    %c0_50 = arith.constant 0 : index
    %66 = vector.load %arg11[%c2_48, %c0_49, %c0_50] : memref<10x8x512xbf16, #tpu.memory_space<vmem>>, vector<1x8x512xbf16>
    %67 = vector.shape_cast %66 : vector<1x8x512xbf16> to vector<8x512xbf16>
    %c0_51 = arith.constant 0 : index
    %c8_52 = arith.constant 8 : index
    %c0_53 = arith.constant 0 : index
    %68 = vector.load %arg12[%c0_51, %c8_52, %c0_53] : memref<2x32x1536xbf16, #tpu.memory_space<vmem>>, vector<1x8x512xbf16>
    %69 = vector.shape_cast %68 : vector<1x8x512xbf16> to vector<8x512xbf16>
    %70 = vector.shape_cast %67 : vector<8x512xbf16> to vector<1x8x512xbf16>
    tpu.vector_store %arg12[%c0_51, %c8_52, %c0_53], %70 {strides = array<i32>} : memref<2x32x1536xbf16, #tpu.memory_space<vmem>>, vector<1x8x512xbf16>,
    %c3_54 = arith.constant 3 : index
    %c0_55 = arith.constant 0 : index
    %c0_56 = arith.constant 0 : index
    %71 = vector.load %arg11[%c3_54, %c0_55, %c0_56] : memref<10x8x512xbf16, #tpu.memory_space<vmem>>, vector<1x8x512xbf16>
    %72 = vector.shape_cast %71 : vector<1x8x512xbf16> to vector<8x512xbf16>
    %c0_57 = arith.constant 0 : index
    %c8_58 = arith.constant 8 : index
    %c512_59 = arith.constant 512 : index
    %73 = vector.load %arg12[%c0_57, %c8_58, %c512_59] : memref<2x32x1536xbf16, #tpu.memory_space<vmem>>, vector<1x8x512xbf16>
    %74 = vector.shape_cast %73 : vector<1x8x512xbf16> to vector<8x512xbf16>
    %75 = vector.shape_cast %72 : vector<8x512xbf16> to vector<1x8x512xbf16>
    tpu.vector_store %arg12[%c0_57, %c8_58, %c512_59], %75 {strides = array<i32>} : memref<2x32x1536xbf16, #tpu.memory_space<vmem>>, vector<1x8x512xbf16>,
    %c4_60 = arith.constant 4 : index
    %c0_61 = arith.constant 0 : index
    %c0_62 = arith.constant 0 : index
    %76 = vector.load %arg11[%c4_60, %c0_61, %c0_62] : memref<10x8x512xbf16, #tpu.memory_space<vmem>>, vector<1x8x512xbf16>
    %77 = vector.shape_cast %76 : vector<1x8x512xbf16> to vector<8x512xbf16>
    %c0_63 = arith.constant 0 : index
    %c8_64 = arith.constant 8 : index
    %c1024_65 = arith.constant 1024 : index
    %78 = vector.load %arg12[%c0_63, %c8_64, %c1024_65] : memref<2x32x1536xbf16, #tpu.memory_space<vmem>>, vector<1x8x512xbf16>
    %79 = vector.shape_cast %78 : vector<1x8x512xbf16> to vector<8x512xbf16>
    %80 = vector.shape_cast %77 : vector<8x512xbf16> to vector<1x8x512xbf16>
    tpu.vector_store %arg12[%c0_63, %c8_64, %c1024_65], %80 {strides = array<i32>} : memref<2x32x1536xbf16, #tpu.memory_space<vmem>>, vector<1x8x512xbf16>,
    %c4_66 = arith.constant 4 : index
    %c0_67 = arith.constant 0 : index
    %c0_68 = arith.constant 0 : index
    %81 = vector.load %arg11[%c4_66, %c0_67, %c0_68] : memref<10x8x512xbf16, #tpu.memory_space<vmem>>, vector<1x8x512xbf16>
    %82 = vector.shape_cast %81 : vector<1x8x512xbf16> to vector<8x512xbf16>
    %c0_69 = arith.constant 0 : index
    %c16 = arith.constant 16 : index
    %c0_70 = arith.constant 0 : index
    %83 = vector.load %arg12[%c0_69, %c16, %c0_70] : memref<2x32x1536xbf16, #tpu.memory_space<vmem>>, vector<1x8x512xbf16>
    %84 = vector.shape_cast %83 : vector<1x8x512xbf16> to vector<8x512xbf16>
    %85 = vector.shape_cast %82 : vector<8x512xbf16> to vector<1x8x512xbf16>
    tpu.vector_store %arg12[%c0_69, %c16, %c0_70], %85 {strides = array<i32>} : memref<2x32x1536xbf16, #tpu.memory_space<vmem>>, vector<1x8x512xbf16>,
    %c5_71 = arith.constant 5 : index
    %c0_72 = arith.constant 0 : index
    %c0_73 = arith.constant 0 : index
    %86 = vector.load %arg11[%c5_71, %c0_72, %c0_73] : memref<10x8x512xbf16, #tpu.memory_space<vmem>>, vector<1x8x512xbf16>
    %87 = vector.shape_cast %86 : vector<1x8x512xbf16> to vector<8x512xbf16>
    %c0_74 = arith.constant 0 : index
    %c16_75 = arith.constant 16 : index
    %c512_76 = arith.constant 512 : index
    %88 = vector.load %arg12[%c0_74, %c16_75, %c512_76] : memref<2x32x1536xbf16, #tpu.memory_space<vmem>>, vector<1x8x512xbf16>
    %89 = vector.shape_cast %88 : vector<1x8x512xbf16> to vector<8x512xbf16>
    %90 = vector.shape_cast %87 : vector<8x512xbf16> to vector<1x8x512xbf16>
    tpu.vector_store %arg12[%c0_74, %c16_75, %c512_76], %90 {strides = array<i32>} : memref<2x32x1536xbf16, #tpu.memory_space<vmem>>, vector<1x8x512xbf16>,
    %c6_77 = arith.constant 6 : index
    %c0_78 = arith.constant 0 : index
    %c0_79 = arith.constant 0 : index
    %91 = vector.load %arg11[%c6_77, %c0_78, %c0_79] : memref<10x8x512xbf16, #tpu.memory_space<vmem>>, vector<1x8x512xbf16>
    %92 = vector.shape_cast %91 : vector<1x8x512xbf16> to vector<8x512xbf16>
    %c0_80 = arith.constant 0 : index
    %c16_81 = arith.constant 16 : index
    %c1024_82 = arith.constant 1024 : index
    %93 = vector.load %arg12[%c0_80, %c16_81, %c1024_82] : memref<2x32x1536xbf16, #tpu.memory_space<vmem>>, vector<1x8x512xbf16>
    %94 = vector.shape_cast %93 : vector<1x8x512xbf16> to vector<8x512xbf16>
    %95 = vector.shape_cast %92 : vector<8x512xbf16> to vector<1x8x512xbf16>
    tpu.vector_store %arg12[%c0_80, %c16_81, %c1024_82], %95 {strides = array<i32>} : memref<2x32x1536xbf16, #tpu.memory_space<vmem>>, vector<1x8x512xbf16>,
    %c6_83 = arith.constant 6 : index
    %c0_84 = arith.constant 0 : index
    %c0_85 = arith.constant 0 : index
    %96 = vector.load %arg11[%c6_83, %c0_84, %c0_85] : memref<10x8x512xbf16, #tpu.memory_space<vmem>>, vector<1x8x512xbf16>
    %97 = vector.shape_cast %96 : vector<1x8x512xbf16> to vector<8x512xbf16>
    %c0_86 = arith.constant 0 : index
    %c24 = arith.constant 24 : index
    %c0_87 = arith.constant 0 : index
    %98 = vector.load %arg12[%c0_86, %c24, %c0_87] : memref<2x32x1536xbf16, #tpu.memory_space<vmem>>, vector<1x8x512xbf16>
    %99 = vector.shape_cast %98 : vector<1x8x512xbf16> to vector<8x512xbf16>
    %100 = vector.shape_cast %97 : vector<8x512xbf16> to vector<1x8x512xbf16>
    tpu.vector_store %arg12[%c0_86, %c24, %c0_87], %100 {strides = array<i32>} : memref<2x32x1536xbf16, #tpu.memory_space<vmem>>, vector<1x8x512xbf16>,
    %c7_88 = arith.constant 7 : index
    %c0_89 = arith.constant 0 : index
    %c0_90 = arith.constant 0 : index
    %101 = vector.load %arg11[%c7_88, %c0_89, %c0_90] : memref<10x8x512xbf16, #tpu.memory_space<vmem>>, vector<1x8x512xbf16>
    %102 = vector.shape_cast %101 : vector<1x8x512xbf16> to vector<8x512xbf16>
    %c0_91 = arith.constant 0 : index
    %c24_92 = arith.constant 24 : index
    %c512_93 = arith.constant 512 : index
    %103 = vector.load %arg12[%c0_91, %c24_92, %c512_93] : memref<2x32x1536xbf16, #tpu.memory_space<vmem>>, vector<1x8x512xbf16>
    %104 = vector.shape_cast %103 : vector<1x8x512xbf16> to vector<8x512xbf16>
    %105 = vector.shape_cast %102 : vector<8x512xbf16> to vector<1x8x512xbf16>
    tpu.vector_store %arg12[%c0_91, %c24_92, %c512_93], %105 {strides = array<i32>} : memref<2x32x1536xbf16, #tpu.memory_space<vmem>>, vector<1x8x512xbf16>,
    %c8_94 = arith.constant 8 : index
    %c0_95 = arith.constant 0 : index
    %c0_96 = arith.constant 0 : index
    %106 = vector.load %arg11[%c8_94, %c0_95, %c0_96] : memref<10x8x512xbf16, #tpu.memory_space<vmem>>, vector<1x8x512xbf16>
    %107 = vector.shape_cast %106 : vector<1x8x512xbf16> to vector<8x512xbf16>
    %c0_97 = arith.constant 0 : index
    %c24_98 = arith.constant 24 : index
    %c1024_99 = arith.constant 1024 : index
    %108 = vector.load %arg12[%c0_97, %c24_98, %c1024_99] : memref<2x32x1536xbf16, #tpu.memory_space<vmem>>, vector<1x8x512xbf16>
    %109 = vector.shape_cast %108 : vector<1x8x512xbf16> to vector<8x512xbf16>
    %110 = vector.shape_cast %107 : vector<8x512xbf16> to vector<1x8x512xbf16>
    tpu.vector_store %arg12[%c0_97, %c24_98, %c1024_99], %110 {strides = array<i32>} : memref<2x32x1536xbf16, #tpu.memory_space<vmem>>, vector<1x8x512xbf16>,
    %c1_100 = arith.constant 1 : index
    %c0_101 = arith.constant 0 : index
    %c0_102 = arith.constant 0 : index
    %111 = vector.load %arg11[%c1_100, %c0_101, %c0_102] : memref<10x8x512xbf16, #tpu.memory_space<vmem>>, vector<1x8x512xbf16>
    %112 = vector.shape_cast %111 : vector<1x8x512xbf16> to vector<8x512xbf16>
    %c1_103 = arith.constant 1 : index
    %c0_104 = arith.constant 0 : index
    %c0_105 = arith.constant 0 : index
    %113 = vector.load %arg12[%c1_103, %c0_104, %c0_105] : memref<2x32x1536xbf16, #tpu.memory_space<vmem>>, vector<1x8x512xbf16>
    %114 = vector.shape_cast %113 : vector<1x8x512xbf16> to vector<8x512xbf16>
    %115 = vector.shape_cast %112 : vector<8x512xbf16> to vector<1x8x512xbf16>
    tpu.vector_store %arg12[%c1_103, %c0_104, %c0_105], %115 {strides = array<i32>} : memref<2x32x1536xbf16, #tpu.memory_space<vmem>>, vector<1x8x512xbf16>,
    %c2_106 = arith.constant 2 : index
    %c0_107 = arith.constant 0 : index
    %c0_108 = arith.constant 0 : index
    %116 = vector.load %arg11[%c2_106, %c0_107, %c0_108] : memref<10x8x512xbf16, #tpu.memory_space<vmem>>, vector<1x8x512xbf16>
    %117 = vector.shape_cast %116 : vector<1x8x512xbf16> to vector<8x512xbf16>
    %c1_109 = arith.constant 1 : index
    %c0_110 = arith.constant 0 : index
    %c512_111 = arith.constant 512 : index
    %118 = vector.load %arg12[%c1_109, %c0_110, %c512_111] : memref<2x32x1536xbf16, #tpu.memory_space<vmem>>, vector<1x8x512xbf16>
    %119 = vector.shape_cast %118 : vector<1x8x512xbf16> to vector<8x512xbf16>
    %120 = vector.shape_cast %117 : vector<8x512xbf16> to vector<1x8x512xbf16>
    tpu.vector_store %arg12[%c1_109, %c0_110, %c512_111], %120 {strides = array<i32>} : memref<2x32x1536xbf16, #tpu.memory_space<vmem>>, vector<1x8x512xbf16>,
    %c3_112 = arith.constant 3 : index
    %c0_113 = arith.constant 0 : index
    %c0_114 = arith.constant 0 : index
    %121 = vector.load %arg11[%c3_112, %c0_113, %c0_114] : memref<10x8x512xbf16, #tpu.memory_space<vmem>>, vector<1x8x512xbf16>
    %122 = vector.shape_cast %121 : vector<1x8x512xbf16> to vector<8x512xbf16>
    %c1_115 = arith.constant 1 : index
    %c0_116 = arith.constant 0 : index
    %c1024_117 = arith.constant 1024 : index
    %123 = vector.load %arg12[%c1_115, %c0_116, %c1024_117] : memref<2x32x1536xbf16, #tpu.memory_space<vmem>>, vector<1x8x512xbf16>
    %124 = vector.shape_cast %123 : vector<1x8x512xbf16> to vector<8x512xbf16>
    %125 = vector.shape_cast %122 : vector<8x512xbf16> to vector<1x8x512xbf16>
    tpu.vector_store %arg12[%c1_115, %c0_116, %c1024_117], %125 {strides = array<i32>} : memref<2x32x1536xbf16, #tpu.memory_space<vmem>>, vector<1x8x512xbf16>,
    %c3_118 = arith.constant 3 : index
    %c0_119 = arith.constant 0 : index
    %c0_120 = arith.constant 0 : index
    %126 = vector.load %arg11[%c3_118, %c0_119, %c0_120] : memref<10x8x512xbf16, #tpu.memory_space<vmem>>, vector<1x8x512xbf16>
    %127 = vector.shape_cast %126 : vector<1x8x512xbf16> to vector<8x512xbf16>
    %c1_121 = arith.constant 1 : index
    %c8_122 = arith.constant 8 : index
    %c0_123 = arith.constant 0 : index
    %128 = vector.load %arg12[%c1_121, %c8_122, %c0_123] : memref<2x32x1536xbf16, #tpu.memory_space<vmem>>, vector<1x8x512xbf16>
    %129 = vector.shape_cast %128 : vector<1x8x512xbf16> to vector<8x512xbf16>
    %130 = vector.shape_cast %127 : vector<8x512xbf16> to vector<1x8x512xbf16>
    tpu.vector_store %arg12[%c1_121, %c8_122, %c0_123], %130 {strides = array<i32>} : memref<2x32x1536xbf16, #tpu.memory_space<vmem>>, vector<1x8x512xbf16>,
    %c4_124 = arith.constant 4 : index
    %c0_125 = arith.constant 0 : index
    %c0_126 = arith.constant 0 : index
    %131 = vector.load %arg11[%c4_124, %c0_125, %c0_126] : memref<10x8x512xbf16, #tpu.memory_space<vmem>>, vector<1x8x512xbf16>
    %132 = vector.shape_cast %131 : vector<1x8x512xbf16> to vector<8x512xbf16>
    %c1_127 = arith.constant 1 : index
    %c8_128 = arith.constant 8 : index
    %c512_129 = arith.constant 512 : index
    %133 = vector.load %arg12[%c1_127, %c8_128, %c512_129] : memref<2x32x1536xbf16, #tpu.memory_space<vmem>>, vector<1x8x512xbf16>
    %134 = vector.shape_cast %133 : vector<1x8x512xbf16> to vector<8x512xbf16>
    %135 = vector.shape_cast %132 : vector<8x512xbf16> to vector<1x8x512xbf16>
    tpu.vector_store %arg12[%c1_127, %c8_128, %c512_129], %135 {strides = array<i32>} : memref<2x32x1536xbf16, #tpu.memory_space<vmem>>, vector<1x8x512xbf16>,
    %c5_130 = arith.constant 5 : index
    %c0_131 = arith.constant 0 : index
    %c0_132 = arith.constant 0 : index
    %136 = vector.load %arg11[%c5_130, %c0_131, %c0_132] : memref<10x8x512xbf16, #tpu.memory_space<vmem>>, vector<1x8x512xbf16>
    %137 = vector.shape_cast %136 : vector<1x8x512xbf16> to vector<8x512xbf16>
    %c1_133 = arith.constant 1 : index
    %c8_134 = arith.constant 8 : index
    %c1024_135 = arith.constant 1024 : index
    %138 = vector.load %arg12[%c1_133, %c8_134, %c1024_135] : memref<2x32x1536xbf16, #tpu.memory_space<vmem>>, vector<1x8x512xbf16>
    %139 = vector.shape_cast %138 : vector<1x8x512xbf16> to vector<8x512xbf16>
    %140 = vector.shape_cast %137 : vector<8x512xbf16> to vector<1x8x512xbf16>
    tpu.vector_store %arg12[%c1_133, %c8_134, %c1024_135], %140 {strides = array<i32>} : memref<2x32x1536xbf16, #tpu.memory_space<vmem>>, vector<1x8x512xbf16>,
    %c5_136 = arith.constant 5 : index
    %c0_137 = arith.constant 0 : index
    %c0_138 = arith.constant 0 : index
    %141 = vector.load %arg11[%c5_136, %c0_137, %c0_138] : memref<10x8x512xbf16, #tpu.memory_space<vmem>>, vector<1x8x512xbf16>
    %142 = vector.shape_cast %141 : vector<1x8x512xbf16> to vector<8x512xbf16>
    %c1_139 = arith.constant 1 : index
    %c16_140 = arith.constant 16 : index
    %c0_141 = arith.constant 0 : index
    %143 = vector.load %arg12[%c1_139, %c16_140, %c0_141] : memref<2x32x1536xbf16, #tpu.memory_space<vmem>>, vector<1x8x512xbf16>
    %144 = vector.shape_cast %143 : vector<1x8x512xbf16> to vector<8x512xbf16>
    %145 = vector.shape_cast %142 : vector<8x512xbf16> to vector<1x8x512xbf16>
    tpu.vector_store %arg12[%c1_139, %c16_140, %c0_141], %145 {strides = array<i32>} : memref<2x32x1536xbf16, #tpu.memory_space<vmem>>, vector<1x8x512xbf16>,
    %c6_142 = arith.constant 6 : index
    %c0_143 = arith.constant 0 : index
    %c0_144 = arith.constant 0 : index
    %146 = vector.load %arg11[%c6_142, %c0_143, %c0_144] : memref<10x8x512xbf16, #tpu.memory_space<vmem>>, vector<1x8x512xbf16>
    %147 = vector.shape_cast %146 : vector<1x8x512xbf16> to vector<8x512xbf16>
    %c1_145 = arith.constant 1 : index
    %c16_146 = arith.constant 16 : index
    %c512_147 = arith.constant 512 : index
    %148 = vector.load %arg12[%c1_145, %c16_146, %c512_147] : memref<2x32x1536xbf16, #tpu.memory_space<vmem>>, vector<1x8x512xbf16>
    %149 = vector.shape_cast %148 : vector<1x8x512xbf16> to vector<8x512xbf16>
    %150 = vector.shape_cast %147 : vector<8x512xbf16> to vector<1x8x512xbf16>
    tpu.vector_store %arg12[%c1_145, %c16_146, %c512_147], %150 {strides = array<i32>} : memref<2x32x1536xbf16, #tpu.memory_space<vmem>>, vector<1x8x512xbf16>,
    %c7_148 = arith.constant 7 : index
    %c0_149 = arith.constant 0 : index
    %c0_150 = arith.constant 0 : index
    %151 = vector.load %arg11[%c7_148, %c0_149, %c0_150] : memref<10x8x512xbf16, #tpu.memory_space<vmem>>, vector<1x8x512xbf16>
    %152 = vector.shape_cast %151 : vector<1x8x512xbf16> to vector<8x512xbf16>
    %c1_151 = arith.constant 1 : index
    %c16_152 = arith.constant 16 : index
    %c1024_153 = arith.constant 1024 : index
    %153 = vector.load %arg12[%c1_151, %c16_152, %c1024_153] : memref<2x32x1536xbf16, #tpu.memory_space<vmem>>, vector<1x8x512xbf16>
    %154 = vector.shape_cast %153 : vector<1x8x512xbf16> to vector<8x512xbf16>
    %155 = vector.shape_cast %152 : vector<8x512xbf16> to vector<1x8x512xbf16>
    tpu.vector_store %arg12[%c1_151, %c16_152, %c1024_153], %155 {strides = array<i32>} : memref<2x32x1536xbf16, #tpu.memory_space<vmem>>, vector<1x8x512xbf16>,
    %c7_154 = arith.constant 7 : index
    %c0_155 = arith.constant 0 : index
    %c0_156 = arith.constant 0 : index
    %156 = vector.load %arg11[%c7_154, %c0_155, %c0_156] : memref<10x8x512xbf16, #tpu.memory_space<vmem>>, vector<1x8x512xbf16>
    %157 = vector.shape_cast %156 : vector<1x8x512xbf16> to vector<8x512xbf16>
    %c1_157 = arith.constant 1 : index
    %c24_158 = arith.constant 24 : index
    %c0_159 = arith.constant 0 : index
    %158 = vector.load %arg12[%c1_157, %c24_158, %c0_159] : memref<2x32x1536xbf16, #tpu.memory_space<vmem>>, vector<1x8x512xbf16>
    %159 = vector.shape_cast %158 : vector<1x8x512xbf16> to vector<8x512xbf16>
    %160 = vector.shape_cast %157 : vector<8x512xbf16> to vector<1x8x512xbf16>
    tpu.vector_store %arg12[%c1_157, %c24_158, %c0_159], %160 {strides = array<i32>} : memref<2x32x1536xbf16, #tpu.memory_space<vmem>>, vector<1x8x512xbf16>,
    %c8_160 = arith.constant 8 : index
    %c0_161 = arith.constant 0 : index
    %c0_162 = arith.constant 0 : index
    %161 = vector.load %arg11[%c8_160, %c0_161, %c0_162] : memref<10x8x512xbf16, #tpu.memory_space<vmem>>, vector<1x8x512xbf16>
    %162 = vector.shape_cast %161 : vector<1x8x512xbf16> to vector<8x512xbf16>
    %c1_163 = arith.constant 1 : index
    %c24_164 = arith.constant 24 : index
    %c512_165 = arith.constant 512 : index
    %163 = vector.load %arg12[%c1_163, %c24_164, %c512_165] : memref<2x32x1536xbf16, #tpu.memory_space<vmem>>, vector<1x8x512xbf16>
    %164 = vector.shape_cast %163 : vector<1x8x512xbf16> to vector<8x512xbf16>
    %165 = vector.shape_cast %162 : vector<8x512xbf16> to vector<1x8x512xbf16>
    tpu.vector_store %arg12[%c1_163, %c24_164, %c512_165], %165 {strides = array<i32>} : memref<2x32x1536xbf16, #tpu.memory_space<vmem>>, vector<1x8x512xbf16>,
    %c9 = arith.constant 9 : index
    %c0_166 = arith.constant 0 : index
    %c0_167 = arith.constant 0 : index
    %166 = vector.load %arg11[%c9, %c0_166, %c0_167] : memref<10x8x512xbf16, #tpu.memory_space<vmem>>, vector<1x8x512xbf16>
    %167 = vector.shape_cast %166 : vector<1x8x512xbf16> to vector<8x512xbf16>
    %c1_168 = arith.constant 1 : index
    %c24_169 = arith.constant 24 : index
    %c1024_170 = arith.constant 1024 : index
    %168 = vector.load %arg12[%c1_168, %c24_169, %c1024_170] : memref<2x32x1536xbf16, #tpu.memory_space<vmem>>, vector<1x8x512xbf16>
    %169 = vector.shape_cast %168 : vector<1x8x512xbf16> to vector<8x512xbf16>
    %170 = vector.shape_cast %167 : vector<8x512xbf16> to vector<1x8x512xbf16>
    tpu.vector_store %arg12[%c1_168, %c24_169, %c1024_170], %170 {strides = array<i32>} : memref<2x32x1536xbf16, #tpu.memory_space<vmem>>, vector<1x8x512xbf16>,
    %c0_171 = arith.constant 0 : index
    %c0_172 = arith.constant 0 : index
    %171 = vector.load %arg4[%c0_171, %c0_172] : memref<1536x512xbf16, #tpu.memory_space<vmem>>, vector<1536x512xbf16>
    %c0_173 = arith.constant 0 : index
    %c0_174 = arith.constant 0 : index
    %c0_175 = arith.constant 0 : index
    %172 = vector.load %arg12[%c0_173, %c0_174, %c0_175] : memref<2x32x1536xbf16, #tpu.memory_space<vmem>>, vector<1x32x1536xbf16>
    %173 = vector.shape_cast %172 : vector<1x32x1536xbf16> to vector<32x1536xbf16>
    %cst_176 = arith.constant dense<0.000000e+00> : vector<32x512xf32>
    %174 = tpu.matmul %173, %171, %cst_176 {dimension_numbers = #tpu.dot_dimension_numbers<[1], [0], [0], [1], [0, 0, 1, 1], [], []>} : vector<32x1536xbf16>, vector<1536x512xbf16>, vector<32x512xf32> -> vector<32x512xf32>
    %c1_177 = arith.constant 1 : index
    %c0_178 = arith.constant 0 : index
    %c0_179 = arith.constant 0 : index
    %175 = vector.load %arg12[%c1_177, %c0_178, %c0_179] : memref<2x32x1536xbf16, #tpu.memory_space<vmem>>, vector<1x32x1536xbf16>
    %176 = vector.shape_cast %175 : vector<1x32x1536xbf16> to vector<32x1536xbf16>
    %cst_180 = arith.constant dense<0.000000e+00> : vector<32x512xf32>
    %177 = tpu.matmul %176, %171, %cst_180 {dimension_numbers = #tpu.dot_dimension_numbers<[1], [0], [0], [1], [0, 0, 1, 1], [], []>} : vector<32x1536xbf16>, vector<1536x512xbf16>, vector<32x512xf32> -> vector<32x512xf32>
    %178 = arith.maximumf %174, %177 : vector<32x512xf32>
    %179 = vector.extract_strided_slice %178 {offsets = [0, 0], sizes = [32, 256], strides = [1, 1]} : vector<32x512xf32> to vector<32x256xf32>
    %180 = vector.extract_strided_slice %178 {offsets = [0, 256], sizes = [32, 256], strides = [1, 1]} : vector<32x512xf32> to vector<32x256xf32>
    %181 = arith.maximumf %179, %180 : vector<32x256xf32>
    %c0_181 = arith.constant 0 : index
    %c0_182 = arith.constant 0 : index
    %182 = vector.load %arg5[%c0_181, %c0_182] : memref<1x256xf32, #tpu.memory_space<vmem>>, vector<1x256xf32>
    %183 = vector.broadcast %182 : vector<1x256xf32> to vector<32x256xf32>
    %184 = arith.addf %181, %183 : vector<32x256xf32>
    %cst_183 = arith.constant 0.000000e+00 : f32
    %185 = vector.broadcast %cst_183 : f32 to vector<32x256xf32>
    %186 = arith.maximumf %184, %185 : vector<32x256xf32>
    %187 = arith.truncf %186 : vector<32x256xf32> to vector<32x256xbf16>
    %188 = vector.extract_strided_slice %187 {offsets = [0, 0], sizes = [8, 256], strides = [1, 1]} : vector<32x256xbf16> to vector<8x256xbf16>
    %c0_184 = arith.constant 0 : index
    %c0_185 = arith.constant 0 : index
    %189 = vector.load %arg13[%c0_184, %c0_185] : memref<8x1024xbf16, #tpu.memory_space<vmem>>, vector<8x256xbf16>
    tpu.vector_store %arg13[%c0_184, %c0_185], %188 {strides = array<i32>} : memref<8x1024xbf16, #tpu.memory_space<vmem>>, vector<8x256xbf16>,
    %190 = vector.extract_strided_slice %187 {offsets = [8, 0], sizes = [8, 256], strides = [1, 1]} : vector<32x256xbf16> to vector<8x256xbf16>
    %c0_186 = arith.constant 0 : index
    %c256 = arith.constant 256 : index
    %191 = vector.load %arg13[%c0_186, %c256] : memref<8x1024xbf16, #tpu.memory_space<vmem>>, vector<8x256xbf16>
    tpu.vector_store %arg13[%c0_186, %c256], %190 {strides = array<i32>} : memref<8x1024xbf16, #tpu.memory_space<vmem>>, vector<8x256xbf16>,
    %192 = vector.extract_strided_slice %187 {offsets = [16, 0], sizes = [8, 256], strides = [1, 1]} : vector<32x256xbf16> to vector<8x256xbf16>
    %c0_187 = arith.constant 0 : index
    %c512_188 = arith.constant 512 : index
    %193 = vector.load %arg13[%c0_187, %c512_188] : memref<8x1024xbf16, #tpu.memory_space<vmem>>, vector<8x256xbf16>
    tpu.vector_store %arg13[%c0_187, %c512_188], %192 {strides = array<i32>} : memref<8x1024xbf16, #tpu.memory_space<vmem>>, vector<8x256xbf16>,
    %194 = vector.extract_strided_slice %187 {offsets = [24, 0], sizes = [8, 256], strides = [1, 1]} : vector<32x256xbf16> to vector<8x256xbf16>
    %c0_189 = arith.constant 0 : index
    %c768 = arith.constant 768 : index
    %195 = vector.load %arg13[%c0_189, %c768] : memref<8x1024xbf16, #tpu.memory_space<vmem>>, vector<8x256xbf16>
    tpu.vector_store %arg13[%c0_189, %c768], %194 {strides = array<i32>} : memref<8x1024xbf16, #tpu.memory_space<vmem>>, vector<8x256xbf16>,
    %c0_190 = arith.constant 0 : index
    %c0_191 = arith.constant 0 : index
    %196 = vector.load %arg13[%c0_190, %c0_191] : memref<8x1024xbf16, #tpu.memory_space<vmem>>, vector<8x1024xbf16>
    %c0_192 = arith.constant 0 : index
    %c0_193 = arith.constant 0 : index
    %197 = vector.load %arg6[%c0_192, %c0_193] : memref<1024x128xbf16, #tpu.memory_space<vmem>>, vector<1024x128xbf16>
    %cst_194 = arith.constant dense<0.000000e+00> : vector<8x128xf32>
    %198 = tpu.matmul %196, %197, %cst_194 {dimension_numbers = #tpu.dot_dimension_numbers<[1], [0], [0], [1], [0, 0, 1, 1], [], []>} : vector<8x1024xbf16>, vector<1024x128xbf16>, vector<8x128xf32> -> vector<8x128xf32>
    %c0_195 = arith.constant 0 : index
    %c0_196 = arith.constant 0 : index
    %199 = vector.load %arg7[%c0_195, %c0_196] : memref<1x128xf32, #tpu.memory_space<vmem>>, vector<1x128xf32>
    %200 = vector.broadcast %199 : vector<1x128xf32> to vector<8x128xf32>
    %201 = arith.addf %198, %200 : vector<8x128xf32>
    %cst_197 = arith.constant 0.000000e+00 : f32
    %202 = vector.broadcast %cst_197 : f32 to vector<8x128xf32>
    %203 = arith.maximumf %201, %202 : vector<8x128xf32>
    %204 = arith.truncf %203 : vector<8x128xf32> to vector<8x128xbf16>
    %c0_198 = arith.constant 0 : index
    %c0_199 = arith.constant 0 : index
    %205 = vector.load %arg8[%c0_198, %c0_199] : memref<128x128xbf16, #tpu.memory_space<vmem>>, vector<128x128xbf16>
    %cst_200 = arith.constant dense<0.000000e+00> : vector<8x128xf32>
    %206 = tpu.matmul %204, %205, %cst_200 {dimension_numbers = #tpu.dot_dimension_numbers<[1], [0], [0], [1], [0, 0, 1, 1], [], []>} : vector<8x128xbf16>, vector<128x128xbf16>, vector<8x128xf32> -> vector<8x128xf32>
    %c0_201 = arith.constant 0 : index
    %c0_202 = arith.constant 0 : index
    %207 = vector.load %arg9[%c0_201, %c0_202] : memref<1x128xf32, #tpu.memory_space<vmem>>, vector<1x128xf32>
    %208 = vector.broadcast %207 : vector<1x128xf32> to vector<8x128xf32>
    %209 = arith.addf %206, %208 : vector<8x128xf32>
    %c0_203 = arith.constant 0 : index
    %c0_204 = arith.constant 0 : index
    %210 = vector.load %arg10[%c0_203, %c0_204] : memref<8x128xf32, #tpu.memory_space<vmem>>, vector<8x128xf32>
    tpu.vector_store %arg10[%c0_203, %c0_204], %209 {strides = array<i32>} : memref<8x128xf32, #tpu.memory_space<vmem>>, vector<8x128xf32>,
    return
  }
  func.func @transform_0(%arg0: i32) -> (i32, i32, i32, i32) {
    %c0_i32 = arith.constant 0 : i32
    %c0_i32_0 = arith.constant 0 : i32
    %c0_i32_1 = arith.constant 0 : i32
    %c0_i32_2 = arith.constant 0 : i32
    return %arg0, %c0_i32, %c0_i32_0, %c0_i32_1 : i32, i32, i32, i32
  }
  func.func @transform_1(%arg0: i32) -> (i32, i32) {
    %c0_i32 = arith.constant 0 : i32
    %c0_i32_0 = arith.constant 0 : i32
    %c0_i32_1 = arith.constant 0 : i32
    return %c0_i32, %c0_i32_0 : i32, i32
  }
  func.func @transform_2(%arg0: i32) -> (i32, i32) {
    %c0_i32 = arith.constant 0 : i32
    %c0_i32_0 = arith.constant 0 : i32
    %c0_i32_1 = arith.constant 0 : i32
    return %c0_i32, %c0_i32_0 : i32, i32
  }
  func.func @transform_3(%arg0: i32) -> (i32, i32) {
    %c0_i32 = arith.constant 0 : i32
    %c0_i32_0 = arith.constant 0 : i32
    %c0_i32_1 = arith.constant 0 : i32
    return %c0_i32, %c0_i32_0 : i32, i32
  }
  func.func @transform_4(%arg0: i32) -> (i32, i32) {
    %c0_i32 = arith.constant 0 : i32
    %c0_i32_0 = arith.constant 0 : i32
    %c0_i32_1 = arith.constant 0 : i32
    return %c0_i32, %c0_i32_0 : i32, i32
  }
  func.func @transform_5(%arg0: i32) -> (i32, i32) {
    %c0_i32 = arith.constant 0 : i32
    %c0_i32_0 = arith.constant 0 : i32
    %c0_i32_1 = arith.constant 0 : i32
    return %c0_i32, %c0_i32_0 : i32, i32
  }
  func.func @transform_6(%arg0: i32) -> (i32, i32) {
    %c0_i32 = arith.constant 0 : i32
    %c0_i32_0 = arith.constant 0 : i32
    %c0_i32_1 = arith.constant 0 : i32
    return %c0_i32, %c0_i32_0 : i32, i32
  }
  func.func @transform_7(%arg0: i32) -> (i32, i32) {
    %c0_i32 = arith.constant 0 : i32
    %c0_i32_0 = arith.constant 0 : i32
    %c0_i32_1 = arith.constant 0 : i32
    return %c0_i32, %c0_i32_0 : i32, i32
  }
  func.func @transform_8(%arg0: i32) -> (i32, i32) {
    %c0_i32 = arith.constant 0 : i32
    %c0_i32_0 = arith.constant 0 : i32
    %c0_i32_1 = arith.constant 0 : i32
    return %c0_i32, %c0_i32_0 : i32, i32
  }
  func.func @transform_9(%arg0: i32) -> (i32, i32) {
    %c0_i32 = arith.constant 0 : i32
    %c0_i32_0 = arith.constant 0 : i32
    return %arg0, %c0_i32 : i32, i32
  }
}

</mosaic_0001>

<llo_original>
// kernel: forward.1
$region0: #{forward.1}
  #allocation0 [shape = 'u32[]', space=smem, size = 0x4, offset = 0x4, fixed_abs, tag = 'smem constant byte address 0x4 - core index']
  #allocation1 [shape = 'u32[72,128]{1,0:T(1,128)}', space=vmem, size = 0x9000, scoped, tag = 'internal scratch']
  #allocation2 [shape = 'bf16[10,8,512]{2,1,0:T(8,128)(2,1)}', space=vmem, size = 0x14000, scoped, tag = 'scratch operand']
  #allocation3 [shape = 'bf16[2,32,1536]{2,1,0:T(8,128)(2,1)}', space=vmem, size = 0x30000, scoped, tag = 'scratch operand']
  #allocation4 [shape = 'bf16[8,1024]{1,0:T(8,128)(2,1)}', space=vmem, size = 0x4000, scoped, tag = 'scratch operand']
  %s0 = inlined_call_operand.vmem [shape: bf16[2,2,64,256], index: 0, kind: input, shape index: {}]
  %s1 = inlined_call_operand.vmem [shape: bf16[256,512], index: 1, kind: input, shape index: {}]
  %s2 = inlined_call_operand.vmem [shape: f32[1,256], index: 2, kind: input, shape index: {}]
  %s3 = inlined_call_operand.vmem [shape: bf16[1536,512], index: 3, kind: input, shape index: {}]
  %s4 = inlined_call_operand.vmem [shape: f32[1,256], index: 4, kind: input, shape index: {}]
  %s5 = inlined_call_operand.vmem [shape: bf16[1024,128], index: 5, kind: input, shape index: {}]
  %s6 = inlined_call_operand.vmem [shape: f32[1,128], index: 6, kind: input, shape index: {}]
  %s7 = inlined_call_operand.vmem [shape: bf16[128,128], index: 7, kind: input, shape index: {}]
  %s8 = inlined_call_operand.vmem [shape: f32[1,128], index: 8, kind: input, shape index: {}]
  %s9 = inlined_call_operand.hbm [shape: f32[16,128], index: 9, kind: output, shape index: {}]
  %s10 = sld [smem:[#allocation0]]
  $region69: #{forward.1} parent=0
    _
  %s12 = ssub.s32 1, %s10
  %s13 = scalar_select 0, %s12, %s10
  $region1: #{forward.1} parent=0
    #allocation5 [shape = 'u8[8192]{0}', space=vmem, size = 0x2000, scoped, tag = 'output window, operand 0']
    #allocation6 [shape = 's32[2]{0}', space=sflag, size = 0x8, scoped, tag = 'scoped memory for forward.1']
    %14 = vsyncpa [#allocation6], 0
    %s15 = scalar_lea.sflag [#allocation6], 1
    %16 = vsyncpa %s15, 0
    loop: start=0, step=1, limit=4
    $region2: #{forward.1} parent=1 // loop_pre_header
      _
    $region3: #{forward.1} parent=1 // loop_header
      %s18 = sphi 0, %s22
      %p19 = scmp.ge.s32.totalorder %s18, 4
      %s28 = sphi 0, %s30
      %s31 = sphi 0, %s28
      %s32 = sphi 0, %s31
      %s48 = sphi 0, %s32
      %s52 = sphi 0, %s52
      %s54 = sphi 0, %s52
      %s55 = sphi 0, %s54
      %s69 = sphi 0, %s55
      %s73 = sphi 0, %s73
      %s75 = sphi 0, %s73
      %s76 = sphi 0, %s75
      %s90 = sphi 0, %s76
      %s94 = sphi 0, %s94
      %s96 = sphi 0, %s94
      %s97 = sphi 0, %s96
      %s111 = sphi 0, %s97
      %s115 = sphi 0, %s115
      %s117 = sphi 0, %s115
      %s118 = sphi 0, %s117
      %s132 = sphi 0, %s118
      %s136 = sphi 0, %s136
      %s138 = sphi 0, %s136
      %s139 = sphi 0, %s138
      %s153 = sphi 0, %s139
      %s157 = sphi 0, %s157
      %s159 = sphi 0, %s157
      %s160 = sphi 0, %s159
      %s174 = sphi 0, %s160
      %s178 = sphi 0, %s178
      %s180 = sphi 0, %s178
      %s181 = sphi 0, %s180
      %s195 = sphi 0, %s181
      %s199 = sphi 0, %s199
      %s201 = sphi 0, %s199
      %s202 = sphi 0, %s201
      %s216 = sphi 0, %s202
      %s222 = sphi 0, %s224
      %s225 = sphi 0, %s222
      %s226 = sphi 0, %s225
      %s242 = sphi 0, %s226
    $region4: #{forward.1} parent=1 // loop_header_branch
      %21 = sbr.rel (%p19) target = $region8
    $region5: #{forward.1} parent=1 // loop_body
      %s23 = ssub.s32 %s18, 1
      %s24 = ssub.s32 %s18, 2
      %s25 = sadd.s32 %s18, 1
      %s26 = ssub.s32 %s18, %s25
      %p27 = scmp.eq.s32.totalorder %s26, 0
      %s29 = sadd.s32 %s28, 1
      %s30 = scalar_select %p27, %s28, %s29
      %p33 = pneg %p27
      %p34 = scmp.eq.s32.totalorder %s18, 1
      %p35 = por %p33, %p34
      %p36 = scmp.ne.s32.totalorder %s28, %s31
      %p37 = scmp.eq.s32.totalorder %s18, 0
      %p38 = por %p36, %p37
      %p39 = scmp.ne.s32.totalorder %s28, %s31
      %p40 = scmp.eq.s32.totalorder %s23, 1
      %p41 = por %p39, %p40
      %p42 = scmp.ne.s32.totalorder %s31, %s32
      %p43 = scmp.eq.s32.totalorder %s23, 0
      %p44 = por %p42, %p43
      %p45 = scmp.ne.s32.totalorder %s31, %s32
      %p46 = scmp.eq.s32.totalorder %s24, 1
      %p47 = por %p45, %p46
      %p49 = scmp.ne.s32.totalorder %s32, %s48
      %p50 = scmp.eq.s32.totalorder %s24, 0
      %p51 = por %p49, %p50
      %s53 = sadd.s32 %s52, 1
      %p56 = scmp.eq.s32.totalorder %s18, 1
      %p57 = scmp.ne.s32.totalorder %s52, %s54
      %p58 = scmp.eq.s32.totalorder %s18, 0
      %p59 = por %p57, %p58
      %p60 = scmp.ne.s32.totalorder %s52, %s54
      %p61 = scmp.eq.s32.totalorder %s23, 1
      %p62 = por %p60, %p61
      %p63 = scmp.ne.s32.totalorder %s54, %s55
      %p64 = scmp.eq.s32.totalorder %s23, 0
      %p65 = por %p63, %p64
      %p66 = scmp.ne.s32.totalorder %s54, %s55
      %p67 = scmp.eq.s32.totalorder %s24, 1
      %p68 = por %p66, %p67
      %p70 = scmp.ne.s32.totalorder %s55, %s69
      %p71 = scmp.eq.s32.totalorder %s24, 0
      %p72 = por %p70, %p71
      %s74 = sadd.s32 %s73, 1
      %p77 = scmp.eq.s32.totalorder %s18, 1
      %p78 = scmp.ne.s32.totalorder %s73, %s75
      %p79 = scmp.eq.s32.totalorder %s18, 0
      %p80 = por %p78, %p79
      %p81 = scmp.ne.s32.totalorder %s73, %s75
      %p82 = scmp.eq.s32.totalorder %s23, 1
      %p83 = por %p81, %p82
      %p84 = scmp.ne.s32.totalorder %s75, %s76
      %p85 = scmp.eq.s32.totalorder %s23, 0
      %p86 = por %p84, %p85
      %p87 = scmp.ne.s32.totalorder %s75, %s76
      %p88 = scmp.eq.s32.totalorder %s24, 1
      %p89 = por %p87, %p88
      %p91 = scmp.ne.s32.totalorder %s76, %s90
      %p92 = scmp.eq.s32.totalorder %s24, 0
      %p93 = por %p91, %p92
      %s95 = sadd.s32 %s94, 1
      %p98 = scmp.eq.s32.totalorder %s18, 1
      %p99 = scmp.ne.s32.totalorder %s94, %s96
      %p100 = scmp.eq.s32.totalorder %s18, 0
      %p101 = por %p99, %p100
      %p102 = scmp.ne.s32.totalorder %s94, %s96
      %p103 = scmp.eq.s32.totalorder %s23, 1
      %p104 = por %p102, %p103
      %p105 = scmp.ne.s32.totalorder %s96, %s97
      %p106 = scmp.eq.s32.totalorder %s23, 0
      %p107 = por %p105, %p106
      %p108 = scmp.ne.s32.totalorder %s96, %s97
      %p109 = scmp.eq.s32.totalorder %s24, 1
      %p110 = por %p108, %p109
      %p112 = scmp.ne.s32.totalorder %s97, %s111
      %p113 = scmp.eq.s32.totalorder %s24, 0
      %p114 = por %p112, %p113
      %s116 = sadd.s32 %s115, 1
      %p119 = scmp.eq.s32.totalorder %s18, 1
      %p120 = scmp.ne.s32.totalorder %s115, %s117
      %p121 = scmp.eq.s32.totalorder %s18, 0
      %p122 = por %p120, %p121
      %p123 = scmp.ne.s32.totalorder %s115, %s117
      %p124 = scmp.eq.s32.totalorder %s23, 1
      %p125 = por %p123, %p124
      %p126 = scmp.ne.s32.totalorder %s117, %s118
      %p127 = scmp.eq.s32.totalorder %s23, 0
      %p128 = por %p126, %p127
      %p129 = scmp.ne.s32.totalorder %s117, %s118
      %p130 = scmp.eq.s32.totalorder %s24, 1
      %p131 = por %p129, %p130
      %p133 = scmp.ne.s32.totalorder %s118, %s132
      %p134 = scmp.eq.s32.totalorder %s24, 0
      %p135 = por %p133, %p134
      %s137 = sadd.s32 %s136, 1
      %p140 = scmp.eq.s32.totalorder %s18, 1
      %p141 = scmp.ne.s32.totalorder %s136, %s138
      %p142 = scmp.eq.s32.totalorder %s18, 0
      %p143 = por %p141, %p142
      %p144 = scmp.ne.s32.totalorder %s136, %s138
      %p145 = scmp.eq.s32.totalorder %s23, 1
      %p146 = por %p144, %p145
      %p147 = scmp.ne.s32.totalorder %s138, %s139
      %p148 = scmp.eq.s32.totalorder %s23, 0
      %p149 = por %p147, %p148
      %p150 = scmp.ne.s32.totalorder %s138, %s139
      %p151 = scmp.eq.s32.totalorder %s24, 1
      %p152 = por %p150, %p151
      %p154 = scmp.ne.s32.totalorder %s139, %s153
      %p155 = scmp.eq.s32.totalorder %s24, 0
      %p156 = por %p154, %p155
      %s158 = sadd.s32 %s157, 1
      %p161 = scmp.eq.s32.totalorder %s18, 1
      %p162 = scmp.ne.s32.totalorder %s157, %s159
      %p163 = scmp.eq.s32.totalorder %s18, 0
      %p164 = por %p162, %p163
      %p165 = scmp.ne.s32.totalorder %s157, %s159
      %p166 = scmp.eq.s32.totalorder %s23, 1
      %p167 = por %p165, %p166
      %p168 = scmp.ne.s32.totalorder %s159, %s160
      %p169 = scmp.eq.s32.totalorder %s23, 0
      %p170 = por %p168, %p169
      %p171 = scmp.ne.s32.totalorder %s159, %s160
      %p172 = scmp.eq.s32.totalorder %s24, 1
      %p173 = por %p171, %p172
      %p175 = scmp.ne.s32.totalorder %s160, %s174
      %p176 = scmp.eq.s32.totalorder %s24, 0
      %p177 = por %p175, %p176
      %s179 = sadd.s32 %s178, 1
      %p182 = scmp.eq.s32.totalorder %s18, 1
      %p183 = scmp.ne.s32.totalorder %s178, %s180
      %p184 = scmp.eq.s32.totalorder %s18, 0
      %p185 = por %p183, %p184
      %p186 = scmp.ne.s32.totalorder %s178, %s180
      %p187 = scmp.eq.s32.totalorder %s23, 1
      %p188 = por %p186, %p187
      %p189 = scmp.ne.s32.totalorder %s180, %s181
      %p190 = scmp.eq.s32.totalorder %s23, 0
      %p191 = por %p189, %p190
      %p192 = scmp.ne.s32.totalorder %s180, %s181
      %p193 = scmp.eq.s32.totalorder %s24, 1
      %p194 = por %p192, %p193
      %p196 = scmp.ne.s32.totalorder %s181, %s195
      %p197 = scmp.eq.s32.totalorder %s24, 0
      %p198 = por %p196, %p197
      %s200 = sadd.s32 %s199, 1
      %p203 = scmp.eq.s32.totalorder %s18, 1
      %p204 = scmp.ne.s32.totalorder %s199, %s201
      %p205 = scmp.eq.s32.totalorder %s18, 0
      %p206 = por %p204, %p205
      %p207 = scmp.ne.s32.totalorder %s199, %s201
      %p208 = scmp.eq.s32.totalorder %s23, 1
      %p209 = por %p207, %p208
      %p210 = scmp.ne.s32.totalorder %s201, %s202
      %p211 = scmp.eq.s32.totalorder %s23, 0
      %p212 = por %p210, %p211
      %p213 = scmp.ne.s32.totalorder %s201, %s202
      %p214 = scmp.eq.s32.totalorder %s24, 1
      %p215 = por %p213, %p214
      %p217 = scmp.ne.s32.totalorder %s202, %s216
      %p218 = scmp.eq.s32.totalorder %s24, 0
      %p219 = por %p217, %p218
      %s220 = ssub.s32 %s18, %s25
      %p221 = scmp.eq.s32.totalorder %s220, 0
      %s223 = sadd.s32 %s222, 1
      %s224 = scalar_select %p221, %s222, %s223
      %p227 = pneg %p221
      %p228 = scmp.eq.s32.totalorder %s18, 1
      %p229 = por %p227, %p228
      %p230 = scmp.ne.s32.totalorder %s222, %s225
      %p231 = scmp.eq.s32.totalorder %s18, 0
      %p232 = por %p230, %p231
      %p233 = scmp.ne.s32.totalorder %s222, %s225
      %p234 = scmp.eq.s32.totalorder %s23, 1
      %p235 = por %p233, %p234
      %p236 = scmp.ne.s32.totalorder %s225, %s226
      %p237 = scmp.eq.s32.totalorder %s23, 0
      %p238 = por %p236, %p237
      %p239 = scmp.ne.s32.totalorder %s225, %s226
      %p240 = scmp.eq.s32.totalorder %s24, 1
      %p241 = por %p239, %p240
      %p243 = scmp.ne.s32.totalorder %s226, %s242
      %p244 = scmp.eq.s32.totalorder %s24, 0
      %p245 = por %p243, %p244
      %p246 = scmp.le.s32.totalorder 1, %s18
      %p247 = scmp.lt.s32.totalorder %s18, 3
      %p248 = pnand %p246, %p247
      %p249 = pneg %p248
      // Predicated region
      $region9: #{forward.1} parent=5 // pred_check
        _
      $region10: #{forward.1} parent=5 // pred_check_branch
        %251 = sbr.rel (%p248) target = $region12
      $region11: #{forward.1} parent=5 // pred_region
        %s252 = ssub.s32 %s18, 1
        // Predicated region
        $region13: #{forward.1} parent=11 // pred_check
          %p253 = pneg %p65
        $region14: #{forward.1} parent=11 // pred_check_branch
          %255 = sbr.rel (%p253) target = $region16
        $region15: #{forward.1} parent=11 // pred_region
          _
        $region16: #{forward.1} parent=11 // pred_fallthru
          _
        // Predicated region
        $region17: #{forward.1} parent=11 // pred_check
          %p256 = pneg %p86
        $region18: #{forward.1} parent=11 // pred_check_branch
          %258 = sbr.rel (%p256) target = $region20
        $region19: #{forward.1} parent=11 // pred_region
          _
        $region20: #{forward.1} parent=11 // pred_fallthru
          _
        // Predicated region
        $region21: #{forward.1} parent=11 // pred_check
          %p259 = pneg %p107
        $region22: #{forward.1} parent=11 // pred_check_branch
          %261 = sbr.rel (%p259) target = $region24
        $region23: #{forward.1} parent=11 // pred_region
          _
        $region24: #{forward.1} parent=11 // pred_fallthru
          _
        // Predicated region
        $region25: #{forward.1} parent=11 // pred_check
          %p262 = pneg %p128
        $region26: #{forward.1} parent=11 // pred_check_branch
          %264 = sbr.rel (%p262) target = $region28
        $region27: #{forward.1} parent=11 // pred_region
          _
        $region28: #{forward.1} parent=11 // pred_fallthru
          _
        // Predicated region
        $region29: #{forward.1} parent=11 // pred_check
          %p265 = pneg %p149
        $region30: #{forward.1} parent=11 // pred_check_branch
          %267 = sbr.rel (%p265) target = $region32
        $region31: #{forward.1} parent=11 // pred_region
          _
        $region32: #{forward.1} parent=11 // pred_fallthru
          _
        // Predicated region
        $region33: #{forward.1} parent=11 // pred_check
          %p268 = pneg %p170
        $region34: #{forward.1} parent=11 // pred_check_branch
          %270 = sbr.rel (%p268) target = $region36
        $region35: #{forward.1} parent=11 // pred_region
          _
        $region36: #{forward.1} parent=11 // pred_fallthru
          _
        // Predicated region
        $region37: #{forward.1} parent=11 // pred_check
          %p271 = pneg %p191
        $region38: #{forward.1} parent=11 // pred_check_branch
          %273 = sbr.rel (%p271) target = $region40
        $region39: #{forward.1} parent=11 // pred_region
          _
        $region40: #{forward.1} parent=11 // pred_fallthru
          _
        // Predicated region
        $region41: #{forward.1} parent=11 // pred_check
          %p274 = pneg %p212
        $region42: #{forward.1} parent=11 // pred_check_branch
          %276 = sbr.rel (%p274) target = $region44
        $region43: #{forward.1} parent=11 // pred_region
          _
        $region44: #{forward.1} parent=11 // pred_fallthru
          _
      $region12: #{forward.1} parent=5 // pred_fallthru
        _
      %p277 = scmp.lt.s32.totalorder %s18, 2
      // Predicated region
      $region45: #{forward.1} parent=5 // pred_check
        %p278 = pneg %p277
      $region46: #{forward.1} parent=5 // pred_check_branch
        %280 = sbr.rel (%p278) target = $region48
      $region47: #{forward.1} parent=5 // pred_region
        // Predicated region
        $region49: #{forward.1} parent=47 // pred_check
          %p281 = pneg %p38
        $region50: #{forward.1} parent=47 // pred_check_branch
          %283 = sbr.rel (%p281) target = $region52
        $region51: #{forward.1} parent=47 // pred_region
          %p284 = scmp.lt.s32.totalorder %s18, 1
          %s285 = scalar_select %p284, %s18, 1
          %s286 = smul.addr %s285, 32
          %s287 = smul.addr %s286, 4
          %s288 = scalar_lea.vmem %s0, %s287
        $region52: #{forward.1} parent=47 // pred_fallthru
          _
      $region48: #{forward.1} parent=5 // pred_fallthru
        _
      %p289 = scmp.le.s32.totalorder 1, %s18
      %p290 = scmp.lt.s32.totalorder %s18, 3
      %p291 = pnand %p289, %p290
      %p292 = pneg %p291
      // Predicated region
      $region53: #{forward.1} parent=5 // pred_check
        _
      $region54: #{forward.1} parent=5 // pred_check_branch
        %294 = sbr.rel (%p291) target = $region56
      $region55: #{forward.1} parent=5 // pred_region
        %s295 = ssub.s32 %s18, 1
        %p296 = scmp.lt.s32.totalorder %s23, 1
        %s297 = scalar_select %p296, %s23, 1
        %s298 = smul.addr %s297, 32
        %s299 = smul.addr %s298, 4
        %s300 = scalar_lea.vmem %s0, %s299
        %p301 = pneg %p44
        %p302 = pneg %p41
        %p303 = pneg %p65
        %p304 = pneg %p62
        %p305 = pneg %p86
        %p306 = pneg %p83
        %p307 = pneg %p107
        %p308 = pneg %p104
        %p309 = pneg %p128
        %p310 = pneg %p125
        %p311 = pneg %p149
        %p312 = pneg %p146
        %p313 = pneg %p170
        %p314 = pneg %p167
        %p315 = pneg %p191
        %p316 = pneg %p188
        %p317 = pneg %p212
        %p318 = pneg %p209
        %p319 = pneg %p238
        %p320 = pneg %p235
        %s321 = sand.u32 %s225, 1
        %s322 = scalar_lea.sflag [#allocation6], %s321
        %s323 = sand.u32 %s225, 1
        %s324 = smul.addr %s323, 8
        %s325 = scalar_lea.vmem [#allocation5], %s324
        %p326 = scmp.lt.s32.totalorder %s23, 1
        %s327 = scalar_select %p326, %s23, 1
        %s328 = smul.addr %s327, 32
        %s329 = smul.addr %s328, 4
        %s330 = scalar_lea.vmem %s0, %s329
        %v332 = vld [vmem:[%s1] sm:$0xff]
        %v333 = vld [vmem:[%s1 + $0x8] sm:$0xff]
        %v334 = vld [vmem:[%s1 + $0x10] sm:$0xff]
        %v335 = vld [vmem:[%s1 + $0x18] sm:$0xff]
        %v336 = vld [vmem:[%s1 + $0x20] sm:$0xff]
        %v337 = vld [vmem:[%s1 + $0x28] sm:$0xff]
        %v338 = vld [vmem:[%s1 + $0x30] sm:$0xff]
        %v339 = vld [vmem:[%s1 + $0x38] sm:$0xff]
        %v340 = vld [vmem:[%s1 + $0x40] sm:$0xff]
        %v341 = vld [vmem:[%s1 + $0x48] sm:$0xff]
        %v342 = vld [vmem:[%s1 + $0x50] sm:$0xff]
        %v343 = vld [vmem:[%s1 + $0x58] sm:$0xff]
        %v344 = vld [vmem:[%s1 + $0x60] sm:$0xff]
        %v345 = vld [vmem:[%s1 + $0x68] sm:$0xff]
        %v346 = vld [vmem:[%s1 + $0x70] sm:$0xff]
        %v347 = vld [vmem:[%s1 + $0x78] sm:$0xff]
        %v348 = vld [vmem:[%s1 + $0x80] sm:$0xff]
        %v349 = vld [vmem:[%s1 + $0x88] sm:$0xff]
        %v350 = vld [vmem:[%s1 + $0x90] sm:$0xff]
        %v351 = vld [vmem:[%s1 + $0x98] sm:$0xff]
        %v352 = vld [vmem:[%s1 + $0xa0] sm:$0xff]
        %v353 = vld [vmem:[%s1 + $0xa8] sm:$0xff]
        %v354 = vld [vmem:[%s1 + $0xb0] sm:$0xff]
        %v355 = vld [vmem:[%s1 + $0xb8] sm:$0xff]
        %v356 = vld [vmem:[%s1 + $0xc0] sm:$0xff]
        %v357 = vld [vmem:[%s1 + $0xc8] sm:$0xff]
        %v358 = vld [vmem:[%s1 + $0xd0] sm:$0xff]
        %v359 = vld [vmem:[%s1 + $0xd8] sm:$0xff]
        %v360 = vld [vmem:[%s1 + $0xe0] sm:$0xff]
        %v361 = vld [vmem:[%s1 + $0xe8] sm:$0xff]
        %v362 = vld [vmem:[%s1 + $0xf0] sm:$0xff]
        %v363 = vld [vmem:[%s1 + $0xf8] sm:$0xff]
        %v364 = vld [vmem:[%s1 + $0x100] sm:$0xff]
        %v365 = vld [vmem:[%s1 + $0x108] sm:$0xff]
        %v366 = vld [vmem:[%s1 + $0x110] sm:$0xff]
        %v367 = vld [vmem:[%s1 + $0x118] sm:$0xff]
        %v368 = vld [vmem:[%s1 + $0x120] sm:$0xff]
        %v369 = vld [vmem:[%s1 + $0x128] sm:$0xff]
        %v370 = vld [vmem:[%s1 + $0x130] sm:$0xff]
        %v371 = vld [vmem:[%s1 + $0x138] sm:$0xff]
        %v372 = vld [vmem:[%s1 + $0x140] sm:$0xff]
        %v373 = vld [vmem:[%s1 + $0x148] sm:$0xff]
        %v374 = vld [vmem:[%s1 + $0x150] sm:$0xff]
        %v375 = vld [vmem:[%s1 + $0x158] sm:$0xff]
        %v376 = vld [vmem:[%s1 + $0x160] sm:$0xff]
        %v377 = vld [vmem:[%s1 + $0x168] sm:$0xff]
        %v378 = vld [vmem:[%s1 + $0x170] sm:$0xff]
        %v379 = vld [vmem:[%s1 + $0x178] sm:$0xff]
        %v380 = vld [vmem:[%s1 + $0x180] sm:$0xff]
        %v381 = vld [vmem:[%s1 + $0x188] sm:$0xff]
        %v382 = vld [vmem:[%s1 + $0x190] sm:$0xff]
        %v383 = vld [vmem:[%s1 + $0x198] sm:$0xff]
        %v384 = vld [vmem:[%s1 + $0x1a0] sm:$0xff]
        %v385 = vld [vmem:[%s1 + $0x1a8] sm:$0xff]
        %v386 = vld [vmem:[%s1 + $0x1b0] sm:$0xff]
        %v387 = vld [vmem:[%s1 + $0x1b8] sm:$0xff]
        %v388 = vld [vmem:[%s1 + $0x1c0] sm:$0xff]
        %v389 = vld [vmem:[%s1 + $0x1c8] sm:$0xff]
        %v390 = vld [vmem:[%s1 + $0x1d0] sm:$0xff]
        %v391 = vld [vmem:[%s1 + $0x1d8] sm:$0xff]
        %v392 = vld [vmem:[%s1 + $0x1e0] sm:$0xff]
        %v393 = vld [vmem:[%s1 + $0x1e8] sm:$0xff]
        %v394 = vld [vmem:[%s1 + $0x1f0] sm:$0xff]
        %v395 = vld [vmem:[%s1 + $0x1f8] sm:$0xff]
        %v396 = vld [vmem:[%s330] sm:$0xff]
        %v397 = vld [vmem:[%s330 + $0x8] sm:$0xff]
        %v398 = vld [vmem:[%s330 + $0x10] sm:$0xff]
        %v399 = vld [vmem:[%s330 + $0x18] sm:$0xff]
        %v400 = vld [vmem:[%s330 + $0x20] sm:$0xff]
        %v401 = vld [vmem:[%s330 + $0x28] sm:$0xff]
        %v402 = vld [vmem:[%s330 + $0x30] sm:$0xff]
        %v403 = vld [vmem:[%s330 + $0x38] sm:$0xff]
        %v412 = vunpack.c.l.b16 %v396
        %v413 = vunpack.c.h.b16 %v396
        %v414 = vunpack.c.l.b16 %v397
        %v415 = vunpack.c.h.b16 %v397
        %v416 = vunpack.c.l.b16 %v398
        %v417 = vunpack.c.h.b16 %v398
        %v418 = vunpack.c.l.b16 %v399
        %v419 = vunpack.c.h.b16 %v399
        %v420 = vunpack.c.l.b16 %v400
        %v421 = vunpack.c.h.b16 %v400
        %v422 = vunpack.c.l.b16 %v401
        %v423 = vunpack.c.h.b16 %v401
        %v424 = vunpack.c.l.b16 %v402
        %v425 = vunpack.c.h.b16 %v402
        %v426 = vunpack.c.l.b16 %v403
        %v427 = vunpack.c.h.b16 %v403
        %v428 = vpack.c.b16 %v414, %v412
        %v429 = vpack.c.b16 %v415, %v413
        %v430 = vpack.c.b16 %v418, %v416
        %v431 = vpack.c.b16 %v419, %v417
        %v432 = vpack.c.b16 %v422, %v420
        %v433 = vpack.c.b16 %v423, %v421
        %v434 = vpack.c.b16 %v426, %v424
        %v435 = vpack.c.b16 %v427, %v425
        %v508 = vunpack.c.l.b16 %v332
        %v509 = vunpack.c.h.b16 %v332
        %v510 = vunpack.c.l.b16 %v333
        %v511 = vunpack.c.h.b16 %v333
        %v512 = vunpack.c.l.b16 %v334
        %v513 = vunpack.c.h.b16 %v334
        %v514 = vunpack.c.l.b16 %v335
        %v515 = vunpack.c.h.b16 %v335
        %v516 = vunpack.c.l.b16 %v336
        %v517 = vunpack.c.h.b16 %v336
        %v518 = vunpack.c.l.b16 %v337
        %v519 = vunpack.c.h.b16 %v337
        %v520 = vunpack.c.l.b16 %v338
        %v521 = vunpack.c.h.b16 %v338
        %v522 = vunpack.c.l.b16 %v339
        %v523 = vunpack.c.h.b16 %v339
        %v524 = vunpack.c.l.b16 %v340
        %v525 = vunpack.c.h.b16 %v340
        %v526 = vunpack.c.l.b16 %v341
        %v527 = vunpack.c.h.b16 %v341
        %v528 = vunpack.c.l.b16 %v342
        %v529 = vunpack.c.h.b16 %v342
        %v530 = vunpack.c.l.b16 %v343
        %v531 = vunpack.c.h.b16 %v343
        %v532 = vunpack.c.l.b16 %v344
        %v533 = vunpack.c.h.b16 %v344
        %v534 = vunpack.c.l.b16 %v345
        %v535 = vunpack.c.h.b16 %v345
        %v536 = vunpack.c.l.b16 %v346
        %v537 = vunpack.c.h.b16 %v346
        %v538 = vunpack.c.l.b16 %v347
        %v539 = vunpack.c.h.b16 %v347
        %v540 = vunpack.c.l.b16 %v348
        %v541 = vunpack.c.h.b16 %v348
        %v542 = vunpack.c.l.b16 %v349
        %v543 = vunpack.c.h.b16 %v349
        %v544 = vunpack.c.l.b16 %v350
        %v545 = vunpack.c.h.b16 %v350
        %v546 = vunpack.c.l.b16 %v351
        %v547 = vunpack.c.h.b16 %v351
        %v548 = vunpack.c.l.b16 %v352
        %v549 = vunpack.c.h.b16 %v352
        %v550 = vunpack.c.l.b16 %v353
        %v551 = vunpack.c.h.b16 %v353
        %v552 = vunpack.c.l.b16 %v354
        %v553 = vunpack.c.h.b16 %v354
        %v554 = vunpack.c.l.b16 %v355
        %v555 = vunpack.c.h.b16 %v355
        %v556 = vunpack.c.l.b16 %v356
        %v557 = vunpack.c.h.b16 %v356
        %v558 = vunpack.c.l.b16 %v357
        %v559 = vunpack.c.h.b16 %v357
        %v560 = vunpack.c.l.b16 %v358
        %v561 = vunpack.c.h.b16 %v358
        %v562 = vunpack.c.l.b16 %v359
        %v563 = vunpack.c.h.b16 %v359
        %v564 = vunpack.c.l.b16 %v360
        %v565 = vunpack.c.h.b16 %v360
        %v566 = vunpack.c.l.b16 %v361
        %v567 = vunpack.c.h.b16 %v361
        %v568 = vunpack.c.l.b16 %v362
        %v569 = vunpack.c.h.b16 %v362
        %v570 = vunpack.c.l.b16 %v363
        %v571 = vunpack.c.h.b16 %v363
        %v572 = vunpack.c.l.b16 %v364
        %v573 = vunpack.c.h.b16 %v364
        %v574 = vunpack.c.l.b16 %v365
        %v575 = vunpack.c.h.b16 %v365
        %v576 = vunpack.c.l.b16 %v366
        %v577 = vunpack.c.h.b16 %v366
        %v578 = vunpack.c.l.b16 %v367
        %v579 = vunpack.c.h.b16 %v367
        %v580 = vunpack.c.l.b16 %v368
        %v581 = vunpack.c.h.b16 %v368
        %v582 = vunpack.c.l.b16 %v369
        %v583 = vunpack.c.h.b16 %v369
        %v584 = vunpack.c.l.b16 %v370
        %v585 = vunpack.c.h.b16 %v370
        %v586 = vunpack.c.l.b16 %v371
        %v587 = vunpack.c.h.b16 %v371
        %v588 = vunpack.c.l.b16 %v372
        %v589 = vunpack.c.h.b16 %v372
        %v590 = vunpack.c.l.b16 %v373
        %v591 = vunpack.c.h.b16 %v373
        %v592 = vunpack.c.l.b16 %v374
        %v593 = vunpack.c.h.b16 %v374
        %v594 = vunpack.c.l.b16 %v375
        %v595 = vunpack.c.h.b16 %v375
        %v596 = vunpack.c.l.b16 %v376
        %v597 = vunpack.c.h.b16 %v376
        %v598 = vunpack.c.l.b16 %v377
        %v599 = vunpack.c.h.b16 %v377
        %v600 = vunpack.c.l.b16 %v378
        %v601 = vunpack.c.h.b16 %v378
        %v602 = vunpack.c.l.b16 %v379
        %v603 = vunpack.c.h.b16 %v379
        %v604 = vunpack.c.l.b16 %v380
        %v605 = vunpack.c.h.b16 %v380
        %v606 = vunpack.c.l.b16 %v381
        %v607 = vunpack.c.h.b16 %v381
        %v608 = vunpack.c.l.b16 %v382
        %v609 = vunpack.c.h.b16 %v382
        %v610 = vunpack.c.l.b16 %v383
        %v611 = vunpack.c.h.b16 %v383
        %v612 = vunpack.c.l.b16 %v384
        %v613 = vunpack.c.h.b16 %v384
        %v614 = vunpack.c.l.b16 %v385
        %v615 = vunpack.c.h.b16 %v385
        %v616 = vunpack.c.l.b16 %v386
        %v617 = vunpack.c.h.b16 %v386
        %v618 = vunpack.c.l.b16 %v387
        %v619 = vunpack.c.h.b16 %v387
        %v620 = vunpack.c.l.b16 %v388
        %v621 = vunpack.c.h.b16 %v388
        %v622 = vunpack.c.l.b16 %v389
        %v623 = vunpack.c.h.b16 %v389
        %v624 = vunpack.c.l.b16 %v390
        %v625 = vunpack.c.h.b16 %v390
        %v626 = vunpack.c.l.b16 %v391
        %v627 = vunpack.c.h.b16 %v391
        %v628 = vunpack.c.l.b16 %v392
        %v629 = vunpack.c.h.b16 %v392
        %v630 = vunpack.c.l.b16 %v393
        %v631 = vunpack.c.h.b16 %v393
        %v632 = vunpack.c.l.b16 %v394
        %v633 = vunpack.c.h.b16 %v394
        %v634 = vunpack.c.l.b16 %v395
        %v635 = vunpack.c.h.b16 %v395
        %v636 = vpack.c.b16 %v512, %v508
        %v637 = vpack.c.b16 %v513, %v509
        %v638 = vpack.c.b16 %v514, %v510
        %v639 = vpack.c.b16 %v515, %v511
        %v640 = vpack.c.b16 %v520, %v516
        %v641 = vpack.c.b16 %v521, %v517
        %v642 = vpack.c.b16 %v522, %v518
        %v643 = vpack.c.b16 %v523, %v519
        %v644 = vpack.c.b16 %v528, %v524
        %v645 = vpack.c.b16 %v529, %v525
        %v646 = vpack.c.b16 %v530, %v526
        %v647 = vpack.c.b16 %v531, %v527
        %v648 = vpack.c.b16 %v536, %v532
        %v649 = vpack.c.b16 %v537, %v533
        %v650 = vpack.c.b16 %v538, %v534
        %v651 = vpack.c.b16 %v539, %v535
        %v652 = vpack.c.b16 %v544, %v540
        %v653 = vpack.c.b16 %v545, %v541
        %v654 = vpack.c.b16 %v546, %v542
        %v655 = vpack.c.b16 %v547, %v543
        %v656 = vpack.c.b16 %v552, %v548
        %v657 = vpack.c.b16 %v553, %v549
        %v658 = vpack.c.b16 %v554, %v550
        %v659 = vpack.c.b16 %v555, %v551
        %v660 = vpack.c.b16 %v560, %v556
        %v661 = vpack.c.b16 %v561, %v557
        %v662 = vpack.c.b16 %v562, %v558
        %v663 = vpack.c.b16 %v563, %v559
        %v664 = vpack.c.b16 %v568, %v564
        %v665 = vpack.c.b16 %v569, %v565
        %v666 = vpack.c.b16 %v570, %v566
        %v667 = vpack.c.b16 %v571, %v567
        %v668 = vpack.c.b16 %v576, %v572
        %v669 = vpack.c.b16 %v577, %v573
        %v670 = vpack.c.b16 %v578, %v574
        %v671 = vpack.c.b16 %v579, %v575
        %v672 = vpack.c.b16 %v584, %v580
        %v673 = vpack.c.b16 %v585, %v581
        %v674 = vpack.c.b16 %v586, %v582
        %v675 = vpack.c.b16 %v587, %v583
        %v676 = vpack.c.b16 %v592, %v588
        %v677 = vpack.c.b16 %v593, %v589
        %v678 = vpack.c.b16 %v594, %v590
        %v679 = vpack.c.b16 %v595, %v591
        %v680 = vpack.c.b16 %v600, %v596
        %v681 = vpack.c.b16 %v601, %v597
        %v682 = vpack.c.b16 %v602, %v598
        %v683 = vpack.c.b16 %v603, %v599
        %v684 = vpack.c.b16 %v608, %v604
        %v685 = vpack.c.b16 %v609, %v605
        %v686 = vpack.c.b16 %v610, %v606
        %v687 = vpack.c.b16 %v611, %v607
        %v688 = vpack.c.b16 %v616, %v612
        %v689 = vpack.c.b16 %v617, %v613
        %v690 = vpack.c.b16 %v618, %v614
        %v691 = vpack.c.b16 %v619, %v615
        %v692 = vpack.c.b16 %v624, %v620
        %v693 = vpack.c.b16 %v625, %v621
        %v694 = vpack.c.b16 %v626, %v622
        %v695 = vpack.c.b16 %v627, %v623
        %v696 = vpack.c.b16 %v632, %v628
        %v697 = vpack.c.b16 %v633, %v629
        %v698 = vpack.c.b16 %v634, %v630
        %v699 = vpack.c.b16 %v635, %v631
        %764 = vmatpush.bf16.msra.mxu0 %v664
        %765 = vmatpush.bf16.msra.mxu0 %v660
        %766 = vmatpush.bf16.msra.mxu0 %v656
        %767 = vmatpush.bf16.msra.mxu0 %v652
        %768 = vmatpush.bf16.msra.mxu0 %v648
        %769 = vmatpush.bf16.msra.mxu0 %v644
        %770 = vmatpush.bf16.msra.mxu0 %v640
        %771 = vmatpush.bf16.msra.mxu0 %v636
        %772 = vmatmul.bf16.gmra.mxu0 %v428
        %v773 = vpop.f32.mrf.mxu0
        %v774 = vadd.f32 0.0, %v773
        %v775 = vpop.f32.mrf.mxu0
        %v776 = vadd.f32 0.0, %v775
        %777 = vmatmul.bf16.gmra.mxu0 %v430
        %v778 = vpop.f32.mrf.mxu0
        %v779 = vadd.f32 0.0, %v778
        %v780 = vpop.f32.mrf.mxu0
        %v781 = vadd.f32 0.0, %v780
        %782 = vmatmul.bf16.gmra.mxu0 %v432
        %v783 = vpop.f32.mrf.mxu0
        %v784 = vadd.f32 0.0, %v783
        %v785 = vpop.f32.mrf.mxu0
        %v786 = vadd.f32 0.0, %v785
        %787 = vmatmul.bf16.gmra.mxu0 %v434
        %v788 = vpop.f32.mrf.mxu0
        %v789 = vadd.f32 0.0, %v788
        %v790 = vpop.f32.mrf.mxu0
        %v791 = vadd.f32 0.0, %v790
        %792 = vdwg.mxu0
        %793 = vmatpush.bf16.msra.mxu0 %v696
        %794 = vmatpush.bf16.msra.mxu0 %v692
        %795 = vmatpush.bf16.msra.mxu0 %v688
        %796 = vmatpush.bf16.msra.mxu0 %v684
        %797 = vmatpush.bf16.msra.mxu0 %v680
        %798 = vmatpush.bf16.msra.mxu0 %v676
        %799 = vmatpush.bf16.msra.mxu0 %v672
        %800 = vmatpush.bf16.msra.mxu0 %v668
        %801 = vmatmul.bf16.gmra.mxu0 %v429
        %v802 = vpop.f32.mrf.mxu0
        %v803 = vadd.f32 %v774, %v802
        %v804 = vpop.f32.mrf.mxu0
        %v805 = vadd.f32 %v776, %v804
        %806 = vmatmul.bf16.gmra.mxu0 %v431
        %v807 = vpop.f32.mrf.mxu0
        %v808 = vadd.f32 %v779, %v807
        %v809 = vpop.f32.mrf.mxu0
        %v810 = vadd.f32 %v781, %v809
        %811 = vmatmul.bf16.gmra.mxu0 %v433
        %v812 = vpop.f32.mrf.mxu0
        %v813 = vadd.f32 %v784, %v812
        %v814 = vpop.f32.mrf.mxu0
        %v815 = vadd.f32 %v786, %v814
        %816 = vmatmul.bf16.gmra.mxu0 %v435
        %v817 = vpop.f32.mrf.mxu0
        %v818 = vadd.f32 %v789, %v817
        %v819 = vpop.f32.mrf.mxu0
        %v820 = vadd.f32 %v791, %v819
        %821 = vdwg.mxu0
        %822 = vmatpush.bf16.msra.mxu0 %v665
        %823 = vmatpush.bf16.msra.mxu0 %v661
        %824 = vmatpush.bf16.msra.mxu0 %v657
        %825 = vmatpush.bf16.msra.mxu0 %v653
        %826 = vmatpush.bf16.msra.mxu0 %v649
        %827 = vmatpush.bf16.msra.mxu0 %v645
        %828 = vmatpush.bf16.msra.mxu0 %v641
        %829 = vmatpush.bf16.msra.mxu0 %v637
        %830 = vmatmul.bf16.gmra.mxu0 %v428
        %v831 = vpop.f32.mrf.mxu0
        %v832 = vadd.f32 0.0, %v831
        %v833 = vpop.f32.mrf.mxu0
        %v834 = vadd.f32 0.0, %v833
        %835 = vmatmul.bf16.gmra.mxu0 %v430
        %v836 = vpop.f32.mrf.mxu0
        %v837 = vadd.f32 0.0, %v836
        %v838 = vpop.f32.mrf.mxu0
        %v839 = vadd.f32 0.0, %v838
        %840 = vmatmul.bf16.gmra.mxu0 %v432
        %v841 = vpop.f32.mrf.mxu0
        %v842 = vadd.f32 0.0, %v841
        %v843 = vpop.f32.mrf.mxu0
        %v844 = vadd.f32 0.0, %v843
        %845 = vmatmul.bf16.gmra.mxu0 %v434
        %v846 = vpop.f32.mrf.mxu0
        %v847 = vadd.f32 0.0, %v846
        %v848 = vpop.f32.mrf.mxu0
        %v849 = vadd.f32 0.0, %v848
        %850 = vdwg.mxu0
        %851 = vmatpush.bf16.msra.mxu0 %v697
        %852 = vmatpush.bf16.msra.mxu0 %v693
        %853 = vmatpush.bf16.msra.mxu0 %v689
        %854 = vmatpush.bf16.msra.mxu0 %v685
        %855 = vmatpush.bf16.msra.mxu0 %v681
        %856 = vmatpush.bf16.msra.mxu0 %v677
        %857 = vmatpush.bf16.msra.mxu0 %v673
        %858 = vmatpush.bf16.msra.mxu0 %v669
        %859 = vmatmul.bf16.gmra.mxu0 %v429
        %v860 = vpop.f32.mrf.mxu0
        %v861 = vadd.f32 %v832, %v860
        %v862 = vpop.f32.mrf.mxu0
        %v863 = vadd.f32 %v834, %v862
        %864 = vmatmul.bf16.gmra.mxu0 %v431
        %v865 = vpop.f32.mrf.mxu0
        %v866 = vadd.f32 %v837, %v865
        %v867 = vpop.f32.mrf.mxu0
        %v868 = vadd.f32 %v839, %v867
        %869 = vmatmul.bf16.gmra.mxu0 %v433
        %v870 = vpop.f32.mrf.mxu0
        %v871 = vadd.f32 %v842, %v870
        %v872 = vpop.f32.mrf.mxu0
        %v873 = vadd.f32 %v844, %v872
        %874 = vmatmul.bf16.gmra.mxu0 %v435
        %v875 = vpop.f32.mrf.mxu0
        %v876 = vadd.f32 %v847, %v875
        %v877 = vpop.f32.mrf.mxu0
        %v878 = vadd.f32 %v849, %v877
        %879 = vdwg.mxu0
        %880 = vmatpush.bf16.msra.mxu0 %v666
        %881 = vmatpush.bf16.msra.mxu0 %v662
        %882 = vmatpush.bf16.msra.mxu0 %v658
        %883 = vmatpush.bf16.msra.mxu0 %v654
        %884 = vmatpush.bf16.msra.mxu0 %v650
        %885 = vmatpush.bf16.msra.mxu0 %v646
        %886 = vmatpush.bf16.msra.mxu0 %v642
        %887 = vmatpush.bf16.msra.mxu0 %v638
        %888 = vmatmul.bf16.gmra.mxu0 %v428
        %v889 = vpop.f32.mrf.mxu0
        %v890 = vadd.f32 0.0, %v889
        %v891 = vpop.f32.mrf.mxu0
        %v892 = vadd.f32 0.0, %v891
        %893 = vmatmul.bf16.gmra.mxu0 %v430
        %v894 = vpop.f32.mrf.mxu0
        %v895 = vadd.f32 0.0, %v894
        %v896 = vpop.f32.mrf.mxu0
        %v897 = vadd.f32 0.0, %v896
        %898 = vmatmul.bf16.gmra.mxu0 %v432
        %v899 = vpop.f32.mrf.mxu0
        %v900 = vadd.f32 0.0, %v899
        %v901 = vpop.f32.mrf.mxu0
        %v902 = vadd.f32 0.0, %v901
        %903 = vmatmul.bf16.gmra.mxu0 %v434
        %v904 = vpop.f32.mrf.mxu0
        %v905 = vadd.f32 0.0, %v904
        %v906 = vpop.f32.mrf.mxu0
        %v907 = vadd.f32 0.0, %v906
        %908 = vdwg.mxu0
        %909 = vmatpush.bf16.msra.mxu0 %v698
        %910 = vmatpush.bf16.msra.mxu0 %v694
        %911 = vmatpush.bf16.msra.mxu0 %v690
        %912 = vmatpush.bf16.msra.mxu0 %v686
        %913 = vmatpush.bf16.msra.mxu0 %v682
        %914 = vmatpush.bf16.msra.mxu0 %v678
        %915 = vmatpush.bf16.msra.mxu0 %v674
        %916 = vmatpush.bf16.msra.mxu0 %v670
        %917 = vmatmul.bf16.gmra.mxu0 %v429
        %v918 = vpop.f32.mrf.mxu0
        %v919 = vadd.f32 %v890, %v918
        %v920 = vpop.f32.mrf.mxu0
        %v921 = vadd.f32 %v892, %v920
        %922 = vmatmul.bf16.gmra.mxu0 %v431
        %v923 = vpop.f32.mrf.mxu0
        %v924 = vadd.f32 %v895, %v923
        %v925 = vpop.f32.mrf.mxu0
        %v926 = vadd.f32 %v897, %v925
        %927 = vmatmul.bf16.gmra.mxu0 %v433
        %v928 = vpop.f32.mrf.mxu0
        %v929 = vadd.f32 %v900, %v928
        %v930 = vpop.f32.mrf.mxu0
        %v931 = vadd.f32 %v902, %v930
        %932 = vmatmul.bf16.gmra.mxu0 %v435
        %v933 = vpop.f32.mrf.mxu0
        %v934 = vadd.f32 %v905, %v933
        %v935 = vpop.f32.mrf.mxu0
        %v936 = vadd.f32 %v907, %v935
        %937 = vdwg.mxu0
        %938 = vmatpush.bf16.msra.mxu0 %v667
        %939 = vmatpush.bf16.msra.mxu0 %v663
        %940 = vmatpush.bf16.msra.mxu0 %v659
        %941 = vmatpush.bf16.msra.mxu0 %v655
        %942 = vmatpush.bf16.msra.mxu0 %v651
        %943 = vmatpush.bf16.msra.mxu0 %v647
        %944 = vmatpush.bf16.msra.mxu0 %v643
        %945 = vmatpush.bf16.msra.mxu0 %v639
        %946 = vmatmul.bf16.gmra.mxu0 %v428
        %v947 = vpop.f32.mrf.mxu0
        %v948 = vadd.f32 0.0, %v947
        %v949 = vpop.f32.mrf.mxu0
        %v950 = vadd.f32 0.0, %v949
        %951 = vmatmul.bf16.gmra.mxu0 %v430
        %v952 = vpop.f32.mrf.mxu0
        %v953 = vadd.f32 0.0, %v952
        %v954 = vpop.f32.mrf.mxu0
        %v955 = vadd.f32 0.0, %v954
        %956 = vmatmul.bf16.gmra.mxu0 %v432
        %v957 = vpop.f32.mrf.mxu0
        %v958 = vadd.f32 0.0, %v957
        %v959 = vpop.f32.mrf.mxu0
        %v960 = vadd.f32 0.0, %v959
        %961 = vmatmul.bf16.gmra.mxu0 %v434
        %v962 = vpop.f32.mrf.mxu0
        %v963 = vadd.f32 0.0, %v962
        %v964 = vpop.f32.mrf.mxu0
        %v965 = vadd.f32 0.0, %v964
        %966 = vdwg.mxu0
        %967 = vmatpush.bf16.msra.mxu0 %v699
        %968 = vmatpush.bf16.msra.mxu0 %v695
        %969 = vmatpush.bf16.msra.mxu0 %v691
        %970 = vmatpush.bf16.msra.mxu0 %v687
        %971 = vmatpush.bf16.msra.mxu0 %v683
        %972 = vmatpush.bf16.msra.mxu0 %v679
        %973 = vmatpush.bf16.msra.mxu0 %v675
        %974 = vmatpush.bf16.msra.mxu0 %v671
        %975 = vmatmul.bf16.gmra.mxu0 %v429
        %v976 = vpop.f32.mrf.mxu0
        %v977 = vadd.f32 %v948, %v976
        %v978 = vpop.f32.mrf.mxu0
        %v979 = vadd.f32 %v950, %v978
        %980 = vmatmul.bf16.gmra.mxu0 %v431
        %v981 = vpop.f32.mrf.mxu0
        %v982 = vadd.f32 %v953, %v981
        %v983 = vpop.f32.mrf.mxu0
        %v984 = vadd.f32 %v955, %v983
        %985 = vmatmul.bf16.gmra.mxu0 %v433
        %v986 = vpop.f32.mrf.mxu0
        %v987 = vadd.f32 %v958, %v986
        %v988 = vpop.f32.mrf.mxu0
        %v989 = vadd.f32 %v960, %v988
        %990 = vmatmul.bf16.gmra.mxu0 %v435
        %v991 = vpop.f32.mrf.mxu0
        %v992 = vadd.f32 %v963, %v991
        %v993 = vpop.f32.mrf.mxu0
        %v994 = vadd.f32 %v965, %v993
        %995 = vdwg.mxu0
        %s996 = scalar_lea.vmem %s330, 64
        %v997 = vld [vmem:[%s996] sm:$0xff]
        %v998 = vld [vmem:[%s996 + $0x8] sm:$0xff]
        %v999 = vld [vmem:[%s996 + $0x10] sm:$0xff]
        %v1000 = vld [vmem:[%s996 + $0x18] sm:$0xff]
        %v1001 = vld [vmem:[%s996 + $0x20] sm:$0xff]
        %v1002 = vld [vmem:[%s996 + $0x28] sm:$0xff]
        %v1003 = vld [vmem:[%s996 + $0x30] sm:$0xff]
        %v1004 = vld [vmem:[%s996 + $0x38] sm:$0xff]
        %v1013 = vunpack.c.l.b16 %v997
        %v1014 = vunpack.c.h.b16 %v997
        %v1015 = vunpack.c.l.b16 %v998
        %v1016 = vunpack.c.h.b16 %v998
        %v1017 = vunpack.c.l.b16 %v999
        %v1018 = vunpack.c.h.b16 %v999
        %v1019 = vunpack.c.l.b16 %v1000
        %v1020 = vunpack.c.h.b16 %v1000
        %v1021 = vunpack.c.l.b16 %v1001
        %v1022 = vunpack.c.h.b16 %v1001
        %v1023 = vunpack.c.l.b16 %v1002
        %v1024 = vunpack.c.h.b16 %v1002
        %v1025 = vunpack.c.l.b16 %v1003
        %v1026 = vunpack.c.h.b16 %v1003
        %v1027 = vunpack.c.l.b16 %v1004
        %v1028 = vunpack.c.h.b16 %v1004
        %v1029 = vpack.c.b16 %v1015, %v1013
        %v1030 = vpack.c.b16 %v1016, %v1014
        %v1031 = vpack.c.b16 %v1019, %v1017
        %v1032 = vpack.c.b16 %v1020, %v1018
        %v1033 = vpack.c.b16 %v1023, %v1021
        %v1034 = vpack.c.b16 %v1024, %v1022
        %v1035 = vpack.c.b16 %v1027, %v1025
        %v1036 = vpack.c.b16 %v1028, %v1026
        %1045 = vmatpush.bf16.msra.mxu0 %v664
        %1046 = vmatpush.bf16.msra.mxu0 %v660
        %1047 = vmatpush.bf16.msra.mxu0 %v656
        %1048 = vmatpush.bf16.msra.mxu0 %v652
        %1049 = vmatpush.bf16.msra.mxu0 %v648
        %1050 = vmatpush.bf16.msra.mxu0 %v644
        %1051 = vmatpush.bf16.msra.mxu0 %v640
        %1052 = vmatpush.bf16.msra.mxu0 %v636
        %1053 = vmatmul.bf16.gmra.mxu0 %v1029
        %v1054 = vpop.f32.mrf.mxu0
        %v1055 = vadd.f32 0.0, %v1054
        %v1056 = vpop.f32.mrf.mxu0
        %v1057 = vadd.f32 0.0, %v1056
        %1058 = vmatmul.bf16.gmra.mxu0 %v1031
        %v1059 = vpop.f32.mrf.mxu0
        %v1060 = vadd.f32 0.0, %v1059
        %v1061 = vpop.f32.mrf.mxu0
        %v1062 = vadd.f32 0.0, %v1061
        %1063 = vmatmul.bf16.gmra.mxu0 %v1033
        %v1064 = vpop.f32.mrf.mxu0
        %v1065 = vadd.f32 0.0, %v1064
        %v1066 = vpop.f32.mrf.mxu0
        %v1067 = vadd.f32 0.0, %v1066
        %1068 = vmatmul.bf16.gmra.mxu0 %v1035
        %v1069 = vpop.f32.mrf.mxu0
        %v1070 = vadd.f32 0.0, %v1069
        %v1071 = vpop.f32.mrf.mxu0
        %v1072 = vadd.f32 0.0, %v1071
        %1073 = vdwg.mxu0
        %1074 = vmatpush.bf16.msra.mxu0 %v696
        %1075 = vmatpush.bf16.msra.mxu0 %v692
        %1076 = vmatpush.bf16.msra.mxu0 %v688
        %1077 = vmatpush.bf16.msra.mxu0 %v684
        %1078 = vmatpush.bf16.msra.mxu0 %v680
        %1079 = vmatpush.bf16.msra.mxu0 %v676
        %1080 = vmatpush.bf16.msra.mxu0 %v672
        %1081 = vmatpush.bf16.msra.mxu0 %v668
        %1082 = vmatmul.bf16.gmra.mxu0 %v1030
        %v1083 = vpop.f32.mrf.mxu0
        %v1084 = vadd.f32 %v1055, %v1083
        %v1085 = vpop.f32.mrf.mxu0
        %v1086 = vadd.f32 %v1057, %v1085
        %1087 = vmatmul.bf16.gmra.mxu0 %v1032
        %v1088 = vpop.f32.mrf.mxu0
        %v1089 = vadd.f32 %v1060, %v1088
        %v1090 = vpop.f32.mrf.mxu0
        %v1091 = vadd.f32 %v1062, %v1090
        %1092 = vmatmul.bf16.gmra.mxu0 %v1034
        %v1093 = vpop.f32.mrf.mxu0
        %v1094 = vadd.f32 %v1065, %v1093
        %v1095 = vpop.f32.mrf.mxu0
        %v1096 = vadd.f32 %v1067, %v1095
        %1097 = vmatmul.bf16.gmra.mxu0 %v1036
        %v1098 = vpop.f32.mrf.mxu0
        %v1099 = vadd.f32 %v1070, %v1098
        %v1100 = vpop.f32.mrf.mxu0
        %v1101 = vadd.f32 %v1072, %v1100
        %1102 = vdwg.mxu0
        %1103 = vmatpush.bf16.msra.mxu0 %v665
        %1104 = vmatpush.bf16.msra.mxu0 %v661
        %1105 = vmatpush.bf16.msra.mxu0 %v657
        %1106 = vmatpush.bf16.msra.mxu0 %v653
        %1107 = vmatpush.bf16.msra.mxu0 %v649
        %1108 = vmatpush.bf16.msra.mxu0 %v645
        %1109 = vmatpush.bf16.msra.mxu0 %v641
        %1110 = vmatpush.bf16.msra.mxu0 %v637
        %1111 = vmatmul.bf16.gmra.mxu0 %v1029
        %v1112 = vpop.f32.mrf.mxu0
        %v1113 = vadd.f32 0.0, %v1112
        %v1114 = vpop.f32.mrf.mxu0
        %v1115 = vadd.f32 0.0, %v1114
        %1116 = vmatmul.bf16.gmra.mxu0 %v1031
        %v1117 = vpop.f32.mrf.mxu0
        %v1118 = vadd.f32 0.0, %v1117
        %v1119 = vpop.f32.mrf.mxu0
        %v1120 = vadd.f32 0.0, %v1119
        %1121 = vmatmul.bf16.gmra.mxu0 %v1033
        %v1122 = vpop.f32.mrf.mxu0
        %v1123 = vadd.f32 0.0, %v1122
        %v1124 = vpop.f32.mrf.mxu0
        %v1125 = vadd.f32 0.0, %v1124
        %1126 = vmatmul.bf16.gmra.mxu0 %v1035
        %v1127 = vpop.f32.mrf.mxu0
        %v1128 = vadd.f32 0.0, %v1127
        %v1129 = vpop.f32.mrf.mxu0
        %v1130 = vadd.f32 0.0, %v1129
        %1131 = vdwg.mxu0
        %1132 = vmatpush.bf16.msra.mxu0 %v697
        %1133 = vmatpush.bf16.msra.mxu0 %v693
        %1134 = vmatpush.bf16.msra.mxu0 %v689
        %1135 = vmatpush.bf16.msra.mxu0 %v685
        %1136 = vmatpush.bf16.msra.mxu0 %v681
        %1137 = vmatpush.bf16.msra.mxu0 %v677
        %1138 = vmatpush.bf16.msra.mxu0 %v673
        %1139 = vmatpush.bf16.msra.mxu0 %v669
        %1140 = vmatmul.bf16.gmra.mxu0 %v1030
        %v1141 = vpop.f32.mrf.mxu0
        %v1142 = vadd.f32 %v1113, %v1141
        %v1143 = vpop.f32.mrf.mxu0
        %v1144 = vadd.f32 %v1115, %v1143
        %1145 = vmatmul.bf16.gmra.mxu0 %v1032
        %v1146 = vpop.f32.mrf.mxu0
        %v1147 = vadd.f32 %v1118, %v1146
        %v1148 = vpop.f32.mrf.mxu0
        %v1149 = vadd.f32 %v1120, %v1148
        %1150 = vmatmul.bf16.gmra.mxu0 %v1034
        %v1151 = vpop.f32.mrf.mxu0
        %v1152 = vadd.f32 %v1123, %v1151
        %v1153 = vpop.f32.mrf.mxu0
        %v1154 = vadd.f32 %v1125, %v1153
        %1155 = vmatmul.bf16.gmra.mxu0 %v1036
        %v1156 = vpop.f32.mrf.mxu0
        %v1157 = vadd.f32 %v1128, %v1156
        %v1158 = vpop.f32.mrf.mxu0
        %v1159 = vadd.f32 %v1130, %v1158
        %1160 = vdwg.mxu0
        %1161 = vmatpush.bf16.msra.mxu0 %v666
        %1162 = vmatpush.bf16.msra.mxu0 %v662
        %1163 = vmatpush.bf16.msra.mxu0 %v658
        %1164 = vmatpush.bf16.msra.mxu0 %v654
        %1165 = vmatpush.bf16.msra.mxu0 %v650
        %1166 = vmatpush.bf16.msra.mxu0 %v646
        %1167 = vmatpush.bf16.msra.mxu0 %v642
        %1168 = vmatpush.bf16.msra.mxu0 %v638
        %1169 = vmatmul.bf16.gmra.mxu0 %v1029
        %v1170 = vpop.f32.mrf.mxu0
        %v1171 = vadd.f32 0.0, %v1170
        %v1172 = vpop.f32.mrf.mxu0
        %v1173 = vadd.f32 0.0, %v1172
        %1174 = vmatmul.bf16.gmra.mxu0 %v1031
        %v1175 = vpop.f32.mrf.mxu0
        %v1176 = vadd.f32 0.0, %v1175
        %v1177 = vpop.f32.mrf.mxu0
        %v1178 = vadd.f32 0.0, %v1177
        %1179 = vmatmul.bf16.gmra.mxu0 %v1033
        %v1180 = vpop.f32.mrf.mxu0
        %v1181 = vadd.f32 0.0, %v1180
        %v1182 = vpop.f32.mrf.mxu0
        %v1183 = vadd.f32 0.0, %v1182
        %1184 = vmatmul.bf16.gmra.mxu0 %v1035
        %v1185 = vpop.f32.mrf.mxu0
        %v1186 = vadd.f32 0.0, %v1185
        %v1187 = vpop.f32.mrf.mxu0
        %v1188 = vadd.f32 0.0, %v1187
        %1189 = vdwg.mxu0
        %1190 = vmatpush.bf16.msra.mxu0 %v698
        %1191 = vmatpush.bf16.msra.mxu0 %v694
        %1192 = vmatpush.bf16.msra.mxu0 %v690
        %1193 = vmatpush.bf16.msra.mxu0 %v686
        %1194 = vmatpush.bf16.msra.mxu0 %v682
        %1195 = vmatpush.bf16.msra.mxu0 %v678
        %1196 = vmatpush.bf16.msra.mxu0 %v674
        %1197 = vmatpush.bf16.msra.mxu0 %v670
        %1198 = vmatmul.bf16.gmra.mxu0 %v1030
        %v1199 = vpop.f32.mrf.mxu0
        %v1200 = vadd.f32 %v1171, %v1199
        %v1201 = vpop.f32.mrf.mxu0
        %v1202 = vadd.f32 %v1173, %v1201
        %1203 = vmatmul.bf16.gmra.mxu0 %v1032
        %v1204 = vpop.f32.mrf.mxu0
        %v1205 = vadd.f32 %v1176, %v1204
        %v1206 = vpop.f32.mrf.mxu0
        %v1207 = vadd.f32 %v1178, %v1206
        %1208 = vmatmul.bf16.gmra.mxu0 %v1034
        %v1209 = vpop.f32.mrf.mxu0
        %v1210 = vadd.f32 %v1181, %v1209
        %v1211 = vpop.f32.mrf.mxu0
        %v1212 = vadd.f32 %v1183, %v1211
        %1213 = vmatmul.bf16.gmra.mxu0 %v1036
        %v1214 = vpop.f32.mrf.mxu0
        %v1215 = vadd.f32 %v1186, %v1214
        %v1216 = vpop.f32.mrf.mxu0
        %v1217 = vadd.f32 %v1188, %v1216
        %1218 = vdwg.mxu0
        %1219 = vmatpush.bf16.msra.mxu0 %v667
        %1220 = vmatpush.bf16.msra.mxu0 %v663
        %1221 = vmatpush.bf16.msra.mxu0 %v659
        %1222 = vmatpush.bf16.msra.mxu0 %v655
        %1223 = vmatpush.bf16.msra.mxu0 %v651
        %1224 = vmatpush.bf16.msra.mxu0 %v647
        %1225 = vmatpush.bf16.msra.mxu0 %v643
        %1226 = vmatpush.bf16.msra.mxu0 %v639
        %1227 = vmatmul.bf16.gmra.mxu0 %v1029
        %v1228 = vpop.f32.mrf.mxu0
        %v1229 = vadd.f32 0.0, %v1228
        %v1230 = vpop.f32.mrf.mxu0
        %v1231 = vadd.f32 0.0, %v1230
        %1232 = vmatmul.bf16.gmra.mxu0 %v1031
        %v1233 = vpop.f32.mrf.mxu0
        %v1234 = vadd.f32 0.0, %v1233
        %v1235 = vpop.f32.mrf.mxu0
        %v1236 = vadd.f32 0.0, %v1235
        %1237 = vmatmul.bf16.gmra.mxu0 %v1033
        %v1238 = vpop.f32.mrf.mxu0
        %v1239 = vadd.f32 0.0, %v1238
        %v1240 = vpop.f32.mrf.mxu0
        %v1241 = vadd.f32 0.0, %v1240
        %1242 = vmatmul.bf16.gmra.mxu0 %v1035
        %v1243 = vpop.f32.mrf.mxu0
        %v1244 = vadd.f32 0.0, %v1243
        %v1245 = vpop.f32.mrf.mxu0
        %v1246 = vadd.f32 0.0, %v1245
        %1247 = vdwg.mxu0
        %1248 = vmatpush.bf16.msra.mxu0 %v699
        %1249 = vmatpush.bf16.msra.mxu0 %v695
        %1250 = vmatpush.bf16.msra.mxu0 %v691
        %1251 = vmatpush.bf16.msra.mxu0 %v687
        %1252 = vmatpush.bf16.msra.mxu0 %v683
        %1253 = vmatpush.bf16.msra.mxu0 %v679
        %1254 = vmatpush.bf16.msra.mxu0 %v675
        %1255 = vmatpush.bf16.msra.mxu0 %v671
        %1256 = vmatmul.bf16.gmra.mxu0 %v1030
        %v1257 = vpop.f32.mrf.mxu0
        %v1258 = vadd.f32 %v1229, %v1257
        %v1259 = vpop.f32.mrf.mxu0
        %v1260 = vadd.f32 %v1231, %v1259
        %1261 = vmatmul.bf16.gmra.mxu0 %v1032
        %v1262 = vpop.f32.mrf.mxu0
        %v1263 = vadd.f32 %v1234, %v1262
        %v1264 = vpop.f32.mrf.mxu0
        %v1265 = vadd.f32 %v1236, %v1264
        %1266 = vmatmul.bf16.gmra.mxu0 %v1034
        %v1267 = vpop.f32.mrf.mxu0
        %v1268 = vadd.f32 %v1239, %v1267
        %v1269 = vpop.f32.mrf.mxu0
        %v1270 = vadd.f32 %v1241, %v1269
        %1271 = vmatmul.bf16.gmra.mxu0 %v1036
        %v1272 = vpop.f32.mrf.mxu0
        %v1273 = vadd.f32 %v1244, %v1272
        %v1274 = vpop.f32.mrf.mxu0
        %v1275 = vadd.f32 %v1246, %v1274
        %1276 = vdwg.mxu0
        %v1277 = vmax.f32 %v803, %v1084
        %v1278 = vmax.f32 %v861, %v1142
        %v1279 = vmax.f32 %v919, %v1200
        %v1280 = vmax.f32 %v977, %v1258
        %v1281 = vmax.f32 %v805, %v1086
        %v1282 = vmax.f32 %v863, %v1144
        %v1283 = vmax.f32 %v921, %v1202
        %v1284 = vmax.f32 %v979, %v1260
        %v1285 = vmax.f32 %v808, %v1089
        %v1286 = vmax.f32 %v866, %v1147
        %v1287 = vmax.f32 %v924, %v1205
        %v1288 = vmax.f32 %v982, %v1263
        %v1289 = vmax.f32 %v810, %v1091
        %v1290 = vmax.f32 %v868, %v1149
        %v1291 = vmax.f32 %v926, %v1207
        %v1292 = vmax.f32 %v984, %v1265
        %v1293 = vmax.f32 %v813, %v1094
        %v1294 = vmax.f32 %v871, %v1152
        %v1295 = vmax.f32 %v929, %v1210
        %v1296 = vmax.f32 %v987, %v1268
        %v1297 = vmax.f32 %v815, %v1096
        %v1298 = vmax.f32 %v873, %v1154
        %v1299 = vmax.f32 %v931, %v1212
        %v1300 = vmax.f32 %v989, %v1270
        %v1301 = vmax.f32 %v818, %v1099
        %v1302 = vmax.f32 %v876, %v1157
        %v1303 = vmax.f32 %v934, %v1215
        %v1304 = vmax.f32 %v992, %v1273
        %v1305 = vmax.f32 %v820, %v1101
        %v1306 = vmax.f32 %v878, %v1159
        %v1307 = vmax.f32 %v936, %v1217
        %v1308 = vmax.f32 %v994, %v1275
        %v1309 = vmax.f32 %v1277, %v1279
        %v1310 = vmax.f32 %v1278, %v1280
        %v1311 = vmax.f32 %v1281, %v1283
        %v1312 = vmax.f32 %v1282, %v1284
        %v1313 = vmax.f32 %v1285, %v1287
        %v1314 = vmax.f32 %v1286, %v1288
        %v1315 = vmax.f32 %v1289, %v1291
        %v1316 = vmax.f32 %v1290, %v1292
        %v1317 = vmax.f32 %v1293, %v1295
        %v1318 = vmax.f32 %v1294, %v1296
        %v1319 = vmax.f32 %v1297, %v1299
        %v1320 = vmax.f32 %v1298, %v1300
        %v1321 = vmax.f32 %v1301, %v1303
        %v1322 = vmax.f32 %v1302, %v1304
        %v1323 = vmax.f32 %v1305, %v1307
        %v1324 = vmax.f32 %v1306, %v1308
        %v1325 = vld [vmem:[%s2] sm:$0x3]
        %v1327 = vperm.slane %v1325, 0
        %v1328 = vperm.slane %v1325, 1
        %v1331 = vadd.f32 %v1309, %v1327
        %v1332 = vadd.f32 %v1310, %v1328
        %v1333 = vadd.f32 %v1311, %v1327
        %v1334 = vadd.f32 %v1312, %v1328
        %v1335 = vadd.f32 %v1313, %v1327
        %v1336 = vadd.f32 %v1314, %v1328
        %v1337 = vadd.f32 %v1315, %v1327
        %v1338 = vadd.f32 %v1316, %v1328
        %v1339 = vadd.f32 %v1317, %v1327
        %v1340 = vadd.f32 %v1318, %v1328
        %v1341 = vadd.f32 %v1319, %v1327
        %v1342 = vadd.f32 %v1320, %v1328
        %v1343 = vadd.f32 %v1321, %v1327
        %v1344 = vadd.f32 %v1322, %v1328
        %v1345 = vadd.f32 %v1323, %v1327
        %v1346 = vadd.f32 %v1324, %v1328
        %v1347 = vmax.f32 %v1331, 0.0
        %v1348 = vmax.f32 %v1332, 0.0
        %v1349 = vmax.f32 %v1333, 0.0
        %v1350 = vmax.f32 %v1334, 0.0
        %v1351 = vmax.f32 %v1335, 0.0
        %v1352 = vmax.f32 %v1336, 0.0
        %v1353 = vmax.f32 %v1337, 0.0
        %v1354 = vmax.f32 %v1338, 0.0
        %v1355 = vmax.f32 %v1339, 0.0
        %v1356 = vmax.f32 %v1340, 0.0
        %v1357 = vmax.f32 %v1341, 0.0
        %v1358 = vmax.f32 %v1342, 0.0
        %v1359 = vmax.f32 %v1343, 0.0
        %v1360 = vmax.f32 %v1344, 0.0
        %v1361 = vmax.f32 %v1345, 0.0
        %v1362 = vmax.f32 %v1346, 0.0
        %v1363 = vpack.c.bf16 %v1348, %v1347
        %v1364 = vpack.c.bf16 %v1350, %v1349
        %v1365 = vpack.c.bf16 %v1352, %v1351
        %v1366 = vpack.c.bf16 %v1354, %v1353
        %v1367 = vpack.c.bf16 %v1356, %v1355
        %v1368 = vpack.c.bf16 %v1358, %v1357
        %v1369 = vpack.c.bf16 %v1360, %v1359
        %v1370 = vpack.c.bf16 %v1362, %v1361
        %1371 = vst [vmem:[#allocation2] sm:$0xff] 0
        %1372 = vst [vmem:[#allocation2 + $0x8] sm:$0xff] 0
        %1373 = vst [vmem:[#allocation2 + $0x10] sm:$0xff] 0
        %1374 = vst [vmem:[#allocation2 + $0x18] sm:$0xff] 0
        %1375 = vst [vmem:[#allocation2 + $0x20] sm:$0xff] 0
        %1376 = vst [vmem:[#allocation2 + $0x28] sm:$0xff] 0
        %1377 = vst [vmem:[#allocation2 + $0x30] sm:$0xff] 0
        %1378 = vst [vmem:[#allocation2 + $0x38] sm:$0xff] 0
        %1379 = vst [vmem:[#allocation2 + $0x40] sm:$0xff] 0
        %1380 = vst [vmem:[#allocation2 + $0x48] sm:$0xff] 0
        %1381 = vst [vmem:[#allocation2 + $0x50] sm:$0xff] 0
        %1382 = vst [vmem:[#allocation2 + $0x58] sm:$0xff] 0
        %1383 = vst [vmem:[#allocation2 + $0x60] sm:$0xff] 0
        %1384 = vst [vmem:[#allocation2 + $0x68] sm:$0xff] 0
        %1385 = vst [vmem:[#allocation2 + $0x70] sm:$0xff] 0
        %1386 = vst [vmem:[#allocation2 + $0x78] sm:$0xff] 0
        %1387 = vst [vmem:[#allocation2 + $0x80] sm:$0xff] 0
        %1388 = vst [vmem:[#allocation2 + $0x88] sm:$0xff] 0
        %1389 = vst [vmem:[#allocation2 + $0x90] sm:$0xff] 0
        %1390 = vst [vmem:[#allocation2 + $0x98] sm:$0xff] 0
        %s1391 = scalar_lea.vmem [#allocation2], 16
        %1392 = vst [vmem:[%s1391 + $0x4] sm:$0xff] %v1363
        %s1393 = scalar_lea.vmem [#allocation2], 32
        %1394 = vst [vmem:[%s1393 + $0x4] sm:$0xff] %v1364
        %s1395 = scalar_lea.vmem [#allocation2], 48
        %1396 = vst [vmem:[%s1395 + $0x4] sm:$0xff] %v1365
        %s1397 = scalar_lea.vmem [#allocation2], 64
        %1398 = vst [vmem:[%s1397 + $0x4] sm:$0xff] %v1366
        %s1399 = scalar_lea.vmem [#allocation2], 80
        %1400 = vst [vmem:[%s1399 + $0x4] sm:$0xff] %v1367
        %s1401 = scalar_lea.vmem [#allocation2], 96
        %1402 = vst [vmem:[%s1401 + $0x4] sm:$0xff] %v1368
        %s1403 = scalar_lea.vmem [#allocation2], 112
        %1404 = vst [vmem:[%s1403 + $0x4] sm:$0xff] %v1369
        %s1405 = scalar_lea.vmem [#allocation2], 128
        %1406 = vst [vmem:[%s1405 + $0x4] sm:$0xff] %v1370
        %v1407 = vld [vmem:[#allocation2] sm:$0xff]
        %v1408 = vld [vmem:[#allocation2 + $0x8] sm:$0xff]
        %1409 = vst [vmem:[#allocation3] sm:$0xff] %v1407
        %1410 = vst [vmem:[#allocation3 + $0x8] sm:$0xff] %v1408
        %v1411 = vld [vmem:[%s1391] sm:$0xff]
        %v1412 = vld [vmem:[%s1391 + $0x8] sm:$0xff]
        %1413 = vst [vmem:[#allocation3 + $0x10] sm:$0xff] %v1411
        %1414 = vst [vmem:[#allocation3 + $0x18] sm:$0xff] %v1412
        %v1415 = vld [vmem:[%s1393] sm:$0xff]
        %v1416 = vld [vmem:[%s1393 + $0x8] sm:$0xff]
        %1417 = vst [vmem:[#allocation3 + $0x20] sm:$0xff] %v1415
        %1418 = vst [vmem:[#allocation3 + $0x28] sm:$0xff] %v1416
        %v1419 = vld [vmem:[%s1393] sm:$0xff]
        %v1420 = vld [vmem:[%s1393 + $0x8] sm:$0xff]
        %1421 = vst [vmem:[#allocation3 + $0x30] sm:$0xff] %v1419
        %1422 = vst [vmem:[#allocation3 + $0x38] sm:$0xff] %v1420
        %v1423 = vld [vmem:[%s1395] sm:$0xff]
        %v1424 = vld [vmem:[%s1395 + $0x8] sm:$0xff]
        %1425 = vst [vmem:[#allocation3 + $0x40] sm:$0xff] %v1423
        %1426 = vst [vmem:[#allocation3 + $0x48] sm:$0xff] %v1424
        %v1427 = vld [vmem:[%s1397] sm:$0xff]
        %v1428 = vld [vmem:[%s1397 + $0x8] sm:$0xff]
        %1429 = vst [vmem:[#allocation3 + $0x50] sm:$0xff] %v1427
        %1430 = vst [vmem:[#allocation3 + $0x58] sm:$0xff] %v1428
        %v1431 = vld [vmem:[%s1397] sm:$0xff]
        %v1432 = vld [vmem:[%s1397 + $0x8] sm:$0xff]
        %1433 = vst [vmem:[#allocation3 + $0x60] sm:$0xff] %v1431
        %1434 = vst [vmem:[#allocation3 + $0x68] sm:$0xff] %v1432
        %v1435 = vld [vmem:[%s1399] sm:$0xff]
        %v1436 = vld [vmem:[%s1399 + $0x8] sm:$0xff]
        %1437 = vst [vmem:[#allocation3 + $0x70] sm:$0xff] %v1435
        %1438 = vst [vmem:[#allocation3 + $0x78] sm:$0xff] %v1436
        %v1439 = vld [vmem:[%s1401] sm:$0xff]
        %v1440 = vld [vmem:[%s1401 + $0x8] sm:$0xff]
        %1441 = vst [vmem:[#allocation3 + $0x80] sm:$0xff] %v1439
        %1442 = vst [vmem:[#allocation3 + $0x88] sm:$0xff] %v1440
        %v1443 = vld [vmem:[%s1401] sm:$0xff]
        %v1444 = vld [vmem:[%s1401 + $0x8] sm:$0xff]
        %1445 = vst [vmem:[#allocation3 + $0x90] sm:$0xff] %v1443
        %1446 = vst [vmem:[#allocation3 + $0x98] sm:$0xff] %v1444
        %v1447 = vld [vmem:[%s1403] sm:$0xff]
        %v1448 = vld [vmem:[%s1403 + $0x8] sm:$0xff]
        %1449 = vst [vmem:[#allocation3 + $0xa0] sm:$0xff] %v1447
        %1450 = vst [vmem:[#allocation3 + $0xa8] sm:$0xff] %v1448
        %v1451 = vld [vmem:[%s1405] sm:$0xff]
        %v1452 = vld [vmem:[%s1405 + $0x8] sm:$0xff]
        %1453 = vst [vmem:[#allocation3 + $0xb0] sm:$0xff] %v1451
        %1454 = vst [vmem:[#allocation3 + $0xb8] sm:$0xff] %v1452
        %v1455 = vld [vmem:[%s1391] sm:$0xff]
        %v1456 = vld [vmem:[%s1391 + $0x8] sm:$0xff]
        %s1457 = scalar_lea.vmem [#allocation3], 192
        %1458 = vst [vmem:[%s1457] sm:$0xff] %v1455
        %1459 = vst [vmem:[%s1457 + $0x8] sm:$0xff] %v1456
        %v1460 = vld [vmem:[%s1393] sm:$0xff]
        %v1461 = vld [vmem:[%s1393 + $0x8] sm:$0xff]
        %1462 = vst [vmem:[%s1457 + $0x10] sm:$0xff] %v1460
        %1463 = vst [vmem:[%s1457 + $0x18] sm:$0xff] %v1461
        %v1464 = vld [vmem:[%s1395] sm:$0xff]
        %v1465 = vld [vmem:[%s1395 + $0x8] sm:$0xff]
        %1466 = vst [vmem:[%s1457 + $0x20] sm:$0xff] %v1464
        %1467 = vst [vmem:[%s1457 + $0x28] sm:$0xff] %v1465
        %v1468 = vld [vmem:[%s1395] sm:$0xff]
        %v1469 = vld [vmem:[%s1395 + $0x8] sm:$0xff]
        %1470 = vst [vmem:[%s1457 + $0x30] sm:$0xff] %v1468
        %1471 = vst [vmem:[%s1457 + $0x38] sm:$0xff] %v1469
        %v1472 = vld [vmem:[%s1397] sm:$0xff]
        %v1473 = vld [vmem:[%s1397 + $0x8] sm:$0xff]
        %1474 = vst [vmem:[%s1457 + $0x40] sm:$0xff] %v1472
        %1475 = vst [vmem:[%s1457 + $0x48] sm:$0xff] %v1473
        %v1476 = vld [vmem:[%s1399] sm:$0xff]
        %v1477 = vld [vmem:[%s1399 + $0x8] sm:$0xff]
        %1478 = vst [vmem:[%s1457 + $0x50] sm:$0xff] %v1476
        %1479 = vst [vmem:[%s1457 + $0x58] sm:$0xff] %v1477
        %v1480 = vld [vmem:[%s1399] sm:$0xff]
        %v1481 = vld [vmem:[%s1399 + $0x8] sm:$0xff]
        %1482 = vst [vmem:[%s1457 + $0x60] sm:$0xff] %v1480
        %1483 = vst [vmem:[%s1457 + $0x68] sm:$0xff] %v1481
        %v1484 = vld [vmem:[%s1401] sm:$0xff]
        %v1485 = vld [vmem:[%s1401 + $0x8] sm:$0xff]
        %1486 = vst [vmem:[%s1457 + $0x70] sm:$0xff] %v1484
        %1487 = vst [vmem:[%s1457 + $0x78] sm:$0xff] %v1485
        %v1488 = vld [vmem:[%s1403] sm:$0xff]
        %v1489 = vld [vmem:[%s1403 + $0x8] sm:$0xff]
        %1490 = vst [vmem:[%s1457 + $0x80] sm:$0xff] %v1488
        %1491 = vst [vmem:[%s1457 + $0x88] sm:$0xff] %v1489
        %v1492 = vld [vmem:[%s1403] sm:$0xff]
        %v1493 = vld [vmem:[%s1403 + $0x8] sm:$0xff]
        %1494 = vst [vmem:[%s1457 + $0x90] sm:$0xff] %v1492
        %1495 = vst [vmem:[%s1457 + $0x98] sm:$0xff] %v1493
        %v1496 = vld [vmem:[%s1405] sm:$0xff]
        %v1497 = vld [vmem:[%s1405 + $0x8] sm:$0xff]
        %1498 = vst [vmem:[%s1457 + $0xa0] sm:$0xff] %v1496
        %1499 = vst [vmem:[%s1457 + $0xa8] sm:$0xff] %v1497
        %s1500 = scalar_lea.vmem [#allocation2], 144
        %v1501 = vld [vmem:[%s1500] sm:$0xff]
        %v1502 = vld [vmem:[%s1500 + $0x8] sm:$0xff]
        %1503 = vst [vmem:[%s1457 + $0xb0] sm:$0xff] %v1501
        %1504 = vst [vmem:[%s1457 + $0xb8] sm:$0xff] %v1502
        %v1505 = vld [vmem:[%s3] sm:$0xff]
        %v1506 = vld [vmem:[%s3 + $0x8] sm:$0xff]
        %v1507 = vld [vmem:[%s3 + $0x10] sm:$0xff]
        %v1508 = vld [vmem:[%s3 + $0x18] sm:$0xff]
        %v1509 = vld [vmem:[%s3 + $0x20] sm:$0xff]
        %v1510 = vld [vmem:[%s3 + $0x28] sm:$0xff]
        %v1511 = vld [vmem:[%s3 + $0x30] sm:$0xff]
        %v1512 = vld [vmem:[%s3 + $0x38] sm:$0xff]
        %v1513 = vld [vmem:[%s3 + $0x40] sm:$0xff]
        %v1514 = vld [vmem:[%s3 + $0x48] sm:$0xff]
        %v1515 = vld [vmem:[%s3 + $0x50] sm:$0xff]
        %v1516 = vld [vmem:[%s3 + $0x58] sm:$0xff]
        %v1517 = vld [vmem:[%s3 + $0x60] sm:$0xff]
        %v1518 = vld [vmem:[%s3 + $0x68] sm:$0xff]
        %v1519 = vld [vmem:[%s3 + $0x70] sm:$0xff]
        %v1520 = vld [vmem:[%s3 + $0x78] sm:$0xff]
        %v1521 = vld [vmem:[%s3 + $0x80] sm:$0xff]
        %v1522 = vld [vmem:[%s3 + $0x88] sm:$0xff]
        %v1523 = vld [vmem:[%s3 + $0x90] sm:$0xff]
        %v1524 = vld [vmem:[%s3 + $0x98] sm:$0xff]
        %v1525 = vld [vmem:[%s3 + $0xa0] sm:$0xff]
        %v1526 = vld [vmem:[%s3 + $0xa8] sm:$0xff]
        %v1527 = vld [vmem:[%s3 + $0xb0] sm:$0xff]
        %v1528 = vld [vmem:[%s3 + $0xb8] sm:$0xff]
        %v1529 = vld [vmem:[%s3 + $0xc0] sm:$0xff]
        %v1530 = vld [vmem:[%s3 + $0xc8] sm:$0xff]
        %v1531 = vld [vmem:[%s3 + $0xd0] sm:$0xff]
        %v1532 = vld [vmem:[%s3 + $0xd8] sm:$0xff]
        %v1533 = vld [vmem:[%s3 + $0xe0] sm:$0xff]
        %v1534 = vld [vmem:[%s3 + $0xe8] sm:$0xff]
        %v1535 = vld [vmem:[%s3 + $0xf0] sm:$0xff]
        %v1536 = vld [vmem:[%s3 + $0xf8] sm:$0xff]
        %v1537 = vld [vmem:[%s3 + $0x100] sm:$0xff]
        %v1538 = vld [vmem:[%s3 + $0x108] sm:$0xff]
        %v1539 = vld [vmem:[%s3 + $0x110] sm:$0xff]
        %v1540 = vld [vmem:[%s3 + $0x118] sm:$0xff]
        %v1541 = vld [vmem:[%s3 + $0x120] sm:$0xff]
        %v1542 = vld [vmem:[%s3 + $0x128] sm:$0xff]
        %v1543 = vld [vmem:[%s3 + $0x130] sm:$0xff]
        %v1544 = vld [vmem:[%s3 + $0x138] sm:$0xff]
        %v1545 = vld [vmem:[%s3 + $0x140] sm:$0xff]
        %v1546 = vld [vmem:[%s3 + $0x148] sm:$0xff]
        %v1547 = vld [vmem:[%s3 + $0x150] sm:$0xff]
        %v1548 = vld [vmem:[%s3 + $0x158] sm:$0xff]
        %v1549 = vld [vmem:[%s3 + $0x160] sm:$0xff]
        %v1550 = vld [vmem:[%s3 + $0x168] sm:$0xff]
        %v1551 = vld [vmem:[%s3 + $0x170] sm:$0xff]
        %v1552 = vld [vmem:[%s3 + $0x178] sm:$0xff]
        %v1553 = vld [vmem:[%s3 + $0x180] sm:$0xff]
        %v1554 = vld [vmem:[%s3 + $0x188] sm:$0xff]
        %v1555 = vld [vmem:[%s3 + $0x190] sm:$0xff]
        %v1556 = vld [vmem:[%s3 + $0x198] sm:$0xff]
        %v1557 = vld [vmem:[%s3 + $0x1a0] sm:$0xff]
        %v1558 = vld [vmem:[%s3 + $0x1a8] sm:$0xff]
        %v1559 = vld [vmem:[%s3 + $0x1b0] sm:$0xff]
        %v1560 = vld [vmem:[%s3 + $0x1b8] sm:$0xff]
        %v1561 = vld [vmem:[%s3 + $0x1c0] sm:$0xff]
        %v1562 = vld [vmem:[%s3 + $0x1c8] sm:$0xff]
        %v1563 = vld [vmem:[%s3 + $0x1d0] sm:$0xff]
        %v1564 = vld [vmem:[%s3 + $0x1d8] sm:$0xff]
        %v1565 = vld [vmem:[%s3 + $0x1e0] sm:$0xff]
        %v1566 = vld [vmem:[%s3 + $0x1e8] sm:$0xff]
        %v1567 = vld [vmem:[%s3 + $0x1f0] sm:$0xff]
        %v1568 = vld [vmem:[%s3 + $0x1f8] sm:$0xff]
        %v1569 = vld [vmem:[%s3 + $0x200] sm:$0xff]
        %v1570 = vld [vmem:[%s3 + $0x208] sm:$0xff]
        %v1571 = vld [vmem:[%s3 + $0x210] sm:$0xff]
        %v1572 = vld [vmem:[%s3 + $0x218] sm:$0xff]
        %v1573 = vld [vmem:[%s3 + $0x220] sm:$0xff]
        %v1574 = vld [vmem:[%s3 + $0x228] sm:$0xff]
        %v1575 = vld [vmem:[%s3 + $0x230] sm:$0xff]
        %v1576 = vld [vmem:[%s3 + $0x238] sm:$0xff]
        %v1577 = vld [vmem:[%s3 + $0x240] sm:$0xff]
        %v1578 = vld [vmem:[%s3 + $0x248] sm:$0xff]
        %v1579 = vld [vmem:[%s3 + $0x250] sm:$0xff]
        %v1580 = vld [vmem:[%s3 + $0x258] sm:$0xff]
        %v1581 = vld [vmem:[%s3 + $0x260] sm:$0xff]
        %v1582 = vld [vmem:[%s3 + $0x268] sm:$0xff]
        %v1583 = vld [vmem:[%s3 + $0x270] sm:$0xff]
        %v1584 = vld [vmem:[%s3 + $0x278] sm:$0xff]
        %v1585 = vld [vmem:[%s3 + $0x280] sm:$0xff]
        %v1586 = vld [vmem:[%s3 + $0x288] sm:$0xff]
        %v1587 = vld [vmem:[%s3 + $0x290] sm:$0xff]
        %v1588 = vld [vmem:[%s3 + $0x298] sm:$0xff]
        %v1589 = vld [vmem:[%s3 + $0x2a0] sm:$0xff]
        %v1590 = vld [vmem:[%s3 + $0x2a8] sm:$0xff]
        %v1591 = vld [vmem:[%s3 + $0x2b0] sm:$0xff]
        %v1592 = vld [vmem:[%s3 + $0x2b8] sm:$0xff]
        %v1593 = vld [vmem:[%s3 + $0x2c0] sm:$0xff]
        %v1594 = vld [vmem:[%s3 + $0x2c8] sm:$0xff]
        %v1595 = vld [vmem:[%s3 + $0x2d0] sm:$0xff]
        %v1596 = vld [vmem:[%s3 + $0x2d8] sm:$0xff]
        %v1597 = vld [vmem:[%s3 + $0x2e0] sm:$0xff]
        %v1598 = vld [vmem:[%s3 + $0x2e8] sm:$0xff]
        %v1599 = vld [vmem:[%s3 + $0x2f0] sm:$0xff]
        %v1600 = vld [vmem:[%s3 + $0x2f8] sm:$0xff]
        %v1601 = vld [vmem:[%s3 + $0x300] sm:$0xff]
        %v1602 = vld [vmem:[%s3 + $0x308] sm:$0xff]
        %v1603 = vld [vmem:[%s3 + $0x310] sm:$0xff]
        %v1604 = vld [vmem:[%s3 + $0x318] sm:$0xff]
        %v1605 = vld [vmem:[%s3 + $0x320] sm:$0xff]
        %v1606 = vld [vmem:[%s3 + $0x328] sm:$0xff]
        %v1607 = vld [vmem:[%s3 + $0x330] sm:$0xff]
        %v1608 = vld [vmem:[%s3 + $0x338] sm:$0xff]
        %v1609 = vld [vmem:[%s3 + $0x340] sm:$0xff]
        %v1610 = vld [vmem:[%s3 + $0x348] sm:$0xff]
        %v1611 = vld [vmem:[%s3 + $0x350] sm:$0xff]
        %v1612 = vld [vmem:[%s3 + $0x358] sm:$0xff]
        %v1613 = vld [vmem:[%s3 + $0x360] sm:$0xff]
        %v1614 = vld [vmem:[%s3 + $0x368] sm:$0xff]
        %v1615 = vld [vmem:[%s3 + $0x370] sm:$0xff]
        %v1616 = vld [vmem:[%s3 + $0x378] sm:$0xff]
        %v1617 = vld [vmem:[%s3 + $0x380] sm:$0xff]
        %v1618 = vld [vmem:[%s3 + $0x388] sm:$0xff]
        %v1619 = vld [vmem:[%s3 + $0x390] sm:$0xff]
        %v1620 = vld [vmem:[%s3 + $0x398] sm:$0xff]
        %v1621 = vld [vmem:[%s3 + $0x3a0] sm:$0xff]
        %v1622 = vld [vmem:[%s3 + $0x3a8] sm:$0xff]
        %v1623 = vld [vmem:[%s3 + $0x3b0] sm:$0xff]
        %v1624 = vld [vmem:[%s3 + $0x3b8] sm:$0xff]
        %v1625 = vld [vmem:[%s3 + $0x3c0] sm:$0xff]
        %v1626 = vld [vmem:[%s3 + $0x3c8] sm:$0xff]
        %v1627 = vld [vmem:[%s3 + $0x3d0] sm:$0xff]
        %v1628 = vld [vmem:[%s3 + $0x3d8] sm:$0xff]
        %v1629 = vld [vmem:[%s3 + $0x3e0] sm:$0xff]
        %v1630 = vld [vmem:[%s3 + $0x3e8] sm:$0xff]
        %v1631 = vld [vmem:[%s3 + $0x3f0] sm:$0xff]
        %v1632 = vld [vmem:[%s3 + $0x3f8] sm:$0xff]
        %v1633 = vld [vmem:[%s3 + $0x400] sm:$0xff]
        %v1634 = vld [vmem:[%s3 + $0x408] sm:$0xff]
        %v1635 = vld [vmem:[%s3 + $0x410] sm:$0xff]
        %v1636 = vld [vmem:[%s3 + $0x418] sm:$0xff]
        %v1637 = vld [vmem:[%s3 + $0x420] sm:$0xff]
        %v1638 = vld [vmem:[%s3 + $0x428] sm:$0xff]
        %v1639 = vld [vmem:[%s3 + $0x430] sm:$0xff]
        %v1640 = vld [vmem:[%s3 + $0x438] sm:$0xff]
        %v1641 = vld [vmem:[%s3 + $0x440] sm:$0xff]
        %v1642 = vld [vmem:[%s3 + $0x448] sm:$0xff]
        %v1643 = vld [vmem:[%s3 + $0x450] sm:$0xff]
        %v1644 = vld [vmem:[%s3 + $0x458] sm:$0xff]
        %v1645 = vld [vmem:[%s3 + $0x460] sm:$0xff]
        %v1646 = vld [vmem:[%s3 + $0x468] sm:$0xff]
        %v1647 = vld [vmem:[%s3 + $0x470] sm:$0xff]
        %v1648 = vld [vmem:[%s3 + $0x478] sm:$0xff]
        %v1649 = vld [vmem:[%s3 + $0x480] sm:$0xff]
        %v1650 = vld [vmem:[%s3 + $0x488] sm:$0xff]
        %v1651 = vld [vmem:[%s3 + $0x490] sm:$0xff]
        %v1652 = vld [vmem:[%s3 + $0x498] sm:$0xff]
        %v1653 = vld [vmem:[%s3 + $0x4a0] sm:$0xff]
        %v1654 = vld [vmem:[%s3 + $0x4a8] sm:$0xff]
        %v1655 = vld [vmem:[%s3 + $0x4b0] sm:$0xff]
        %v1656 = vld [vmem:[%s3 + $0x4b8] sm:$0xff]
        %v1657 = vld [vmem:[%s3 + $0x4c0] sm:$0xff]
        %v1658 = vld [vmem:[%s3 + $0x4c8] sm:$0xff]
        %v1659 = vld [vmem:[%s3 + $0x4d0] sm:$0xff]
        %v1660 = vld [vmem:[%s3 + $0x4d8] sm:$0xff]
        %v1661 = vld [vmem:[%s3 + $0x4e0] sm:$0xff]
        %v1662 = vld [vmem:[%s3 + $0x4e8] sm:$0xff]
        %v1663 = vld [vmem:[%s3 + $0x4f0] sm:$0xff]
        %v1664 = vld [vmem:[%s3 + $0x4f8] sm:$0xff]
        %v1665 = vld [vmem:[%s3 + $0x500] sm:$0xff]
        %v1666 = vld [vmem:[%s3 + $0x508] sm:$0xff]
        %v1667 = vld [vmem:[%s3 + $0x510] sm:$0xff]
        %v1668 = vld [vmem:[%s3 + $0x518] sm:$0xff]
        %v1669 = vld [vmem:[%s3 + $0x520] sm:$0xff]
        %v1670 = vld [vmem:[%s3 + $0x528] sm:$0xff]
        %v1671 = vld [vmem:[%s3 + $0x530] sm:$0xff]
        %v1672 = vld [vmem:[%s3 + $0x538] sm:$0xff]
        %v1673 = vld [vmem:[%s3 + $0x540] sm:$0xff]
        %v1674 = vld [vmem:[%s3 + $0x548] sm:$0xff]
        %v1675 = vld [vmem:[%s3 + $0x550] sm:$0xff]
        %v1676 = vld [vmem:[%s3 + $0x558] sm:$0xff]
        %v1677 = vld [vmem:[%s3 + $0x560] sm:$0xff]
        %v1678 = vld [vmem:[%s3 + $0x568] sm:$0xff]
        %v1679 = vld [vmem:[%s3 + $0x570] sm:$0xff]
        %v1680 = vld [vmem:[%s3 + $0x578] sm:$0xff]
        %v1681 = vld [vmem:[%s3 + $0x580] sm:$0xff]
        %v1682 = vld [vmem:[%s3 + $0x588] sm:$0xff]
        %v1683 = vld [vmem:[%s3 + $0x590] sm:$0xff]
        %v1684 = vld [vmem:[%s3 + $0x598] sm:$0xff]
        %v1685 = vld [vmem:[%s3 + $0x5a0] sm:$0xff]
        %v1686 = vld [vmem:[%s3 + $0x5a8] sm:$0xff]
        %v1687 = vld [vmem:[%s3 + $0x5b0] sm:$0xff]
        %v1688 = vld [vmem:[%s3 + $0x5b8] sm:$0xff]
        %v1689 = vld [vmem:[%s3 + $0x5c0] sm:$0xff]
        %v1690 = vld [vmem:[%s3 + $0x5c8] sm:$0xff]
        %v1691 = vld [vmem:[%s3 + $0x5d0] sm:$0xff]
        %v1692 = vld [vmem:[%s3 + $0x5d8] sm:$0xff]
        %v1693 = vld [vmem:[%s3 + $0x5e0] sm:$0xff]
        %v1694 = vld [vmem:[%s3 + $0x5e8] sm:$0xff]
        %v1695 = vld [vmem:[%s3 + $0x5f0] sm:$0xff]
        %v1696 = vld [vmem:[%s3 + $0x5f8] sm:$0xff]
        %v1697 = vld [vmem:[%s3 + $0x600] sm:$0xff]
        %v1698 = vld [vmem:[%s3 + $0x608] sm:$0xff]
        %v1699 = vld [vmem:[%s3 + $0x610] sm:$0xff]
        %v1700 = vld [vmem:[%s3 + $0x618] sm:$0xff]
        %v1701 = vld [vmem:[%s3 + $0x620] sm:$0xff]
        %v1702 = vld [vmem:[%s3 + $0x628] sm:$0xff]
        %v1703 = vld [vmem:[%s3 + $0x630] sm:$0xff]
        %v1704 = vld [vmem:[%s3 + $0x638] sm:$0xff]
        %v1705 = vld [vmem:[%s3 + $0x640] sm:$0xff]
        %v1706 = vld [vmem:[%s3 + $0x648] sm:$0xff]
        %v1707 = vld [vmem:[%s3 + $0x650] sm:$0xff]
        %v1708 = vld [vmem:[%s3 + $0x658] sm:$0xff]
        %v1709 = vld [vmem:[%s3 + $0x660] sm:$0xff]
        %v1710 = vld [vmem:[%s3 + $0x668] sm:$0xff]
        %v1711 = vld [vmem:[%s3 + $0x670] sm:$0xff]
        %v1712 = vld [vmem:[%s3 + $0x678] sm:$0xff]
        %v1713 = vld [vmem:[%s3 + $0x680] sm:$0xff]
        %v1714 = vld [vmem:[%s3 + $0x688] sm:$0xff]
        %v1715 = vld [vmem:[%s3 + $0x690] sm:$0xff]
        %v1716 = vld [vmem:[%s3 + $0x698] sm:$0xff]
        %v1717 = vld [vmem:[%s3 + $0x6a0] sm:$0xff]
        %v1718 = vld [vmem:[%s3 + $0x6a8] sm:$0xff]
        %v1719 = vld [vmem:[%s3 + $0x6b0] sm:$0xff]
        %v1720 = vld [vmem:[%s3 + $0x6b8] sm:$0xff]
        %v1721 = vld [vmem:[%s3 + $0x6c0] sm:$0xff]
        %v1722 = vld [vmem:[%s3 + $0x6c8] sm:$0xff]
        %v1723 = vld [vmem:[%s3 + $0x6d0] sm:$0xff]
        %v1724 = vld [vmem:[%s3 + $0x6d8] sm:$0xff]
        %v1725 = vld [vmem:[%s3 + $0x6e0] sm:$0xff]
        %v1726 = vld [vmem:[%s3 + $0x6e8] sm:$0xff]
        %v1727 = vld [vmem:[%s3 + $0x6f0] sm:$0xff]
        %v1728 = vld [vmem:[%s3 + $0x6f8] sm:$0xff]
        %v1729 = vld [vmem:[%s3 + $0x700] sm:$0xff]
        %v1730 = vld [vmem:[%s3 + $0x708] sm:$0xff]
        %v1731 = vld [vmem:[%s3 + $0x710] sm:$0xff]
        %v1732 = vld [vmem:[%s3 + $0x718] sm:$0xff]
        %v1733 = vld [vmem:[%s3 + $0x720] sm:$0xff]
        %v1734 = vld [vmem:[%s3 + $0x728] sm:$0xff]
        %v1735 = vld [vmem:[%s3 + $0x730] sm:$0xff]
        %v1736 = vld [vmem:[%s3 + $0x738] sm:$0xff]
        %v1737 = vld [vmem:[%s3 + $0x740] sm:$0xff]
        %v1738 = vld [vmem:[%s3 + $0x748] sm:$0xff]
        %v1739 = vld [vmem:[%s3 + $0x750] sm:$0xff]
        %v1740 = vld [vmem:[%s3 + $0x758] sm:$0xff]
        %v1741 = vld [vmem:[%s3 + $0x760] sm:$0xff]
        %v1742 = vld [vmem:[%s3 + $0x768] sm:$0xff]
        %v1743 = vld [vmem:[%s3 + $0x770] sm:$0xff]
        %v1744 = vld [vmem:[%s3 + $0x778] sm:$0xff]
        %v1745 = vld [vmem:[%s3 + $0x780] sm:$0xff]
        %v1746 = vld [vmem:[%s3 + $0x788] sm:$0xff]
        %v1747 = vld [vmem:[%s3 + $0x790] sm:$0xff]
        %v1748 = vld [vmem:[%s3 + $0x798] sm:$0xff]
        %v1749 = vld [vmem:[%s3 + $0x7a0] sm:$0xff]
        %v1750 = vld [vmem:[%s3 + $0x7a8] sm:$0xff]
        %v1751 = vld [vmem:[%s3 + $0x7b0] sm:$0xff]
        %v1752 = vld [vmem:[%s3 + $0x7b8] sm:$0xff]
        %v1753 = vld [vmem:[%s3 + $0x7c0] sm:$0xff]
        %v1754 = vld [vmem:[%s3 + $0x7c8] sm:$0xff]
        %v1755 = vld [vmem:[%s3 + $0x7d0] sm:$0xff]
        %v1756 = vld [vmem:[%s3 + $0x7d8] sm:$0xff]
        %v1757 = vld [vmem:[%s3 + $0x7e0] sm:$0xff]
        %v1758 = vld [vmem:[%s3 + $0x7e8] sm:$0xff]
        %v1759 = vld [vmem:[%s3 + $0x7f0] sm:$0xff]
        %v1760 = vld [vmem:[%s3 + $0x7f8] sm:$0xff]
        %v1761 = vld [vmem:[%s3 + $0x800] sm:$0xff]
        %v1762 = vld [vmem:[%s3 + $0x808] sm:$0xff]
        %v1763 = vld [vmem:[%s3 + $0x810] sm:$0xff]
        %v1764 = vld [vmem:[%s3 + $0x818] sm:$0xff]
        %v1765 = vld [vmem:[%s3 + $0x820] sm:$0xff]
        %v1766 = vld [vmem:[%s3 + $0x828] sm:$0xff]
        %v1767 = vld [vmem:[%s3 + $0x830] sm:$0xff]
        %v1768 = vld [vmem:[%s3 + $0x838] sm:$0xff]
        %v1769 = vld [vmem:[%s3 + $0x840] sm:$0xff]
        %v1770 = vld [vmem:[%s3 + $0x848] sm:$0xff]
        %v1771 = vld [vmem:[%s3 + $0x850] sm:$0xff]
        %v1772 = vld [vmem:[%s3 + $0x858] sm:$0xff]
        %v1773 = vld [vmem:[%s3 + $0x860] sm:$0xff]
        %v1774 = vld [vmem:[%s3 + $0x868] sm:$0xff]
        %v1775 = vld [vmem:[%s3 + $0x870] sm:$0xff]
        %v1776 = vld [vmem:[%s3 + $0x878] sm:$0xff]
        %v1777 = vld [vmem:[%s3 + $0x880] sm:$0xff]
        %v1778 = vld [vmem:[%s3 + $0x888] sm:$0xff]
        %v1779 = vld [vmem:[%s3 + $0x890] sm:$0xff]
        %v1780 = vld [vmem:[%s3 + $0x898] sm:$0xff]
        %v1781 = vld [vmem:[%s3 + $0x8a0] sm:$0xff]
        %v1782 = vld [vmem:[%s3 + $0x8a8] sm:$0xff]
        %v1783 = vld [vmem:[%s3 + $0x8b0] sm:$0xff]
        %v1784 = vld [vmem:[%s3 + $0x8b8] sm:$0xff]
        %v1785 = vld [vmem:[%s3 + $0x8c0] sm:$0xff]
        %v1786 = vld [vmem:[%s3 + $0x8c8] sm:$0xff]
        %v1787 = vld [vmem:[%s3 + $0x8d0] sm:$0xff]
        %v1788 = vld [vmem:[%s3 + $0x8d8] sm:$0xff]
        %v1789 = vld [vmem:[%s3 + $0x8e0] sm:$0xff]
        %v1790 = vld [vmem:[%s3 + $0x8e8] sm:$0xff]
        %v1791 = vld [vmem:[%s3 + $0x8f0] sm:$0xff]
        %v1792 = vld [vmem:[%s3 + $0x8f8] sm:$0xff]
        %v1793 = vld [vmem:[%s3 + $0x900] sm:$0xff]
        %v1794 = vld [vmem:[%s3 + $0x908] sm:$0xff]
        %v1795 = vld [vmem:[%s3 + $0x910] sm:$0xff]
        %v1796 = vld [vmem:[%s3 + $0x918] sm:$0xff]
        %v1797 = vld [vmem:[%s3 + $0x920] sm:$0xff]
        %v1798 = vld [vmem:[%s3 + $0x928] sm:$0xff]
        %v1799 = vld [vmem:[%s3 + $0x930] sm:$0xff]
        %v1800 = vld [vmem:[%s3 + $0x938] sm:$0xff]
        %v1801 = vld [vmem:[%s3 + $0x940] sm:$0xff]
        %v1802 = vld [vmem:[%s3 + $0x948] sm:$0xff]
        %v1803 = vld [vmem:[%s3 + $0x950] sm:$0xff]
        %v1804 = vld [vmem:[%s3 + $0x958] sm:$0xff]
        %v1805 = vld [vmem:[%s3 + $0x960] sm:$0xff]
        %v1806 = vld [vmem:[%s3 + $0x968] sm:$0xff]
        %v1807 = vld [vmem:[%s3 + $0x970] sm:$0xff]
        %v1808 = vld [vmem:[%s3 + $0x978] sm:$0xff]
        %v1809 = vld [vmem:[%s3 + $0x980] sm:$0xff]
        %v1810 = vld [vmem:[%s3 + $0x988] sm:$0xff]
        %v1811 = vld [vmem:[%s3 + $0x990] sm:$0xff]
        %v1812 = vld [vmem:[%s3 + $0x998] sm:$0xff]
        %v1813 = vld [vmem:[%s3 + $0x9a0] sm:$0xff]
        %v1814 = vld [vmem:[%s3 + $0x9a8] sm:$0xff]
        %v1815 = vld [vmem:[%s3 + $0x9b0] sm:$0xff]
        %v1816 = vld [vmem:[%s3 + $0x9b8] sm:$0xff]
        %v1817 = vld [vmem:[%s3 + $0x9c0] sm:$0xff]
        %v1818 = vld [vmem:[%s3 + $0x9c8] sm:$0xff]
        %v1819 = vld [vmem:[%s3 + $0x9d0] sm:$0xff]
        %v1820 = vld [vmem:[%s3 + $0x9d8] sm:$0xff]
        %v1821 = vld [vmem:[%s3 + $0x9e0] sm:$0xff]
        %v1822 = vld [vmem:[%s3 + $0x9e8] sm:$0xff]
        %v1823 = vld [vmem:[%s3 + $0x9f0] sm:$0xff]
        %v1824 = vld [vmem:[%s3 + $0x9f8] sm:$0xff]
        %v1825 = vld [vmem:[%s3 + $0xa00] sm:$0xff]
        %v1826 = vld [vmem:[%s3 + $0xa08] sm:$0xff]
        %v1827 = vld [vmem:[%s3 + $0xa10] sm:$0xff]
        %v1828 = vld [vmem:[%s3 + $0xa18] sm:$0xff]
        %v1829 = vld [vmem:[%s3 + $0xa20] sm:$0xff]
        %v1830 = vld [vmem:[%s3 + $0xa28] sm:$0xff]
        %v1831 = vld [vmem:[%s3 + $0xa30] sm:$0xff]
        %v1832 = vld [vmem:[%s3 + $0xa38] sm:$0xff]
        %v1833 = vld [vmem:[%s3 + $0xa40] sm:$0xff]
        %v1834 = vld [vmem:[%s3 + $0xa48] sm:$0xff]
        %v1835 = vld [vmem:[%s3 + $0xa50] sm:$0xff]
        %v1836 = vld [vmem:[%s3 + $0xa58] sm:$0xff]
        %v1837 = vld [vmem:[%s3 + $0xa60] sm:$0xff]
        %v1838 = vld [vmem:[%s3 + $0xa68] sm:$0xff]
        %v1839 = vld [vmem:[%s3 + $0xa70] sm:$0xff]
        %v1840 = vld [vmem:[%s3 + $0xa78] sm:$0xff]
        %v1841 = vld [vmem:[%s3 + $0xa80] sm:$0xff]
        %v1842 = vld [vmem:[%s3 + $0xa88] sm:$0xff]
        %v1843 = vld [vmem:[%s3 + $0xa90] sm:$0xff]
        %v1844 = vld [vmem:[%s3 + $0xa98] sm:$0xff]
        %v1845 = vld [vmem:[%s3 + $0xaa0] sm:$0xff]
        %v1846 = vld [vmem:[%s3 + $0xaa8] sm:$0xff]
        %v1847 = vld [vmem:[%s3 + $0xab0] sm:$0xff]
        %v1848 = vld [vmem:[%s3 + $0xab8] sm:$0xff]
        %v1849 = vld [vmem:[%s3 + $0xac0] sm:$0xff]
        %v1850 = vld [vmem:[%s3 + $0xac8] sm:$0xff]
        %v1851 = vld [vmem:[%s3 + $0xad0] sm:$0xff]
        %v1852 = vld [vmem:[%s3 + $0xad8] sm:$0xff]
        %v1853 = vld [vmem:[%s3 + $0xae0] sm:$0xff]
        %v1854 = vld [vmem:[%s3 + $0xae8] sm:$0xff]
        %v1855 = vld [vmem:[%s3 + $0xaf0] sm:$0xff]
        %v1856 = vld [vmem:[%s3 + $0xaf8] sm:$0xff]
        %v1857 = vld [vmem:[%s3 + $0xb00] sm:$0xff]
        %v1858 = vld [vmem:[%s3 + $0xb08] sm:$0xff]
        %v1859 = vld [vmem:[%s3 + $0xb10] sm:$0xff]
        %v1860 = vld [vmem:[%s3 + $0xb18] sm:$0xff]
        %v1861 = vld [vmem:[%s3 + $0xb20] sm:$0xff]
        %v1862 = vld [vmem:[%s3 + $0xb28] sm:$0xff]
        %v1863 = vld [vmem:[%s3 + $0xb30] sm:$0xff]
        %v1864 = vld [vmem:[%s3 + $0xb38] sm:$0xff]
        %v1865 = vld [vmem:[%s3 + $0xb40] sm:$0xff]
        %v1866 = vld [vmem:[%s3 + $0xb48] sm:$0xff]
        %v1867 = vld [vmem:[%s3 + $0xb50] sm:$0xff]
        %v1868 = vld [vmem:[%s3 + $0xb58] sm:$0xff]
        %v1869 = vld [vmem:[%s3 + $0xb60] sm:$0xff]
        %v1870 = vld [vmem:[%s3 + $0xb68] sm:$0xff]
        %v1871 = vld [vmem:[%s3 + $0xb70] sm:$0xff]
        %v1872 = vld [vmem:[%s3 + $0xb78] sm:$0xff]
        %v1873 = vld [vmem:[%s3 + $0xb80] sm:$0xff]
        %v1874 = vld [vmem:[%s3 + $0xb88] sm:$0xff]
        %v1875 = vld [vmem:[%s3 + $0xb90] sm:$0xff]
        %v1876 = vld [vmem:[%s3 + $0xb98] sm:$0xff]
        %v1877 = vld [vmem:[%s3 + $0xba0] sm:$0xff]
        %v1878 = vld [vmem:[%s3 + $0xba8] sm:$0xff]
        %v1879 = vld [vmem:[%s3 + $0xbb0] sm:$0xff]
        %v1880 = vld [vmem:[%s3 + $0xbb8] sm:$0xff]
        %v1881 = vld [vmem:[%s3 + $0xbc0] sm:$0xff]
        %v1882 = vld [vmem:[%s3 + $0xbc8] sm:$0xff]
        %v1883 = vld [vmem:[%s3 + $0xbd0] sm:$0xff]
        %v1884 = vld [vmem:[%s3 + $0xbd8] sm:$0xff]
        %v1885 = vld [vmem:[%s3 + $0xbe0] sm:$0xff]
        %v1886 = vld [vmem:[%s3 + $0xbe8] sm:$0xff]
        %v1887 = vld [vmem:[%s3 + $0xbf0] sm:$0xff]
        %v1888 = vld [vmem:[%s3 + $0xbf8] sm:$0xff]
        %v1889 = vld [vmem:[#allocation3] sm:$0xff]
        %v1890 = vld [vmem:[#allocation3 + $0x8] sm:$0xff]
        %v1891 = vld [vmem:[#allocation3 + $0x10] sm:$0xff]
        %v1892 = vld [vmem:[#allocation3 + $0x18] sm:$0xff]
        %v1893 = vld [vmem:[#allocation3 + $0x20] sm:$0xff]
        %v1894 = vld [vmem:[#allocation3 + $0x28] sm:$0xff]
        %v1895 = vld [vmem:[#allocation3 + $0x30] sm:$0xff]
        %v1896 = vld [vmem:[#allocation3 + $0x38] sm:$0xff]
        %v1897 = vld [vmem:[#allocation3 + $0x40] sm:$0xff]
        %v1898 = vld [vmem:[#allocation3 + $0x48] sm:$0xff]
        %v1899 = vld [vmem:[#allocation3 + $0x50] sm:$0xff]
        %v1900 = vld [vmem:[#allocation3 + $0x58] sm:$0xff]
        %v1901 = vld [vmem:[#allocation3 + $0x60] sm:$0xff]
        %v1902 = vld [vmem:[#allocation3 + $0x68] sm:$0xff]
        %v1903 = vld [vmem:[#allocation3 + $0x70] sm:$0xff]
        %v1904 = vld [vmem:[#allocation3 + $0x78] sm:$0xff]
        %v1905 = vld [vmem:[#allocation3 + $0x80] sm:$0xff]
        %v1906 = vld [vmem:[#allocation3 + $0x88] sm:$0xff]
        %v1907 = vld [vmem:[#allocation3 + $0x90] sm:$0xff]
        %v1908 = vld [vmem:[#allocation3 + $0x98] sm:$0xff]
        %v1909 = vld [vmem:[#allocation3 + $0xa0] sm:$0xff]
        %v1910 = vld [vmem:[#allocation3 + $0xa8] sm:$0xff]
        %v1911 = vld [vmem:[#allocation3 + $0xb0] sm:$0xff]
        %v1912 = vld [vmem:[#allocation3 + $0xb8] sm:$0xff]
        %v1937 = vunpack.c.l.b16 %v1889
        %v1938 = vunpack.c.h.b16 %v1889
        %v1939 = vunpack.c.l.b16 %v1890
        %v1940 = vunpack.c.h.b16 %v1890
        %v1941 = vunpack.c.l.b16 %v1891
        %v1942 = vunpack.c.h.b16 %v1891
        %v1943 = vunpack.c.l.b16 %v1892
        %v1944 = vunpack.c.h.b16 %v1892
        %v1945 = vunpack.c.l.b16 %v1893
        %v1946 = vunpack.c.h.b16 %v1893
        %v1947 = vunpack.c.l.b16 %v1894
        %v1948 = vunpack.c.h.b16 %v1894
        %v1949 = vunpack.c.l.b16 %v1895
        %v1950 = vunpack.c.h.b16 %v1895
        %v1951 = vunpack.c.l.b16 %v1896
        %v1952 = vunpack.c.h.b16 %v1896
        %v1953 = vunpack.c.l.b16 %v1897
        %v1954 = vunpack.c.h.b16 %v1897
        %v1955 = vunpack.c.l.b16 %v1898
        %v1956 = vunpack.c.h.b16 %v1898
        %v1957 = vunpack.c.l.b16 %v1899
        %v1958 = vunpack.c.h.b16 %v1899
        %v1959 = vunpack.c.l.b16 %v1900
        %v1960 = vunpack.c.h.b16 %v1900
        %v1961 = vunpack.c.l.b16 %v1901
        %v1962 = vunpack.c.h.b16 %v1901
        %v1963 = vunpack.c.l.b16 %v1902
        %v1964 = vunpack.c.h.b16 %v1902
        %v1965 = vunpack.c.l.b16 %v1903
        %v1966 = vunpack.c.h.b16 %v1903
        %v1967 = vunpack.c.l.b16 %v1904
        %v1968 = vunpack.c.h.b16 %v1904
        %v1969 = vunpack.c.l.b16 %v1905
        %v1970 = vunpack.c.h.b16 %v1905
        %v1971 = vunpack.c.l.b16 %v1906
        %v1972 = vunpack.c.h.b16 %v1906
        %v1973 = vunpack.c.l.b16 %v1907
        %v1974 = vunpack.c.h.b16 %v1907
        %v1975 = vunpack.c.l.b16 %v1908
        %v1976 = vunpack.c.h.b16 %v1908
        %v1977 = vunpack.c.l.b16 %v1909
        %v1978 = vunpack.c.h.b16 %v1909
        %v1979 = vunpack.c.l.b16 %v1910
        %v1980 = vunpack.c.h.b16 %v1910
        %v1981 = vunpack.c.l.b16 %v1911
        %v1982 = vunpack.c.h.b16 %v1911
        %v1983 = vunpack.c.l.b16 %v1912
        %v1984 = vunpack.c.h.b16 %v1912
        %v1985 = vpack.c.b16 %v1949, %v1937
        %v1986 = vpack.c.b16 %v1950, %v1938
        %v1987 = vpack.c.b16 %v1951, %v1939
        %v1988 = vpack.c.b16 %v1952, %v1940
        %v1989 = vpack.c.b16 %v1953, %v1941
        %v1990 = vpack.c.b16 %v1954, %v1942
        %v1991 = vpack.c.b16 %v1955, %v1943
        %v1992 = vpack.c.b16 %v1956, %v1944
        %v1993 = vpack.c.b16 %v1957, %v1945
        %v1994 = vpack.c.b16 %v1958, %v1946
        %v1995 = vpack.c.b16 %v1959, %v1947
        %v1996 = vpack.c.b16 %v1960, %v1948
        %v1997 = vpack.c.b16 %v1973, %v1961
        %v1998 = vpack.c.b16 %v1974, %v1962
        %v1999 = vpack.c.b16 %v1975, %v1963
        %v2000 = vpack.c.b16 %v1976, %v1964
        %v2001 = vpack.c.b16 %v1977, %v1965
        %v2002 = vpack.c.b16 %v1978, %v1966
        %v2003 = vpack.c.b16 %v1979, %v1967
        %v2004 = vpack.c.b16 %v1980, %v1968
        %v2005 = vpack.c.b16 %v1981, %v1969
        %v2006 = vpack.c.b16 %v1982, %v1970
        %v2007 = vpack.c.b16 %v1983, %v1971
        %v2008 = vpack.c.b16 %v1984, %v1972
        %v2417 = vunpack.c.l.b16 %v1505
        %v2418 = vunpack.c.h.b16 %v1505
        %v2419 = vunpack.c.l.b16 %v1506
        %v2420 = vunpack.c.h.b16 %v1506
        %v2421 = vunpack.c.l.b16 %v1507
        %v2422 = vunpack.c.h.b16 %v1507
        %v2423 = vunpack.c.l.b16 %v1508
        %v2424 = vunpack.c.h.b16 %v1508
        %v2425 = vunpack.c.l.b16 %v1509
        %v2426 = vunpack.c.h.b16 %v1509
        %v2427 = vunpack.c.l.b16 %v1510
        %v2428 = vunpack.c.h.b16 %v1510
        %v2429 = vunpack.c.l.b16 %v1511
        %v2430 = vunpack.c.h.b16 %v1511
        %v2431 = vunpack.c.l.b16 %v1512
        %v2432 = vunpack.c.h.b16 %v1512
        %v2433 = vunpack.c.l.b16 %v1513
        %v2434 = vunpack.c.h.b16 %v1513
        %v2435 = vunpack.c.l.b16 %v1514
        %v2436 = vunpack.c.h.b16 %v1514
        %v2437 = vunpack.c.l.b16 %v1515
        %v2438 = vunpack.c.h.b16 %v1515
        %v2439 = vunpack.c.l.b16 %v1516
        %v2440 = vunpack.c.h.b16 %v1516
        %v2441 = vunpack.c.l.b16 %v1517
        %v2442 = vunpack.c.h.b16 %v1517
        %v2443 = vunpack.c.l.b16 %v1518
        %v2444 = vunpack.c.h.b16 %v1518
        %v2445 = vunpack.c.l.b16 %v1519
        %v2446 = vunpack.c.h.b16 %v1519
        %v2447 = vunpack.c.l.b16 %v1520
        %v2448 = vunpack.c.h.b16 %v1520
        %v2449 = vunpack.c.l.b16 %v1521
        %v2450 = vunpack.c.h.b16 %v1521
        %v2451 = vunpack.c.l.b16 %v1522
        %v2452 = vunpack.c.h.b16 %v1522
        %v2453 = vunpack.c.l.b16 %v1523
        %v2454 = vunpack.c.h.b16 %v1523
        %v2455 = vunpack.c.l.b16 %v1524
        %v2456 = vunpack.c.h.b16 %v1524
        %v2457 = vunpack.c.l.b16 %v1525
        %v2458 = vunpack.c.h.b16 %v1525
        %v2459 = vunpack.c.l.b16 %v1526
        %v2460 = vunpack.c.h.b16 %v1526
        %v2461 = vunpack.c.l.b16 %v1527
        %v2462 = vunpack.c.h.b16 %v1527
        %v2463 = vunpack.c.l.b16 %v1528
        %v2464 = vunpack.c.h.b16 %v1528
        %v2465 = vunpack.c.l.b16 %v1529
        %v2466 = vunpack.c.h.b16 %v1529
        %v2467 = vunpack.c.l.b16 %v1530
        %v2468 = vunpack.c.h.b16 %v1530
        %v2469 = vunpack.c.l.b16 %v1531
        %v2470 = vunpack.c.h.b16 %v1531
        %v2471 = vunpack.c.l.b16 %v1532
        %v2472 = vunpack.c.h.b16 %v1532
        %v2473 = vunpack.c.l.b16 %v1533
        %v2474 = vunpack.c.h.b16 %v1533
        %v2475 = vunpack.c.l.b16 %v1534
        %v2476 = vunpack.c.h.b16 %v1534
        %v2477 = vunpack.c.l.b16 %v1535
        %v2478 = vunpack.c.h.b16 %v1535
        %v2479 = vunpack.c.l.b16 %v1536
        %v2480 = vunpack.c.h.b16 %v1536
        %v2481 = vunpack.c.l.b16 %v1537
        %v2482 = vunpack.c.h.b16 %v1537
        %v2483 = vunpack.c.l.b16 %v1538
        %v2484 = vunpack.c.h.b16 %v1538
        %v2485 = vunpack.c.l.b16 %v1539
        %v2486 = vunpack.c.h.b16 %v1539
        %v2487 = vunpack.c.l.b16 %v1540
        %v2488 = vunpack.c.h.b16 %v1540
        %v2489 = vunpack.c.l.b16 %v1541
        %v2490 = vunpack.c.h.b16 %v1541
        %v2491 = vunpack.c.l.b16 %v1542
        %v2492 = vunpack.c.h.b16 %v1542
        %v2493 = vunpack.c.l.b16 %v1543
        %v2494 = vunpack.c.h.b16 %v1543
        %v2495 = vunpack.c.l.b16 %v1544
        %v2496 = vunpack.c.h.b16 %v1544
        %v2497 = vunpack.c.l.b16 %v1545
        %v2498 = vunpack.c.h.b16 %v1545
        %v2499 = vunpack.c.l.b16 %v1546
        %v2500 = vunpack.c.h.b16 %v1546
        %v2501 = vunpack.c.l.b16 %v1547
        %v2502 = vunpack.c.h.b16 %v1547
        %v2503 = vunpack.c.l.b16 %v1548
        %v2504 = vunpack.c.h.b16 %v1548
        %v2505 = vunpack.c.l.b16 %v1549
        %v2506 = vunpack.c.h.b16 %v1549
        %v2507 = vunpack.c.l.b16 %v1550
        %v2508 = vunpack.c.h.b16 %v1550
        %v2509 = vunpack.c.l.b16 %v1551
        %v2510 = vunpack.c.h.b16 %v1551
        %v2511 = vunpack.c.l.b16 %v1552
        %v2512 = vunpack.c.h.b16 %v1552
        %v2513 = vunpack.c.l.b16 %v1553
        %v2514 = vunpack.c.h.b16 %v1553
        %v2515 = vunpack.c.l.b16 %v1554
        %v2516 = vunpack.c.h.b16 %v1554
        %v2517 = vunpack.c.l.b16 %v1555
        %v2518 = vunpack.c.h.b16 %v1555
        %v2519 = vunpack.c.l.b16 %v1556
        %v2520 = vunpack.c.h.b16 %v1556
        %v2521 = vunpack.c.l.b16 %v1557
        %v2522 = vunpack.c.h.b16 %v1557
        %v2523 = vunpack.c.l.b16 %v1558
        %v2524 = vunpack.c.h.b16 %v1558
        %v2525 = vunpack.c.l.b16 %v1559
        %v2526 = vunpack.c.h.b16 %v1559
        %v2527 = vunpack.c.l.b16 %v1560
        %v2528 = vunpack.c.h.b16 %v1560
        %v2529 = vunpack.c.l.b16 %v1561
        %v2530 = vunpack.c.h.b16 %v1561
        %v2531 = vunpack.c.l.b16 %v1562
        %v2532 = vunpack.c.h.b16 %v1562
        %v2533 = vunpack.c.l.b16 %v1563
        %v2534 = vunpack.c.h.b16 %v1563
        %v2535 = vunpack.c.l.b16 %v1564
        %v2536 = vunpack.c.h.b16 %v1564
        %v2537 = vunpack.c.l.b16 %v1565
        %v2538 = vunpack.c.h.b16 %v1565
        %v2539 = vunpack.c.l.b16 %v1566
        %v2540 = vunpack.c.h.b16 %v1566
        %v2541 = vunpack.c.l.b16 %v1567
        %v2542 = vunpack.c.h.b16 %v1567
        %v2543 = vunpack.c.l.b16 %v1568
        %v2544 = vunpack.c.h.b16 %v1568
        %v2545 = vunpack.c.l.b16 %v1569
        %v2546 = vunpack.c.h.b16 %v1569
        %v2547 = vunpack.c.l.b16 %v1570
        %v2548 = vunpack.c.h.b16 %v1570
        %v2549 = vunpack.c.l.b16 %v1571
        %v2550 = vunpack.c.h.b16 %v1571
        %v2551 = vunpack.c.l.b16 %v1572
        %v2552 = vunpack.c.h.b16 %v1572
        %v2553 = vunpack.c.l.b16 %v1573
        %v2554 = vunpack.c.h.b16 %v1573
        %v2555 = vunpack.c.l.b16 %v1574
        %v2556 = vunpack.c.h.b16 %v1574
        %v2557 = vunpack.c.l.b16 %v1575
        %v2558 = vunpack.c.h.b16 %v1575
        %v2559 = vunpack.c.l.b16 %v1576
        %v2560 = vunpack.c.h.b16 %v1576
        %v2561 = vunpack.c.l.b16 %v1577
        %v2562 = vunpack.c.h.b16 %v1577
        %v2563 = vunpack.c.l.b16 %v1578
        %v2564 = vunpack.c.h.b16 %v1578
        %v2565 = vunpack.c.l.b16 %v1579
        %v2566 = vunpack.c.h.b16 %v1579
        %v2567 = vunpack.c.l.b16 %v1580
        %v2568 = vunpack.c.h.b16 %v1580
        %v2569 = vunpack.c.l.b16 %v1581
        %v2570 = vunpack.c.h.b16 %v1581
        %v2571 = vunpack.c.l.b16 %v1582
        %v2572 = vunpack.c.h.b16 %v1582
        %v2573 = vunpack.c.l.b16 %v1583
        %v2574 = vunpack.c.h.b16 %v1583
        %v2575 = vunpack.c.l.b16 %v1584
        %v2576 = vunpack.c.h.b16 %v1584
        %v2577 = vunpack.c.l.b16 %v1585
        %v2578 = vunpack.c.h.b16 %v1585
        %v2579 = vunpack.c.l.b16 %v1586
        %v2580 = vunpack.c.h.b16 %v1586
        %v2581 = vunpack.c.l.b16 %v1587
        %v2582 = vunpack.c.h.b16 %v1587
        %v2583 = vunpack.c.l.b16 %v1588
        %v2584 = vunpack.c.h.b16 %v1588
        %v2585 = vunpack.c.l.b16 %v1589
        %v2586 = vunpack.c.h.b16 %v1589
        %v2587 = vunpack.c.l.b16 %v1590
        %v2588 = vunpack.c.h.b16 %v1590
        %v2589 = vunpack.c.l.b16 %v1591
        %v2590 = vunpack.c.h.b16 %v1591
        %v2591 = vunpack.c.l.b16 %v1592
        %v2592 = vunpack.c.h.b16 %v1592
        %v2593 = vunpack.c.l.b16 %v1593
        %v2594 = vunpack.c.h.b16 %v1593
        %v2595 = vunpack.c.l.b16 %v1594
        %v2596 = vunpack.c.h.b16 %v1594
        %v2597 = vunpack.c.l.b16 %v1595
        %v2598 = vunpack.c.h.b16 %v1595
        %v2599 = vunpack.c.l.b16 %v1596
        %v2600 = vunpack.c.h.b16 %v1596
        %v2601 = vunpack.c.l.b16 %v1597
        %v2602 = vunpack.c.h.b16 %v1597
        %v2603 = vunpack.c.l.b16 %v1598
        %v2604 = vunpack.c.h.b16 %v1598
        %v2605 = vunpack.c.l.b16 %v1599
        %v2606 = vunpack.c.h.b16 %v1599
        %v2607 = vunpack.c.l.b16 %v1600
        %v2608 = vunpack.c.h.b16 %v1600
        %v2609 = vunpack.c.l.b16 %v1601
        %v2610 = vunpack.c.h.b16 %v1601
        %v2611 = vunpack.c.l.b16 %v1602
        %v2612 = vunpack.c.h.b16 %v1602
        %v2613 = vunpack.c.l.b16 %v1603
        %v2614 = vunpack.c.h.b16 %v1603
        %v2615 = vunpack.c.l.b16 %v1604
        %v2616 = vunpack.c.h.b16 %v1604
        %v2617 = vunpack.c.l.b16 %v1605
        %v2618 = vunpack.c.h.b16 %v1605
        %v2619 = vunpack.c.l.b16 %v1606
        %v2620 = vunpack.c.h.b16 %v1606
        %v2621 = vunpack.c.l.b16 %v1607
        %v2622 = vunpack.c.h.b16 %v1607
        %v2623 = vunpack.c.l.b16 %v1608
        %v2624 = vunpack.c.h.b16 %v1608
        %v2625 = vunpack.c.l.b16 %v1609
        %v2626 = vunpack.c.h.b16 %v1609
        %v2627 = vunpack.c.l.b16 %v1610
        %v2628 = vunpack.c.h.b16 %v1610
        %v2629 = vunpack.c.l.b16 %v1611
        %v2630 = vunpack.c.h.b16 %v1611
        %v2631 = vunpack.c.l.b16 %v1612
        %v2632 = vunpack.c.h.b16 %v1612
        %v2633 = vunpack.c.l.b16 %v1613
        %v2634 = vunpack.c.h.b16 %v1613
        %v2635 = vunpack.c.l.b16 %v1614
        %v2636 = vunpack.c.h.b16 %v1614
        %v2637 = vunpack.c.l.b16 %v1615
        %v2638 = vunpack.c.h.b16 %v1615
        %v2639 = vunpack.c.l.b16 %v1616
        %v2640 = vunpack.c.h.b16 %v1616
        %v2641 = vunpack.c.l.b16 %v1617
        %v2642 = vunpack.c.h.b16 %v1617
        %v2643 = vunpack.c.l.b16 %v1618
        %v2644 = vunpack.c.h.b16 %v1618
        %v2645 = vunpack.c.l.b16 %v1619
        %v2646 = vunpack.c.h.b16 %v1619
        %v2647 = vunpack.c.l.b16 %v1620
        %v2648 = vunpack.c.h.b16 %v1620
        %v2649 = vunpack.c.l.b16 %v1621
        %v2650 = vunpack.c.h.b16 %v1621
        %v2651 = vunpack.c.l.b16 %v1622
        %v2652 = vunpack.c.h.b16 %v1622
        %v2653 = vunpack.c.l.b16 %v1623
        %v2654 = vunpack.c.h.b16 %v1623
        %v2655 = vunpack.c.l.b16 %v1624
        %v2656 = vunpack.c.h.b16 %v1624
        %v2657 = vunpack.c.l.b16 %v1625
        %v2658 = vunpack.c.h.b16 %v1625
        %v2659 = vunpack.c.l.b16 %v1626
        %v2660 = vunpack.c.h.b16 %v1626
        %v2661 = vunpack.c.l.b16 %v1627
        %v2662 = vunpack.c.h.b16 %v1627
        %v2663 = vunpack.c.l.b16 %v1628
        %v2664 = vunpack.c.h.b16 %v1628
        %v2665 = vunpack.c.l.b16 %v1629
        %v2666 = vunpack.c.h.b16 %v1629
        %v2667 = vunpack.c.l.b16 %v1630
        %v2668 = vunpack.c.h.b16 %v1630
        %v2669 = vunpack.c.l.b16 %v1631
        %v2670 = vunpack.c.h.b16 %v1631
        %v2671 = vunpack.c.l.b16 %v1632
        %v2672 = vunpack.c.h.b16 %v1632
        %v2673 = vunpack.c.l.b16 %v1633
        %v2674 = vunpack.c.h.b16 %v1633
        %v2675 = vunpack.c.l.b16 %v1634
        %v2676 = vunpack.c.h.b16 %v1634
        %v2677 = vunpack.c.l.b16 %v1635
        %v2678 = vunpack.c.h.b16 %v1635
        %v2679 = vunpack.c.l.b16 %v1636
        %v2680 = vunpack.c.h.b16 %v1636
        %v2681 = vunpack.c.l.b16 %v1637
        %v2682 = vunpack.c.h.b16 %v1637
        %v2683 = vunpack.c.l.b16 %v1638
        %v2684 = vunpack.c.h.b16 %v1638
        %v2685 = vunpack.c.l.b16 %v1639
        %v2686 = vunpack.c.h.b16 %v1639
        %v2687 = vunpack.c.l.b16 %v1640
        %v2688 = vunpack.c.h.b16 %v1640
        %v2689 = vunpack.c.l.b16 %v1641
        %v2690 = vunpack.c.h.b16 %v1641
        %v2691 = vunpack.c.l.b16 %v1642
        %v2692 = vunpack.c.h.b16 %v1642
        %v2693 = vunpack.c.l.b16 %v1643
        %v2694 = vunpack.c.h.b16 %v1643
        %v2695 = vunpack.c.l.b16 %v1644
        %v2696 = vunpack.c.h.b16 %v1644
        %v2697 = vunpack.c.l.b16 %v1645
        %v2698 = vunpack.c.h.b16 %v1645
        %v2699 = vunpack.c.l.b16 %v1646
        %v2700 = vunpack.c.h.b16 %v1646
        %v2701 = vunpack.c.l.b16 %v1647
        %v2702 = vunpack.c.h.b16 %v1647
        %v2703 = vunpack.c.l.b16 %v1648
        %v2704 = vunpack.c.h.b16 %v1648
        %v2705 = vunpack.c.l.b16 %v1649
        %v2706 = vunpack.c.h.b16 %v1649
        %v2707 = vunpack.c.l.b16 %v1650
        %v2708 = vunpack.c.h.b16 %v1650
        %v2709 = vunpack.c.l.b16 %v1651
        %v2710 = vunpack.c.h.b16 %v1651
        %v2711 = vunpack.c.l.b16 %v1652
        %v2712 = vunpack.c.h.b16 %v1652
        %v2713 = vunpack.c.l.b16 %v1653
        %v2714 = vunpack.c.h.b16 %v1653
        %v2715 = vunpack.c.l.b16 %v1654
        %v2716 = vunpack.c.h.b16 %v1654
        %v2717 = vunpack.c.l.b16 %v1655
        %v2718 = vunpack.c.h.b16 %v1655
        %v2719 = vunpack.c.l.b16 %v1656
        %v2720 = vunpack.c.h.b16 %v1656
        %v2721 = vunpack.c.l.b16 %v1657
        %v2722 = vunpack.c.h.b16 %v1657
        %v2723 = vunpack.c.l.b16 %v1658
        %v2724 = vunpack.c.h.b16 %v1658
        %v2725 = vunpack.c.l.b16 %v1659
        %v2726 = vunpack.c.h.b16 %v1659
        %v2727 = vunpack.c.l.b16 %v1660
        %v2728 = vunpack.c.h.b16 %v1660
        %v2729 = vunpack.c.l.b16 %v1661
        %v2730 = vunpack.c.h.b16 %v1661
        %v2731 = vunpack.c.l.b16 %v1662
        %v2732 = vunpack.c.h.b16 %v1662
        %v2733 = vunpack.c.l.b16 %v1663
        %v2734 = vunpack.c.h.b16 %v1663
        %v2735 = vunpack.c.l.b16 %v1664
        %v2736 = vunpack.c.h.b16 %v1664
        %v2737 = vunpack.c.l.b16 %v1665
        %v2738 = vunpack.c.h.b16 %v1665
        %v2739 = vunpack.c.l.b16 %v1666
        %v2740 = vunpack.c.h.b16 %v1666
        %v2741 = vunpack.c.l.b16 %v1667
        %v2742 = vunpack.c.h.b16 %v1667
        %v2743 = vunpack.c.l.b16 %v1668
        %v2744 = vunpack.c.h.b16 %v1668
        %v2745 = vunpack.c.l.b16 %v1669
        %v2746 = vunpack.c.h.b16 %v1669
        %v2747 = vunpack.c.l.b16 %v1670
        %v2748 = vunpack.c.h.b16 %v1670
        %v2749 = vunpack.c.l.b16 %v1671
        %v2750 = vunpack.c.h.b16 %v1671
        %v2751 = vunpack.c.l.b16 %v1672
        %v2752 = vunpack.c.h.b16 %v1672
        %v2753 = vunpack.c.l.b16 %v1673
        %v2754 = vunpack.c.h.b16 %v1673
        %v2755 = vunpack.c.l.b16 %v1674
        %v2756 = vunpack.c.h.b16 %v1674
        %v2757 = vunpack.c.l.b16 %v1675
        %v2758 = vunpack.c.h.b16 %v1675
        %v2759 = vunpack.c.l.b16 %v1676
        %v2760 = vunpack.c.h.b16 %v1676
        %v2761 = vunpack.c.l.b16 %v1677
        %v2762 = vunpack.c.h.b16 %v1677
        %v2763 = vunpack.c.l.b16 %v1678
        %v2764 = vunpack.c.h.b16 %v1678
        %v2765 = vunpack.c.l.b16 %v1679
        %v2766 = vunpack.c.h.b16 %v1679
        %v2767 = vunpack.c.l.b16 %v1680
        %v2768 = vunpack.c.h.b16 %v1680
        %v2769 = vunpack.c.l.b16 %v1681
        %v2770 = vunpack.c.h.b16 %v1681
        %v2771 = vunpack.c.l.b16 %v1682
        %v2772 = vunpack.c.h.b16 %v1682
        %v2773 = vunpack.c.l.b16 %v1683
        %v2774 = vunpack.c.h.b16 %v1683
        %v2775 = vunpack.c.l.b16 %v1684
        %v2776 = vunpack.c.h.b16 %v1684
        %v2777 = vunpack.c.l.b16 %v1685
        %v2778 = vunpack.c.h.b16 %v1685
        %v2779 = vunpack.c.l.b16 %v1686
        %v2780 = vunpack.c.h.b16 %v1686
        %v2781 = vunpack.c.l.b16 %v1687
        %v2782 = vunpack.c.h.b16 %v1687
        %v2783 = vunpack.c.l.b16 %v1688
        %v2784 = vunpack.c.h.b16 %v1688
        %v2785 = vunpack.c.l.b16 %v1689
        %v2786 = vunpack.c.h.b16 %v1689
        %v2787 = vunpack.c.l.b16 %v1690
        %v2788 = vunpack.c.h.b16 %v1690
        %v2789 = vunpack.c.l.b16 %v1691
        %v2790 = vunpack.c.h.b16 %v1691
        %v2791 = vunpack.c.l.b16 %v1692
        %v2792 = vunpack.c.h.b16 %v1692
        %v2793 = vunpack.c.l.b16 %v1693
        %v2794 = vunpack.c.h.b16 %v1693
        %v2795 = vunpack.c.l.b16 %v1694
        %v2796 = vunpack.c.h.b16 %v1694
        %v2797 = vunpack.c.l.b16 %v1695
        %v2798 = vunpack.c.h.b16 %v1695
        %v2799 = vunpack.c.l.b16 %v1696
        %v2800 = vunpack.c.h.b16 %v1696
        %v2801 = vunpack.c.l.b16 %v1697
        %v2802 = vunpack.c.h.b16 %v1697
        %v2803 = vunpack.c.l.b16 %v1698
        %v2804 = vunpack.c.h.b16 %v1698
        %v2805 = vunpack.c.l.b16 %v1699
        %v2806 = vunpack.c.h.b16 %v1699
        %v2807 = vunpack.c.l.b16 %v1700
        %v2808 = vunpack.c.h.b16 %v1700
        %v2809 = vunpack.c.l.b16 %v1701
        %v2810 = vunpack.c.h.b16 %v1701
        %v2811 = vunpack.c.l.b16 %v1702
        %v2812 = vunpack.c.h.b16 %v1702
        %v2813 = vunpack.c.l.b16 %v1703
        %v2814 = vunpack.c.h.b16 %v1703
        %v2815 = vunpack.c.l.b16 %v1704
        %v2816 = vunpack.c.h.b16 %v1704
        %v2817 = vunpack.c.l.b16 %v1705
        %v2818 = vunpack.c.h.b16 %v1705
        %v2819 = vunpack.c.l.b16 %v1706
        %v2820 = vunpack.c.h.b16 %v1706
        %v2821 = vunpack.c.l.b16 %v1707
        %v2822 = vunpack.c.h.b16 %v1707
        %v2823 = vunpack.c.l.b16 %v1708
        %v2824 = vunpack.c.h.b16 %v1708
        %v2825 = vunpack.c.l.b16 %v1709
        %v2826 = vunpack.c.h.b16 %v1709
        %v2827 = vunpack.c.l.b16 %v1710
        %v2828 = vunpack.c.h.b16 %v1710
        %v2829 = vunpack.c.l.b16 %v1711
        %v2830 = vunpack.c.h.b16 %v1711
        %v2831 = vunpack.c.l.b16 %v1712
        %v2832 = vunpack.c.h.b16 %v1712
        %v2833 = vunpack.c.l.b16 %v1713
        %v2834 = vunpack.c.h.b16 %v1713
        %v2835 = vunpack.c.l.b16 %v1714
        %v2836 = vunpack.c.h.b16 %v1714
        %v2837 = vunpack.c.l.b16 %v1715
        %v2838 = vunpack.c.h.b16 %v1715
        %v2839 = vunpack.c.l.b16 %v1716
        %v2840 = vunpack.c.h.b16 %v1716
        %v2841 = vunpack.c.l.b16 %v1717
        %v2842 = vunpack.c.h.b16 %v1717
        %v2843 = vunpack.c.l.b16 %v1718
        %v2844 = vunpack.c.h.b16 %v1718
        %v2845 = vunpack.c.l.b16 %v1719
        %v2846 = vunpack.c.h.b16 %v1719
        %v2847 = vunpack.c.l.b16 %v1720
        %v2848 = vunpack.c.h.b16 %v1720
        %v2849 = vunpack.c.l.b16 %v1721
        %v2850 = vunpack.c.h.b16 %v1721
        %v2851 = vunpack.c.l.b16 %v1722
        %v2852 = vunpack.c.h.b16 %v1722
        %v2853 = vunpack.c.l.b16 %v1723
        %v2854 = vunpack.c.h.b16 %v1723
        %v2855 = vunpack.c.l.b16 %v1724
        %v2856 = vunpack.c.h.b16 %v1724
        %v2857 = vunpack.c.l.b16 %v1725
        %v2858 = vunpack.c.h.b16 %v1725
        %v2859 = vunpack.c.l.b16 %v1726
        %v2860 = vunpack.c.h.b16 %v1726
        %v2861 = vunpack.c.l.b16 %v1727
        %v2862 = vunpack.c.h.b16 %v1727
        %v2863 = vunpack.c.l.b16 %v1728
        %v2864 = vunpack.c.h.b16 %v1728
        %v2865 = vunpack.c.l.b16 %v1729
        %v2866 = vunpack.c.h.b16 %v1729
        %v2867 = vunpack.c.l.b16 %v1730
        %v2868 = vunpack.c.h.b16 %v1730
        %v2869 = vunpack.c.l.b16 %v1731
        %v2870 = vunpack.c.h.b16 %v1731
        %v2871 = vunpack.c.l.b16 %v1732
        %v2872 = vunpack.c.h.b16 %v1732
        %v2873 = vunpack.c.l.b16 %v1733
        %v2874 = vunpack.c.h.b16 %v1733
        %v2875 = vunpack.c.l.b16 %v1734
        %v2876 = vunpack.c.h.b16 %v1734
        %v2877 = vunpack.c.l.b16 %v1735
        %v2878 = vunpack.c.h.b16 %v1735
        %v2879 = vunpack.c.l.b16 %v1736
        %v2880 = vunpack.c.h.b16 %v1736
        %v2881 = vunpack.c.l.b16 %v1737
        %v2882 = vunpack.c.h.b16 %v1737
        %v2883 = vunpack.c.l.b16 %v1738
        %v2884 = vunpack.c.h.b16 %v1738
        %v2885 = vunpack.c.l.b16 %v1739
        %v2886 = vunpack.c.h.b16 %v1739
        %v2887 = vunpack.c.l.b16 %v1740
        %v2888 = vunpack.c.h.b16 %v1740
        %v2889 = vunpack.c.l.b16 %v1741
        %v2890 = vunpack.c.h.b16 %v1741
        %v2891 = vunpack.c.l.b16 %v1742
        %v2892 = vunpack.c.h.b16 %v1742
        %v2893 = vunpack.c.l.b16 %v1743
        %v2894 = vunpack.c.h.b16 %v1743
        %v2895 = vunpack.c.l.b16 %v1744
        %v2896 = vunpack.c.h.b16 %v1744
        %v2897 = vunpack.c.l.b16 %v1745
        %v2898 = vunpack.c.h.b16 %v1745
        %v2899 = vunpack.c.l.b16 %v1746
        %v2900 = vunpack.c.h.b16 %v1746
        %v2901 = vunpack.c.l.b16 %v1747
        %v2902 = vunpack.c.h.b16 %v1747
        %v2903 = vunpack.c.l.b16 %v1748
        %v2904 = vunpack.c.h.b16 %v1748
        %v2905 = vunpack.c.l.b16 %v1749
        %v2906 = vunpack.c.h.b16 %v1749
        %v2907 = vunpack.c.l.b16 %v1750
        %v2908 = vunpack.c.h.b16 %v1750
        %v2909 = vunpack.c.l.b16 %v1751
        %v2910 = vunpack.c.h.b16 %v1751
        %v2911 = vunpack.c.l.b16 %v1752
        %v2912 = vunpack.c.h.b16 %v1752
        %v2913 = vunpack.c.l.b16 %v1753
        %v2914 = vunpack.c.h.b16 %v1753
        %v2915 = vunpack.c.l.b16 %v1754
        %v2916 = vunpack.c.h.b16 %v1754
        %v2917 = vunpack.c.l.b16 %v1755
        %v2918 = vunpack.c.h.b16 %v1755
        %v2919 = vunpack.c.l.b16 %v1756
        %v2920 = vunpack.c.h.b16 %v1756
        %v2921 = vunpack.c.l.b16 %v1757
        %v2922 = vunpack.c.h.b16 %v1757
        %v2923 = vunpack.c.l.b16 %v1758
        %v2924 = vunpack.c.h.b16 %v1758
        %v2925 = vunpack.c.l.b16 %v1759
        %v2926 = vunpack.c.h.b16 %v1759
        %v2927 = vunpack.c.l.b16 %v1760
        %v2928 = vunpack.c.h.b16 %v1760
        %v2929 = vunpack.c.l.b16 %v1761
        %v2930 = vunpack.c.h.b16 %v1761
        %v2931 = vunpack.c.l.b16 %v1762
        %v2932 = vunpack.c.h.b16 %v1762
        %v2933 = vunpack.c.l.b16 %v1763
        %v2934 = vunpack.c.h.b16 %v1763
        %v2935 = vunpack.c.l.b16 %v1764
        %v2936 = vunpack.c.h.b16 %v1764
        %v2937 = vunpack.c.l.b16 %v1765
        %v2938 = vunpack.c.h.b16 %v1765
        %v2939 = vunpack.c.l.b16 %v1766
        %v2940 = vunpack.c.h.b16 %v1766
        %v2941 = vunpack.c.l.b16 %v1767
        %v2942 = vunpack.c.h.b16 %v1767
        %v2943 = vunpack.c.l.b16 %v1768
        %v2944 = vunpack.c.h.b16 %v1768
        %v2945 = vunpack.c.l.b16 %v1769
        %v2946 = vunpack.c.h.b16 %v1769
        %v2947 = vunpack.c.l.b16 %v1770
        %v2948 = vunpack.c.h.b16 %v1770
        %v2949 = vunpack.c.l.b16 %v1771
        %v2950 = vunpack.c.h.b16 %v1771
        %v2951 = vunpack.c.l.b16 %v1772
        %v2952 = vunpack.c.h.b16 %v1772
        %v2953 = vunpack.c.l.b16 %v1773
        %v2954 = vunpack.c.h.b16 %v1773
        %v2955 = vunpack.c.l.b16 %v1774
        %v2956 = vunpack.c.h.b16 %v1774
        %v2957 = vunpack.c.l.b16 %v1775
        %v2958 = vunpack.c.h.b16 %v1775
        %v2959 = vunpack.c.l.b16 %v1776
        %v2960 = vunpack.c.h.b16 %v1776
        %v2961 = vunpack.c.l.b16 %v1777
        %v2962 = vunpack.c.h.b16 %v1777
        %v2963 = vunpack.c.l.b16 %v1778
        %v2964 = vunpack.c.h.b16 %v1778
        %v2965 = vunpack.c.l.b16 %v1779
        %v2966 = vunpack.c.h.b16 %v1779
        %v2967 = vunpack.c.l.b16 %v1780
        %v2968 = vunpack.c.h.b16 %v1780
        %v2969 = vunpack.c.l.b16 %v1781
        %v2970 = vunpack.c.h.b16 %v1781
        %v2971 = vunpack.c.l.b16 %v1782
        %v2972 = vunpack.c.h.b16 %v1782
        %v2973 = vunpack.c.l.b16 %v1783
        %v2974 = vunpack.c.h.b16 %v1783
        %v2975 = vunpack.c.l.b16 %v1784
        %v2976 = vunpack.c.h.b16 %v1784
        %v2977 = vunpack.c.l.b16 %v1785
        %v2978 = vunpack.c.h.b16 %v1785
        %v2979 = vunpack.c.l.b16 %v1786
        %v2980 = vunpack.c.h.b16 %v1786
        %v2981 = vunpack.c.l.b16 %v1787
        %v2982 = vunpack.c.h.b16 %v1787
        %v2983 = vunpack.c.l.b16 %v1788
        %v2984 = vunpack.c.h.b16 %v1788
        %v2985 = vunpack.c.l.b16 %v1789
        %v2986 = vunpack.c.h.b16 %v1789
        %v2987 = vunpack.c.l.b16 %v1790
        %v2988 = vunpack.c.h.b16 %v1790
        %v2989 = vunpack.c.l.b16 %v1791
        %v2990 = vunpack.c.h.b16 %v1791
        %v2991 = vunpack.c.l.b16 %v1792
        %v2992 = vunpack.c.h.b16 %v1792
        %v2993 = vunpack.c.l.b16 %v1793
        %v2994 = vunpack.c.h.b16 %v1793
        %v2995 = vunpack.c.l.b16 %v1794
        %v2996 = vunpack.c.h.b16 %v1794
        %v2997 = vunpack.c.l.b16 %v1795
        %v2998 = vunpack.c.h.b16 %v1795
        %v2999 = vunpack.c.l.b16 %v1796
        %v3000 = vunpack.c.h.b16 %v1796
        %v3001 = vunpack.c.l.b16 %v1797
        %v3002 = vunpack.c.h.b16 %v1797
        %v3003 = vunpack.c.l.b16 %v1798
        %v3004 = vunpack.c.h.b16 %v1798
        %v3005 = vunpack.c.l.b16 %v1799
        %v3006 = vunpack.c.h.b16 %v1799
        %v3007 = vunpack.c.l.b16 %v1800
        %v3008 = vunpack.c.h.b16 %v1800
        %v3009 = vunpack.c.l.b16 %v1801
        %v3010 = vunpack.c.h.b16 %v1801
        %v3011 = vunpack.c.l.b16 %v1802
        %v3012 = vunpack.c.h.b16 %v1802
        %v3013 = vunpack.c.l.b16 %v1803
        %v3014 = vunpack.c.h.b16 %v1803
        %v3015 = vunpack.c.l.b16 %v1804
        %v3016 = vunpack.c.h.b16 %v1804
        %v3017 = vunpack.c.l.b16 %v1805
        %v3018 = vunpack.c.h.b16 %v1805
        %v3019 = vunpack.c.l.b16 %v1806
        %v3020 = vunpack.c.h.b16 %v1806
        %v3021 = vunpack.c.l.b16 %v1807
        %v3022 = vunpack.c.h.b16 %v1807
        %v3023 = vunpack.c.l.b16 %v1808
        %v3024 = vunpack.c.h.b16 %v1808
        %v3025 = vunpack.c.l.b16 %v1809
        %v3026 = vunpack.c.h.b16 %v1809
        %v3027 = vunpack.c.l.b16 %v1810
        %v3028 = vunpack.c.h.b16 %v1810
        %v3029 = vunpack.c.l.b16 %v1811
        %v3030 = vunpack.c.h.b16 %v1811
        %v3031 = vunpack.c.l.b16 %v1812
        %v3032 = vunpack.c.h.b16 %v1812
        %v3033 = vunpack.c.l.b16 %v1813
        %v3034 = vunpack.c.h.b16 %v1813
        %v3035 = vunpack.c.l.b16 %v1814
        %v3036 = vunpack.c.h.b16 %v1814
        %v3037 = vunpack.c.l.b16 %v1815
        %v3038 = vunpack.c.h.b16 %v1815
        %v3039 = vunpack.c.l.b16 %v1816
        %v3040 = vunpack.c.h.b16 %v1816
        %v3041 = vunpack.c.l.b16 %v1817
        %v3042 = vunpack.c.h.b16 %v1817
        %v3043 = vunpack.c.l.b16 %v1818
        %v3044 = vunpack.c.h.b16 %v1818
        %v3045 = vunpack.c.l.b16 %v1819
        %v3046 = vunpack.c.h.b16 %v1819
        %v3047 = vunpack.c.l.b16 %v1820
        %v3048 = vunpack.c.h.b16 %v1820
        %v3049 = vunpack.c.l.b16 %v1821
        %v3050 = vunpack.c.h.b16 %v1821
        %v3051 = vunpack.c.l.b16 %v1822
        %v3052 = vunpack.c.h.b16 %v1822
        %v3053 = vunpack.c.l.b16 %v1823
        %v3054 = vunpack.c.h.b16 %v1823
        %v3055 = vunpack.c.l.b16 %v1824
        %v3056 = vunpack.c.h.b16 %v1824
        %v3057 = vunpack.c.l.b16 %v1825
        %v3058 = vunpack.c.h.b16 %v1825
        %v3059 = vunpack.c.l.b16 %v1826
        %v3060 = vunpack.c.h.b16 %v1826
        %v3061 = vunpack.c.l.b16 %v1827
        %v3062 = vunpack.c.h.b16 %v1827
        %v3063 = vunpack.c.l.b16 %v1828
        %v3064 = vunpack.c.h.b16 %v1828
        %v3065 = vunpack.c.l.b16 %v1829
        %v3066 = vunpack.c.h.b16 %v1829
        %v3067 = vunpack.c.l.b16 %v1830
        %v3068 = vunpack.c.h.b16 %v1830
        %v3069 = vunpack.c.l.b16 %v1831
        %v3070 = vunpack.c.h.b16 %v1831
        %v3071 = vunpack.c.l.b16 %v1832
        %v3072 = vunpack.c.h.b16 %v1832
        %v3073 = vunpack.c.l.b16 %v1833
        %v3074 = vunpack.c.h.b16 %v1833
        %v3075 = vunpack.c.l.b16 %v1834
        %v3076 = vunpack.c.h.b16 %v1834
        %v3077 = vunpack.c.l.b16 %v1835
        %v3078 = vunpack.c.h.b16 %v1835
        %v3079 = vunpack.c.l.b16 %v1836
        %v3080 = vunpack.c.h.b16 %v1836
        %v3081 = vunpack.c.l.b16 %v1837
        %v3082 = vunpack.c.h.b16 %v1837
        %v3083 = vunpack.c.l.b16 %v1838
        %v3084 = vunpack.c.h.b16 %v1838
        %v3085 = vunpack.c.l.b16 %v1839
        %v3086 = vunpack.c.h.b16 %v1839
        %v3087 = vunpack.c.l.b16 %v1840
        %v3088 = vunpack.c.h.b16 %v1840
        %v3089 = vunpack.c.l.b16 %v1841
        %v3090 = vunpack.c.h.b16 %v1841
        %v3091 = vunpack.c.l.b16 %v1842
        %v3092 = vunpack.c.h.b16 %v1842
        %v3093 = vunpack.c.l.b16 %v1843
        %v3094 = vunpack.c.h.b16 %v1843
        %v3095 = vunpack.c.l.b16 %v1844
        %v3096 = vunpack.c.h.b16 %v1844
        %v3097 = vunpack.c.l.b16 %v1845
        %v3098 = vunpack.c.h.b16 %v1845
        %v3099 = vunpack.c.l.b16 %v1846
        %v3100 = vunpack.c.h.b16 %v1846
        %v3101 = vunpack.c.l.b16 %v1847
        %v3102 = vunpack.c.h.b16 %v1847
        %v3103 = vunpack.c.l.b16 %v1848
        %v3104 = vunpack.c.h.b16 %v1848
        %v3105 = vunpack.c.l.b16 %v1849
        %v3106 = vunpack.c.h.b16 %v1849
        %v3107 = vunpack.c.l.b16 %v1850
        %v3108 = vunpack.c.h.b16 %v1850
        %v3109 = vunpack.c.l.b16 %v1851
        %v3110 = vunpack.c.h.b16 %v1851
        %v3111 = vunpack.c.l.b16 %v1852
        %v3112 = vunpack.c.h.b16 %v1852
        %v3113 = vunpack.c.l.b16 %v1853
        %v3114 = vunpack.c.h.b16 %v1853
        %v3115 = vunpack.c.l.b16 %v1854
        %v3116 = vunpack.c.h.b16 %v1854
        %v3117 = vunpack.c.l.b16 %v1855
        %v3118 = vunpack.c.h.b16 %v1855
        %v3119 = vunpack.c.l.b16 %v1856
        %v3120 = vunpack.c.h.b16 %v1856
        %v3121 = vunpack.c.l.b16 %v1857
        %v3122 = vunpack.c.h.b16 %v1857
        %v3123 = vunpack.c.l.b16 %v1858
        %v3124 = vunpack.c.h.b16 %v1858
        %v3125 = vunpack.c.l.b16 %v1859
        %v3126 = vunpack.c.h.b16 %v1859
        %v3127 = vunpack.c.l.b16 %v1860
        %v3128 = vunpack.c.h.b16 %v1860
        %v3129 = vunpack.c.l.b16 %v1861
        %v3130 = vunpack.c.h.b16 %v1861
        %v3131 = vunpack.c.l.b16 %v1862
        %v3132 = vunpack.c.h.b16 %v1862
        %v3133 = vunpack.c.l.b16 %v1863
        %v3134 = vunpack.c.h.b16 %v1863
        %v3135 = vunpack.c.l.b16 %v1864
        %v3136 = vunpack.c.h.b16 %v1864
        %v3137 = vunpack.c.l.b16 %v1865
        %v3138 = vunpack.c.h.b16 %v1865
        %v3139 = vunpack.c.l.b16 %v1866
        %v3140 = vunpack.c.h.b16 %v1866
        %v3141 = vunpack.c.l.b16 %v1867
        %v3142 = vunpack.c.h.b16 %v1867
        %v3143 = vunpack.c.l.b16 %v1868
        %v3144 = vunpack.c.h.b16 %v1868
        %v3145 = vunpack.c.l.b16 %v1869
        %v3146 = vunpack.c.h.b16 %v1869
        %v3147 = vunpack.c.l.b16 %v1870
        %v3148 = vunpack.c.h.b16 %v1870
        %v3149 = vunpack.c.l.b16 %v1871
        %v3150 = vunpack.c.h.b16 %v1871
        %v3151 = vunpack.c.l.b16 %v1872
        %v3152 = vunpack.c.h.b16 %v1872
        %v3153 = vunpack.c.l.b16 %v1873
        %v3154 = vunpack.c.h.b16 %v1873
        %v3155 = vunpack.c.l.b16 %v1874
        %v3156 = vunpack.c.h.b16 %v1874
        %v3157 = vunpack.c.l.b16 %v1875
        %v3158 = vunpack.c.h.b16 %v1875
        %v3159 = vunpack.c.l.b16 %v1876
        %v3160 = vunpack.c.h.b16 %v1876
        %v3161 = vunpack.c.l.b16 %v1877
        %v3162 = vunpack.c.h.b16 %v1877
        %v3163 = vunpack.c.l.b16 %v1878
        %v3164 = vunpack.c.h.b16 %v1878
        %v3165 = vunpack.c.l.b16 %v1879
        %v3166 = vunpack.c.h.b16 %v1879
        %v3167 = vunpack.c.l.b16 %v1880
        %v3168 = vunpack.c.h.b16 %v1880
        %v3169 = vunpack.c.l.b16 %v1881
        %v3170 = vunpack.c.h.b16 %v1881
        %v3171 = vunpack.c.l.b16 %v1882
        %v3172 = vunpack.c.h.b16 %v1882
        %v3173 = vunpack.c.l.b16 %v1883
        %v3174 = vunpack.c.h.b16 %v1883
        %v3175 = vunpack.c.l.b16 %v1884
        %v3176 = vunpack.c.h.b16 %v1884
        %v3177 = vunpack.c.l.b16 %v1885
        %v3178 = vunpack.c.h.b16 %v1885
        %v3179 = vunpack.c.l.b16 %v1886
        %v3180 = vunpack.c.h.b16 %v1886
        %v3181 = vunpack.c.l.b16 %v1887
        %v3182 = vunpack.c.h.b16 %v1887
        %v3183 = vunpack.c.l.b16 %v1888
        %v3184 = vunpack.c.h.b16 %v1888
        %v3185 = vpack.c.b16 %v2421, %v2417
        %v3186 = vpack.c.b16 %v2422, %v2418
        %v3187 = vpack.c.b16 %v2423, %v2419
        %v3188 = vpack.c.b16 %v2424, %v2420
        %v3189 = vpack.c.b16 %v2429, %v2425
        %v3190 = vpack.c.b16 %v2430, %v2426
        %v3191 = vpack.c.b16 %v2431, %v2427
        %v3192 = vpack.c.b16 %v2432, %v2428
        %v3193 = vpack.c.b16 %v2437, %v2433
        %v3194 = vpack.c.b16 %v2438, %v2434
        %v3195 = vpack.c.b16 %v2439, %v2435
        %v3196 = vpack.c.b16 %v2440, %v2436
        %v3197 = vpack.c.b16 %v2445, %v2441
        %v3198 = vpack.c.b16 %v2446, %v2442
        %v3199 = vpack.c.b16 %v2447, %v2443
        %v3200 = vpack.c.b16 %v2448, %v2444
        %v3201 = vpack.c.b16 %v2453, %v2449
        %v3202 = vpack.c.b16 %v2454, %v2450
        %v3203 = vpack.c.b16 %v2455, %v2451
        %v3204 = vpack.c.b16 %v2456, %v2452
        %v3205 = vpack.c.b16 %v2461, %v2457
        %v3206 = vpack.c.b16 %v2462, %v2458
        %v3207 = vpack.c.b16 %v2463, %v2459
        %v3208 = vpack.c.b16 %v2464, %v2460
        %v3209 = vpack.c.b16 %v2469, %v2465
        %v3210 = vpack.c.b16 %v2470, %v2466
        %v3211 = vpack.c.b16 %v2471, %v2467
        %v3212 = vpack.c.b16 %v2472, %v2468
        %v3213 = vpack.c.b16 %v2477, %v2473
        %v3214 = vpack.c.b16 %v2478, %v2474
        %v3215 = vpack.c.b16 %v2479, %v2475
        %v3216 = vpack.c.b16 %v2480, %v2476
        %v3217 = vpack.c.b16 %v2485, %v2481
        %v3218 = vpack.c.b16 %v2486, %v2482
        %v3219 = vpack.c.b16 %v2487, %v2483
        %v3220 = vpack.c.b16 %v2488, %v2484
        %v3221 = vpack.c.b16 %v2493, %v2489
        %v3222 = vpack.c.b16 %v2494, %v2490
        %v3223 = vpack.c.b16 %v2495, %v2491
        %v3224 = vpack.c.b16 %v2496, %v2492
        %v3225 = vpack.c.b16 %v2501, %v2497
        %v3226 = vpack.c.b16 %v2502, %v2498
        %v3227 = vpack.c.b16 %v2503, %v2499
        %v3228 = vpack.c.b16 %v2504, %v2500
        %v3229 = vpack.c.b16 %v2509, %v2505
        %v3230 = vpack.c.b16 %v2510, %v2506
        %v3231 = vpack.c.b16 %v2511, %v2507
        %v3232 = vpack.c.b16 %v2512, %v2508
        %v3233 = vpack.c.b16 %v2517, %v2513
        %v3234 = vpack.c.b16 %v2518, %v2514
        %v3235 = vpack.c.b16 %v2519, %v2515
        %v3236 = vpack.c.b16 %v2520, %v2516
        %v3237 = vpack.c.b16 %v2525, %v2521
        %v3238 = vpack.c.b16 %v2526, %v2522
        %v3239 = vpack.c.b16 %v2527, %v2523
        %v3240 = vpack.c.b16 %v2528, %v2524
        %v3241 = vpack.c.b16 %v2533, %v2529
        %v3242 = vpack.c.b16 %v2534, %v2530
        %v3243 = vpack.c.b16 %v2535, %v2531
        %v3244 = vpack.c.b16 %v2536, %v2532
        %v3245 = vpack.c.b16 %v2541, %v2537
        %v3246 = vpack.c.b16 %v2542, %v2538
        %v3247 = vpack.c.b16 %v2543, %v2539
        %v3248 = vpack.c.b16 %v2544, %v2540
        %v3249 = vpack.c.b16 %v2549, %v2545
        %v3250 = vpack.c.b16 %v2550, %v2546
        %v3251 = vpack.c.b16 %v2551, %v2547
        %v3252 = vpack.c.b16 %v2552, %v2548
        %v3253 = vpack.c.b16 %v2557, %v2553
        %v3254 = vpack.c.b16 %v2558, %v2554
        %v3255 = vpack.c.b16 %v2559, %v2555
        %v3256 = vpack.c.b16 %v2560, %v2556
        %v3257 = vpack.c.b16 %v2565, %v2561
        %v3258 = vpack.c.b16 %v2566, %v2562
        %v3259 = vpack.c.b16 %v2567, %v2563
        %v3260 = vpack.c.b16 %v2568, %v2564
        %v3261 = vpack.c.b16 %v2573, %v2569
        %v3262 = vpack.c.b16 %v2574, %v2570
        %v3263 = vpack.c.b16 %v2575, %v2571
        %v3264 = vpack.c.b16 %v2576, %v2572
        %v3265 = vpack.c.b16 %v2581, %v2577
        %v3266 = vpack.c.b16 %v2582, %v2578
        %v3267 = vpack.c.b16 %v2583, %v2579
        %v3268 = vpack.c.b16 %v2584, %v2580
        %v3269 = vpack.c.b16 %v2589, %v2585
        %v3270 = vpack.c.b16 %v2590, %v2586
        %v3271 = vpack.c.b16 %v2591, %v2587
        %v3272 = vpack.c.b16 %v2592, %v2588
        %v3273 = vpack.c.b16 %v2597, %v2593
        %v3274 = vpack.c.b16 %v2598, %v2594
        %v3275 = vpack.c.b16 %v2599, %v2595
        %v3276 = vpack.c.b16 %v2600, %v2596
        %v3277 = vpack.c.b16 %v2605, %v2601
        %v3278 = vpack.c.b16 %v2606, %v2602
        %v3279 = vpack.c.b16 %v2607, %v2603
        %v3280 = vpack.c.b16 %v2608, %v2604
        %v3281 = vpack.c.b16 %v2613, %v2609
        %v3282 = vpack.c.b16 %v2614, %v2610
        %v3283 = vpack.c.b16 %v2615, %v2611
        %v3284 = vpack.c.b16 %v2616, %v2612
        %v3285 = vpack.c.b16 %v2621, %v2617
        %v3286 = vpack.c.b16 %v2622, %v2618
        %v3287 = vpack.c.b16 %v2623, %v2619
        %v3288 = vpack.c.b16 %v2624, %v2620
        %v3289 = vpack.c.b16 %v2629, %v2625
        %v3290 = vpack.c.b16 %v2630, %v2626
        %v3291 = vpack.c.b16 %v2631, %v2627
        %v3292 = vpack.c.b16 %v2632, %v2628
        %v3293 = vpack.c.b16 %v2637, %v2633
        %v3294 = vpack.c.b16 %v2638, %v2634
        %v3295 = vpack.c.b16 %v2639, %v2635
        %v3296 = vpack.c.b16 %v2640, %v2636
        %v3297 = vpack.c.b16 %v2645, %v2641
        %v3298 = vpack.c.b16 %v2646, %v2642
        %v3299 = vpack.c.b16 %v2647, %v2643
        %v3300 = vpack.c.b16 %v2648, %v2644
        %v3301 = vpack.c.b16 %v2653, %v2649
        %v3302 = vpack.c.b16 %v2654, %v2650
        %v3303 = vpack.c.b16 %v2655, %v2651
        %v3304 = vpack.c.b16 %v2656, %v2652
        %v3305 = vpack.c.b16 %v2661, %v2657
        %v3306 = vpack.c.b16 %v2662, %v2658
        %v3307 = vpack.c.b16 %v2663, %v2659
        %v3308 = vpack.c.b16 %v2664, %v2660
        %v3309 = vpack.c.b16 %v2669, %v2665
        %v3310 = vpack.c.b16 %v2670, %v2666
        %v3311 = vpack.c.b16 %v2671, %v2667
        %v3312 = vpack.c.b16 %v2672, %v2668
        %v3313 = vpack.c.b16 %v2677, %v2673
        %v3314 = vpack.c.b16 %v2678, %v2674
        %v3315 = vpack.c.b16 %v2679, %v2675
        %v3316 = vpack.c.b16 %v2680, %v2676
        %v3317 = vpack.c.b16 %v2685, %v2681
        %v3318 = vpack.c.b16 %v2686, %v2682
        %v3319 = vpack.c.b16 %v2687, %v2683
        %v3320 = vpack.c.b16 %v2688, %v2684
        %v3321 = vpack.c.b16 %v2693, %v2689
        %v3322 = vpack.c.b16 %v2694, %v2690
        %v3323 = vpack.c.b16 %v2695, %v2691
        %v3324 = vpack.c.b16 %v2696, %v2692
        %v3325 = vpack.c.b16 %v2701, %v2697
        %v3326 = vpack.c.b16 %v2702, %v2698
        %v3327 = vpack.c.b16 %v2703, %v2699
        %v3328 = vpack.c.b16 %v2704, %v2700
        %v3329 = vpack.c.b16 %v2709, %v2705
        %v3330 = vpack.c.b16 %v2710, %v2706
        %v3331 = vpack.c.b16 %v2711, %v2707
        %v3332 = vpack.c.b16 %v2712, %v2708
        %v3333 = vpack.c.b16 %v2717, %v2713
        %v3334 = vpack.c.b16 %v2718, %v2714
        %v3335 = vpack.c.b16 %v2719, %v2715
        %v3336 = vpack.c.b16 %v2720, %v2716
        %v3337 = vpack.c.b16 %v2725, %v2721
        %v3338 = vpack.c.b16 %v2726, %v2722
        %v3339 = vpack.c.b16 %v2727, %v2723
        %v3340 = vpack.c.b16 %v2728, %v2724
        %v3341 = vpack.c.b16 %v2733, %v2729
        %v3342 = vpack.c.b16 %v2734, %v2730
        %v3343 = vpack.c.b16 %v2735, %v2731
        %v3344 = vpack.c.b16 %v2736, %v2732
        %v3345 = vpack.c.b16 %v2741, %v2737
        %v3346 = vpack.c.b16 %v2742, %v2738
        %v3347 = vpack.c.b16 %v2743, %v2739
        %v3348 = vpack.c.b16 %v2744, %v2740
        %v3349 = vpack.c.b16 %v2749, %v2745
        %v3350 = vpack.c.b16 %v2750, %v2746
        %v3351 = vpack.c.b16 %v2751, %v2747
        %v3352 = vpack.c.b16 %v2752, %v2748
        %v3353 = vpack.c.b16 %v2757, %v2753
        %v3354 = vpack.c.b16 %v2758, %v2754
        %v3355 = vpack.c.b16 %v2759, %v2755
        %v3356 = vpack.c.b16 %v2760, %v2756
        %v3357 = vpack.c.b16 %v2765, %v2761
        %v3358 = vpack.c.b16 %v2766, %v2762
        %v3359 = vpack.c.b16 %v2767, %v2763
        %v3360 = vpack.c.b16 %v2768, %v2764
        %v3361 = vpack.c.b16 %v2773, %v2769
        %v3362 = vpack.c.b16 %v2774, %v2770
        %v3363 = vpack.c.b16 %v2775, %v2771
        %v3364 = vpack.c.b16 %v2776, %v2772
        %v3365 = vpack.c.b16 %v2781, %v2777
        %v3366 = vpack.c.b16 %v2782, %v2778
        %v3367 = vpack.c.b16 %v2783, %v2779
        %v3368 = vpack.c.b16 %v2784, %v2780
        %v3369 = vpack.c.b16 %v2789, %v2785
        %v3370 = vpack.c.b16 %v2790, %v2786
        %v3371 = vpack.c.b16 %v2791, %v2787
        %v3372 = vpack.c.b16 %v2792, %v2788
        %v3373 = vpack.c.b16 %v2797, %v2793
        %v3374 = vpack.c.b16 %v2798, %v2794
        %v3375 = vpack.c.b16 %v2799, %v2795
        %v3376 = vpack.c.b16 %v2800, %v2796
        %v3377 = vpack.c.b16 %v2805, %v2801
        %v3378 = vpack.c.b16 %v2806, %v2802
        %v3379 = vpack.c.b16 %v2807, %v2803
        %v3380 = vpack.c.b16 %v2808, %v2804
        %v3381 = vpack.c.b16 %v2813, %v2809
        %v3382 = vpack.c.b16 %v2814, %v2810
        %v3383 = vpack.c.b16 %v2815, %v2811
        %v3384 = vpack.c.b16 %v2816, %v2812
        %v3385 = vpack.c.b16 %v2821, %v2817
        %v3386 = vpack.c.b16 %v2822, %v2818
        %v3387 = vpack.c.b16 %v2823, %v2819
        %v3388 = vpack.c.b16 %v2824, %v2820
        %v3389 = vpack.c.b16 %v2829, %v2825
        %v3390 = vpack.c.b16 %v2830, %v2826
        %v3391 = vpack.c.b16 %v2831, %v2827
        %v3392 = vpack.c.b16 %v2832, %v2828
        %v3393 = vpack.c.b16 %v2837, %v2833
        %v3394 = vpack.c.b16 %v2838, %v2834
        %v3395 = vpack.c.b16 %v2839, %v2835
        %v3396 = vpack.c.b16 %v2840, %v2836
        %v3397 = vpack.c.b16 %v2845, %v2841
        %v3398 = vpack.c.b16 %v2846, %v2842
        %v3399 = vpack.c.b16 %v2847, %v2843
        %v3400 = vpack.c.b16 %v2848, %v2844
        %v3401 = vpack.c.b16 %v2853, %v2849
        %v3402 = vpack.c.b16 %v2854, %v2850
        %v3403 = vpack.c.b16 %v2855, %v2851
        %v3404 = vpack.c.b16 %v2856, %v2852
        %v3405 = vpack.c.b16 %v2861, %v2857
        %v3406 = vpack.c.b16 %v2862, %v2858
        %v3407 = vpack.c.b16 %v2863, %v2859
        %v3408 = vpack.c.b16 %v2864, %v2860
        %v3409 = vpack.c.b16 %v2869, %v2865
        %v3410 = vpack.c.b16 %v2870, %v2866
        %v3411 = vpack.c.b16 %v2871, %v2867
        %v3412 = vpack.c.b16 %v2872, %v2868
        %v3413 = vpack.c.b16 %v2877, %v2873
        %v3414 = vpack.c.b16 %v2878, %v2874
        %v3415 = vpack.c.b16 %v2879, %v2875
        %v3416 = vpack.c.b16 %v2880, %v2876
        %v3417 = vpack.c.b16 %v2885, %v2881
        %v3418 = vpack.c.b16 %v2886, %v2882
        %v3419 = vpack.c.b16 %v2887, %v2883
        %v3420 = vpack.c.b16 %v2888, %v2884
        %v3421 = vpack.c.b16 %v2893, %v2889
        %v3422 = vpack.c.b16 %v2894, %v2890
        %v3423 = vpack.c.b16 %v2895, %v2891
        %v3424 = vpack.c.b16 %v2896, %v2892
        %v3425 = vpack.c.b16 %v2901, %v2897
        %v3426 = vpack.c.b16 %v2902, %v2898
        %v3427 = vpack.c.b16 %v2903, %v2899
        %v3428 = vpack.c.b16 %v2904, %v2900
        %v3429 = vpack.c.b16 %v2909, %v2905
        %v3430 = vpack.c.b16 %v2910, %v2906
        %v3431 = vpack.c.b16 %v2911, %v2907
        %v3432 = vpack.c.b16 %v2912, %v2908
        %v3433 = vpack.c.b16 %v2917, %v2913
        %v3434 = vpack.c.b16 %v2918, %v2914
        %v3435 = vpack.c.b16 %v2919, %v2915
        %v3436 = vpack.c.b16 %v2920, %v2916
        %v3437 = vpack.c.b16 %v2925, %v2921
        %v3438 = vpack.c.b16 %v2926, %v2922
        %v3439 = vpack.c.b16 %v2927, %v2923
        %v3440 = vpack.c.b16 %v2928, %v2924
        %v3441 = vpack.c.b16 %v2933, %v2929
        %v3442 = vpack.c.b16 %v2934, %v2930
        %v3443 = vpack.c.b16 %v2935, %v2931
        %v3444 = vpack.c.b16 %v2936, %v2932
        %v3445 = vpack.c.b16 %v2941, %v2937
        %v3446 = vpack.c.b16 %v2942, %v2938
        %v3447 = vpack.c.b16 %v2943, %v2939
        %v3448 = vpack.c.b16 %v2944, %v2940
        %v3449 = vpack.c.b16 %v2949, %v2945
        %v3450 = vpack.c.b16 %v2950, %v2946
        %v3451 = vpack.c.b16 %v2951, %v2947
        %v3452 = vpack.c.b16 %v2952, %v2948
        %v3453 = vpack.c.b16 %v2957, %v2953
        %v3454 = vpack.c.b16 %v2958, %v2954
        %v3455 = vpack.c.b16 %v2959, %v2955
        %v3456 = vpack.c.b16 %v2960, %v2956
        %v3457 = vpack.c.b16 %v2965, %v2961
        %v3458 = vpack.c.b16 %v2966, %v2962
        %v3459 = vpack.c.b16 %v2967, %v2963
        %v3460 = vpack.c.b16 %v2968, %v2964
        %v3461 = vpack.c.b16 %v2973, %v2969
        %v3462 = vpack.c.b16 %v2974, %v2970
        %v3463 = vpack.c.b16 %v2975, %v2971
        %v3464 = vpack.c.b16 %v2976, %v2972
        %v3465 = vpack.c.b16 %v2981, %v2977
        %v3466 = vpack.c.b16 %v2982, %v2978
        %v3467 = vpack.c.b16 %v2983, %v2979
        %v3468 = vpack.c.b16 %v2984, %v2980
        %v3469 = vpack.c.b16 %v2989, %v2985
        %v3470 = vpack.c.b16 %v2990, %v2986
        %v3471 = vpack.c.b16 %v2991, %v2987
        %v3472 = vpack.c.b16 %v2992, %v2988
        %v3473 = vpack.c.b16 %v2997, %v2993
        %v3474 = vpack.c.b16 %v2998, %v2994
        %v3475 = vpack.c.b16 %v2999, %v2995
        %v3476 = vpack.c.b16 %v3000, %v2996
        %v3477 = vpack.c.b16 %v3005, %v3001
        %v3478 = vpack.c.b16 %v3006, %v3002
        %v3479 = vpack.c.b16 %v3007, %v3003
        %v3480 = vpack.c.b16 %v3008, %v3004
        %v3481 = vpack.c.b16 %v3013, %v3009
        %v3482 = vpack.c.b16 %v3014, %v3010
        %v3483 = vpack.c.b16 %v3015, %v3011
        %v3484 = vpack.c.b16 %v3016, %v3012
        %v3485 = vpack.c.b16 %v3021, %v3017
        %v3486 = vpack.c.b16 %v3022, %v3018
        %v3487 = vpack.c.b16 %v3023, %v3019
        %v3488 = vpack.c.b16 %v3024, %v3020
        %v3489 = vpack.c.b16 %v3029, %v3025
        %v3490 = vpack.c.b16 %v3030, %v3026
        %v3491 = vpack.c.b16 %v3031, %v3027
        %v3492 = vpack.c.b16 %v3032, %v3028
        %v3493 = vpack.c.b16 %v3037, %v3033
        %v3494 = vpack.c.b16 %v3038, %v3034
        %v3495 = vpack.c.b16 %v3039, %v3035
        %v3496 = vpack.c.b16 %v3040, %v3036
        %v3497 = vpack.c.b16 %v3045, %v3041
        %v3498 = vpack.c.b16 %v3046, %v3042
        %v3499 = vpack.c.b16 %v3047, %v3043
        %v3500 = vpack.c.b16 %v3048, %v3044
        %v3501 = vpack.c.b16 %v3053, %v3049
        %v3502 = vpack.c.b16 %v3054, %v3050
        %v3503 = vpack.c.b16 %v3055, %v3051
        %v3504 = vpack.c.b16 %v3056, %v3052
        %v3505 = vpack.c.b16 %v3061, %v3057
        %v3506 = vpack.c.b16 %v3062, %v3058
        %v3507 = vpack.c.b16 %v3063, %v3059
        %v3508 = vpack.c.b16 %v3064, %v3060
        %v3509 = vpack.c.b16 %v3069, %v3065
        %v3510 = vpack.c.b16 %v3070, %v3066
        %v3511 = vpack.c.b16 %v3071, %v3067
        %v3512 = vpack.c.b16 %v3072, %v3068
        %v3513 = vpack.c.b16 %v3077, %v3073
        %v3514 = vpack.c.b16 %v3078, %v3074
        %v3515 = vpack.c.b16 %v3079, %v3075
        %v3516 = vpack.c.b16 %v3080, %v3076
        %v3517 = vpack.c.b16 %v3085, %v3081
        %v3518 = vpack.c.b16 %v3086, %v3082
        %v3519 = vpack.c.b16 %v3087, %v3083
        %v3520 = vpack.c.b16 %v3088, %v3084
        %v3521 = vpack.c.b16 %v3093, %v3089
        %v3522 = vpack.c.b16 %v3094, %v3090
        %v3523 = vpack.c.b16 %v3095, %v3091
        %v3524 = vpack.c.b16 %v3096, %v3092
        %v3525 = vpack.c.b16 %v3101, %v3097
        %v3526 = vpack.c.b16 %v3102, %v3098
        %v3527 = vpack.c.b16 %v3103, %v3099
        %v3528 = vpack.c.b16 %v3104, %v3100
        %v3529 = vpack.c.b16 %v3109, %v3105
        %v3530 = vpack.c.b16 %v3110, %v3106
        %v3531 = vpack.c.b16 %v3111, %v3107
        %v3532 = vpack.c.b16 %v3112, %v3108
        %v3533 = vpack.c.b16 %v3117, %v3113
        %v3534 = vpack.c.b16 %v3118, %v3114
        %v3535 = vpack.c.b16 %v3119, %v3115
        %v3536 = vpack.c.b16 %v3120, %v3116
        %v3537 = vpack.c.b16 %v3125, %v3121
        %v3538 = vpack.c.b16 %v3126, %v3122
        %v3539 = vpack.c.b16 %v3127, %v3123
        %v3540 = vpack.c.b16 %v3128, %v3124
        %v3541 = vpack.c.b16 %v3133, %v3129
        %v3542 = vpack.c.b16 %v3134, %v3130
        %v3543 = vpack.c.b16 %v3135, %v3131
        %v3544 = vpack.c.b16 %v3136, %v3132
        %v3545 = vpack.c.b16 %v3141, %v3137
        %v3546 = vpack.c.b16 %v3142, %v3138
        %v3547 = vpack.c.b16 %v3143, %v3139
        %v3548 = vpack.c.b16 %v3144, %v3140
        %v3549 = vpack.c.b16 %v3149, %v3145
        %v3550 = vpack.c.b16 %v3150, %v3146
        %v3551 = vpack.c.b16 %v3151, %v3147
        %v3552 = vpack.c.b16 %v3152, %v3148
        %v3553 = vpack.c.b16 %v3157, %v3153
        %v3554 = vpack.c.b16 %v3158, %v3154
        %v3555 = vpack.c.b16 %v3159, %v3155
        %v3556 = vpack.c.b16 %v3160, %v3156
        %v3557 = vpack.c.b16 %v3165, %v3161
        %v3558 = vpack.c.b16 %v3166, %v3162
        %v3559 = vpack.c.b16 %v3167, %v3163
        %v3560 = vpack.c.b16 %v3168, %v3164
        %v3561 = vpack.c.b16 %v3173, %v3169
        %v3562 = vpack.c.b16 %v3174, %v3170
        %v3563 = vpack.c.b16 %v3175, %v3171
        %v3564 = vpack.c.b16 %v3176, %v3172
        %v3565 = vpack.c.b16 %v3181, %v3177
        %v3566 = vpack.c.b16 %v3182, %v3178
        %v3567 = vpack.c.b16 %v3183, %v3179
        %v3568 = vpack.c.b16 %v3184, %v3180
        %3953 = vmatpush.bf16.msra.mxu0 %v3213
        %3954 = vmatpush.bf16.msra.mxu0 %v3209
        %3955 = vmatpush.bf16.msra.mxu0 %v3205
        %3956 = vmatpush.bf16.msra.mxu0 %v3201
        %3957 = vmatpush.bf16.msra.mxu0 %v3197
        %3958 = vmatpush.bf16.msra.mxu0 %v3193
        %3959 = vmatpush.bf16.msra.mxu0 %v3189
        %3960 = vmatpush.bf16.msra.mxu0 %v3185
        %3961 = vmatmul.bf16.gmra.mxu0 %v1985
        %v3962 = vpop.f32.mrf.mxu0
        %v3963 = vadd.f32 0.0, %v3962
        %v3964 = vpop.f32.mrf.mxu0
        %v3965 = vadd.f32 0.0, %v3964
        %3966 = vmatmul.bf16.gmra.mxu0 %v1997
        %v3967 = vpop.f32.mrf.mxu0
        %v3968 = vadd.f32 0.0, %v3967
        %v3969 = vpop.f32.mrf.mxu0
        %v3970 = vadd.f32 0.0, %v3969
        %3971 = vdwg.mxu0
        %3972 = vmatpush.bf16.msra.mxu0 %v3245
        %3973 = vmatpush.bf16.msra.mxu0 %v3241
        %3974 = vmatpush.bf16.msra.mxu0 %v3237
        %3975 = vmatpush.bf16.msra.mxu0 %v3233
        %3976 = vmatpush.bf16.msra.mxu0 %v3229
        %3977 = vmatpush.bf16.msra.mxu0 %v3225
        %3978 = vmatpush.bf16.msra.mxu0 %v3221
        %3979 = vmatpush.bf16.msra.mxu0 %v3217
        %3980 = vmatmul.bf16.gmra.mxu0 %v1986
        %v3981 = vpop.f32.mrf.mxu0
        %v3982 = vadd.f32 %v3963, %v3981
        %v3983 = vpop.f32.mrf.mxu0
        %v3984 = vadd.f32 %v3965, %v3983
        %3985 = vmatmul.bf16.gmra.mxu0 %v1998
        %v3986 = vpop.f32.mrf.mxu0
        %v3987 = vadd.f32 %v3968, %v3986
        %v3988 = vpop.f32.mrf.mxu0
        %v3989 = vadd.f32 %v3970, %v3988
        %3990 = vdwg.mxu0
        %3991 = vmatpush.bf16.msra.mxu0 %v3277
        %3992 = vmatpush.bf16.msra.mxu0 %v3273
        %3993 = vmatpush.bf16.msra.mxu0 %v3269
        %3994 = vmatpush.bf16.msra.mxu0 %v3265
        %3995 = vmatpush.bf16.msra.mxu0 %v3261
        %3996 = vmatpush.bf16.msra.mxu0 %v3257
        %3997 = vmatpush.bf16.msra.mxu0 %v3253
        %3998 = vmatpush.bf16.msra.mxu0 %v3249
        %3999 = vmatmul.bf16.gmra.mxu0 %v1987
        %v4000 = vpop.f32.mrf.mxu0
        %v4001 = vadd.f32 %v3982, %v4000
        %v4002 = vpop.f32.mrf.mxu0
        %v4003 = vadd.f32 %v3984, %v4002
        %4004 = vmatmul.bf16.gmra.mxu0 %v1999
        %v4005 = vpop.f32.mrf.mxu0
        %v4006 = vadd.f32 %v3987, %v4005
        %v4007 = vpop.f32.mrf.mxu0
        %v4008 = vadd.f32 %v3989, %v4007
        %4009 = vdwg.mxu0
        %4010 = vmatpush.bf16.msra.mxu0 %v3309
        %4011 = vmatpush.bf16.msra.mxu0 %v3305
        %4012 = vmatpush.bf16.msra.mxu0 %v3301
        %4013 = vmatpush.bf16.msra.mxu0 %v3297
        %4014 = vmatpush.bf16.msra.mxu0 %v3293
        %4015 = vmatpush.bf16.msra.mxu0 %v3289
        %4016 = vmatpush.bf16.msra.mxu0 %v3285
        %4017 = vmatpush.bf16.msra.mxu0 %v3281
        %4018 = vmatmul.bf16.gmra.mxu0 %v1988
        %v4019 = vpop.f32.mrf.mxu0
        %v4020 = vadd.f32 %v4001, %v4019
        %v4021 = vpop.f32.mrf.mxu0
        %v4022 = vadd.f32 %v4003, %v4021
        %4023 = vmatmul.bf16.gmra.mxu0 %v2000
        %v4024 = vpop.f32.mrf.mxu0
        %v4025 = vadd.f32 %v4006, %v4024
        %v4026 = vpop.f32.mrf.mxu0
        %v4027 = vadd.f32 %v4008, %v4026
        %4028 = vdwg.mxu0
        %4029 = vmatpush.bf16.msra.mxu0 %v3341
        %4030 = vmatpush.bf16.msra.mxu0 %v3337
        %4031 = vmatpush.bf16.msra.mxu0 %v3333
        %4032 = vmatpush.bf16.msra.mxu0 %v3329
        %4033 = vmatpush.bf16.msra.mxu0 %v3325
        %4034 = vmatpush.bf16.msra.mxu0 %v3321
        %4035 = vmatpush.bf16.msra.mxu0 %v3317
        %4036 = vmatpush.bf16.msra.mxu0 %v3313
        %4037 = vmatmul.bf16.gmra.mxu0 %v1989
        %v4038 = vpop.f32.mrf.mxu0
        %v4039 = vadd.f32 %v4020, %v4038
        %v4040 = vpop.f32.mrf.mxu0
        %v4041 = vadd.f32 %v4022, %v4040
        %4042 = vmatmul.bf16.gmra.mxu0 %v2001
        %v4043 = vpop.f32.mrf.mxu0
        %v4044 = vadd.f32 %v4025, %v4043
        %v4045 = vpop.f32.mrf.mxu0
        %v4046 = vadd.f32 %v4027, %v4045
        %4047 = vdwg.mxu0
        %4048 = vmatpush.bf16.msra.mxu0 %v3373
        %4049 = vmatpush.bf16.msra.mxu0 %v3369
        %4050 = vmatpush.bf16.msra.mxu0 %v3365
        %4051 = vmatpush.bf16.msra.mxu0 %v3361
        %4052 = vmatpush.bf16.msra.mxu0 %v3357
        %4053 = vmatpush.bf16.msra.mxu0 %v3353
        %4054 = vmatpush.bf16.msra.mxu0 %v3349
        %4055 = vmatpush.bf16.msra.mxu0 %v3345
        %4056 = vmatmul.bf16.gmra.mxu0 %v1990
        %v4057 = vpop.f32.mrf.mxu0
        %v4058 = vadd.f32 %v4039, %v4057
        %v4059 = vpop.f32.mrf.mxu0
        %v4060 = vadd.f32 %v4041, %v4059
        %4061 = vmatmul.bf16.gmra.mxu0 %v2002
        %v4062 = vpop.f32.mrf.mxu0
        %v4063 = vadd.f32 %v4044, %v4062
        %v4064 = vpop.f32.mrf.mxu0
        %v4065 = vadd.f32 %v4046, %v4064
        %4066 = vdwg.mxu0
        %4067 = vmatpush.bf16.msra.mxu0 %v3405
        %4068 = vmatpush.bf16.msra.mxu0 %v3401
        %4069 = vmatpush.bf16.msra.mxu0 %v3397
        %4070 = vmatpush.bf16.msra.mxu0 %v3393
        %4071 = vmatpush.bf16.msra.mxu0 %v3389
        %4072 = vmatpush.bf16.msra.mxu0 %v3385
        %4073 = vmatpush.bf16.msra.mxu0 %v3381
        %4074 = vmatpush.bf16.msra.mxu0 %v3377
        %4075 = vmatmul.bf16.gmra.mxu0 %v1991
        %v4076 = vpop.f32.mrf.mxu0
        %v4077 = vadd.f32 %v4058, %v4076
        %v4078 = vpop.f32.mrf.mxu0
        %v4079 = vadd.f32 %v4060, %v4078
        %4080 = vmatmul.bf16.gmra.mxu0 %v2003
        %v4081 = vpop.f32.mrf.mxu0
        %v4082 = vadd.f32 %v4063, %v4081
        %v4083 = vpop.f32.mrf.mxu0
        %v4084 = vadd.f32 %v4065, %v4083
        %4085 = vdwg.mxu0
        %4086 = vmatpush.bf16.msra.mxu0 %v3437
        %4087 = vmatpush.bf16.msra.mxu0 %v3433
        %4088 = vmatpush.bf16.msra.mxu0 %v3429
        %4089 = vmatpush.bf16.msra.mxu0 %v3425
        %4090 = vmatpush.bf16.msra.mxu0 %v3421
        %4091 = vmatpush.bf16.msra.mxu0 %v3417
        %4092 = vmatpush.bf16.msra.mxu0 %v3413
        %4093 = vmatpush.bf16.msra.mxu0 %v3409
        %4094 = vmatmul.bf16.gmra.mxu0 %v1992
        %v4095 = vpop.f32.mrf.mxu0
        %v4096 = vadd.f32 %v4077, %v4095
        %v4097 = vpop.f32.mrf.mxu0
        %v4098 = vadd.f32 %v4079, %v4097
        %4099 = vmatmul.bf16.gmra.mxu0 %v2004
        %v4100 = vpop.f32.mrf.mxu0
        %v4101 = vadd.f32 %v4082, %v4100
        %v4102 = vpop.f32.mrf.mxu0
        %v4103 = vadd.f32 %v4084, %v4102
        %4104 = vdwg.mxu0
        %4105 = vmatpush.bf16.msra.mxu0 %v3469
        %4106 = vmatpush.bf16.msra.mxu0 %v3465
        %4107 = vmatpush.bf16.msra.mxu0 %v3461
        %4108 = vmatpush.bf16.msra.mxu0 %v3457
        %4109 = vmatpush.bf16.msra.mxu0 %v3453
        %4110 = vmatpush.bf16.msra.mxu0 %v3449
        %4111 = vmatpush.bf16.msra.mxu0 %v3445
        %4112 = vmatpush.bf16.msra.mxu0 %v3441
        %4113 = vmatmul.bf16.gmra.mxu0 %v1993
        %v4114 = vpop.f32.mrf.mxu0
        %v4115 = vadd.f32 %v4096, %v4114
        %v4116 = vpop.f32.mrf.mxu0
        %v4117 = vadd.f32 %v4098, %v4116
        %4118 = vmatmul.bf16.gmra.mxu0 %v2005
        %v4119 = vpop.f32.mrf.mxu0
        %v4120 = vadd.f32 %v4101, %v4119
        %v4121 = vpop.f32.mrf.mxu0
        %v4122 = vadd.f32 %v4103, %v4121
        %4123 = vdwg.mxu0
        %4124 = vmatpush.bf16.msra.mxu0 %v3501
        %4125 = vmatpush.bf16.msra.mxu0 %v3497
        %4126 = vmatpush.bf16.msra.mxu0 %v3493
        %4127 = vmatpush.bf16.msra.mxu0 %v3489
        %4128 = vmatpush.bf16.msra.mxu0 %v3485
        %4129 = vmatpush.bf16.msra.mxu0 %v3481
        %4130 = vmatpush.bf16.msra.mxu0 %v3477
        %4131 = vmatpush.bf16.msra.mxu0 %v3473
        %4132 = vmatmul.bf16.gmra.mxu0 %v1994
        %v4133 = vpop.f32.mrf.mxu0
        %v4134 = vadd.f32 %v4115, %v4133
        %v4135 = vpop.f32.mrf.mxu0
        %v4136 = vadd.f32 %v4117, %v4135
        %4137 = vmatmul.bf16.gmra.mxu0 %v2006
        %v4138 = vpop.f32.mrf.mxu0
        %v4139 = vadd.f32 %v4120, %v4138
        %v4140 = vpop.f32.mrf.mxu0
        %v4141 = vadd.f32 %v4122, %v4140
        %4142 = vdwg.mxu0
        %4143 = vmatpush.bf16.msra.mxu0 %v3533
        %4144 = vmatpush.bf16.msra.mxu0 %v3529
        %4145 = vmatpush.bf16.msra.mxu0 %v3525
        %4146 = vmatpush.bf16.msra.mxu0 %v3521
        %4147 = vmatpush.bf16.msra.mxu0 %v3517
        %4148 = vmatpush.bf16.msra.mxu0 %v3513
        %4149 = vmatpush.bf16.msra.mxu0 %v3509
        %4150 = vmatpush.bf16.msra.mxu0 %v3505
        %4151 = vmatmul.bf16.gmra.mxu0 %v1995
        %v4152 = vpop.f32.mrf.mxu0
        %v4153 = vadd.f32 %v4134, %v4152
        %v4154 = vpop.f32.mrf.mxu0
        %v4155 = vadd.f32 %v4136, %v4154
        %4156 = vmatmul.bf16.gmra.mxu0 %v2007
        %v4157 = vpop.f32.mrf.mxu0
        %v4158 = vadd.f32 %v4139, %v4157
        %v4159 = vpop.f32.mrf.mxu0
        %v4160 = vadd.f32 %v4141, %v4159
        %4161 = vdwg.mxu0
        %4162 = vmatpush.bf16.msra.mxu0 %v3565
        %4163 = vmatpush.bf16.msra.mxu0 %v3561
        %4164 = vmatpush.bf16.msra.mxu0 %v3557
        %4165 = vmatpush.bf16.msra.mxu0 %v3553
        %4166 = vmatpush.bf16.msra.mxu0 %v3549
        %4167 = vmatpush.bf16.msra.mxu0 %v3545
        %4168 = vmatpush.bf16.msra.mxu0 %v3541
        %4169 = vmatpush.bf16.msra.mxu0 %v3537
        %4170 = vmatmul.bf16.gmra.mxu0 %v1996
        %v4171 = vpop.f32.mrf.mxu0
        %v4172 = vadd.f32 %v4153, %v4171
        %v4173 = vpop.f32.mrf.mxu0
        %v4174 = vadd.f32 %v4155, %v4173
        %4175 = vmatmul.bf16.gmra.mxu0 %v2008
        %v4176 = vpop.f32.mrf.mxu0
        %v4177 = vadd.f32 %v4158, %v4176
        %v4178 = vpop.f32.mrf.mxu0
        %v4179 = vadd.f32 %v4160, %v4178
        %4180 = vdwg.mxu0
        %4181 = vmatpush.bf16.msra.mxu0 %v3214
        %4182 = vmatpush.bf16.msra.mxu0 %v3210
        %4183 = vmatpush.bf16.msra.mxu0 %v3206
        %4184 = vmatpush.bf16.msra.mxu0 %v3202
        %4185 = vmatpush.bf16.msra.mxu0 %v3198
        %4186 = vmatpush.bf16.msra.mxu0 %v3194
        %4187 = vmatpush.bf16.msra.mxu0 %v3190
        %4188 = vmatpush.bf16.msra.mxu0 %v3186
        %4189 = vmatmul.bf16.gmra.mxu0 %v1985
        %v4190 = vpop.f32.mrf.mxu0
        %v4191 = vadd.f32 0.0, %v4190
        %v4192 = vpop.f32.mrf.mxu0
        %v4193 = vadd.f32 0.0, %v4192
        %4194 = vmatmul.bf16.gmra.mxu0 %v1997
        %v4195 = vpop.f32.mrf.mxu0
        %v4196 = vadd.f32 0.0, %v4195
        %v4197 = vpop.f32.mrf.mxu0
        %v4198 = vadd.f32 0.0, %v4197
        %4199 = vdwg.mxu0
        %4200 = vmatpush.bf16.msra.mxu0 %v3246
        %4201 = vmatpush.bf16.msra.mxu0 %v3242
        %4202 = vmatpush.bf16.msra.mxu0 %v3238
        %4203 = vmatpush.bf16.msra.mxu0 %v3234
        %4204 = vmatpush.bf16.msra.mxu0 %v3230
        %4205 = vmatpush.bf16.msra.mxu0 %v3226
        %4206 = vmatpush.bf16.msra.mxu0 %v3222
        %4207 = vmatpush.bf16.msra.mxu0 %v3218
        %4208 = vmatmul.bf16.gmra.mxu0 %v1986
        %v4209 = vpop.f32.mrf.mxu0
        %v4210 = vadd.f32 %v4191, %v4209
        %v4211 = vpop.f32.mrf.mxu0
        %v4212 = vadd.f32 %v4193, %v4211
        %4213 = vmatmul.bf16.gmra.mxu0 %v1998
        %v4214 = vpop.f32.mrf.mxu0
        %v4215 = vadd.f32 %v4196, %v4214
        %v4216 = vpop.f32.mrf.mxu0
        %v4217 = vadd.f32 %v4198, %v4216
        %4218 = vdwg.mxu0
        %4219 = vmatpush.bf16.msra.mxu0 %v3278
        %4220 = vmatpush.bf16.msra.mxu0 %v3274
        %4221 = vmatpush.bf16.msra.mxu0 %v3270
        %4222 = vmatpush.bf16.msra.mxu0 %v3266
        %4223 = vmatpush.bf16.msra.mxu0 %v3262
        %4224 = vmatpush.bf16.msra.mxu0 %v3258
        %4225 = vmatpush.bf16.msra.mxu0 %v3254
        %4226 = vmatpush.bf16.msra.mxu0 %v3250
        %4227 = vmatmul.bf16.gmra.mxu0 %v1987
        %v4228 = vpop.f32.mrf.mxu0
        %v4229 = vadd.f32 %v4210, %v4228
        %v4230 = vpop.f32.mrf.mxu0
        %v4231 = vadd.f32 %v4212, %v4230
        %4232 = vmatmul.bf16.gmra.mxu0 %v1999
        %v4233 = vpop.f32.mrf.mxu0
        %v4234 = vadd.f32 %v4215, %v4233
        %v4235 = vpop.f32.mrf.mxu0
        %v4236 = vadd.f32 %v4217, %v4235
        %4237 = vdwg.mxu0
        %4238 = vmatpush.bf16.msra.mxu0 %v3310
        %4239 = vmatpush.bf16.msra.mxu0 %v3306
        %4240 = vmatpush.bf16.msra.mxu0 %v3302
        %4241 = vmatpush.bf16.msra.mxu0 %v3298
        %4242 = vmatpush.bf16.msra.mxu0 %v3294
        %4243 = vmatpush.bf16.msra.mxu0 %v3290
        %4244 = vmatpush.bf16.msra.mxu0 %v3286
        %4245 = vmatpush.bf16.msra.mxu0 %v3282
        %4246 = vmatmul.bf16.gmra.mxu0 %v1988
        %v4247 = vpop.f32.mrf.mxu0
        %v4248 = vadd.f32 %v4229, %v4247
        %v4249 = vpop.f32.mrf.mxu0
        %v4250 = vadd.f32 %v4231, %v4249
        %4251 = vmatmul.bf16.gmra.mxu0 %v2000
        %v4252 = vpop.f32.mrf.mxu0
        %v4253 = vadd.f32 %v4234, %v4252
        %v4254 = vpop.f32.mrf.mxu0
        %v4255 = vadd.f32 %v4236, %v4254
        %4256 = vdwg.mxu0
        %4257 = vmatpush.bf16.msra.mxu0 %v3342
        %4258 = vmatpush.bf16.msra.mxu0 %v3338
        %4259 = vmatpush.bf16.msra.mxu0 %v3334
        %4260 = vmatpush.bf16.msra.mxu0 %v3330
        %4261 = vmatpush.bf16.msra.mxu0 %v3326
        %4262 = vmatpush.bf16.msra.mxu0 %v3322
        %4263 = vmatpush.bf16.msra.mxu0 %v3318
        %4264 = vmatpush.bf16.msra.mxu0 %v3314
        %4265 = vmatmul.bf16.gmra.mxu0 %v1989
        %v4266 = vpop.f32.mrf.mxu0
        %v4267 = vadd.f32 %v4248, %v4266
        %v4268 = vpop.f32.mrf.mxu0
        %v4269 = vadd.f32 %v4250, %v4268
        %4270 = vmatmul.bf16.gmra.mxu0 %v2001
        %v4271 = vpop.f32.mrf.mxu0
        %v4272 = vadd.f32 %v4253, %v4271
        %v4273 = vpop.f32.mrf.mxu0
        %v4274 = vadd.f32 %v4255, %v4273
        %4275 = vdwg.mxu0
        %4276 = vmatpush.bf16.msra.mxu0 %v3374
        %4277 = vmatpush.bf16.msra.mxu0 %v3370
        %4278 = vmatpush.bf16.msra.mxu0 %v3366
        %4279 = vmatpush.bf16.msra.mxu0 %v3362
        %4280 = vmatpush.bf16.msra.mxu0 %v3358
        %4281 = vmatpush.bf16.msra.mxu0 %v3354
        %4282 = vmatpush.bf16.msra.mxu0 %v3350
        %4283 = vmatpush.bf16.msra.mxu0 %v3346
        %4284 = vmatmul.bf16.gmra.mxu0 %v1990
        %v4285 = vpop.f32.mrf.mxu0
        %v4286 = vadd.f32 %v4267, %v4285
        %v4287 = vpop.f32.mrf.mxu0
        %v4288 = vadd.f32 %v4269, %v4287
        %4289 = vmatmul.bf16.gmra.mxu0 %v2002
        %v4290 = vpop.f32.mrf.mxu0
        %v4291 = vadd.f32 %v4272, %v4290
        %v4292 = vpop.f32.mrf.mxu0
        %v4293 = vadd.f32 %v4274, %v4292
        %4294 = vdwg.mxu0
        %4295 = vmatpush.bf16.msra.mxu0 %v3406
        %4296 = vmatpush.bf16.msra.mxu0 %v3402
        %4297 = vmatpush.bf16.msra.mxu0 %v3398
        %4298 = vmatpush.bf16.msra.mxu0 %v3394
        %4299 = vmatpush.bf16.msra.mxu0 %v3390
        %4300 = vmatpush.bf16.msra.mxu0 %v3386
        %4301 = vmatpush.bf16.msra.mxu0 %v3382
        %4302 = vmatpush.bf16.msra.mxu0 %v3378
        %4303 = vmatmul.bf16.gmra.mxu0 %v1991
        %v4304 = vpop.f32.mrf.mxu0
        %v4305 = vadd.f32 %v4286, %v4304
        %v4306 = vpop.f32.mrf.mxu0
        %v4307 = vadd.f32 %v4288, %v4306
        %4308 = vmatmul.bf16.gmra.mxu0 %v2003
        %v4309 = vpop.f32.mrf.mxu0
        %v4310 = vadd.f32 %v4291, %v4309
        %v4311 = vpop.f32.mrf.mxu0
        %v4312 = vadd.f32 %v4293, %v4311
        %4313 = vdwg.mxu0
        %4314 = vmatpush.bf16.msra.mxu0 %v3438
        %4315 = vmatpush.bf16.msra.mxu0 %v3434
        %4316 = vmatpush.bf16.msra.mxu0 %v3430
        %4317 = vmatpush.bf16.msra.mxu0 %v3426
        %4318 = vmatpush.bf16.msra.mxu0 %v3422
        %4319 = vmatpush.bf16.msra.mxu0 %v3418
        %4320 = vmatpush.bf16.msra.mxu0 %v3414
        %4321 = vmatpush.bf16.msra.mxu0 %v3410
        %4322 = vmatmul.bf16.gmra.mxu0 %v1992
        %v4323 = vpop.f32.mrf.mxu0
        %v4324 = vadd.f32 %v4305, %v4323
        %v4325 = vpop.f32.mrf.mxu0
        %v4326 = vadd.f32 %v4307, %v4325
        %4327 = vmatmul.bf16.gmra.mxu0 %v2004
        %v4328 = vpop.f32.mrf.mxu0
        %v4329 = vadd.f32 %v4310, %v4328
        %v4330 = vpop.f32.mrf.mxu0
        %v4331 = vadd.f32 %v4312, %v4330
        %4332 = vdwg.mxu0
        %4333 = vmatpush.bf16.msra.mxu0 %v3470
        %4334 = vmatpush.bf16.msra.mxu0 %v3466
        %4335 = vmatpush.bf16.msra.mxu0 %v3462
        %4336 = vmatpush.bf16.msra.mxu0 %v3458
        %4337 = vmatpush.bf16.msra.mxu0 %v3454
        %4338 = vmatpush.bf16.msra.mxu0 %v3450
        %4339 = vmatpush.bf16.msra.mxu0 %v3446
        %4340 = vmatpush.bf16.msra.mxu0 %v3442
        %4341 = vmatmul.bf16.gmra.mxu0 %v1993
        %v4342 = vpop.f32.mrf.mxu0
        %v4343 = vadd.f32 %v4324, %v4342
        %v4344 = vpop.f32.mrf.mxu0
        %v4345 = vadd.f32 %v4326, %v4344
        %4346 = vmatmul.bf16.gmra.mxu0 %v2005
        %v4347 = vpop.f32.mrf.mxu0
        %v4348 = vadd.f32 %v4329, %v4347
        %v4349 = vpop.f32.mrf.mxu0
        %v4350 = vadd.f32 %v4331, %v4349
        %4351 = vdwg.mxu0
        %4352 = vmatpush.bf16.msra.mxu0 %v3502
        %4353 = vmatpush.bf16.msra.mxu0 %v3498
        %4354 = vmatpush.bf16.msra.mxu0 %v3494
        %4355 = vmatpush.bf16.msra.mxu0 %v3490
        %4356 = vmatpush.bf16.msra.mxu0 %v3486
        %4357 = vmatpush.bf16.msra.mxu0 %v3482
        %4358 = vmatpush.bf16.msra.mxu0 %v3478
        %4359 = vmatpush.bf16.msra.mxu0 %v3474
        %4360 = vmatmul.bf16.gmra.mxu0 %v1994
        %v4361 = vpop.f32.mrf.mxu0
        %v4362 = vadd.f32 %v4343, %v4361
        %v4363 = vpop.f32.mrf.mxu0
        %v4364 = vadd.f32 %v4345, %v4363
        %4365 = vmatmul.bf16.gmra.mxu0 %v2006
        %v4366 = vpop.f32.mrf.mxu0
        %v4367 = vadd.f32 %v4348, %v4366
        %v4368 = vpop.f32.mrf.mxu0
        %v4369 = vadd.f32 %v4350, %v4368
        %4370 = vdwg.mxu0
        %4371 = vmatpush.bf16.msra.mxu0 %v3534
        %4372 = vmatpush.bf16.msra.mxu0 %v3530
        %4373 = vmatpush.bf16.msra.mxu0 %v3526
        %4374 = vmatpush.bf16.msra.mxu0 %v3522
        %4375 = vmatpush.bf16.msra.mxu0 %v3518
        %4376 = vmatpush.bf16.msra.mxu0 %v3514
        %4377 = vmatpush.bf16.msra.mxu0 %v3510
        %4378 = vmatpush.bf16.msra.mxu0 %v3506
        %4379 = vmatmul.bf16.gmra.mxu0 %v1995
        %v4380 = vpop.f32.mrf.mxu0
        %v4381 = vadd.f32 %v4362, %v4380
        %v4382 = vpop.f32.mrf.mxu0
        %v4383 = vadd.f32 %v4364, %v4382
        %4384 = vmatmul.bf16.gmra.mxu0 %v2007
        %v4385 = vpop.f32.mrf.mxu0
        %v4386 = vadd.f32 %v4367, %v4385
        %v4387 = vpop.f32.mrf.mxu0
        %v4388 = vadd.f32 %v4369, %v4387
        %4389 = vdwg.mxu0
        %4390 = vmatpush.bf16.msra.mxu0 %v3566
        %4391 = vmatpush.bf16.msra.mxu0 %v3562
        %4392 = vmatpush.bf16.msra.mxu0 %v3558
        %4393 = vmatpush.bf16.msra.mxu0 %v3554
        %4394 = vmatpush.bf16.msra.mxu0 %v3550
        %4395 = vmatpush.bf16.msra.mxu0 %v3546
        %4396 = vmatpush.bf16.msra.mxu0 %v3542
        %4397 = vmatpush.bf16.msra.mxu0 %v3538
        %4398 = vmatmul.bf16.gmra.mxu0 %v1996
        %v4399 = vpop.f32.mrf.mxu0
        %v4400 = vadd.f32 %v4381, %v4399
        %v4401 = vpop.f32.mrf.mxu0
        %v4402 = vadd.f32 %v4383, %v4401
        %4403 = vmatmul.bf16.gmra.mxu0 %v2008
        %v4404 = vpop.f32.mrf.mxu0
        %v4405 = vadd.f32 %v4386, %v4404
        %v4406 = vpop.f32.mrf.mxu0
        %v4407 = vadd.f32 %v4388, %v4406
        %4408 = vdwg.mxu0
        %4409 = vmatpush.bf16.msra.mxu0 %v3215
        %4410 = vmatpush.bf16.msra.mxu0 %v3211
        %4411 = vmatpush.bf16.msra.mxu0 %v3207
        %4412 = vmatpush.bf16.msra.mxu0 %v3203
        %4413 = vmatpush.bf16.msra.mxu0 %v3199
        %4414 = vmatpush.bf16.msra.mxu0 %v3195
        %4415 = vmatpush.bf16.msra.mxu0 %v3191
        %4416 = vmatpush.bf16.msra.mxu0 %v3187
        %4417 = vmatmul.bf16.gmra.mxu0 %v1985
        %v4418 = vpop.f32.mrf.mxu0
        %v4419 = vadd.f32 0.0, %v4418
        %v4420 = vpop.f32.mrf.mxu0
        %v4421 = vadd.f32 0.0, %v4420
        %4422 = vmatmul.bf16.gmra.mxu0 %v1997
        %v4423 = vpop.f32.mrf.mxu0
        %v4424 = vadd.f32 0.0, %v4423
        %v4425 = vpop.f32.mrf.mxu0
        %v4426 = vadd.f32 0.0, %v4425
        %4427 = vdwg.mxu0
        %4428 = vmatpush.bf16.msra.mxu0 %v3247
        %4429 = vmatpush.bf16.msra.mxu0 %v3243
        %4430 = vmatpush.bf16.msra.mxu0 %v3239
        %4431 = vmatpush.bf16.msra.mxu0 %v3235
        %4432 = vmatpush.bf16.msra.mxu0 %v3231
        %4433 = vmatpush.bf16.msra.mxu0 %v3227
        %4434 = vmatpush.bf16.msra.mxu0 %v3223
        %4435 = vmatpush.bf16.msra.mxu0 %v3219
        %4436 = vmatmul.bf16.gmra.mxu0 %v1986
        %v4437 = vpop.f32.mrf.mxu0
        %v4438 = vadd.f32 %v4419, %v4437
        %v4439 = vpop.f32.mrf.mxu0
        %v4440 = vadd.f32 %v4421, %v4439
        %4441 = vmatmul.bf16.gmra.mxu0 %v1998
        %v4442 = vpop.f32.mrf.mxu0
        %v4443 = vadd.f32 %v4424, %v4442
        %v4444 = vpop.f32.mrf.mxu0
        %v4445 = vadd.f32 %v4426, %v4444
        %4446 = vdwg.mxu0
        %4447 = vmatpush.bf16.msra.mxu0 %v3279
        %4448 = vmatpush.bf16.msra.mxu0 %v3275
        %4449 = vmatpush.bf16.msra.mxu0 %v3271
        %4450 = vmatpush.bf16.msra.mxu0 %v3267
        %4451 = vmatpush.bf16.msra.mxu0 %v3263
        %4452 = vmatpush.bf16.msra.mxu0 %v3259
        %4453 = vmatpush.bf16.msra.mxu0 %v3255
        %4454 = vmatpush.bf16.msra.mxu0 %v3251
        %4455 = vmatmul.bf16.gmra.mxu0 %v1987
        %v4456 = vpop.f32.mrf.mxu0
        %v4457 = vadd.f32 %v4438, %v4456
        %v4458 = vpop.f32.mrf.mxu0
        %v4459 = vadd.f32 %v4440, %v4458
        %4460 = vmatmul.bf16.gmra.mxu0 %v1999
        %v4461 = vpop.f32.mrf.mxu0
        %v4462 = vadd.f32 %v4443, %v4461
        %v4463 = vpop.f32.mrf.mxu0
        %v4464 = vadd.f32 %v4445, %v4463
        %4465 = vdwg.mxu0
        %4466 = vmatpush.bf16.msra.mxu0 %v3311
        %4467 = vmatpush.bf16.msra.mxu0 %v3307
        %4468 = vmatpush.bf16.msra.mxu0 %v3303
        %4469 = vmatpush.bf16.msra.mxu0 %v3299
        %4470 = vmatpush.bf16.msra.mxu0 %v3295
        %4471 = vmatpush.bf16.msra.mxu0 %v3291
        %4472 = vmatpush.bf16.msra.mxu0 %v3287
        %4473 = vmatpush.bf16.msra.mxu0 %v3283
        %4474 = vmatmul.bf16.gmra.mxu0 %v1988
        %v4475 = vpop.f32.mrf.mxu0
        %v4476 = vadd.f32 %v4457, %v4475
        %v4477 = vpop.f32.mrf.mxu0
        %v4478 = vadd.f32 %v4459, %v4477
        %4479 = vmatmul.bf16.gmra.mxu0 %v2000
        %v4480 = vpop.f32.mrf.mxu0
        %v4481 = vadd.f32 %v4462, %v4480
        %v4482 = vpop.f32.mrf.mxu0
        %v4483 = vadd.f32 %v4464, %v4482
        %4484 = vdwg.mxu0
        %4485 = vmatpush.bf16.msra.mxu0 %v3343
        %4486 = vmatpush.bf16.msra.mxu0 %v3339
        %4487 = vmatpush.bf16.msra.mxu0 %v3335
        %4488 = vmatpush.bf16.msra.mxu0 %v3331
        %4489 = vmatpush.bf16.msra.mxu0 %v3327
        %4490 = vmatpush.bf16.msra.mxu0 %v3323
        %4491 = vmatpush.bf16.msra.mxu0 %v3319
        %4492 = vmatpush.bf16.msra.mxu0 %v3315
        %4493 = vmatmul.bf16.gmra.mxu0 %v1989
        %v4494 = vpop.f32.mrf.mxu0
        %v4495 = vadd.f32 %v4476, %v4494
        %v4496 = vpop.f32.mrf.mxu0
        %v4497 = vadd.f32 %v4478, %v4496
        %4498 = vmatmul.bf16.gmra.mxu0 %v2001
        %v4499 = vpop.f32.mrf.mxu0
        %v4500 = vadd.f32 %v4481, %v4499
        %v4501 = vpop.f32.mrf.mxu0
        %v4502 = vadd.f32 %v4483, %v4501
        %4503 = vdwg.mxu0
        %4504 = vmatpush.bf16.msra.mxu0 %v3375
        %4505 = vmatpush.bf16.msra.mxu0 %v3371
        %4506 = vmatpush.bf16.msra.mxu0 %v3367
        %4507 = vmatpush.bf16.msra.mxu0 %v3363
        %4508 = vmatpush.bf16.msra.mxu0 %v3359
        %4509 = vmatpush.bf16.msra.mxu0 %v3355
        %4510 = vmatpush.bf16.msra.mxu0 %v3351
        %4511 = vmatpush.bf16.msra.mxu0 %v3347
        %4512 = vmatmul.bf16.gmra.mxu0 %v1990
        %v4513 = vpop.f32.mrf.mxu0
        %v4514 = vadd.f32 %v4495, %v4513
        %v4515 = vpop.f32.mrf.mxu0
        %v4516 = vadd.f32 %v4497, %v4515
        %4517 = vmatmul.bf16.gmra.mxu0 %v2002
        %v4518 = vpop.f32.mrf.mxu0
        %v4519 = vadd.f32 %v4500, %v4518
        %v4520 = vpop.f32.mrf.mxu0
        %v4521 = vadd.f32 %v4502, %v4520
        %4522 = vdwg.mxu0
        %4523 = vmatpush.bf16.msra.mxu0 %v3407
        %4524 = vmatpush.bf16.msra.mxu0 %v3403
        %4525 = vmatpush.bf16.msra.mxu0 %v3399
        %4526 = vmatpush.bf16.msra.mxu0 %v3395
        %4527 = vmatpush.bf16.msra.mxu0 %v3391
        %4528 = vmatpush.bf16.msra.mxu0 %v3387
        %4529 = vmatpush.bf16.msra.mxu0 %v3383
        %4530 = vmatpush.bf16.msra.mxu0 %v3379
        %4531 = vmatmul.bf16.gmra.mxu0 %v1991
        %v4532 = vpop.f32.mrf.mxu0
        %v4533 = vadd.f32 %v4514, %v4532
        %v4534 = vpop.f32.mrf.mxu0
        %v4535 = vadd.f32 %v4516, %v4534
        %4536 = vmatmul.bf16.gmra.mxu0 %v2003
        %v4537 = vpop.f32.mrf.mxu0
        %v4538 = vadd.f32 %v4519, %v4537
        %v4539 = vpop.f32.mrf.mxu0
        %v4540 = vadd.f32 %v4521, %v4539
        %4541 = vdwg.mxu0
        %4542 = vmatpush.bf16.msra.mxu0 %v3439
        %4543 = vmatpush.bf16.msra.mxu0 %v3435
        %4544 = vmatpush.bf16.msra.mxu0 %v3431
        %4545 = vmatpush.bf16.msra.mxu0 %v3427
        %4546 = vmatpush.bf16.msra.mxu0 %v3423
        %4547 = vmatpush.bf16.msra.mxu0 %v3419
        %4548 = vmatpush.bf16.msra.mxu0 %v3415
        %4549 = vmatpush.bf16.msra.mxu0 %v3411
        %4550 = vmatmul.bf16.gmra.mxu0 %v1992
        %v4551 = vpop.f32.mrf.mxu0
        %v4552 = vadd.f32 %v4533, %v4551
        %v4553 = vpop.f32.mrf.mxu0
        %v4554 = vadd.f32 %v4535, %v4553
        %4555 = vmatmul.bf16.gmra.mxu0 %v2004
        %v4556 = vpop.f32.mrf.mxu0
        %v4557 = vadd.f32 %v4538, %v4556
        %v4558 = vpop.f32.mrf.mxu0
        %v4559 = vadd.f32 %v4540, %v4558
        %4560 = vdwg.mxu0
        %4561 = vmatpush.bf16.msra.mxu0 %v3471
        %4562 = vmatpush.bf16.msra.mxu0 %v3467
        %4563 = vmatpush.bf16.msra.mxu0 %v3463
        %4564 = vmatpush.bf16.msra.mxu0 %v3459
        %4565 = vmatpush.bf16.msra.mxu0 %v3455
        %4566 = vmatpush.bf16.msra.mxu0 %v3451
        %4567 = vmatpush.bf16.msra.mxu0 %v3447
        %4568 = vmatpush.bf16.msra.mxu0 %v3443
        %4569 = vmatmul.bf16.gmra.mxu0 %v1993
        %v4570 = vpop.f32.mrf.mxu0
        %v4571 = vadd.f32 %v4552, %v4570
        %v4572 = vpop.f32.mrf.mxu0
        %v4573 = vadd.f32 %v4554, %v4572
        %4574 = vmatmul.bf16.gmra.mxu0 %v2005
        %v4575 = vpop.f32.mrf.mxu0
        %v4576 = vadd.f32 %v4557, %v4575
        %v4577 = vpop.f32.mrf.mxu0
        %v4578 = vadd.f32 %v4559, %v4577
        %4579 = vdwg.mxu0
        %4580 = vmatpush.bf16.msra.mxu0 %v3503
        %4581 = vmatpush.bf16.msra.mxu0 %v3499
        %4582 = vmatpush.bf16.msra.mxu0 %v3495
        %4583 = vmatpush.bf16.msra.mxu0 %v3491
        %4584 = vmatpush.bf16.msra.mxu0 %v3487
        %4585 = vmatpush.bf16.msra.mxu0 %v3483
        %4586 = vmatpush.bf16.msra.mxu0 %v3479
        %4587 = vmatpush.bf16.msra.mxu0 %v3475
        %4588 = vmatmul.bf16.gmra.mxu0 %v1994
        %v4589 = vpop.f32.mrf.mxu0
        %v4590 = vadd.f32 %v4571, %v4589
        %v4591 = vpop.f32.mrf.mxu0
        %v4592 = vadd.f32 %v4573, %v4591
        %4593 = vmatmul.bf16.gmra.mxu0 %v2006
        %v4594 = vpop.f32.mrf.mxu0
        %v4595 = vadd.f32 %v4576, %v4594
        %v4596 = vpop.f32.mrf.mxu0
        %v4597 = vadd.f32 %v4578, %v4596
        %4598 = vdwg.mxu0
        %4599 = vmatpush.bf16.msra.mxu0 %v3535
        %4600 = vmatpush.bf16.msra.mxu0 %v3531
        %4601 = vmatpush.bf16.msra.mxu0 %v3527
        %4602 = vmatpush.bf16.msra.mxu0 %v3523
        %4603 = vmatpush.bf16.msra.mxu0 %v3519
        %4604 = vmatpush.bf16.msra.mxu0 %v3515
        %4605 = vmatpush.bf16.msra.mxu0 %v3511
        %4606 = vmatpush.bf16.msra.mxu0 %v3507
        %4607 = vmatmul.bf16.gmra.mxu0 %v1995
        %v4608 = vpop.f32.mrf.mxu0
        %v4609 = vadd.f32 %v4590, %v4608
        %v4610 = vpop.f32.mrf.mxu0
        %v4611 = vadd.f32 %v4592, %v4610
        %4612 = vmatmul.bf16.gmra.mxu0 %v2007
        %v4613 = vpop.f32.mrf.mxu0
        %v4614 = vadd.f32 %v4595, %v4613
        %v4615 = vpop.f32.mrf.mxu0
        %v4616 = vadd.f32 %v4597, %v4615
        %4617 = vdwg.mxu0
        %4618 = vmatpush.bf16.msra.mxu0 %v3567
        %4619 = vmatpush.bf16.msra.mxu0 %v3563
        %4620 = vmatpush.bf16.msra.mxu0 %v3559
        %4621 = vmatpush.bf16.msra.mxu0 %v3555
        %4622 = vmatpush.bf16.msra.mxu0 %v3551
        %4623 = vmatpush.bf16.msra.mxu0 %v3547
        %4624 = vmatpush.bf16.msra.mxu0 %v3543
        %4625 = vmatpush.bf16.msra.mxu0 %v3539
        %4626 = vmatmul.bf16.gmra.mxu0 %v1996
        %v4627 = vpop.f32.mrf.mxu0
        %v4628 = vadd.f32 %v4609, %v4627
        %v4629 = vpop.f32.mrf.mxu0
        %v4630 = vadd.f32 %v4611, %v4629
        %4631 = vmatmul.bf16.gmra.mxu0 %v2008
        %v4632 = vpop.f32.mrf.mxu0
        %v4633 = vadd.f32 %v4614, %v4632
        %v4634 = vpop.f32.mrf.mxu0
        %v4635 = vadd.f32 %v4616, %v4634
        %4636 = vdwg.mxu0
        %4637 = vmatpush.bf16.msra.mxu0 %v3216
        %4638 = vmatpush.bf16.msra.mxu0 %v3212
        %4639 = vmatpush.bf16.msra.mxu0 %v3208
        %4640 = vmatpush.bf16.msra.mxu0 %v3204
        %4641 = vmatpush.bf16.msra.mxu0 %v3200
        %4642 = vmatpush.bf16.msra.mxu0 %v3196
        %4643 = vmatpush.bf16.msra.mxu0 %v3192
        %4644 = vmatpush.bf16.msra.mxu0 %v3188
        %4645 = vmatmul.bf16.gmra.mxu0 %v1985
        %v4646 = vpop.f32.mrf.mxu0
        %v4647 = vadd.f32 0.0, %v4646
        %v4648 = vpop.f32.mrf.mxu0
        %v4649 = vadd.f32 0.0, %v4648
        %4650 = vmatmul.bf16.gmra.mxu0 %v1997
        %v4651 = vpop.f32.mrf.mxu0
        %v4652 = vadd.f32 0.0, %v4651
        %v4653 = vpop.f32.mrf.mxu0
        %v4654 = vadd.f32 0.0, %v4653
        %4655 = vdwg.mxu0
        %4656 = vmatpush.bf16.msra.mxu0 %v3248
        %4657 = vmatpush.bf16.msra.mxu0 %v3244
        %4658 = vmatpush.bf16.msra.mxu0 %v3240
        %4659 = vmatpush.bf16.msra.mxu0 %v3236
        %4660 = vmatpush.bf16.msra.mxu0 %v3232
        %4661 = vmatpush.bf16.msra.mxu0 %v3228
        %4662 = vmatpush.bf16.msra.mxu0 %v3224
        %4663 = vmatpush.bf16.msra.mxu0 %v3220
        %4664 = vmatmul.bf16.gmra.mxu0 %v1986
        %v4665 = vpop.f32.mrf.mxu0
        %v4666 = vadd.f32 %v4647, %v4665
        %v4667 = vpop.f32.mrf.mxu0
        %v4668 = vadd.f32 %v4649, %v4667
        %4669 = vmatmul.bf16.gmra.mxu0 %v1998
        %v4670 = vpop.f32.mrf.mxu0
        %v4671 = vadd.f32 %v4652, %v4670
        %v4672 = vpop.f32.mrf.mxu0
        %v4673 = vadd.f32 %v4654, %v4672
        %4674 = vdwg.mxu0
        %4675 = vmatpush.bf16.msra.mxu0 %v3280
        %4676 = vmatpush.bf16.msra.mxu0 %v3276
        %4677 = vmatpush.bf16.msra.mxu0 %v3272
        %4678 = vmatpush.bf16.msra.mxu0 %v3268
        %4679 = vmatpush.bf16.msra.mxu0 %v3264
        %4680 = vmatpush.bf16.msra.mxu0 %v3260
        %4681 = vmatpush.bf16.msra.mxu0 %v3256
        %4682 = vmatpush.bf16.msra.mxu0 %v3252
        %4683 = vmatmul.bf16.gmra.mxu0 %v1987
        %v4684 = vpop.f32.mrf.mxu0
        %v4685 = vadd.f32 %v4666, %v4684
        %v4686 = vpop.f32.mrf.mxu0
        %v4687 = vadd.f32 %v4668, %v4686
        %4688 = vmatmul.bf16.gmra.mxu0 %v1999
        %v4689 = vpop.f32.mrf.mxu0
        %v4690 = vadd.f32 %v4671, %v4689
        %v4691 = vpop.f32.mrf.mxu0
        %v4692 = vadd.f32 %v4673, %v4691
        %4693 = vdwg.mxu0
        %4694 = vmatpush.bf16.msra.mxu0 %v3312
        %4695 = vmatpush.bf16.msra.mxu0 %v3308
        %4696 = vmatpush.bf16.msra.mxu0 %v3304
        %4697 = vmatpush.bf16.msra.mxu0 %v3300
        %4698 = vmatpush.bf16.msra.mxu0 %v3296
        %4699 = vmatpush.bf16.msra.mxu0 %v3292
        %4700 = vmatpush.bf16.msra.mxu0 %v3288
        %4701 = vmatpush.bf16.msra.mxu0 %v3284
        %4702 = vmatmul.bf16.gmra.mxu0 %v1988
        %v4703 = vpop.f32.mrf.mxu0
        %v4704 = vadd.f32 %v4685, %v4703
        %v4705 = vpop.f32.mrf.mxu0
        %v4706 = vadd.f32 %v4687, %v4705
        %4707 = vmatmul.bf16.gmra.mxu0 %v2000
        %v4708 = vpop.f32.mrf.mxu0
        %v4709 = vadd.f32 %v4690, %v4708
        %v4710 = vpop.f32.mrf.mxu0
        %v4711 = vadd.f32 %v4692, %v4710
        %4712 = vdwg.mxu0
        %4713 = vmatpush.bf16.msra.mxu0 %v3344
        %4714 = vmatpush.bf16.msra.mxu0 %v3340
        %4715 = vmatpush.bf16.msra.mxu0 %v3336
        %4716 = vmatpush.bf16.msra.mxu0 %v3332
        %4717 = vmatpush.bf16.msra.mxu0 %v3328
        %4718 = vmatpush.bf16.msra.mxu0 %v3324
        %4719 = vmatpush.bf16.msra.mxu0 %v3320
        %4720 = vmatpush.bf16.msra.mxu0 %v3316
        %4721 = vmatmul.bf16.gmra.mxu0 %v1989
        %v4722 = vpop.f32.mrf.mxu0
        %v4723 = vadd.f32 %v4704, %v4722
        %v4724 = vpop.f32.mrf.mxu0
        %v4725 = vadd.f32 %v4706, %v4724
        %4726 = vmatmul.bf16.gmra.mxu0 %v2001
        %v4727 = vpop.f32.mrf.mxu0
        %v4728 = vadd.f32 %v4709, %v4727
        %v4729 = vpop.f32.mrf.mxu0
        %v4730 = vadd.f32 %v4711, %v4729
        %4731 = vdwg.mxu0
        %4732 = vmatpush.bf16.msra.mxu0 %v3376
        %4733 = vmatpush.bf16.msra.mxu0 %v3372
        %4734 = vmatpush.bf16.msra.mxu0 %v3368
        %4735 = vmatpush.bf16.msra.mxu0 %v3364
        %4736 = vmatpush.bf16.msra.mxu0 %v3360
        %4737 = vmatpush.bf16.msra.mxu0 %v3356
        %4738 = vmatpush.bf16.msra.mxu0 %v3352
        %4739 = vmatpush.bf16.msra.mxu0 %v3348
        %4740 = vmatmul.bf16.gmra.mxu0 %v1990
        %v4741 = vpop.f32.mrf.mxu0
        %v4742 = vadd.f32 %v4723, %v4741
        %v4743 = vpop.f32.mrf.mxu0
        %v4744 = vadd.f32 %v4725, %v4743
        %4745 = vmatmul.bf16.gmra.mxu0 %v2002
        %v4746 = vpop.f32.mrf.mxu0
        %v4747 = vadd.f32 %v4728, %v4746
        %v4748 = vpop.f32.mrf.mxu0
        %v4749 = vadd.f32 %v4730, %v4748
        %4750 = vdwg.mxu0
        %4751 = vmatpush.bf16.msra.mxu0 %v3408
        %4752 = vmatpush.bf16.msra.mxu0 %v3404
        %4753 = vmatpush.bf16.msra.mxu0 %v3400
        %4754 = vmatpush.bf16.msra.mxu0 %v3396
        %4755 = vmatpush.bf16.msra.mxu0 %v3392
        %4756 = vmatpush.bf16.msra.mxu0 %v3388
        %4757 = vmatpush.bf16.msra.mxu0 %v3384
        %4758 = vmatpush.bf16.msra.mxu0 %v3380
        %4759 = vmatmul.bf16.gmra.mxu0 %v1991
        %v4760 = vpop.f32.mrf.mxu0
        %v4761 = vadd.f32 %v4742, %v4760
        %v4762 = vpop.f32.mrf.mxu0
        %v4763 = vadd.f32 %v4744, %v4762
        %4764 = vmatmul.bf16.gmra.mxu0 %v2003
        %v4765 = vpop.f32.mrf.mxu0
        %v4766 = vadd.f32 %v4747, %v4765
        %v4767 = vpop.f32.mrf.mxu0
        %v4768 = vadd.f32 %v4749, %v4767
        %4769 = vdwg.mxu0
        %4770 = vmatpush.bf16.msra.mxu0 %v3440
        %4771 = vmatpush.bf16.msra.mxu0 %v3436
        %4772 = vmatpush.bf16.msra.mxu0 %v3432
        %4773 = vmatpush.bf16.msra.mxu0 %v3428
        %4774 = vmatpush.bf16.msra.mxu0 %v3424
        %4775 = vmatpush.bf16.msra.mxu0 %v3420
        %4776 = vmatpush.bf16.msra.mxu0 %v3416
        %4777 = vmatpush.bf16.msra.mxu0 %v3412
        %4778 = vmatmul.bf16.gmra.mxu0 %v1992
        %v4779 = vpop.f32.mrf.mxu0
        %v4780 = vadd.f32 %v4761, %v4779
        %v4781 = vpop.f32.mrf.mxu0
        %v4782 = vadd.f32 %v4763, %v4781
        %4783 = vmatmul.bf16.gmra.mxu0 %v2004
        %v4784 = vpop.f32.mrf.mxu0
        %v4785 = vadd.f32 %v4766, %v4784
        %v4786 = vpop.f32.mrf.mxu0
        %v4787 = vadd.f32 %v4768, %v4786
        %4788 = vdwg.mxu0
        %4789 = vmatpush.bf16.msra.mxu0 %v3472
        %4790 = vmatpush.bf16.msra.mxu0 %v3468
        %4791 = vmatpush.bf16.msra.mxu0 %v3464
        %4792 = vmatpush.bf16.msra.mxu0 %v3460
        %4793 = vmatpush.bf16.msra.mxu0 %v3456
        %4794 = vmatpush.bf16.msra.mxu0 %v3452
        %4795 = vmatpush.bf16.msra.mxu0 %v3448
        %4796 = vmatpush.bf16.msra.mxu0 %v3444
        %4797 = vmatmul.bf16.gmra.mxu0 %v1993
        %v4798 = vpop.f32.mrf.mxu0
        %v4799 = vadd.f32 %v4780, %v4798
        %v4800 = vpop.f32.mrf.mxu0
        %v4801 = vadd.f32 %v4782, %v4800
        %4802 = vmatmul.bf16.gmra.mxu0 %v2005
        %v4803 = vpop.f32.mrf.mxu0
        %v4804 = vadd.f32 %v4785, %v4803
        %v4805 = vpop.f32.mrf.mxu0
        %v4806 = vadd.f32 %v4787, %v4805
        %4807 = vdwg.mxu0
        %4808 = vmatpush.bf16.msra.mxu0 %v3504
        %4809 = vmatpush.bf16.msra.mxu0 %v3500
        %4810 = vmatpush.bf16.msra.mxu0 %v3496
        %4811 = vmatpush.bf16.msra.mxu0 %v3492
        %4812 = vmatpush.bf16.msra.mxu0 %v3488
        %4813 = vmatpush.bf16.msra.mxu0 %v3484
        %4814 = vmatpush.bf16.msra.mxu0 %v3480
        %4815 = vmatpush.bf16.msra.mxu0 %v3476
        %4816 = vmatmul.bf16.gmra.mxu0 %v1994
        %v4817 = vpop.f32.mrf.mxu0
        %v4818 = vadd.f32 %v4799, %v4817
        %v4819 = vpop.f32.mrf.mxu0
        %v4820 = vadd.f32 %v4801, %v4819
        %4821 = vmatmul.bf16.gmra.mxu0 %v2006
        %v4822 = vpop.f32.mrf.mxu0
        %v4823 = vadd.f32 %v4804, %v4822
        %v4824 = vpop.f32.mrf.mxu0
        %v4825 = vadd.f32 %v4806, %v4824
        %4826 = vdwg.mxu0
        %4827 = vmatpush.bf16.msra.mxu0 %v3536
        %4828 = vmatpush.bf16.msra.mxu0 %v3532
        %4829 = vmatpush.bf16.msra.mxu0 %v3528
        %4830 = vmatpush.bf16.msra.mxu0 %v3524
        %4831 = vmatpush.bf16.msra.mxu0 %v3520
        %4832 = vmatpush.bf16.msra.mxu0 %v3516
        %4833 = vmatpush.bf16.msra.mxu0 %v3512
        %4834 = vmatpush.bf16.msra.mxu0 %v3508
        %4835 = vmatmul.bf16.gmra.mxu0 %v1995
        %v4836 = vpop.f32.mrf.mxu0
        %v4837 = vadd.f32 %v4818, %v4836
        %v4838 = vpop.f32.mrf.mxu0
        %v4839 = vadd.f32 %v4820, %v4838
        %4840 = vmatmul.bf16.gmra.mxu0 %v2007
        %v4841 = vpop.f32.mrf.mxu0
        %v4842 = vadd.f32 %v4823, %v4841
        %v4843 = vpop.f32.mrf.mxu0
        %v4844 = vadd.f32 %v4825, %v4843
        %4845 = vdwg.mxu0
        %4846 = vmatpush.bf16.msra.mxu0 %v3568
        %4847 = vmatpush.bf16.msra.mxu0 %v3564
        %4848 = vmatpush.bf16.msra.mxu0 %v3560
        %4849 = vmatpush.bf16.msra.mxu0 %v3556
        %4850 = vmatpush.bf16.msra.mxu0 %v3552
        %4851 = vmatpush.bf16.msra.mxu0 %v3548
        %4852 = vmatpush.bf16.msra.mxu0 %v3544
        %4853 = vmatpush.bf16.msra.mxu0 %v3540
        %4854 = vmatmul.bf16.gmra.mxu0 %v1996
        %v4855 = vpop.f32.mrf.mxu0
        %v4856 = vadd.f32 %v4837, %v4855
        %v4857 = vpop.f32.mrf.mxu0
        %v4858 = vadd.f32 %v4839, %v4857
        %4859 = vmatmul.bf16.gmra.mxu0 %v2008
        %v4860 = vpop.f32.mrf.mxu0
        %v4861 = vadd.f32 %v4842, %v4860
        %v4862 = vpop.f32.mrf.mxu0
        %v4863 = vadd.f32 %v4844, %v4862
        %4864 = vdwg.mxu0
        %v4865 = vld [vmem:[%s1457] sm:$0xff]
        %v4866 = vld [vmem:[%s1457 + $0x8] sm:$0xff]
        %v4867 = vld [vmem:[%s1457 + $0x10] sm:$0xff]
        %v4868 = vld [vmem:[%s1457 + $0x18] sm:$0xff]
        %v4869 = vld [vmem:[%s1457 + $0x20] sm:$0xff]
        %v4870 = vld [vmem:[%s1457 + $0x28] sm:$0xff]
        %v4871 = vld [vmem:[%s1457 + $0x30] sm:$0xff]
        %v4872 = vld [vmem:[%s1457 + $0x38] sm:$0xff]
        %v4873 = vld [vmem:[%s1457 + $0x40] sm:$0xff]
        %v4874 = vld [vmem:[%s1457 + $0x48] sm:$0xff]
        %v4875 = vld [vmem:[%s1457 + $0x50] sm:$0xff]
        %v4876 = vld [vmem:[%s1457 + $0x58] sm:$0xff]
        %v4877 = vld [vmem:[%s1457 + $0x60] sm:$0xff]
        %v4878 = vld [vmem:[%s1457 + $0x68] sm:$0xff]
        %v4879 = vld [vmem:[%s1457 + $0x70] sm:$0xff]
        %v4880 = vld [vmem:[%s1457 + $0x78] sm:$0xff]
        %v4881 = vld [vmem:[%s1457 + $0x80] sm:$0xff]
        %v4882 = vld [vmem:[%s1457 + $0x88] sm:$0xff]
        %v4883 = vld [vmem:[%s1457 + $0x90] sm:$0xff]
        %v4884 = vld [vmem:[%s1457 + $0x98] sm:$0xff]
        %v4885 = vld [vmem:[%s1457 + $0xa0] sm:$0xff]
        %v4886 = vld [vmem:[%s1457 + $0xa8] sm:$0xff]
        %v4887 = vld [vmem:[%s1457 + $0xb0] sm:$0xff]
        %v4888 = vld [vmem:[%s1457 + $0xb8] sm:$0xff]
        %v4913 = vunpack.c.l.b16 %v4865
        %v4914 = vunpack.c.h.b16 %v4865
        %v4915 = vunpack.c.l.b16 %v4866
        %v4916 = vunpack.c.h.b16 %v4866
        %v4917 = vunpack.c.l.b16 %v4867
        %v4918 = vunpack.c.h.b16 %v4867
        %v4919 = vunpack.c.l.b16 %v4868
        %v4920 = vunpack.c.h.b16 %v4868
        %v4921 = vunpack.c.l.b16 %v4869
        %v4922 = vunpack.c.h.b16 %v4869
        %v4923 = vunpack.c.l.b16 %v4870
        %v4924 = vunpack.c.h.b16 %v4870
        %v4925 = vunpack.c.l.b16 %v4871
        %v4926 = vunpack.c.h.b16 %v4871
        %v4927 = vunpack.c.l.b16 %v4872
        %v4928 = vunpack.c.h.b16 %v4872
        %v4929 = vunpack.c.l.b16 %v4873
        %v4930 = vunpack.c.h.b16 %v4873
        %v4931 = vunpack.c.l.b16 %v4874
        %v4932 = vunpack.c.h.b16 %v4874
        %v4933 = vunpack.c.l.b16 %v4875
        %v4934 = vunpack.c.h.b16 %v4875
        %v4935 = vunpack.c.l.b16 %v4876
        %v4936 = vunpack.c.h.b16 %v4876
        %v4937 = vunpack.c.l.b16 %v4877
        %v4938 = vunpack.c.h.b16 %v4877
        %v4939 = vunpack.c.l.b16 %v4878
        %v4940 = vunpack.c.h.b16 %v4878
        %v4941 = vunpack.c.l.b16 %v4879
        %v4942 = vunpack.c.h.b16 %v4879
        %v4943 = vunpack.c.l.b16 %v4880
        %v4944 = vunpack.c.h.b16 %v4880
        %v4945 = vunpack.c.l.b16 %v4881
        %v4946 = vunpack.c.h.b16 %v4881
        %v4947 = vunpack.c.l.b16 %v4882
        %v4948 = vunpack.c.h.b16 %v4882
        %v4949 = vunpack.c.l.b16 %v4883
        %v4950 = vunpack.c.h.b16 %v4883
        %v4951 = vunpack.c.l.b16 %v4884
        %v4952 = vunpack.c.h.b16 %v4884
        %v4953 = vunpack.c.l.b16 %v4885
        %v4954 = vunpack.c.h.b16 %v4885
        %v4955 = vunpack.c.l.b16 %v4886
        %v4956 = vunpack.c.h.b16 %v4886
        %v4957 = vunpack.c.l.b16 %v4887
        %v4958 = vunpack.c.h.b16 %v4887
        %v4959 = vunpack.c.l.b16 %v4888
        %v4960 = vunpack.c.h.b16 %v4888
        %v4961 = vpack.c.b16 %v4925, %v4913
        %v4962 = vpack.c.b16 %v4926, %v4914
        %v4963 = vpack.c.b16 %v4927, %v4915
        %v4964 = vpack.c.b16 %v4928, %v4916
        %v4965 = vpack.c.b16 %v4929, %v4917
        %v4966 = vpack.c.b16 %v4930, %v4918
        %v4967 = vpack.c.b16 %v4931, %v4919
        %v4968 = vpack.c.b16 %v4932, %v4920
        %v4969 = vpack.c.b16 %v4933, %v4921
        %v4970 = vpack.c.b16 %v4934, %v4922
        %v4971 = vpack.c.b16 %v4935, %v4923
        %v4972 = vpack.c.b16 %v4936, %v4924
        %v4973 = vpack.c.b16 %v4949, %v4937
        %v4974 = vpack.c.b16 %v4950, %v4938
        %v4975 = vpack.c.b16 %v4951, %v4939
        %v4976 = vpack.c.b16 %v4952, %v4940
        %v4977 = vpack.c.b16 %v4953, %v4941
        %v4978 = vpack.c.b16 %v4954, %v4942
        %v4979 = vpack.c.b16 %v4955, %v4943
        %v4980 = vpack.c.b16 %v4956, %v4944
        %v4981 = vpack.c.b16 %v4957, %v4945
        %v4982 = vpack.c.b16 %v4958, %v4946
        %v4983 = vpack.c.b16 %v4959, %v4947
        %v4984 = vpack.c.b16 %v4960, %v4948
        %5009 = vmatpush.bf16.msra.mxu0 %v3213
        %5010 = vmatpush.bf16.msra.mxu0 %v3209
        %5011 = vmatpush.bf16.msra.mxu0 %v3205
        %5012 = vmatpush.bf16.msra.mxu0 %v3201
        %5013 = vmatpush.bf16.msra.mxu0 %v3197
        %5014 = vmatpush.bf16.msra.mxu0 %v3193
        %5015 = vmatpush.bf16.msra.mxu0 %v3189
        %5016 = vmatpush.bf16.msra.mxu0 %v3185
        %5017 = vmatmul.bf16.gmra.mxu0 %v4961
        %v5018 = vpop.f32.mrf.mxu0
        %v5019 = vadd.f32 0.0, %v5018
        %v5020 = vpop.f32.mrf.mxu0
        %v5021 = vadd.f32 0.0, %v5020
        %5022 = vmatmul.bf16.gmra.mxu0 %v4973
        %v5023 = vpop.f32.mrf.mxu0
        %v5024 = vadd.f32 0.0, %v5023
        %v5025 = vpop.f32.mrf.mxu0
        %v5026 = vadd.f32 0.0, %v5025
        %5027 = vdwg.mxu0
        %5028 = vmatpush.bf16.msra.mxu0 %v3245
        %5029 = vmatpush.bf16.msra.mxu0 %v3241
        %5030 = vmatpush.bf16.msra.mxu0 %v3237
        %5031 = vmatpush.bf16.msra.mxu0 %v3233
        %5032 = vmatpush.bf16.msra.mxu0 %v3229
        %5033 = vmatpush.bf16.msra.mxu0 %v3225
        %5034 = vmatpush.bf16.msra.mxu0 %v3221
        %5035 = vmatpush.bf16.msra.mxu0 %v3217
        %5036 = vmatmul.bf16.gmra.mxu0 %v4962
        %v5037 = vpop.f32.mrf.mxu0
        %v5038 = vadd.f32 %v5019, %v5037
        %v5039 = vpop.f32.mrf.mxu0
        %v5040 = vadd.f32 %v5021, %v5039
        %5041 = vmatmul.bf16.gmra.mxu0 %v4974
        %v5042 = vpop.f32.mrf.mxu0
        %v5043 = vadd.f32 %v5024, %v5042
        %v5044 = vpop.f32.mrf.mxu0
        %v5045 = vadd.f32 %v5026, %v5044
        %5046 = vdwg.mxu0
        %5047 = vmatpush.bf16.msra.mxu0 %v3277
        %5048 = vmatpush.bf16.msra.mxu0 %v3273
        %5049 = vmatpush.bf16.msra.mxu0 %v3269
        %5050 = vmatpush.bf16.msra.mxu0 %v3265
        %5051 = vmatpush.bf16.msra.mxu0 %v3261
        %5052 = vmatpush.bf16.msra.mxu0 %v3257
        %5053 = vmatpush.bf16.msra.mxu0 %v3253
        %5054 = vmatpush.bf16.msra.mxu0 %v3249
        %5055 = vmatmul.bf16.gmra.mxu0 %v4963
        %v5056 = vpop.f32.mrf.mxu0
        %v5057 = vadd.f32 %v5038, %v5056
        %v5058 = vpop.f32.mrf.mxu0
        %v5059 = vadd.f32 %v5040, %v5058
        %5060 = vmatmul.bf16.gmra.mxu0 %v4975
        %v5061 = vpop.f32.mrf.mxu0
        %v5062 = vadd.f32 %v5043, %v5061
        %v5063 = vpop.f32.mrf.mxu0
        %v5064 = vadd.f32 %v5045, %v5063
        %5065 = vdwg.mxu0
        %5066 = vmatpush.bf16.msra.mxu0 %v3309
        %5067 = vmatpush.bf16.msra.mxu0 %v3305
        %5068 = vmatpush.bf16.msra.mxu0 %v3301
        %5069 = vmatpush.bf16.msra.mxu0 %v3297
        %5070 = vmatpush.bf16.msra.mxu0 %v3293
        %5071 = vmatpush.bf16.msra.mxu0 %v3289
        %5072 = vmatpush.bf16.msra.mxu0 %v3285
        %5073 = vmatpush.bf16.msra.mxu0 %v3281
        %5074 = vmatmul.bf16.gmra.mxu0 %v4964
        %v5075 = vpop.f32.mrf.mxu0
        %v5076 = vadd.f32 %v5057, %v5075
        %v5077 = vpop.f32.mrf.mxu0
        %v5078 = vadd.f32 %v5059, %v5077
        %5079 = vmatmul.bf16.gmra.mxu0 %v4976
        %v5080 = vpop.f32.mrf.mxu0
        %v5081 = vadd.f32 %v5062, %v5080
        %v5082 = vpop.f32.mrf.mxu0
        %v5083 = vadd.f32 %v5064, %v5082
        %5084 = vdwg.mxu0
        %5085 = vmatpush.bf16.msra.mxu0 %v3341
        %5086 = vmatpush.bf16.msra.mxu0 %v3337
        %5087 = vmatpush.bf16.msra.mxu0 %v3333
        %5088 = vmatpush.bf16.msra.mxu0 %v3329
        %5089 = vmatpush.bf16.msra.mxu0 %v3325
        %5090 = vmatpush.bf16.msra.mxu0 %v3321
        %5091 = vmatpush.bf16.msra.mxu0 %v3317
        %5092 = vmatpush.bf16.msra.mxu0 %v3313
        %5093 = vmatmul.bf16.gmra.mxu0 %v4965
        %v5094 = vpop.f32.mrf.mxu0
        %v5095 = vadd.f32 %v5076, %v5094
        %v5096 = vpop.f32.mrf.mxu0
        %v5097 = vadd.f32 %v5078, %v5096
        %5098 = vmatmul.bf16.gmra.mxu0 %v4977
        %v5099 = vpop.f32.mrf.mxu0
        %v5100 = vadd.f32 %v5081, %v5099
        %v5101 = vpop.f32.mrf.mxu0
        %v5102 = vadd.f32 %v5083, %v5101
        %5103 = vdwg.mxu0
        %5104 = vmatpush.bf16.msra.mxu0 %v3373
        %5105 = vmatpush.bf16.msra.mxu0 %v3369
        %5106 = vmatpush.bf16.msra.mxu0 %v3365
        %5107 = vmatpush.bf16.msra.mxu0 %v3361
        %5108 = vmatpush.bf16.msra.mxu0 %v3357
        %5109 = vmatpush.bf16.msra.mxu0 %v3353
        %5110 = vmatpush.bf16.msra.mxu0 %v3349
        %5111 = vmatpush.bf16.msra.mxu0 %v3345
        %5112 = vmatmul.bf16.gmra.mxu0 %v4966
        %v5113 = vpop.f32.mrf.mxu0
        %v5114 = vadd.f32 %v5095, %v5113
        %v5115 = vpop.f32.mrf.mxu0
        %v5116 = vadd.f32 %v5097, %v5115
        %5117 = vmatmul.bf16.gmra.mxu0 %v4978
        %v5118 = vpop.f32.mrf.mxu0
        %v5119 = vadd.f32 %v5100, %v5118
        %v5120 = vpop.f32.mrf.mxu0
        %v5121 = vadd.f32 %v5102, %v5120
        %5122 = vdwg.mxu0
        %5123 = vmatpush.bf16.msra.mxu0 %v3405
        %5124 = vmatpush.bf16.msra.mxu0 %v3401
        %5125 = vmatpush.bf16.msra.mxu0 %v3397
        %5126 = vmatpush.bf16.msra.mxu0 %v3393
        %5127 = vmatpush.bf16.msra.mxu0 %v3389
        %5128 = vmatpush.bf16.msra.mxu0 %v3385
        %5129 = vmatpush.bf16.msra.mxu0 %v3381
        %5130 = vmatpush.bf16.msra.mxu0 %v3377
        %5131 = vmatmul.bf16.gmra.mxu0 %v4967
        %v5132 = vpop.f32.mrf.mxu0
        %v5133 = vadd.f32 %v5114, %v5132
        %v5134 = vpop.f32.mrf.mxu0
        %v5135 = vadd.f32 %v5116, %v5134
        %5136 = vmatmul.bf16.gmra.mxu0 %v4979
        %v5137 = vpop.f32.mrf.mxu0
        %v5138 = vadd.f32 %v5119, %v5137
        %v5139 = vpop.f32.mrf.mxu0
        %v5140 = vadd.f32 %v5121, %v5139
        %5141 = vdwg.mxu0
        %5142 = vmatpush.bf16.msra.mxu0 %v3437
        %5143 = vmatpush.bf16.msra.mxu0 %v3433
        %5144 = vmatpush.bf16.msra.mxu0 %v3429
        %5145 = vmatpush.bf16.msra.mxu0 %v3425
        %5146 = vmatpush.bf16.msra.mxu0 %v3421
        %5147 = vmatpush.bf16.msra.mxu0 %v3417
        %5148 = vmatpush.bf16.msra.mxu0 %v3413
        %5149 = vmatpush.bf16.msra.mxu0 %v3409
        %5150 = vmatmul.bf16.gmra.mxu0 %v4968
        %v5151 = vpop.f32.mrf.mxu0
        %v5152 = vadd.f32 %v5133, %v5151
        %v5153 = vpop.f32.mrf.mxu0
        %v5154 = vadd.f32 %v5135, %v5153
        %5155 = vmatmul.bf16.gmra.mxu0 %v4980
        %v5156 = vpop.f32.mrf.mxu0
        %v5157 = vadd.f32 %v5138, %v5156
        %v5158 = vpop.f32.mrf.mxu0
        %v5159 = vadd.f32 %v5140, %v5158
        %5160 = vdwg.mxu0
        %5161 = vmatpush.bf16.msra.mxu0 %v3469
        %5162 = vmatpush.bf16.msra.mxu0 %v3465
        %5163 = vmatpush.bf16.msra.mxu0 %v3461
        %5164 = vmatpush.bf16.msra.mxu0 %v3457
        %5165 = vmatpush.bf16.msra.mxu0 %v3453
        %5166 = vmatpush.bf16.msra.mxu0 %v3449
        %5167 = vmatpush.bf16.msra.mxu0 %v3445
        %5168 = vmatpush.bf16.msra.mxu0 %v3441
        %5169 = vmatmul.bf16.gmra.mxu0 %v4969
        %v5170 = vpop.f32.mrf.mxu0
        %v5171 = vadd.f32 %v5152, %v5170
        %v5172 = vpop.f32.mrf.mxu0
        %v5173 = vadd.f32 %v5154, %v5172
        %5174 = vmatmul.bf16.gmra.mxu0 %v4981
        %v5175 = vpop.f32.mrf.mxu0
        %v5176 = vadd.f32 %v5157, %v5175
        %v5177 = vpop.f32.mrf.mxu0
        %v5178 = vadd.f32 %v5159, %v5177
        %5179 = vdwg.mxu0
        %5180 = vmatpush.bf16.msra.mxu0 %v3501
        %5181 = vmatpush.bf16.msra.mxu0 %v3497
        %5182 = vmatpush.bf16.msra.mxu0 %v3493
        %5183 = vmatpush.bf16.msra.mxu0 %v3489
        %5184 = vmatpush.bf16.msra.mxu0 %v3485
        %5185 = vmatpush.bf16.msra.mxu0 %v3481
        %5186 = vmatpush.bf16.msra.mxu0 %v3477
        %5187 = vmatpush.bf16.msra.mxu0 %v3473
        %5188 = vmatmul.bf16.gmra.mxu0 %v4970
        %v5189 = vpop.f32.mrf.mxu0
        %v5190 = vadd.f32 %v5171, %v5189
        %v5191 = vpop.f32.mrf.mxu0
        %v5192 = vadd.f32 %v5173, %v5191
        %5193 = vmatmul.bf16.gmra.mxu0 %v4982
        %v5194 = vpop.f32.mrf.mxu0
        %v5195 = vadd.f32 %v5176, %v5194
        %v5196 = vpop.f32.mrf.mxu0
        %v5197 = vadd.f32 %v5178, %v5196
        %5198 = vdwg.mxu0
        %5199 = vmatpush.bf16.msra.mxu0 %v3533
        %5200 = vmatpush.bf16.msra.mxu0 %v3529
        %5201 = vmatpush.bf16.msra.mxu0 %v3525
        %5202 = vmatpush.bf16.msra.mxu0 %v3521
        %5203 = vmatpush.bf16.msra.mxu0 %v3517
        %5204 = vmatpush.bf16.msra.mxu0 %v3513
        %5205 = vmatpush.bf16.msra.mxu0 %v3509
        %5206 = vmatpush.bf16.msra.mxu0 %v3505
        %5207 = vmatmul.bf16.gmra.mxu0 %v4971
        %v5208 = vpop.f32.mrf.mxu0
        %v5209 = vadd.f32 %v5190, %v5208
        %v5210 = vpop.f32.mrf.mxu0
        %v5211 = vadd.f32 %v5192, %v5210
        %5212 = vmatmul.bf16.gmra.mxu0 %v4983
        %v5213 = vpop.f32.mrf.mxu0
        %v5214 = vadd.f32 %v5195, %v5213
        %v5215 = vpop.f32.mrf.mxu0
        %v5216 = vadd.f32 %v5197, %v5215
        %5217 = vdwg.mxu0
        %5218 = vmatpush.bf16.msra.mxu0 %v3565
        %5219 = vmatpush.bf16.msra.mxu0 %v3561
        %5220 = vmatpush.bf16.msra.mxu0 %v3557
        %5221 = vmatpush.bf16.msra.mxu0 %v3553
        %5222 = vmatpush.bf16.msra.mxu0 %v3549
        %5223 = vmatpush.bf16.msra.mxu0 %v3545
        %5224 = vmatpush.bf16.msra.mxu0 %v3541
        %5225 = vmatpush.bf16.msra.mxu0 %v3537
        %5226 = vmatmul.bf16.gmra.mxu0 %v4972
        %v5227 = vpop.f32.mrf.mxu0
        %v5228 = vadd.f32 %v5209, %v5227
        %v5229 = vpop.f32.mrf.mxu0
        %v5230 = vadd.f32 %v5211, %v5229
        %5231 = vmatmul.bf16.gmra.mxu0 %v4984
        %v5232 = vpop.f32.mrf.mxu0
        %v5233 = vadd.f32 %v5214, %v5232
        %v5234 = vpop.f32.mrf.mxu0
        %v5235 = vadd.f32 %v5216, %v5234
        %5236 = vdwg.mxu0
        %5237 = vmatpush.bf16.msra.mxu0 %v3214
        %5238 = vmatpush.bf16.msra.mxu0 %v3210
        %5239 = vmatpush.bf16.msra.mxu0 %v3206
        %5240 = vmatpush.bf16.msra.mxu0 %v3202
        %5241 = vmatpush.bf16.msra.mxu0 %v3198
        %5242 = vmatpush.bf16.msra.mxu0 %v3194
        %5243 = vmatpush.bf16.msra.mxu0 %v3190
        %5244 = vmatpush.bf16.msra.mxu0 %v3186
        %5245 = vmatmul.bf16.gmra.mxu0 %v4961
        %v5246 = vpop.f32.mrf.mxu0
        %v5247 = vadd.f32 0.0, %v5246
        %v5248 = vpop.f32.mrf.mxu0
        %v5249 = vadd.f32 0.0, %v5248
        %5250 = vmatmul.bf16.gmra.mxu0 %v4973
        %v5251 = vpop.f32.mrf.mxu0
        %v5252 = vadd.f32 0.0, %v5251
        %v5253 = vpop.f32.mrf.mxu0
        %v5254 = vadd.f32 0.0, %v5253
        %5255 = vdwg.mxu0
        %5256 = vmatpush.bf16.msra.mxu0 %v3246
        %5257 = vmatpush.bf16.msra.mxu0 %v3242
        %5258 = vmatpush.bf16.msra.mxu0 %v3238
        %5259 = vmatpush.bf16.msra.mxu0 %v3234
        %5260 = vmatpush.bf16.msra.mxu0 %v3230
        %5261 = vmatpush.bf16.msra.mxu0 %v3226
        %5262 = vmatpush.bf16.msra.mxu0 %v3222
        %5263 = vmatpush.bf16.msra.mxu0 %v3218
        %5264 = vmatmul.bf16.gmra.mxu0 %v4962
        %v5265 = vpop.f32.mrf.mxu0
        %v5266 = vadd.f32 %v5247, %v5265
        %v5267 = vpop.f32.mrf.mxu0
        %v5268 = vadd.f32 %v5249, %v5267
        %5269 = vmatmul.bf16.gmra.mxu0 %v4974
        %v5270 = vpop.f32.mrf.mxu0
        %v5271 = vadd.f32 %v5252, %v5270
        %v5272 = vpop.f32.mrf.mxu0
        %v5273 = vadd.f32 %v5254, %v5272
        %5274 = vdwg.mxu0
        %5275 = vmatpush.bf16.msra.mxu0 %v3278
        %5276 = vmatpush.bf16.msra.mxu0 %v3274
        %5277 = vmatpush.bf16.msra.mxu0 %v3270
        %5278 = vmatpush.bf16.msra.mxu0 %v3266
        %5279 = vmatpush.bf16.msra.mxu0 %v3262
        %5280 = vmatpush.bf16.msra.mxu0 %v3258
        %5281 = vmatpush.bf16.msra.mxu0 %v3254
        %5282 = vmatpush.bf16.msra.mxu0 %v3250
        %5283 = vmatmul.bf16.gmra.mxu0 %v4963
        %v5284 = vpop.f32.mrf.mxu0
        %v5285 = vadd.f32 %v5266, %v5284
        %v5286 = vpop.f32.mrf.mxu0
        %v5287 = vadd.f32 %v5268, %v5286
        %5288 = vmatmul.bf16.gmra.mxu0 %v4975
        %v5289 = vpop.f32.mrf.mxu0
        %v5290 = vadd.f32 %v5271, %v5289
        %v5291 = vpop.f32.mrf.mxu0
        %v5292 = vadd.f32 %v5273, %v5291
        %5293 = vdwg.mxu0
        %5294 = vmatpush.bf16.msra.mxu0 %v3310
        %5295 = vmatpush.bf16.msra.mxu0 %v3306
        %5296 = vmatpush.bf16.msra.mxu0 %v3302
        %5297 = vmatpush.bf16.msra.mxu0 %v3298
        %5298 = vmatpush.bf16.msra.mxu0 %v3294
        %5299 = vmatpush.bf16.msra.mxu0 %v3290
        %5300 = vmatpush.bf16.msra.mxu0 %v3286
        %5301 = vmatpush.bf16.msra.mxu0 %v3282
        %5302 = vmatmul.bf16.gmra.mxu0 %v4964
        %v5303 = vpop.f32.mrf.mxu0
        %v5304 = vadd.f32 %v5285, %v5303
        %v5305 = vpop.f32.mrf.mxu0
        %v5306 = vadd.f32 %v5287, %v5305
        %5307 = vmatmul.bf16.gmra.mxu0 %v4976
        %v5308 = vpop.f32.mrf.mxu0
        %v5309 = vadd.f32 %v5290, %v5308
        %v5310 = vpop.f32.mrf.mxu0
        %v5311 = vadd.f32 %v5292, %v5310
        %5312 = vdwg.mxu0
        %5313 = vmatpush.bf16.msra.mxu0 %v3342
        %5314 = vmatpush.bf16.msra.mxu0 %v3338
        %5315 = vmatpush.bf16.msra.mxu0 %v3334
        %5316 = vmatpush.bf16.msra.mxu0 %v3330
        %5317 = vmatpush.bf16.msra.mxu0 %v3326
        %5318 = vmatpush.bf16.msra.mxu0 %v3322
        %5319 = vmatpush.bf16.msra.mxu0 %v3318
        %5320 = vmatpush.bf16.msra.mxu0 %v3314
        %5321 = vmatmul.bf16.gmra.mxu0 %v4965
        %v5322 = vpop.f32.mrf.mxu0
        %v5323 = vadd.f32 %v5304, %v5322
        %v5324 = vpop.f32.mrf.mxu0
        %v5325 = vadd.f32 %v5306, %v5324
        %5326 = vmatmul.bf16.gmra.mxu0 %v4977
        %v5327 = vpop.f32.mrf.mxu0
        %v5328 = vadd.f32 %v5309, %v5327
        %v5329 = vpop.f32.mrf.mxu0
        %v5330 = vadd.f32 %v5311, %v5329
        %5331 = vdwg.mxu0
        %5332 = vmatpush.bf16.msra.mxu0 %v3374
        %5333 = vmatpush.bf16.msra.mxu0 %v3370
        %5334 = vmatpush.bf16.msra.mxu0 %v3366
        %5335 = vmatpush.bf16.msra.mxu0 %v3362
        %5336 = vmatpush.bf16.msra.mxu0 %v3358
        %5337 = vmatpush.bf16.msra.mxu0 %v3354
        %5338 = vmatpush.bf16.msra.mxu0 %v3350
        %5339 = vmatpush.bf16.msra.mxu0 %v3346
        %5340 = vmatmul.bf16.gmra.mxu0 %v4966
        %v5341 = vpop.f32.mrf.mxu0
        %v5342 = vadd.f32 %v5323, %v5341
        %v5343 = vpop.f32.mrf.mxu0
        %v5344 = vadd.f32 %v5325, %v5343
        %5345 = vmatmul.bf16.gmra.mxu0 %v4978
        %v5346 = vpop.f32.mrf.mxu0
        %v5347 = vadd.f32 %v5328, %v5346
        %v5348 = vpop.f32.mrf.mxu0
        %v5349 = vadd.f32 %v5330, %v5348
        %5350 = vdwg.mxu0
        %5351 = vmatpush.bf16.msra.mxu0 %v3406
        %5352 = vmatpush.bf16.msra.mxu0 %v3402
        %5353 = vmatpush.bf16.msra.mxu0 %v3398
        %5354 = vmatpush.bf16.msra.mxu0 %v3394
        %5355 = vmatpush.bf16.msra.mxu0 %v3390
        %5356 = vmatpush.bf16.msra.mxu0 %v3386
        %5357 = vmatpush.bf16.msra.mxu0 %v3382
        %5358 = vmatpush.bf16.msra.mxu0 %v3378
        %5359 = vmatmul.bf16.gmra.mxu0 %v4967
        %v5360 = vpop.f32.mrf.mxu0
        %v5361 = vadd.f32 %v5342, %v5360
        %v5362 = vpop.f32.mrf.mxu0
        %v5363 = vadd.f32 %v5344, %v5362
        %5364 = vmatmul.bf16.gmra.mxu0 %v4979
        %v5365 = vpop.f32.mrf.mxu0
        %v5366 = vadd.f32 %v5347, %v5365
        %v5367 = vpop.f32.mrf.mxu0
        %v5368 = vadd.f32 %v5349, %v5367
        %5369 = vdwg.mxu0
        %5370 = vmatpush.bf16.msra.mxu0 %v3438
        %5371 = vmatpush.bf16.msra.mxu0 %v3434
        %5372 = vmatpush.bf16.msra.mxu0 %v3430
        %5373 = vmatpush.bf16.msra.mxu0 %v3426
        %5374 = vmatpush.bf16.msra.mxu0 %v3422
        %5375 = vmatpush.bf16.msra.mxu0 %v3418
        %5376 = vmatpush.bf16.msra.mxu0 %v3414
        %5377 = vmatpush.bf16.msra.mxu0 %v3410
        %5378 = vmatmul.bf16.gmra.mxu0 %v4968
        %v5379 = vpop.f32.mrf.mxu0
        %v5380 = vadd.f32 %v5361, %v5379
        %v5381 = vpop.f32.mrf.mxu0
        %v5382 = vadd.f32 %v5363, %v5381
        %5383 = vmatmul.bf16.gmra.mxu0 %v4980
        %v5384 = vpop.f32.mrf.mxu0
        %v5385 = vadd.f32 %v5366, %v5384
        %v5386 = vpop.f32.mrf.mxu0
        %v5387 = vadd.f32 %v5368, %v5386
        %5388 = vdwg.mxu0
        %5389 = vmatpush.bf16.msra.mxu0 %v3470
        %5390 = vmatpush.bf16.msra.mxu0 %v3466
        %5391 = vmatpush.bf16.msra.mxu0 %v3462
        %5392 = vmatpush.bf16.msra.mxu0 %v3458
        %5393 = vmatpush.bf16.msra.mxu0 %v3454
        %5394 = vmatpush.bf16.msra.mxu0 %v3450
        %5395 = vmatpush.bf16.msra.mxu0 %v3446
        %5396 = vmatpush.bf16.msra.mxu0 %v3442
        %5397 = vmatmul.bf16.gmra.mxu0 %v4969
        %v5398 = vpop.f32.mrf.mxu0
        %v5399 = vadd.f32 %v5380, %v5398
        %v5400 = vpop.f32.mrf.mxu0
        %v5401 = vadd.f32 %v5382, %v5400
        %5402 = vmatmul.bf16.gmra.mxu0 %v4981
        %v5403 = vpop.f32.mrf.mxu0
        %v5404 = vadd.f32 %v5385, %v5403
        %v5405 = vpop.f32.mrf.mxu0
        %v5406 = vadd.f32 %v5387, %v5405
        %5407 = vdwg.mxu0
        %5408 = vmatpush.bf16.msra.mxu0 %v3502
        %5409 = vmatpush.bf16.msra.mxu0 %v3498
        %5410 = vmatpush.bf16.msra.mxu0 %v3494
        %5411 = vmatpush.bf16.msra.mxu0 %v3490
        %5412 = vmatpush.bf16.msra.mxu0 %v3486
        %5413 = vmatpush.bf16.msra.mxu0 %v3482
        %5414 = vmatpush.bf16.msra.mxu0 %v3478
        %5415 = vmatpush.bf16.msra.mxu0 %v3474
        %5416 = vmatmul.bf16.gmra.mxu0 %v4970
        %v5417 = vpop.f32.mrf.mxu0
        %v5418 = vadd.f32 %v5399, %v5417
        %v5419 = vpop.f32.mrf.mxu0
        %v5420 = vadd.f32 %v5401, %v5419
        %5421 = vmatmul.bf16.gmra.mxu0 %v4982
        %v5422 = vpop.f32.mrf.mxu0
        %v5423 = vadd.f32 %v5404, %v5422
        %v5424 = vpop.f32.mrf.mxu0
        %v5425 = vadd.f32 %v5406, %v5424
        %5426 = vdwg.mxu0
        %5427 = vmatpush.bf16.msra.mxu0 %v3534
        %5428 = vmatpush.bf16.msra.mxu0 %v3530
        %5429 = vmatpush.bf16.msra.mxu0 %v3526
        %5430 = vmatpush.bf16.msra.mxu0 %v3522
        %5431 = vmatpush.bf16.msra.mxu0 %v3518
        %5432 = vmatpush.bf16.msra.mxu0 %v3514
        %5433 = vmatpush.bf16.msra.mxu0 %v3510
        %5434 = vmatpush.bf16.msra.mxu0 %v3506
        %5435 = vmatmul.bf16.gmra.mxu0 %v4971
        %v5436 = vpop.f32.mrf.mxu0
        %v5437 = vadd.f32 %v5418, %v5436
        %v5438 = vpop.f32.mrf.mxu0
        %v5439 = vadd.f32 %v5420, %v5438
        %5440 = vmatmul.bf16.gmra.mxu0 %v4983
        %v5441 = vpop.f32.mrf.mxu0
        %v5442 = vadd.f32 %v5423, %v5441
        %v5443 = vpop.f32.mrf.mxu0
        %v5444 = vadd.f32 %v5425, %v5443
        %5445 = vdwg.mxu0
        %5446 = vmatpush.bf16.msra.mxu0 %v3566
        %5447 = vmatpush.bf16.msra.mxu0 %v3562
        %5448 = vmatpush.bf16.msra.mxu0 %v3558
        %5449 = vmatpush.bf16.msra.mxu0 %v3554
        %5450 = vmatpush.bf16.msra.mxu0 %v3550
        %5451 = vmatpush.bf16.msra.mxu0 %v3546
        %5452 = vmatpush.bf16.msra.mxu0 %v3542
        %5453 = vmatpush.bf16.msra.mxu0 %v3538
        %5454 = vmatmul.bf16.gmra.mxu0 %v4972
        %v5455 = vpop.f32.mrf.mxu0
        %v5456 = vadd.f32 %v5437, %v5455
        %v5457 = vpop.f32.mrf.mxu0
        %v5458 = vadd.f32 %v5439, %v5457
        %5459 = vmatmul.bf16.gmra.mxu0 %v4984
        %v5460 = vpop.f32.mrf.mxu0
        %v5461 = vadd.f32 %v5442, %v5460
        %v5462 = vpop.f32.mrf.mxu0
        %v5463 = vadd.f32 %v5444, %v5462
        %5464 = vdwg.mxu0
        %5465 = vmatpush.bf16.msra.mxu0 %v3215
        %5466 = vmatpush.bf16.msra.mxu0 %v3211
        %5467 = vmatpush.bf16.msra.mxu0 %v3207
        %5468 = vmatpush.bf16.msra.mxu0 %v3203
        %5469 = vmatpush.bf16.msra.mxu0 %v3199
        %5470 = vmatpush.bf16.msra.mxu0 %v3195
        %5471 = vmatpush.bf16.msra.mxu0 %v3191
        %5472 = vmatpush.bf16.msra.mxu0 %v3187
        %5473 = vmatmul.bf16.gmra.mxu0 %v4961
        %v5474 = vpop.f32.mrf.mxu0
        %v5475 = vadd.f32 0.0, %v5474
        %v5476 = vpop.f32.mrf.mxu0
        %v5477 = vadd.f32 0.0, %v5476
        %5478 = vmatmul.bf16.gmra.mxu0 %v4973
        %v5479 = vpop.f32.mrf.mxu0
        %v5480 = vadd.f32 0.0, %v5479
        %v5481 = vpop.f32.mrf.mxu0
        %v5482 = vadd.f32 0.0, %v5481
        %5483 = vdwg.mxu0
        %5484 = vmatpush.bf16.msra.mxu0 %v3247
        %5485 = vmatpush.bf16.msra.mxu0 %v3243
        %5486 = vmatpush.bf16.msra.mxu0 %v3239
        %5487 = vmatpush.bf16.msra.mxu0 %v3235
        %5488 = vmatpush.bf16.msra.mxu0 %v3231
        %5489 = vmatpush.bf16.msra.mxu0 %v3227
        %5490 = vmatpush.bf16.msra.mxu0 %v3223
        %5491 = vmatpush.bf16.msra.mxu0 %v3219
        %5492 = vmatmul.bf16.gmra.mxu0 %v4962
        %v5493 = vpop.f32.mrf.mxu0
        %v5494 = vadd.f32 %v5475, %v5493
        %v5495 = vpop.f32.mrf.mxu0
        %v5496 = vadd.f32 %v5477, %v5495
        %5497 = vmatmul.bf16.gmra.mxu0 %v4974
        %v5498 = vpop.f32.mrf.mxu0
        %v5499 = vadd.f32 %v5480, %v5498
        %v5500 = vpop.f32.mrf.mxu0
        %v5501 = vadd.f32 %v5482, %v5500
        %5502 = vdwg.mxu0
        %5503 = vmatpush.bf16.msra.mxu0 %v3279
        %5504 = vmatpush.bf16.msra.mxu0 %v3275
        %5505 = vmatpush.bf16.msra.mxu0 %v3271
        %5506 = vmatpush.bf16.msra.mxu0 %v3267
        %5507 = vmatpush.bf16.msra.mxu0 %v3263
        %5508 = vmatpush.bf16.msra.mxu0 %v3259
        %5509 = vmatpush.bf16.msra.mxu0 %v3255
        %5510 = vmatpush.bf16.msra.mxu0 %v3251
        %5511 = vmatmul.bf16.gmra.mxu0 %v4963
        %v5512 = vpop.f32.mrf.mxu0
        %v5513 = vadd.f32 %v5494, %v5512
        %v5514 = vpop.f32.mrf.mxu0
        %v5515 = vadd.f32 %v5496, %v5514
        %5516 = vmatmul.bf16.gmra.mxu0 %v4975
        %v5517 = vpop.f32.mrf.mxu0
        %v5518 = vadd.f32 %v5499, %v5517
        %v5519 = vpop.f32.mrf.mxu0
        %v5520 = vadd.f32 %v5501, %v5519
        %5521 = vdwg.mxu0
        %5522 = vmatpush.bf16.msra.mxu0 %v3311
        %5523 = vmatpush.bf16.msra.mxu0 %v3307
        %5524 = vmatpush.bf16.msra.mxu0 %v3303
        %5525 = vmatpush.bf16.msra.mxu0 %v3299
        %5526 = vmatpush.bf16.msra.mxu0 %v3295
        %5527 = vmatpush.bf16.msra.mxu0 %v3291
        %5528 = vmatpush.bf16.msra.mxu0 %v3287
        %5529 = vmatpush.bf16.msra.mxu0 %v3283
        %5530 = vmatmul.bf16.gmra.mxu0 %v4964
        %v5531 = vpop.f32.mrf.mxu0
        %v5532 = vadd.f32 %v5513, %v5531
        %v5533 = vpop.f32.mrf.mxu0
        %v5534 = vadd.f32 %v5515, %v5533
        %5535 = vmatmul.bf16.gmra.mxu0 %v4976
        %v5536 = vpop.f32.mrf.mxu0
        %v5537 = vadd.f32 %v5518, %v5536
        %v5538 = vpop.f32.mrf.mxu0
        %v5539 = vadd.f32 %v5520, %v5538
        %5540 = vdwg.mxu0
        %5541 = vmatpush.bf16.msra.mxu0 %v3343
        %5542 = vmatpush.bf16.msra.mxu0 %v3339
        %5543 = vmatpush.bf16.msra.mxu0 %v3335
        %5544 = vmatpush.bf16.msra.mxu0 %v3331
        %5545 = vmatpush.bf16.msra.mxu0 %v3327
        %5546 = vmatpush.bf16.msra.mxu0 %v3323
        %5547 = vmatpush.bf16.msra.mxu0 %v3319
        %5548 = vmatpush.bf16.msra.mxu0 %v3315
        %5549 = vmatmul.bf16.gmra.mxu0 %v4965
        %v5550 = vpop.f32.mrf.mxu0
        %v5551 = vadd.f32 %v5532, %v5550
        %v5552 = vpop.f32.mrf.mxu0
        %v5553 = vadd.f32 %v5534, %v5552
        %5554 = vmatmul.bf16.gmra.mxu0 %v4977
        %v5555 = vpop.f32.mrf.mxu0
        %v5556 = vadd.f32 %v5537, %v5555
        %v5557 = vpop.f32.mrf.mxu0
        %v5558 = vadd.f32 %v5539, %v5557
        %5559 = vdwg.mxu0
        %5560 = vmatpush.bf16.msra.mxu0 %v3375
        %5561 = vmatpush.bf16.msra.mxu0 %v3371
        %5562 = vmatpush.bf16.msra.mxu0 %v3367
        %5563 = vmatpush.bf16.msra.mxu0 %v3363
        %5564 = vmatpush.bf16.msra.mxu0 %v3359
        %5565 = vmatpush.bf16.msra.mxu0 %v3355
        %5566 = vmatpush.bf16.msra.mxu0 %v3351
        %5567 = vmatpush.bf16.msra.mxu0 %v3347
        %5568 = vmatmul.bf16.gmra.mxu0 %v4966
        %v5569 = vpop.f32.mrf.mxu0
        %v5570 = vadd.f32 %v5551, %v5569
        %v5571 = vpop.f32.mrf.mxu0
        %v5572 = vadd.f32 %v5553, %v5571
        %5573 = vmatmul.bf16.gmra.mxu0 %v4978
        %v5574 = vpop.f32.mrf.mxu0
        %v5575 = vadd.f32 %v5556, %v5574
        %v5576 = vpop.f32.mrf.mxu0
        %v5577 = vadd.f32 %v5558, %v5576
        %5578 = vdwg.mxu0
        %5579 = vmatpush.bf16.msra.mxu0 %v3407
        %5580 = vmatpush.bf16.msra.mxu0 %v3403
        %5581 = vmatpush.bf16.msra.mxu0 %v3399
        %5582 = vmatpush.bf16.msra.mxu0 %v3395
        %5583 = vmatpush.bf16.msra.mxu0 %v3391
        %5584 = vmatpush.bf16.msra.mxu0 %v3387
        %5585 = vmatpush.bf16.msra.mxu0 %v3383
        %5586 = vmatpush.bf16.msra.mxu0 %v3379
        %5587 = vmatmul.bf16.gmra.mxu0 %v4967
        %v5588 = vpop.f32.mrf.mxu0
        %v5589 = vadd.f32 %v5570, %v5588
        %v5590 = vpop.f32.mrf.mxu0
        %v5591 = vadd.f32 %v5572, %v5590
        %5592 = vmatmul.bf16.gmra.mxu0 %v4979
        %v5593 = vpop.f32.mrf.mxu0
        %v5594 = vadd.f32 %v5575, %v5593
        %v5595 = vpop.f32.mrf.mxu0
        %v5596 = vadd.f32 %v5577, %v5595
        %5597 = vdwg.mxu0
        %5598 = vmatpush.bf16.msra.mxu0 %v3439
        %5599 = vmatpush.bf16.msra.mxu0 %v3435
        %5600 = vmatpush.bf16.msra.mxu0 %v3431
        %5601 = vmatpush.bf16.msra.mxu0 %v3427
        %5602 = vmatpush.bf16.msra.mxu0 %v3423
        %5603 = vmatpush.bf16.msra.mxu0 %v3419
        %5604 = vmatpush.bf16.msra.mxu0 %v3415
        %5605 = vmatpush.bf16.msra.mxu0 %v3411
        %5606 = vmatmul.bf16.gmra.mxu0 %v4968
        %v5607 = vpop.f32.mrf.mxu0
        %v5608 = vadd.f32 %v5589, %v5607
        %v5609 = vpop.f32.mrf.mxu0
        %v5610 = vadd.f32 %v5591, %v5609
        %5611 = vmatmul.bf16.gmra.mxu0 %v4980
        %v5612 = vpop.f32.mrf.mxu0
        %v5613 = vadd.f32 %v5594, %v5612
        %v5614 = vpop.f32.mrf.mxu0
        %v5615 = vadd.f32 %v5596, %v5614
        %5616 = vdwg.mxu0
        %5617 = vmatpush.bf16.msra.mxu0 %v3471
        %5618 = vmatpush.bf16.msra.mxu0 %v3467
        %5619 = vmatpush.bf16.msra.mxu0 %v3463
        %5620 = vmatpush.bf16.msra.mxu0 %v3459
        %5621 = vmatpush.bf16.msra.mxu0 %v3455
        %5622 = vmatpush.bf16.msra.mxu0 %v3451
        %5623 = vmatpush.bf16.msra.mxu0 %v3447
        %5624 = vmatpush.bf16.msra.mxu0 %v3443
        %5625 = vmatmul.bf16.gmra.mxu0 %v4969
        %v5626 = vpop.f32.mrf.mxu0
        %v5627 = vadd.f32 %v5608, %v5626
        %v5628 = vpop.f32.mrf.mxu0
        %v5629 = vadd.f32 %v5610, %v5628
        %5630 = vmatmul.bf16.gmra.mxu0 %v4981
        %v5631 = vpop.f32.mrf.mxu0
        %v5632 = vadd.f32 %v5613, %v5631
        %v5633 = vpop.f32.mrf.mxu0
        %v5634 = vadd.f32 %v5615, %v5633
        %5635 = vdwg.mxu0
        %5636 = vmatpush.bf16.msra.mxu0 %v3503
        %5637 = vmatpush.bf16.msra.mxu0 %v3499
        %5638 = vmatpush.bf16.msra.mxu0 %v3495
        %5639 = vmatpush.bf16.msra.mxu0 %v3491
        %5640 = vmatpush.bf16.msra.mxu0 %v3487
        %5641 = vmatpush.bf16.msra.mxu0 %v3483
        %5642 = vmatpush.bf16.msra.mxu0 %v3479
        %5643 = vmatpush.bf16.msra.mxu0 %v3475
        %5644 = vmatmul.bf16.gmra.mxu0 %v4970
        %v5645 = vpop.f32.mrf.mxu0
        %v5646 = vadd.f32 %v5627, %v5645
        %v5647 = vpop.f32.mrf.mxu0
        %v5648 = vadd.f32 %v5629, %v5647
        %5649 = vmatmul.bf16.gmra.mxu0 %v4982
        %v5650 = vpop.f32.mrf.mxu0
        %v5651 = vadd.f32 %v5632, %v5650
        %v5652 = vpop.f32.mrf.mxu0
        %v5653 = vadd.f32 %v5634, %v5652
        %5654 = vdwg.mxu0
        %5655 = vmatpush.bf16.msra.mxu0 %v3535
        %5656 = vmatpush.bf16.msra.mxu0 %v3531
        %5657 = vmatpush.bf16.msra.mxu0 %v3527
        %5658 = vmatpush.bf16.msra.mxu0 %v3523
        %5659 = vmatpush.bf16.msra.mxu0 %v3519
        %5660 = vmatpush.bf16.msra.mxu0 %v3515
        %5661 = vmatpush.bf16.msra.mxu0 %v3511
        %5662 = vmatpush.bf16.msra.mxu0 %v3507
        %5663 = vmatmul.bf16.gmra.mxu0 %v4971
        %v5664 = vpop.f32.mrf.mxu0
        %v5665 = vadd.f32 %v5646, %v5664
        %v5666 = vpop.f32.mrf.mxu0
        %v5667 = vadd.f32 %v5648, %v5666
        %5668 = vmatmul.bf16.gmra.mxu0 %v4983
        %v5669 = vpop.f32.mrf.mxu0
        %v5670 = vadd.f32 %v5651, %v5669
        %v5671 = vpop.f32.mrf.mxu0
        %v5672 = vadd.f32 %v5653, %v5671
        %5673 = vdwg.mxu0
        %5674 = vmatpush.bf16.msra.mxu0 %v3567
        %5675 = vmatpush.bf16.msra.mxu0 %v3563
        %5676 = vmatpush.bf16.msra.mxu0 %v3559
        %5677 = vmatpush.bf16.msra.mxu0 %v3555
        %5678 = vmatpush.bf16.msra.mxu0 %v3551
        %5679 = vmatpush.bf16.msra.mxu0 %v3547
        %5680 = vmatpush.bf16.msra.mxu0 %v3543
        %5681 = vmatpush.bf16.msra.mxu0 %v3539
        %5682 = vmatmul.bf16.gmra.mxu0 %v4972
        %v5683 = vpop.f32.mrf.mxu0
        %v5684 = vadd.f32 %v5665, %v5683
        %v5685 = vpop.f32.mrf.mxu0
        %v5686 = vadd.f32 %v5667, %v5685
        %5687 = vmatmul.bf16.gmra.mxu0 %v4984
        %v5688 = vpop.f32.mrf.mxu0
        %v5689 = vadd.f32 %v5670, %v5688
        %v5690 = vpop.f32.mrf.mxu0
        %v5691 = vadd.f32 %v5672, %v5690
        %5692 = vdwg.mxu0
        %5693 = vmatpush.bf16.msra.mxu0 %v3216
        %5694 = vmatpush.bf16.msra.mxu0 %v3212
        %5695 = vmatpush.bf16.msra.mxu0 %v3208
        %5696 = vmatpush.bf16.msra.mxu0 %v3204
        %5697 = vmatpush.bf16.msra.mxu0 %v3200
        %5698 = vmatpush.bf16.msra.mxu0 %v3196
        %5699 = vmatpush.bf16.msra.mxu0 %v3192
        %5700 = vmatpush.bf16.msra.mxu0 %v3188
        %5701 = vmatmul.bf16.gmra.mxu0 %v4961
        %v5702 = vpop.f32.mrf.mxu0
        %v5703 = vadd.f32 0.0, %v5702
        %v5704 = vpop.f32.mrf.mxu0
        %v5705 = vadd.f32 0.0, %v5704
        %5706 = vmatmul.bf16.gmra.mxu0 %v4973
        %v5707 = vpop.f32.mrf.mxu0
        %v5708 = vadd.f32 0.0, %v5707
        %v5709 = vpop.f32.mrf.mxu0
        %v5710 = vadd.f32 0.0, %v5709
        %5711 = vdwg.mxu0
        %5712 = vmatpush.bf16.msra.mxu0 %v3248
        %5713 = vmatpush.bf16.msra.mxu0 %v3244
        %5714 = vmatpush.bf16.msra.mxu0 %v3240
        %5715 = vmatpush.bf16.msra.mxu0 %v3236
        %5716 = vmatpush.bf16.msra.mxu0 %v3232
        %5717 = vmatpush.bf16.msra.mxu0 %v3228
        %5718 = vmatpush.bf16.msra.mxu0 %v3224
        %5719 = vmatpush.bf16.msra.mxu0 %v3220
        %5720 = vmatmul.bf16.gmra.mxu0 %v4962
        %v5721 = vpop.f32.mrf.mxu0
        %v5722 = vadd.f32 %v5703, %v5721
        %v5723 = vpop.f32.mrf.mxu0
        %v5724 = vadd.f32 %v5705, %v5723
        %5725 = vmatmul.bf16.gmra.mxu0 %v4974
        %v5726 = vpop.f32.mrf.mxu0
        %v5727 = vadd.f32 %v5708, %v5726
        %v5728 = vpop.f32.mrf.mxu0
        %v5729 = vadd.f32 %v5710, %v5728
        %5730 = vdwg.mxu0
        %5731 = vmatpush.bf16.msra.mxu0 %v3280
        %5732 = vmatpush.bf16.msra.mxu0 %v3276
        %5733 = vmatpush.bf16.msra.mxu0 %v3272
        %5734 = vmatpush.bf16.msra.mxu0 %v3268
        %5735 = vmatpush.bf16.msra.mxu0 %v3264
        %5736 = vmatpush.bf16.msra.mxu0 %v3260
        %5737 = vmatpush.bf16.msra.mxu0 %v3256
        %5738 = vmatpush.bf16.msra.mxu0 %v3252
        %5739 = vmatmul.bf16.gmra.mxu0 %v4963
        %v5740 = vpop.f32.mrf.mxu0
        %v5741 = vadd.f32 %v5722, %v5740
        %v5742 = vpop.f32.mrf.mxu0
        %v5743 = vadd.f32 %v5724, %v5742
        %5744 = vmatmul.bf16.gmra.mxu0 %v4975
        %v5745 = vpop.f32.mrf.mxu0
        %v5746 = vadd.f32 %v5727, %v5745
        %v5747 = vpop.f32.mrf.mxu0
        %v5748 = vadd.f32 %v5729, %v5747
        %5749 = vdwg.mxu0
        %5750 = vmatpush.bf16.msra.mxu0 %v3312
        %5751 = vmatpush.bf16.msra.mxu0 %v3308
        %5752 = vmatpush.bf16.msra.mxu0 %v3304
        %5753 = vmatpush.bf16.msra.mxu0 %v3300
        %5754 = vmatpush.bf16.msra.mxu0 %v3296
        %5755 = vmatpush.bf16.msra.mxu0 %v3292
        %5756 = vmatpush.bf16.msra.mxu0 %v3288
        %5757 = vmatpush.bf16.msra.mxu0 %v3284
        %5758 = vmatmul.bf16.gmra.mxu0 %v4964
        %v5759 = vpop.f32.mrf.mxu0
        %v5760 = vadd.f32 %v5741, %v5759
        %v5761 = vpop.f32.mrf.mxu0
        %v5762 = vadd.f32 %v5743, %v5761
        %5763 = vmatmul.bf16.gmra.mxu0 %v4976
        %v5764 = vpop.f32.mrf.mxu0
        %v5765 = vadd.f32 %v5746, %v5764
        %v5766 = vpop.f32.mrf.mxu0
        %v5767 = vadd.f32 %v5748, %v5766
        %5768 = vdwg.mxu0
        %5769 = vmatpush.bf16.msra.mxu0 %v3344
        %5770 = vmatpush.bf16.msra.mxu0 %v3340
        %5771 = vmatpush.bf16.msra.mxu0 %v3336
        %5772 = vmatpush.bf16.msra.mxu0 %v3332
        %5773 = vmatpush.bf16.msra.mxu0 %v3328
        %5774 = vmatpush.bf16.msra.mxu0 %v3324
        %5775 = vmatpush.bf16.msra.mxu0 %v3320
        %5776 = vmatpush.bf16.msra.mxu0 %v3316
        %5777 = vmatmul.bf16.gmra.mxu0 %v4965
        %v5778 = vpop.f32.mrf.mxu0
        %v5779 = vadd.f32 %v5760, %v5778
        %v5780 = vpop.f32.mrf.mxu0
        %v5781 = vadd.f32 %v5762, %v5780
        %5782 = vmatmul.bf16.gmra.mxu0 %v4977
        %v5783 = vpop.f32.mrf.mxu0
        %v5784 = vadd.f32 %v5765, %v5783
        %v5785 = vpop.f32.mrf.mxu0
        %v5786 = vadd.f32 %v5767, %v5785
        %5787 = vdwg.mxu0
        %5788 = vmatpush.bf16.msra.mxu0 %v3376
        %5789 = vmatpush.bf16.msra.mxu0 %v3372
        %5790 = vmatpush.bf16.msra.mxu0 %v3368
        %5791 = vmatpush.bf16.msra.mxu0 %v3364
        %5792 = vmatpush.bf16.msra.mxu0 %v3360
        %5793 = vmatpush.bf16.msra.mxu0 %v3356
        %5794 = vmatpush.bf16.msra.mxu0 %v3352
        %5795 = vmatpush.bf16.msra.mxu0 %v3348
        %5796 = vmatmul.bf16.gmra.mxu0 %v4966
        %v5797 = vpop.f32.mrf.mxu0
        %v5798 = vadd.f32 %v5779, %v5797
        %v5799 = vpop.f32.mrf.mxu0
        %v5800 = vadd.f32 %v5781, %v5799
        %5801 = vmatmul.bf16.gmra.mxu0 %v4978
        %v5802 = vpop.f32.mrf.mxu0
        %v5803 = vadd.f32 %v5784, %v5802
        %v5804 = vpop.f32.mrf.mxu0
        %v5805 = vadd.f32 %v5786, %v5804
        %5806 = vdwg.mxu0
        %5807 = vmatpush.bf16.msra.mxu0 %v3408
        %5808 = vmatpush.bf16.msra.mxu0 %v3404
        %5809 = vmatpush.bf16.msra.mxu0 %v3400
        %5810 = vmatpush.bf16.msra.mxu0 %v3396
        %5811 = vmatpush.bf16.msra.mxu0 %v3392
        %5812 = vmatpush.bf16.msra.mxu0 %v3388
        %5813 = vmatpush.bf16.msra.mxu0 %v3384
        %5814 = vmatpush.bf16.msra.mxu0 %v3380
        %5815 = vmatmul.bf16.gmra.mxu0 %v4967
        %v5816 = vpop.f32.mrf.mxu0
        %v5817 = vadd.f32 %v5798, %v5816
        %v5818 = vpop.f32.mrf.mxu0
        %v5819 = vadd.f32 %v5800, %v5818
        %5820 = vmatmul.bf16.gmra.mxu0 %v4979
        %v5821 = vpop.f32.mrf.mxu0
        %v5822 = vadd.f32 %v5803, %v5821
        %v5823 = vpop.f32.mrf.mxu0
        %v5824 = vadd.f32 %v5805, %v5823
        %5825 = vdwg.mxu0
        %5826 = vmatpush.bf16.msra.mxu0 %v3440
        %5827 = vmatpush.bf16.msra.mxu0 %v3436
        %5828 = vmatpush.bf16.msra.mxu0 %v3432
        %5829 = vmatpush.bf16.msra.mxu0 %v3428
        %5830 = vmatpush.bf16.msra.mxu0 %v3424
        %5831 = vmatpush.bf16.msra.mxu0 %v3420
        %5832 = vmatpush.bf16.msra.mxu0 %v3416
        %5833 = vmatpush.bf16.msra.mxu0 %v3412
        %5834 = vmatmul.bf16.gmra.mxu0 %v4968
        %v5835 = vpop.f32.mrf.mxu0
        %v5836 = vadd.f32 %v5817, %v5835
        %v5837 = vpop.f32.mrf.mxu0
        %v5838 = vadd.f32 %v5819, %v5837
        %5839 = vmatmul.bf16.gmra.mxu0 %v4980
        %v5840 = vpop.f32.mrf.mxu0
        %v5841 = vadd.f32 %v5822, %v5840
        %v5842 = vpop.f32.mrf.mxu0
        %v5843 = vadd.f32 %v5824, %v5842
        %5844 = vdwg.mxu0
        %5845 = vmatpush.bf16.msra.mxu0 %v3472
        %5846 = vmatpush.bf16.msra.mxu0 %v3468
        %5847 = vmatpush.bf16.msra.mxu0 %v3464
        %5848 = vmatpush.bf16.msra.mxu0 %v3460
        %5849 = vmatpush.bf16.msra.mxu0 %v3456
        %5850 = vmatpush.bf16.msra.mxu0 %v3452
        %5851 = vmatpush.bf16.msra.mxu0 %v3448
        %5852 = vmatpush.bf16.msra.mxu0 %v3444
        %5853 = vmatmul.bf16.gmra.mxu0 %v4969
        %v5854 = vpop.f32.mrf.mxu0
        %v5855 = vadd.f32 %v5836, %v5854
        %v5856 = vpop.f32.mrf.mxu0
        %v5857 = vadd.f32 %v5838, %v5856
        %5858 = vmatmul.bf16.gmra.mxu0 %v4981
        %v5859 = vpop.f32.mrf.mxu0
        %v5860 = vadd.f32 %v5841, %v5859
        %v5861 = vpop.f32.mrf.mxu0
        %v5862 = vadd.f32 %v5843, %v5861
        %5863 = vdwg.mxu0
        %5864 = vmatpush.bf16.msra.mxu0 %v3504
        %5865 = vmatpush.bf16.msra.mxu0 %v3500
        %5866 = vmatpush.bf16.msra.mxu0 %v3496
        %5867 = vmatpush.bf16.msra.mxu0 %v3492
        %5868 = vmatpush.bf16.msra.mxu0 %v3488
        %5869 = vmatpush.bf16.msra.mxu0 %v3484
        %5870 = vmatpush.bf16.msra.mxu0 %v3480
        %5871 = vmatpush.bf16.msra.mxu0 %v3476
        %5872 = vmatmul.bf16.gmra.mxu0 %v4970
        %v5873 = vpop.f32.mrf.mxu0
        %v5874 = vadd.f32 %v5855, %v5873
        %v5875 = vpop.f32.mrf.mxu0
        %v5876 = vadd.f32 %v5857, %v5875
        %5877 = vmatmul.bf16.gmra.mxu0 %v4982
        %v5878 = vpop.f32.mrf.mxu0
        %v5879 = vadd.f32 %v5860, %v5878
        %v5880 = vpop.f32.mrf.mxu0
        %v5881 = vadd.f32 %v5862, %v5880
        %5882 = vdwg.mxu0
        %5883 = vmatpush.bf16.msra.mxu0 %v3536
        %5884 = vmatpush.bf16.msra.mxu0 %v3532
        %5885 = vmatpush.bf16.msra.mxu0 %v3528
        %5886 = vmatpush.bf16.msra.mxu0 %v3524
        %5887 = vmatpush.bf16.msra.mxu0 %v3520
        %5888 = vmatpush.bf16.msra.mxu0 %v3516
        %5889 = vmatpush.bf16.msra.mxu0 %v3512
        %5890 = vmatpush.bf16.msra.mxu0 %v3508
        %5891 = vmatmul.bf16.gmra.mxu0 %v4971
        %v5892 = vpop.f32.mrf.mxu0
        %v5893 = vadd.f32 %v5874, %v5892
        %v5894 = vpop.f32.mrf.mxu0
        %v5895 = vadd.f32 %v5876, %v5894
        %5896 = vmatmul.bf16.gmra.mxu0 %v4983
        %v5897 = vpop.f32.mrf.mxu0
        %v5898 = vadd.f32 %v5879, %v5897
        %v5899 = vpop.f32.mrf.mxu0
        %v5900 = vadd.f32 %v5881, %v5899
        %5901 = vdwg.mxu0
        %5902 = vmatpush.bf16.msra.mxu0 %v3568
        %5903 = vmatpush.bf16.msra.mxu0 %v3564
        %5904 = vmatpush.bf16.msra.mxu0 %v3560
        %5905 = vmatpush.bf16.msra.mxu0 %v3556
        %5906 = vmatpush.bf16.msra.mxu0 %v3552
        %5907 = vmatpush.bf16.msra.mxu0 %v3548
        %5908 = vmatpush.bf16.msra.mxu0 %v3544
        %5909 = vmatpush.bf16.msra.mxu0 %v3540
        %5910 = vmatmul.bf16.gmra.mxu0 %v4972
        %v5911 = vpop.f32.mrf.mxu0
        %v5912 = vadd.f32 %v5893, %v5911
        %v5913 = vpop.f32.mrf.mxu0
        %v5914 = vadd.f32 %v5895, %v5913
        %5915 = vmatmul.bf16.gmra.mxu0 %v4984
        %v5916 = vpop.f32.mrf.mxu0
        %v5917 = vadd.f32 %v5898, %v5916
        %v5918 = vpop.f32.mrf.mxu0
        %v5919 = vadd.f32 %v5900, %v5918
        %5920 = vdwg.mxu0
        %v5921 = vmax.f32 %v4172, %v5228
        %v5922 = vmax.f32 %v4400, %v5456
        %v5923 = vmax.f32 %v4628, %v5684
        %v5924 = vmax.f32 %v4856, %v5912
        %v5925 = vmax.f32 %v4174, %v5230
        %v5926 = vmax.f32 %v4402, %v5458
        %v5927 = vmax.f32 %v4630, %v5686
        %v5928 = vmax.f32 %v4858, %v5914
        %v5929 = vmax.f32 %v4177, %v5233
        %v5930 = vmax.f32 %v4405, %v5461
        %v5931 = vmax.f32 %v4633, %v5689
        %v5932 = vmax.f32 %v4861, %v5917
        %v5933 = vmax.f32 %v4179, %v5235
        %v5934 = vmax.f32 %v4407, %v5463
        %v5935 = vmax.f32 %v4635, %v5691
        %v5936 = vmax.f32 %v4863, %v5919
        %v5937 = vmax.f32 %v5921, %v5923
        %v5938 = vmax.f32 %v5922, %v5924
        %v5939 = vmax.f32 %v5925, %v5927
        %v5940 = vmax.f32 %v5926, %v5928
        %v5941 = vmax.f32 %v5929, %v5931
        %v5942 = vmax.f32 %v5930, %v5932
        %v5943 = vmax.f32 %v5933, %v5935
        %v5944 = vmax.f32 %v5934, %v5936
        %v5945 = vld [vmem:[%s4] sm:$0x3]
        %v5947 = vperm.slane %v5945, 0
        %v5948 = vperm.slane %v5945, 1
        %v5951 = vadd.f32 %v5937, %v5947
        %v5952 = vadd.f32 %v5938, %v5948
        %v5953 = vadd.f32 %v5939, %v5947
        %v5954 = vadd.f32 %v5940, %v5948
        %v5955 = vadd.f32 %v5941, %v5947
        %v5956 = vadd.f32 %v5942, %v5948
        %v5957 = vadd.f32 %v5943, %v5947
        %v5958 = vadd.f32 %v5944, %v5948
        %v5959 = vmax.f32 %v5951, 0.0
        %v5960 = vmax.f32 %v5952, 0.0
        %v5961 = vmax.f32 %v5953, 0.0
        %v5962 = vmax.f32 %v5954, 0.0
        %v5963 = vmax.f32 %v5955, 0.0
        %v5964 = vmax.f32 %v5956, 0.0
        %v5965 = vmax.f32 %v5957, 0.0
        %v5966 = vmax.f32 %v5958, 0.0
        %v5967 = vpack.c.bf16 %v5960, %v5959
        %v5968 = vpack.c.bf16 %v5962, %v5961
        %v5969 = vpack.c.bf16 %v5964, %v5963
        %v5970 = vpack.c.bf16 %v5966, %v5965
        %5971 = vst [vmem:[#allocation4] sm:$0xff] %v5967
        %5972 = vst [vmem:[#allocation4 + $0x8] sm:$0xff] %v5968
        %5973 = vst [vmem:[#allocation4 + $0x10] sm:$0xff] %v5969
        %5974 = vst [vmem:[#allocation4 + $0x18] sm:$0xff] %v5970
        %v5975 = vld [vmem:[#allocation4] sm:$0xff]
        %v5976 = vld [vmem:[#allocation4 + $0x8] sm:$0xff]
        %v5977 = vld [vmem:[#allocation4 + $0x10] sm:$0xff]
        %v5978 = vld [vmem:[#allocation4 + $0x18] sm:$0xff]
        %v5979 = vld [vmem:[%s5] sm:$0xf]
        %v5980 = vld [vmem:[%s5 + $0x4] sm:$0xf]
        %v5981 = vld [vmem:[%s5 + $0x8] sm:$0xf]
        %v5982 = vld [vmem:[%s5 + $0xc] sm:$0xf]
        %v5983 = vld [vmem:[%s5 + $0x10] sm:$0xf]
        %v5984 = vld [vmem:[%s5 + $0x14] sm:$0xf]
        %v5985 = vld [vmem:[%s5 + $0x18] sm:$0xf]
        %v5986 = vld [vmem:[%s5 + $0x1c] sm:$0xf]
        %v5987 = vld [vmem:[%s5 + $0x20] sm:$0xf]
        %v5988 = vld [vmem:[%s5 + $0x24] sm:$0xf]
        %v5989 = vld [vmem:[%s5 + $0x28] sm:$0xf]
        %v5990 = vld [vmem:[%s5 + $0x2c] sm:$0xf]
        %v5991 = vld [vmem:[%s5 + $0x30] sm:$0xf]
        %v5992 = vld [vmem:[%s5 + $0x34] sm:$0xf]
        %v5993 = vld [vmem:[%s5 + $0x38] sm:$0xf]
        %v5994 = vld [vmem:[%s5 + $0x3c] sm:$0xf]
        %v5995 = vld [vmem:[%s5 + $0x40] sm:$0xf]
        %v5996 = vld [vmem:[%s5 + $0x44] sm:$0xf]
        %v5997 = vld [vmem:[%s5 + $0x48] sm:$0xf]
        %v5998 = vld [vmem:[%s5 + $0x4c] sm:$0xf]
        %v5999 = vld [vmem:[%s5 + $0x50] sm:$0xf]
        %v6000 = vld [vmem:[%s5 + $0x54] sm:$0xf]
        %v6001 = vld [vmem:[%s5 + $0x58] sm:$0xf]
        %v6002 = vld [vmem:[%s5 + $0x5c] sm:$0xf]
        %v6003 = vld [vmem:[%s5 + $0x60] sm:$0xf]
        %v6004 = vld [vmem:[%s5 + $0x64] sm:$0xf]
        %v6005 = vld [vmem:[%s5 + $0x68] sm:$0xf]
        %v6006 = vld [vmem:[%s5 + $0x6c] sm:$0xf]
        %v6007 = vld [vmem:[%s5 + $0x70] sm:$0xf]
        %v6008 = vld [vmem:[%s5 + $0x74] sm:$0xf]
        %v6009 = vld [vmem:[%s5 + $0x78] sm:$0xf]
        %v6010 = vld [vmem:[%s5 + $0x7c] sm:$0xf]
        %v6011 = vld [vmem:[%s5 + $0x80] sm:$0xf]
        %v6012 = vld [vmem:[%s5 + $0x84] sm:$0xf]
        %v6013 = vld [vmem:[%s5 + $0x88] sm:$0xf]
        %v6014 = vld [vmem:[%s5 + $0x8c] sm:$0xf]
        %v6015 = vld [vmem:[%s5 + $0x90] sm:$0xf]
        %v6016 = vld [vmem:[%s5 + $0x94] sm:$0xf]
        %v6017 = vld [vmem:[%s5 + $0x98] sm:$0xf]
        %v6018 = vld [vmem:[%s5 + $0x9c] sm:$0xf]
        %v6019 = vld [vmem:[%s5 + $0xa0] sm:$0xf]
        %v6020 = vld [vmem:[%s5 + $0xa4] sm:$0xf]
        %v6021 = vld [vmem:[%s5 + $0xa8] sm:$0xf]
        %v6022 = vld [vmem:[%s5 + $0xac] sm:$0xf]
        %v6023 = vld [vmem:[%s5 + $0xb0] sm:$0xf]
        %v6024 = vld [vmem:[%s5 + $0xb4] sm:$0xf]
        %v6025 = vld [vmem:[%s5 + $0xb8] sm:$0xf]
        %v6026 = vld [vmem:[%s5 + $0xbc] sm:$0xf]
        %v6027 = vld [vmem:[%s5 + $0xc0] sm:$0xf]
        %v6028 = vld [vmem:[%s5 + $0xc4] sm:$0xf]
        %v6029 = vld [vmem:[%s5 + $0xc8] sm:$0xf]
        %v6030 = vld [vmem:[%s5 + $0xcc] sm:$0xf]
        %v6031 = vld [vmem:[%s5 + $0xd0] sm:$0xf]
        %v6032 = vld [vmem:[%s5 + $0xd4] sm:$0xf]
        %v6033 = vld [vmem:[%s5 + $0xd8] sm:$0xf]
        %v6034 = vld [vmem:[%s5 + $0xdc] sm:$0xf]
        %v6035 = vld [vmem:[%s5 + $0xe0] sm:$0xf]
        %v6036 = vld [vmem:[%s5 + $0xe4] sm:$0xf]
        %v6037 = vld [vmem:[%s5 + $0xe8] sm:$0xf]
        %v6038 = vld [vmem:[%s5 + $0xec] sm:$0xf]
        %v6039 = vld [vmem:[%s5 + $0xf0] sm:$0xf]
        %v6040 = vld [vmem:[%s5 + $0xf4] sm:$0xf]
        %v6041 = vld [vmem:[%s5 + $0xf8] sm:$0xf]
        %v6042 = vld [vmem:[%s5 + $0xfc] sm:$0xf]
        %v6043 = vld [vmem:[%s5 + $0x100] sm:$0xf]
        %v6044 = vld [vmem:[%s5 + $0x104] sm:$0xf]
        %v6045 = vld [vmem:[%s5 + $0x108] sm:$0xf]
        %v6046 = vld [vmem:[%s5 + $0x10c] sm:$0xf]
        %v6047 = vld [vmem:[%s5 + $0x110] sm:$0xf]
        %v6048 = vld [vmem:[%s5 + $0x114] sm:$0xf]
        %v6049 = vld [vmem:[%s5 + $0x118] sm:$0xf]
        %v6050 = vld [vmem:[%s5 + $0x11c] sm:$0xf]
        %v6051 = vld [vmem:[%s5 + $0x120] sm:$0xf]
        %v6052 = vld [vmem:[%s5 + $0x124] sm:$0xf]
        %v6053 = vld [vmem:[%s5 + $0x128] sm:$0xf]
        %v6054 = vld [vmem:[%s5 + $0x12c] sm:$0xf]
        %v6055 = vld [vmem:[%s5 + $0x130] sm:$0xf]
        %v6056 = vld [vmem:[%s5 + $0x134] sm:$0xf]
        %v6057 = vld [vmem:[%s5 + $0x138] sm:$0xf]
        %v6058 = vld [vmem:[%s5 + $0x13c] sm:$0xf]
        %v6059 = vld [vmem:[%s5 + $0x140] sm:$0xf]
        %v6060 = vld [vmem:[%s5 + $0x144] sm:$0xf]
        %v6061 = vld [vmem:[%s5 + $0x148] sm:$0xf]
        %v6062 = vld [vmem:[%s5 + $0x14c] sm:$0xf]
        %v6063 = vld [vmem:[%s5 + $0x150] sm:$0xf]
        %v6064 = vld [vmem:[%s5 + $0x154] sm:$0xf]
        %v6065 = vld [vmem:[%s5 + $0x158] sm:$0xf]
        %v6066 = vld [vmem:[%s5 + $0x15c] sm:$0xf]
        %v6067 = vld [vmem:[%s5 + $0x160] sm:$0xf]
        %v6068 = vld [vmem:[%s5 + $0x164] sm:$0xf]
        %v6069 = vld [vmem:[%s5 + $0x168] sm:$0xf]
        %v6070 = vld [vmem:[%s5 + $0x16c] sm:$0xf]
        %v6071 = vld [vmem:[%s5 + $0x170] sm:$0xf]
        %v6072 = vld [vmem:[%s5 + $0x174] sm:$0xf]
        %v6073 = vld [vmem:[%s5 + $0x178] sm:$0xf]
        %v6074 = vld [vmem:[%s5 + $0x17c] sm:$0xf]
        %v6075 = vld [vmem:[%s5 + $0x180] sm:$0xf]
        %v6076 = vld [vmem:[%s5 + $0x184] sm:$0xf]
        %v6077 = vld [vmem:[%s5 + $0x188] sm:$0xf]
        %v6078 = vld [vmem:[%s5 + $0x18c] sm:$0xf]
        %v6079 = vld [vmem:[%s5 + $0x190] sm:$0xf]
        %v6080 = vld [vmem:[%s5 + $0x194] sm:$0xf]
        %v6081 = vld [vmem:[%s5 + $0x198] sm:$0xf]
        %v6082 = vld [vmem:[%s5 + $0x19c] sm:$0xf]
        %v6083 = vld [vmem:[%s5 + $0x1a0] sm:$0xf]
        %v6084 = vld [vmem:[%s5 + $0x1a4] sm:$0xf]
        %v6085 = vld [vmem:[%s5 + $0x1a8] sm:$0xf]
        %v6086 = vld [vmem:[%s5 + $0x1ac] sm:$0xf]
        %v6087 = vld [vmem:[%s5 + $0x1b0] sm:$0xf]
        %v6088 = vld [vmem:[%s5 + $0x1b4] sm:$0xf]
        %v6089 = vld [vmem:[%s5 + $0x1b8] sm:$0xf]
        %v6090 = vld [vmem:[%s5 + $0x1bc] sm:$0xf]
        %v6091 = vld [vmem:[%s5 + $0x1c0] sm:$0xf]
        %v6092 = vld [vmem:[%s5 + $0x1c4] sm:$0xf]
        %v6093 = vld [vmem:[%s5 + $0x1c8] sm:$0xf]
        %v6094 = vld [vmem:[%s5 + $0x1cc] sm:$0xf]
        %v6095 = vld [vmem:[%s5 + $0x1d0] sm:$0xf]
        %v6096 = vld [vmem:[%s5 + $0x1d4] sm:$0xf]
        %v6097 = vld [vmem:[%s5 + $0x1d8] sm:$0xf]
        %v6098 = vld [vmem:[%s5 + $0x1dc] sm:$0xf]
        %v6099 = vld [vmem:[%s5 + $0x1e0] sm:$0xf]
        %v6100 = vld [vmem:[%s5 + $0x1e4] sm:$0xf]
        %v6101 = vld [vmem:[%s5 + $0x1e8] sm:$0xf]
        %v6102 = vld [vmem:[%s5 + $0x1ec] sm:$0xf]
        %v6103 = vld [vmem:[%s5 + $0x1f0] sm:$0xf]
        %v6104 = vld [vmem:[%s5 + $0x1f4] sm:$0xf]
        %v6105 = vld [vmem:[%s5 + $0x1f8] sm:$0xf]
        %v6106 = vld [vmem:[%s5 + $0x1fc] sm:$0xf]
        %v6107 = vld [vmem:[%s6] sm:$0x1]
        %v6109 = vperm.slane %v6107, 0
        %v6115 = vunpack.c.l.b16 %v5975
        %v6116 = vunpack.c.h.b16 %v5975
        %v6117 = vunpack.c.l.b16 %v5976
        %v6118 = vunpack.c.h.b16 %v5976
        %v6119 = vunpack.c.l.b16 %v5977
        %v6120 = vunpack.c.h.b16 %v5977
        %v6121 = vunpack.c.l.b16 %v5978
        %v6122 = vunpack.c.h.b16 %v5978
        %v6123 = vpack.c.b16 %v6115, %v6115
        %v6124 = vpack.c.b16 %v6116, %v6116
        %v6125 = vpack.c.b16 %v6117, %v6117
        %v6126 = vpack.c.b16 %v6118, %v6118
        %v6127 = vpack.c.b16 %v6119, %v6119
        %v6128 = vpack.c.b16 %v6120, %v6120
        %v6129 = vpack.c.b16 %v6121, %v6121
        %v6130 = vpack.c.b16 %v6122, %v6122
        %v6267 = vunpack.c.l.b16 %v5979
        %v6268 = vunpack.c.l.b16 %v5980
        %v6269 = vunpack.c.l.b16 %v5981
        %v6270 = vunpack.c.l.b16 %v5982
        %v6271 = vunpack.c.l.b16 %v5983
        %v6272 = vunpack.c.l.b16 %v5984
        %v6273 = vunpack.c.l.b16 %v5985
        %v6274 = vunpack.c.l.b16 %v5986
        %v6275 = vunpack.c.l.b16 %v5987
        %v6276 = vunpack.c.l.b16 %v5988
        %v6277 = vunpack.c.l.b16 %v5989
        %v6278 = vunpack.c.l.b16 %v5990
        %v6279 = vunpack.c.l.b16 %v5991
        %v6280 = vunpack.c.l.b16 %v5992
        %v6281 = vunpack.c.l.b16 %v5993
        %v6282 = vunpack.c.l.b16 %v5994
        %v6283 = vunpack.c.l.b16 %v5995
        %v6284 = vunpack.c.l.b16 %v5996
        %v6285 = vunpack.c.l.b16 %v5997
        %v6286 = vunpack.c.l.b16 %v5998
        %v6287 = vunpack.c.l.b16 %v5999
        %v6288 = vunpack.c.l.b16 %v6000
        %v6289 = vunpack.c.l.b16 %v6001
        %v6290 = vunpack.c.l.b16 %v6002
        %v6291 = vunpack.c.l.b16 %v6003
        %v6292 = vunpack.c.l.b16 %v6004
        %v6293 = vunpack.c.l.b16 %v6005
        %v6294 = vunpack.c.l.b16 %v6006
        %v6295 = vunpack.c.l.b16 %v6007
        %v6296 = vunpack.c.l.b16 %v6008
        %v6297 = vunpack.c.l.b16 %v6009
        %v6298 = vunpack.c.l.b16 %v6010
        %v6299 = vunpack.c.l.b16 %v6011
        %v6300 = vunpack.c.l.b16 %v6012
        %v6301 = vunpack.c.l.b16 %v6013
        %v6302 = vunpack.c.l.b16 %v6014
        %v6303 = vunpack.c.l.b16 %v6015
        %v6304 = vunpack.c.l.b16 %v6016
        %v6305 = vunpack.c.l.b16 %v6017
        %v6306 = vunpack.c.l.b16 %v6018
        %v6307 = vunpack.c.l.b16 %v6019
        %v6308 = vunpack.c.l.b16 %v6020
        %v6309 = vunpack.c.l.b16 %v6021
        %v6310 = vunpack.c.l.b16 %v6022
        %v6311 = vunpack.c.l.b16 %v6023
        %v6312 = vunpack.c.l.b16 %v6024
        %v6313 = vunpack.c.l.b16 %v6025
        %v6314 = vunpack.c.l.b16 %v6026
        %v6315 = vunpack.c.l.b16 %v6027
        %v6316 = vunpack.c.l.b16 %v6028
        %v6317 = vunpack.c.l.b16 %v6029
        %v6318 = vunpack.c.l.b16 %v6030
        %v6319 = vunpack.c.l.b16 %v6031
        %v6320 = vunpack.c.l.b16 %v6032
        %v6321 = vunpack.c.l.b16 %v6033
        %v6322 = vunpack.c.l.b16 %v6034
        %v6323 = vunpack.c.l.b16 %v6035
        %v6324 = vunpack.c.l.b16 %v6036
        %v6325 = vunpack.c.l.b16 %v6037
        %v6326 = vunpack.c.l.b16 %v6038
        %v6327 = vunpack.c.l.b16 %v6039
        %v6328 = vunpack.c.l.b16 %v6040
        %v6329 = vunpack.c.l.b16 %v6041
        %v6330 = vunpack.c.l.b16 %v6042
        %v6331 = vunpack.c.l.b16 %v6043
        %v6332 = vunpack.c.l.b16 %v6044
        %v6333 = vunpack.c.l.b16 %v6045
        %v6334 = vunpack.c.l.b16 %v6046
        %v6335 = vunpack.c.l.b16 %v6047
        %v6336 = vunpack.c.l.b16 %v6048
        %v6337 = vunpack.c.l.b16 %v6049
        %v6338 = vunpack.c.l.b16 %v6050
        %v6339 = vunpack.c.l.b16 %v6051
        %v6340 = vunpack.c.l.b16 %v6052
        %v6341 = vunpack.c.l.b16 %v6053
        %v6342 = vunpack.c.l.b16 %v6054
        %v6343 = vunpack.c.l.b16 %v6055
        %v6344 = vunpack.c.l.b16 %v6056
        %v6345 = vunpack.c.l.b16 %v6057
        %v6346 = vunpack.c.l.b16 %v6058
        %v6347 = vunpack.c.l.b16 %v6059
        %v6348 = vunpack.c.l.b16 %v6060
        %v6349 = vunpack.c.l.b16 %v6061
        %v6350 = vunpack.c.l.b16 %v6062
        %v6351 = vunpack.c.l.b16 %v6063
        %v6352 = vunpack.c.l.b16 %v6064
        %v6353 = vunpack.c.l.b16 %v6065
        %v6354 = vunpack.c.l.b16 %v6066
        %v6355 = vunpack.c.l.b16 %v6067
        %v6356 = vunpack.c.l.b16 %v6068
        %v6357 = vunpack.c.l.b16 %v6069
        %v6358 = vunpack.c.l.b16 %v6070
        %v6359 = vunpack.c.l.b16 %v6071
        %v6360 = vunpack.c.l.b16 %v6072
        %v6361 = vunpack.c.l.b16 %v6073
        %v6362 = vunpack.c.l.b16 %v6074
        %v6363 = vunpack.c.l.b16 %v6075
        %v6364 = vunpack.c.l.b16 %v6076
        %v6365 = vunpack.c.l.b16 %v6077
        %v6366 = vunpack.c.l.b16 %v6078
        %v6367 = vunpack.c.l.b16 %v6079
        %v6368 = vunpack.c.l.b16 %v6080
        %v6369 = vunpack.c.l.b16 %v6081
        %v6370 = vunpack.c.l.b16 %v6082
        %v6371 = vunpack.c.l.b16 %v6083
        %v6372 = vunpack.c.l.b16 %v6084
        %v6373 = vunpack.c.l.b16 %v6085
        %v6374 = vunpack.c.l.b16 %v6086
        %v6375 = vunpack.c.l.b16 %v6087
        %v6376 = vunpack.c.l.b16 %v6088
        %v6377 = vunpack.c.l.b16 %v6089
        %v6378 = vunpack.c.l.b16 %v6090
        %v6379 = vunpack.c.l.b16 %v6091
        %v6380 = vunpack.c.l.b16 %v6092
        %v6381 = vunpack.c.l.b16 %v6093
        %v6382 = vunpack.c.l.b16 %v6094
        %v6383 = vunpack.c.l.b16 %v6095
        %v6384 = vunpack.c.l.b16 %v6096
        %v6385 = vunpack.c.l.b16 %v6097
        %v6386 = vunpack.c.l.b16 %v6098
        %v6387 = vunpack.c.l.b16 %v6099
        %v6388 = vunpack.c.l.b16 %v6100
        %v6389 = vunpack.c.l.b16 %v6101
        %v6390 = vunpack.c.l.b16 %v6102
        %v6391 = vunpack.c.l.b16 %v6103
        %v6392 = vunpack.c.l.b16 %v6104
        %v6393 = vunpack.c.l.b16 %v6105
        %v6394 = vunpack.c.l.b16 %v6106
        %v6395 = vpack.c.b16 %v6268, %v6267
        %v6396 = vpack.c.b16 %v6270, %v6269
        %v6397 = vpack.c.b16 %v6272, %v6271
        %v6398 = vpack.c.b16 %v6274, %v6273
        %v6399 = vpack.c.b16 %v6276, %v6275
        %v6400 = vpack.c.b16 %v6278, %v6277
        %v6401 = vpack.c.b16 %v6280, %v6279
        %v6402 = vpack.c.b16 %v6282, %v6281
        %v6403 = vpack.c.b16 %v6284, %v6283
        %v6404 = vpack.c.b16 %v6286, %v6285
        %v6405 = vpack.c.b16 %v6288, %v6287
        %v6406 = vpack.c.b16 %v6290, %v6289
        %v6407 = vpack.c.b16 %v6292, %v6291
        %v6408 = vpack.c.b16 %v6294, %v6293
        %v6409 = vpack.c.b16 %v6296, %v6295
        %v6410 = vpack.c.b16 %v6298, %v6297
        %v6411 = vpack.c.b16 %v6300, %v6299
        %v6412 = vpack.c.b16 %v6302, %v6301
        %v6413 = vpack.c.b16 %v6304, %v6303
        %v6414 = vpack.c.b16 %v6306, %v6305
        %v6415 = vpack.c.b16 %v6308, %v6307
        %v6416 = vpack.c.b16 %v6310, %v6309
        %v6417 = vpack.c.b16 %v6312, %v6311
        %v6418 = vpack.c.b16 %v6314, %v6313
        %v6419 = vpack.c.b16 %v6316, %v6315
        %v6420 = vpack.c.b16 %v6318, %v6317
        %v6421 = vpack.c.b16 %v6320, %v6319
        %v6422 = vpack.c.b16 %v6322, %v6321
        %v6423 = vpack.c.b16 %v6324, %v6323
        %v6424 = vpack.c.b16 %v6326, %v6325
        %v6425 = vpack.c.b16 %v6328, %v6327
        %v6426 = vpack.c.b16 %v6330, %v6329
        %v6427 = vpack.c.b16 %v6332, %v6331
        %v6428 = vpack.c.b16 %v6334, %v6333
        %v6429 = vpack.c.b16 %v6336, %v6335
        %v6430 = vpack.c.b16 %v6338, %v6337
        %v6431 = vpack.c.b16 %v6340, %v6339
        %v6432 = vpack.c.b16 %v6342, %v6341
        %v6433 = vpack.c.b16 %v6344, %v6343
        %v6434 = vpack.c.b16 %v6346, %v6345
        %v6435 = vpack.c.b16 %v6348, %v6347
        %v6436 = vpack.c.b16 %v6350, %v6349
        %v6437 = vpack.c.b16 %v6352, %v6351
        %v6438 = vpack.c.b16 %v6354, %v6353
        %v6439 = vpack.c.b16 %v6356, %v6355
        %v6440 = vpack.c.b16 %v6358, %v6357
        %v6441 = vpack.c.b16 %v6360, %v6359
        %v6442 = vpack.c.b16 %v6362, %v6361
        %v6443 = vpack.c.b16 %v6364, %v6363
        %v6444 = vpack.c.b16 %v6366, %v6365
        %v6445 = vpack.c.b16 %v6368, %v6367
        %v6446 = vpack.c.b16 %v6370, %v6369
        %v6447 = vpack.c.b16 %v6372, %v6371
        %v6448 = vpack.c.b16 %v6374, %v6373
        %v6449 = vpack.c.b16 %v6376, %v6375
        %v6450 = vpack.c.b16 %v6378, %v6377
        %v6451 = vpack.c.b16 %v6380, %v6379
        %v6452 = vpack.c.b16 %v6382, %v6381
        %v6453 = vpack.c.b16 %v6384, %v6383
        %v6454 = vpack.c.b16 %v6386, %v6385
        %v6455 = vpack.c.b16 %v6388, %v6387
        %v6456 = vpack.c.b16 %v6390, %v6389
        %v6457 = vpack.c.b16 %v6392, %v6391
        %v6458 = vpack.c.b16 %v6394, %v6393
        %6523 = vmatpush.bf16.msra.mxu0 %v6402
        %6524 = vmatpush.bf16.msra.mxu0 %v6401
        %6525 = vmatpush.bf16.msra.mxu0 %v6400
        %6526 = vmatpush.bf16.msra.mxu0 %v6399
        %6527 = vmatpush.bf16.msra.mxu0 %v6398
        %6528 = vmatpush.bf16.msra.mxu0 %v6397
        %6529 = vmatpush.bf16.msra.mxu0 %v6396
        %6530 = vmatpush.bf16.msra.mxu0 %v6395
        %6531 = vmatmul.bf16.gmra.mxu0 %v6123
        %v6532 = vpop.f32.mrf.mxu0
        %v6533 = vadd.f32 %v6109, %v6532
        %v6534 = vpop.f32.mrf.mxu0
        %6535 = vdwg.mxu0
        %6536 = vmatpush.bf16.msra.mxu0 %v6410
        %6537 = vmatpush.bf16.msra.mxu0 %v6409
        %6538 = vmatpush.bf16.msra.mxu0 %v6408
        %6539 = vmatpush.bf16.msra.mxu0 %v6407
        %6540 = vmatpush.bf16.msra.mxu0 %v6406
        %6541 = vmatpush.bf16.msra.mxu0 %v6405
        %6542 = vmatpush.bf16.msra.mxu0 %v6404
        %6543 = vmatpush.bf16.msra.mxu0 %v6403
        %6544 = vmatmul.bf16.gmra.mxu0 %v6124
        %v6545 = vpop.f32.mrf.mxu0
        %v6546 = vadd.f32 %v6533, %v6545
        %v6547 = vpop.f32.mrf.mxu0
        %6548 = vdwg.mxu0
        %6549 = vmatpush.bf16.msra.mxu0 %v6418
        %6550 = vmatpush.bf16.msra.mxu0 %v6417
        %6551 = vmatpush.bf16.msra.mxu0 %v6416
        %6552 = vmatpush.bf16.msra.mxu0 %v6415
        %6553 = vmatpush.bf16.msra.mxu0 %v6414
        %6554 = vmatpush.bf16.msra.mxu0 %v6413
        %6555 = vmatpush.bf16.msra.mxu0 %v6412
        %6556 = vmatpush.bf16.msra.mxu0 %v6411
        %6557 = vmatmul.bf16.gmra.mxu0 %v6125
        %v6558 = vpop.f32.mrf.mxu0
        %v6559 = vadd.f32 %v6546, %v6558
        %v6560 = vpop.f32.mrf.mxu0
        %6561 = vdwg.mxu0
        %6562 = vmatpush.bf16.msra.mxu0 %v6426
        %6563 = vmatpush.bf16.msra.mxu0 %v6425
        %6564 = vmatpush.bf16.msra.mxu0 %v6424
        %6565 = vmatpush.bf16.msra.mxu0 %v6423
        %6566 = vmatpush.bf16.msra.mxu0 %v6422
        %6567 = vmatpush.bf16.msra.mxu0 %v6421
        %6568 = vmatpush.bf16.msra.mxu0 %v6420
        %6569 = vmatpush.bf16.msra.mxu0 %v6419
        %6570 = vmatmul.bf16.gmra.mxu0 %v6126
        %v6571 = vpop.f32.mrf.mxu0
        %v6572 = vadd.f32 %v6559, %v6571
        %v6573 = vpop.f32.mrf.mxu0
        %6574 = vdwg.mxu0
        %6575 = vmatpush.bf16.msra.mxu0 %v6434
        %6576 = vmatpush.bf16.msra.mxu0 %v6433
        %6577 = vmatpush.bf16.msra.mxu0 %v6432
        %6578 = vmatpush.bf16.msra.mxu0 %v6431
        %6579 = vmatpush.bf16.msra.mxu0 %v6430
        %6580 = vmatpush.bf16.msra.mxu0 %v6429
        %6581 = vmatpush.bf16.msra.mxu0 %v6428
        %6582 = vmatpush.bf16.msra.mxu0 %v6427
        %6583 = vmatmul.bf16.gmra.mxu0 %v6127
        %v6584 = vpop.f32.mrf.mxu0
        %v6585 = vadd.f32 %v6572, %v6584
        %v6586 = vpop.f32.mrf.mxu0
        %6587 = vdwg.mxu0
        %6588 = vmatpush.bf16.msra.mxu0 %v6442
        %6589 = vmatpush.bf16.msra.mxu0 %v6441
        %6590 = vmatpush.bf16.msra.mxu0 %v6440
        %6591 = vmatpush.bf16.msra.mxu0 %v6439
        %6592 = vmatpush.bf16.msra.mxu0 %v6438
        %6593 = vmatpush.bf16.msra.mxu0 %v6437
        %6594 = vmatpush.bf16.msra.mxu0 %v6436
        %6595 = vmatpush.bf16.msra.mxu0 %v6435
        %6596 = vmatmul.bf16.gmra.mxu0 %v6128
        %v6597 = vpop.f32.mrf.mxu0
        %v6598 = vadd.f32 %v6585, %v6597
        %v6599 = vpop.f32.mrf.mxu0
        %6600 = vdwg.mxu0
        %6601 = vmatpush.bf16.msra.mxu0 %v6450
        %6602 = vmatpush.bf16.msra.mxu0 %v6449
        %6603 = vmatpush.bf16.msra.mxu0 %v6448
        %6604 = vmatpush.bf16.msra.mxu0 %v6447
        %6605 = vmatpush.bf16.msra.mxu0 %v6446
        %6606 = vmatpush.bf16.msra.mxu0 %v6445
        %6607 = vmatpush.bf16.msra.mxu0 %v6444
        %6608 = vmatpush.bf16.msra.mxu0 %v6443
        %6609 = vmatmul.bf16.gmra.mxu0 %v6129
        %v6610 = vpop.f32.mrf.mxu0
        %v6611 = vadd.f32 %v6598, %v6610
        %v6612 = vpop.f32.mrf.mxu0
        %6613 = vdwg.mxu0
        %6614 = vmatpush.bf16.msra.mxu0 %v6458
        %6615 = vmatpush.bf16.msra.mxu0 %v6457
        %6616 = vmatpush.bf16.msra.mxu0 %v6456
        %6617 = vmatpush.bf16.msra.mxu0 %v6455
        %6618 = vmatpush.bf16.msra.mxu0 %v6454
        %6619 = vmatpush.bf16.msra.mxu0 %v6453
        %6620 = vmatpush.bf16.msra.mxu0 %v6452
        %6621 = vmatpush.bf16.msra.mxu0 %v6451
        %6622 = vmatmul.bf16.gmra.mxu0 %v6130
        %v6623 = vpop.f32.mrf.mxu0
        %v6624 = vadd.f32 %v6611, %v6623
        %v6625 = vpop.f32.mrf.mxu0
        %6626 = vdwg.mxu0
        %v6627 = vmax.f32 %v6624, 0.0
        %v6628 = vpack.c.bf16 %v6627, %v6627
        %v6629 = vld [vmem:[%s7] sm:$0xf]
        %v6630 = vld [vmem:[%s7 + $0x4] sm:$0xf]
        %v6631 = vld [vmem:[%s7 + $0x8] sm:$0xf]
        %v6632 = vld [vmem:[%s7 + $0xc] sm:$0xf]
        %v6633 = vld [vmem:[%s7 + $0x10] sm:$0xf]
        %v6634 = vld [vmem:[%s7 + $0x14] sm:$0xf]
        %v6635 = vld [vmem:[%s7 + $0x18] sm:$0xf]
        %v6636 = vld [vmem:[%s7 + $0x1c] sm:$0xf]
        %v6637 = vld [vmem:[%s7 + $0x20] sm:$0xf]
        %v6638 = vld [vmem:[%s7 + $0x24] sm:$0xf]
        %v6639 = vld [vmem:[%s7 + $0x28] sm:$0xf]
        %v6640 = vld [vmem:[%s7 + $0x2c] sm:$0xf]
        %v6641 = vld [vmem:[%s7 + $0x30] sm:$0xf]
        %v6642 = vld [vmem:[%s7 + $0x34] sm:$0xf]
        %v6643 = vld [vmem:[%s7 + $0x38] sm:$0xf]
        %v6644 = vld [vmem:[%s7 + $0x3c] sm:$0xf]
        %v6645 = vld [vmem:[%s8] sm:$0x1]
        %v6647 = vperm.slane %v6645, 0
        %v6665 = vunpack.c.l.b16 %v6629
        %v6666 = vunpack.c.l.b16 %v6630
        %v6667 = vunpack.c.l.b16 %v6631
        %v6668 = vunpack.c.l.b16 %v6632
        %v6669 = vunpack.c.l.b16 %v6633
        %v6670 = vunpack.c.l.b16 %v6634
        %v6671 = vunpack.c.l.b16 %v6635
        %v6672 = vunpack.c.l.b16 %v6636
        %v6673 = vunpack.c.l.b16 %v6637
        %v6674 = vunpack.c.l.b16 %v6638
        %v6675 = vunpack.c.l.b16 %v6639
        %v6676 = vunpack.c.l.b16 %v6640
        %v6677 = vunpack.c.l.b16 %v6641
        %v6678 = vunpack.c.l.b16 %v6642
        %v6679 = vunpack.c.l.b16 %v6643
        %v6680 = vunpack.c.l.b16 %v6644
        %v6681 = vpack.c.b16 %v6666, %v6665
        %v6682 = vpack.c.b16 %v6668, %v6667
        %v6683 = vpack.c.b16 %v6670, %v6669
        %v6684 = vpack.c.b16 %v6672, %v6671
        %v6685 = vpack.c.b16 %v6674, %v6673
        %v6686 = vpack.c.b16 %v6676, %v6675
        %v6687 = vpack.c.b16 %v6678, %v6677
        %v6688 = vpack.c.b16 %v6680, %v6679
        %6697 = vmatpush.bf16.msra.mxu0 %v6688
        %6698 = vmatpush.bf16.msra.mxu0 %v6687
        %6699 = vmatpush.bf16.msra.mxu0 %v6686
        %6700 = vmatpush.bf16.msra.mxu0 %v6685
        %6701 = vmatpush.bf16.msra.mxu0 %v6684
        %6702 = vmatpush.bf16.msra.mxu0 %v6683
        %6703 = vmatpush.bf16.msra.mxu0 %v6682
        %6704 = vmatpush.bf16.msra.mxu0 %v6681
        %6705 = vmatmul.bf16.gmra.mxu0 %v6628
        %v6706 = vpop.f32.mrf.mxu0
        %v6707 = vadd.f32 %v6647, %v6706
        %v6708 = vpop.f32.mrf.mxu0
        %6709 = vdwg.mxu0
        %6710 = vst [vmem:[%s325] sm:$0xff] %v6707
        %s6711 = sand.u32 %s225, 1
        %s6712 = scalar_lea.sflag [#allocation6], %s6711
        %s6713 = sand.u32 %s225, 1
        %s6714 = smul.addr %s6713, 8
        %s6715 = scalar_lea.vmem [#allocation5], %s6714
        // Predicated region
        $region57: #{forward.1} parent=55 // pred_check
          %p6716 = pneg %p235
        $region58: #{forward.1} parent=55 // pred_check_branch
          %6718 = sbr.rel (%p6716) target = $region60
        $region59: #{forward.1} parent=55 // pred_region
          %6720 = vsyncadd %s6712, 0
          %s6721 = smul.addr %s23, 8
          %s6722 = scalar_lea.hbm %s9, %s6721
          %s6724 = sshll.u32 %s6715, 4
          %s6725 = int_to_ptr.vmem [resolvable:$true] %s6724
          %s6726 = sshll.u32 %s6722, 4
          %s6727 = int_to_ptr.hbm [resolvable:$true] %s6726
          %6729 = dma.vmem_to_hbm [thread:$0]  %s6725, 128, %s6727, %s6712
        $region60: #{forward.1} parent=55 // pred_fallthru
          _
      $region56: #{forward.1} parent=5 // pred_fallthru
        _
      %p6730 = scmp.le.s32.totalorder 2, %s18
      // Predicated region
      $region61: #{forward.1} parent=5 // pred_check
        %p6731 = pneg %p6730
      $region62: #{forward.1} parent=5 // pred_check_branch
        %6733 = sbr.rel (%p6731) target = $region64
      $region63: #{forward.1} parent=5 // pred_region
        %s6734 = ssub.s32 %s18, 2
        // Predicated region
        $region65: #{forward.1} parent=63 // pred_check
          %p6735 = pneg %p241
        $region66: #{forward.1} parent=63 // pred_check_branch
          %6737 = sbr.rel (%p6735) target = $region68
        $region67: #{forward.1} parent=63 // pred_region
          %s6738 = sand.u32 %s226, 1
          %s6739 = scalar_lea.sflag [#allocation6], %s6738
          %s6740 = sand.u32 %s226, 1
          %s6741 = smul.addr %s6740, 8
          %s6742 = scalar_lea.vmem [#allocation5], %s6741
          %6744 = dma.done %s6739, 128
        $region68: #{forward.1} parent=63 // pred_fallthru
          _
      $region64: #{forward.1} parent=5 // pred_fallthru
        _
    $region6: #{forward.1} parent=1 // loop_footer
      %s22 = sadd.s32 1, %s18
    $region7: #{forward.1} parent=1 // loop_footer_branch
      %17 = sbr.rel target = $region3
    $region8: #{forward.1} parent=1 // loop_exit
      _
    %6745 = vsyncpa [#allocation6], 1
    %s6746 = scalar_lea.sflag [#allocation6], 1
    %6747 = vsyncpa %s6746, 1

</llo_original>
